<compile_context>
chip_gen: v7x
topology: tpu7x:2x2x1
jax: 0.10.0
libtpu: 0.0.40
codegen_flags: <defaults>
</compile_context>

<pallas_src>
import functools

import jax
import jax.numpy as jnp
import numpy as np
from jax import lax
from jax.experimental import pallas as pl
from jax.experimental.pallas import tpu as pltpu


# ---------------------------------------------------------------------------
# Fused kernel: conv1 + BN1 + LeakyReLU + conv2 + BN2 + residual (nb images)
# ---------------------------------------------------------------------------
def _make_fused_kernel(nb, H, W, K, Cp, negative_slope):
    HW = H * W
    M = nb * HW
    pad = K // 2
    Hp, Wp = H + 2 * pad, W + 2 * pad

    def kernel(xh_ref, xc_ref, w1_ref, w2_ref, aff_ref, o_ref, h_scr):
        aff = aff_ref[...]                                  # (4, Cp) f32
        scale1, bias1 = aff[0:1, :], aff[1:2, :]
        scale2, bias2 = aff[2:3, :], aff[3:4, :]

        # ---- conv1 (+ folded BN1) + LeakyReLU(0.2) --------------------------
        # K*K accumulated depth-Cp dots taken directly from the halo'd input
        # ref: no im2col concat, no large VMEM temporaries.
        acc1 = jnp.zeros((M, Cp), jnp.float32)
        for t in range(K * K):
            ky, kx = divmod(t, K)
            tap = xh_ref[:, ky:ky + H, kx:kx + W, :].reshape(M, Cp)
            acc1 = acc1 + jnp.dot(tap, w1_ref[t],
                                  preferred_element_type=jnp.float32)
        y1 = acc1 * scale1 + bias1
        y1 = jnp.where(y1 >= 0, y1, negative_slope * y1)

        # ---- stage zero-padded h in VMEM scratch (never touches HBM) --------
        # Zero only the 1-pixel halo ring (the interior is fully overwritten).
        h_scr[:, :pad, :, :] = jnp.zeros((nb, pad, Wp, Cp), jnp.float32)
        h_scr[:, pad + H:, :, :] = jnp.zeros((nb, pad, Wp, Cp), jnp.float32)
        h_scr[:, :, :pad, :] = jnp.zeros((nb, Hp, pad, Cp), jnp.float32)
        h_scr[:, :, pad + W:, :] = jnp.zeros((nb, Hp, pad, Cp), jnp.float32)
        h_scr[:, pad:pad + H, pad:pad + W, :] = y1.reshape(nb, H, W, Cp)

        # ---- conv2 (+ folded BN2) + residual ---------------------------------
        acc2 = jnp.zeros((M, Cp), jnp.float32)
        for t in range(K * K):
            ky, kx = divmod(t, K)
            tap = h_scr[:, ky:ky + H, kx:kx + W, :].reshape(M, Cp)
            acc2 = acc2 + jnp.dot(tap, w2_ref[t],
                                  preferred_element_type=jnp.float32)
        res = xc_ref[...].reshape(M, Cp)          # exact f32 skip connection
        o_ref[...] = (acc2 * scale2 + bias2 + res).reshape(nb, H, W, Cp)

    return kernel


# ---------------------------------------------------------------------------
# ResidualBlock forward (wrapper glue in plain JAX)
# ---------------------------------------------------------------------------
def residual_block_forward(x_nchw, params, *, kernel_size=3, n_grid_blocks=None):
    K = kernel_size
    pad = K // 2
    x = jnp.transpose(x_nchw, (0, 2, 3, 1)).astype(jnp.float32)   # NCHW -> NHWC
    N, H, W, C = x.shape
    Cp = max(128, ((C + 127) // 128) * 128)                       # lane-dense pad
    Hp, Wp = H + 2 * pad, W + 2 * pad

    # Grid sizing: keep >= 2 parallel blocks so both v7x TensorCores get work,
    # while folding multiple images per step into the matmul M dimension.
    # On single-TC chips (v5e/v6e), pass n_grid_blocks=1 to collapse all steps.
    if n_grid_blocks is None:
        n_grid_blocks = 2 if (N >= 2 and N % 2 == 0) else N
    assert N % n_grid_blocks == 0
    nb = N // n_grid_blocks

    # Two views of x: halo'd (conv taps) and aligned center (exact f32 residual).
    x_halo = jnp.pad(x, ((0, 0), (pad, pad), (pad, pad), (0, Cp - C)))
    x_center = jnp.pad(x, ((0, 0), (0, 0), (0, 0), (0, Cp - C)))

    def pack_w(w_oihw):
        # (Cout, Cin, K, K) -> (K, K, Cin, Cout) -> pad channels -> (K*K, Cp, Cp)
        w = jnp.transpose(w_oihw, (2, 3, 1, 0))
        w = jnp.pad(w, ((0, 0), (0, 0), (0, Cp - C), (0, Cp - C)))
        return w.reshape(K * K, Cp, Cp).astype(jnp.float32)

    w1p, w2p = pack_w(params["w1"]), pack_w(params["w2"])

    def fold_bn(conv_b, gamma, beta, mean, var, eps=1e-5):
        s = gamma / jnp.sqrt(var + eps)
        return s, beta + s * (conv_b - mean)

    s1, t1 = fold_bn(params["b1"], params["gamma1"], params["beta1"],
                     params["mean1"], params["var1"])
    s2, t2 = fold_bn(params["b2"], params["gamma2"], params["beta2"],
                     params["mean2"], params["var2"])
    aff = jnp.stack([s1, t1, s2, t2], axis=0).astype(jnp.float32)   # (4, C)
    aff = jnp.pad(aff, ((0, 0), (0, Cp - C)))

    kernel = _make_fused_kernel(nb, H, W, K, Cp, 0.2)

    # Real math (unpadded channels) and real HBM bytes.
    flops = 2 * (2 * N * H * W * (K * K * C) * C)                 # two convs
    bytes_accessed = int(x_halo.size * 4 + x_center.size * 4 + w1p.size * 4
                         + w2p.size * 4 + aff.size * 4 + N * H * W * Cp * 4)

    out_p = pl.pallas_call(
        kernel,
        out_shape=jax.ShapeDtypeStruct((N, H, W, Cp), jnp.float32),
        grid_spec=pltpu.PrefetchScalarGridSpec(
            num_scalar_prefetch=0,
            grid=(n_grid_blocks,),
            in_specs=[
                pl.BlockSpec((nb, Hp, Wp, Cp), lambda n: (n, 0, 0, 0)),
                pl.BlockSpec((nb, H, W, Cp), lambda n: (n, 0, 0, 0)),
                pl.BlockSpec((K * K, Cp, Cp), lambda n: (0, 0, 0)),
                pl.BlockSpec((K * K, Cp, Cp), lambda n: (0, 0, 0)),
                pl.BlockSpec((4, Cp), lambda n: (0, 0)),
            ],
            out_specs=pl.BlockSpec((nb, H, W, Cp), lambda n: (n, 0, 0, 0)),
            scratch_shapes=[pltpu.VMEM((nb, Hp, Wp, Cp), jnp.float32)],
        ),
        compiler_params=pltpu.CompilerParams(
            dimension_semantics=("parallel",)),
        cost_estimate=pl.CostEstimate(
            flops=flops, transcendentals=0, bytes_accessed=bytes_accessed),
    )(x_halo, x_center, w1p, w2p, aff)

    out = out_p[..., :C]                                          # drop channel pad
    return jnp.transpose(out, (0, 3, 1, 2)).astype(x_nchw.dtype)  # back to NCHW


# ---------------------------------------------------------------------------
# Pure-JAX reference (for correctness check)
# ---------------------------------------------------------------------------
def residual_block_reference(x_nchw, params, *, kernel_size=3):
    eps = 1e-5

    def conv(x, w, b):
        y = lax.conv_general_dilated(
            x, w, window_strides=(1, 1), padding="SAME",
            dimension_numbers=("NCHW", "OIHW", "NCHW"))
        return y + b.reshape(1, -1, 1, 1)

    def bn(x, gamma, beta, mean, var):
        s = gamma / jnp.sqrt(var + eps)
        return x * s.reshape(1, -1, 1, 1) + (beta - mean * s).reshape(1, -1, 1, 1)

    h = conv(x_nchw, params["w1"], params["b1"])
    h = bn(h, params["gamma1"], params["beta1"], params["mean1"], params["var1"])
    h = jnp.where(h >= 0, h, 0.2 * h)
    h = conv(h, params["w2"], params["b2"])
    h = bn(h, params["gamma2"], params["beta2"], params["mean2"], params["var2"])
    return x_nchw + h


# ---------------------------------------------------------------------------
# main
# ---------------------------------------------------------------------------
if __name__ == "__main__":
    key = jax.random.PRNGKey(0)
    N, C, Hs, Ws, K = 2, 4, 16, 16, 3

    keys = jax.random.split(key, 13)
    params = {
        "w1": jax.random.normal(keys[0], (C, C, K, K), jnp.float32) * 0.1,
        "b1": jax.random.normal(keys[1], (C,), jnp.float32) * 0.1,
        "gamma1": 1.0 + 0.1 * jax.random.normal(keys[2], (C,), jnp.float32),
        "beta1": 0.1 * jax.random.normal(keys[3], (C,), jnp.float32),
        "mean1": 0.1 * jax.random.normal(keys[4], (C,), jnp.float32),
        "var1": 1.0 + 0.1 * jnp.abs(jax.random.normal(keys[5], (C,), jnp.float32)),
        "w2": jax.random.normal(keys[6], (C, C, K, K), jnp.float32) * 0.1,
        "b2": jax.random.normal(keys[7], (C,), jnp.float32) * 0.1,
        "gamma2": 1.0 + 0.1 * jax.random.normal(keys[8], (C,), jnp.float32),
        "beta2": 0.1 * jax.random.normal(keys[9], (C,), jnp.float32),
        "mean2": 0.1 * jax.random.normal(keys[10], (C,), jnp.float32),
        "var2": 1.0 + 0.1 * jnp.abs(jax.random.normal(keys[11], (C,), jnp.float32)),
    }
    x = jax.random.normal(keys[12], (N, C, Hs, Ws), jnp.float32)

    fwd = functools.partial(residual_block_forward, kernel_size=K)
    out = jax.jit(fwd)(x, params)
    out = jax.block_until_ready(out)

    ref = residual_block_reference(x, params, kernel_size=K)
    # f32 residual/output; conv path runs at MXU default matmul precision.
    np.testing.assert_allclose(np.asarray(out), np.asarray(ref),
                               rtol=2e-2, atol=2e-2)

    print("KERNEL_OK")
</pallas_src>

<mosaic_0001>
module attributes {stable_mosaic.version = 11 : i64} {
  func.func @kernel(%arg0: i32, %arg1: memref<1x18x18x128xf32, #tpu.memory_space<vmem>>, %arg2: memref<1x16x16x128xf32, #tpu.memory_space<vmem>>, %arg3: memref<9x128x128xf32, #tpu.memory_space<vmem>>, %arg4: memref<9x128x128xf32, #tpu.memory_space<vmem>>, %arg5: memref<4x128xf32, #tpu.memory_space<vmem>>, %arg6: memref<1x16x16x128xf32, #tpu.memory_space<vmem>>, %arg7: memref<1x18x18x128xf32, #tpu.memory_space<vmem>>) attributes {dimension_semantics = [#tpu.dimension_semantics<parallel>], iteration_bounds = array<i64: 2>, scalar_prefetch = 0 : i64, scratch_operands = 1 : i64, tpu.core_type = #tpu.core_type<tc>, window_params = [{transform_indices = @transform_0, window_bounds = array<i64: 1, 18, 18, 128>}, {transform_indices = @transform_1, window_bounds = array<i64: 1, 16, 16, 128>}, {pipeline_mode = #tpu.pipeline_mode<synchronous>, transform_indices = @transform_2, window_bounds = array<i64: 9, 128, 128>}, {pipeline_mode = #tpu.pipeline_mode<synchronous>, transform_indices = @transform_3, window_bounds = array<i64: 9, 128, 128>}, {pipeline_mode = #tpu.pipeline_mode<synchronous>, transform_indices = @transform_4, window_bounds = array<i64: 4, 128>}, {transform_indices = @transform_5, window_bounds = array<i64: 1, 16, 16, 128>}]} {
    %c0 = arith.constant 0 : index
    %c0_0 = arith.constant 0 : index
    %0 = vector.load %arg5[%c0, %c0_0] : memref<4x128xf32, #tpu.memory_space<vmem>>, vector<4x128xf32>
    %1 = vector.extract_strided_slice %0 {offsets = [0, 0], sizes = [1, 128], strides = [1, 1]} : vector<4x128xf32> to vector<1x128xf32>
    %2 = vector.extract_strided_slice %0 {offsets = [1, 0], sizes = [1, 128], strides = [1, 1]} : vector<4x128xf32> to vector<1x128xf32>
    %3 = vector.extract_strided_slice %0 {offsets = [2, 0], sizes = [1, 128], strides = [1, 1]} : vector<4x128xf32> to vector<1x128xf32>
    %4 = vector.extract_strided_slice %0 {offsets = [3, 0], sizes = [1, 128], strides = [1, 1]} : vector<4x128xf32> to vector<1x128xf32>
    %cst = arith.constant 0.000000e+00 : f32
    %5 = vector.broadcast %cst : f32 to vector<256x128xf32>
    %c0_1 = arith.constant 0 : index
    %c0_2 = arith.constant 0 : index
    %c0_3 = arith.constant 0 : index
    %c0_4 = arith.constant 0 : index
    %6 = vector.load %arg1[%c0_1, %c0_2, %c0_3, %c0_4] : memref<1x18x18x128xf32, #tpu.memory_space<vmem>>, vector<1x16x16x128xf32>
    %7 = vector.shape_cast %6 : vector<1x16x16x128xf32> to vector<256x128xf32>
    %c0_5 = arith.constant 0 : index
    %c0_6 = arith.constant 0 : index
    %c0_7 = arith.constant 0 : index
    %8 = vector.load %arg3[%c0_5, %c0_6, %c0_7] : memref<9x128x128xf32, #tpu.memory_space<vmem>>, vector<1x128x128xf32>
    %9 = vector.shape_cast %8 : vector<1x128x128xf32> to vector<128x128xf32>
    %cst_8 = arith.constant dense<0.000000e+00> : vector<256x128xf32>
    %10 = tpu.matmul %7, %9, %cst_8 {dimension_numbers = #tpu.dot_dimension_numbers<[1], [0], [0], [1], [0, 0, 1, 1], [], []>} : vector<256x128xf32>, vector<128x128xf32>, vector<256x128xf32> -> vector<256x128xf32>
    %11 = arith.addf %5, %10 : vector<256x128xf32>
    %c0_9 = arith.constant 0 : index
    %c0_10 = arith.constant 0 : index
    %c1 = arith.constant 1 : index
    %c0_11 = arith.constant 0 : index
    %12 = vector.load %arg1[%c0_9, %c0_10, %c1, %c0_11] : memref<1x18x18x128xf32, #tpu.memory_space<vmem>>, vector<1x16x16x128xf32>
    %13 = vector.shape_cast %12 : vector<1x16x16x128xf32> to vector<256x128xf32>
    %c1_12 = arith.constant 1 : index
    %c0_13 = arith.constant 0 : index
    %c0_14 = arith.constant 0 : index
    %14 = vector.load %arg3[%c1_12, %c0_13, %c0_14] : memref<9x128x128xf32, #tpu.memory_space<vmem>>, vector<1x128x128xf32>
    %15 = vector.shape_cast %14 : vector<1x128x128xf32> to vector<128x128xf32>
    %cst_15 = arith.constant dense<0.000000e+00> : vector<256x128xf32>
    %16 = tpu.matmul %13, %15, %cst_15 {dimension_numbers = #tpu.dot_dimension_numbers<[1], [0], [0], [1], [0, 0, 1, 1], [], []>} : vector<256x128xf32>, vector<128x128xf32>, vector<256x128xf32> -> vector<256x128xf32>
    %17 = arith.addf %11, %16 : vector<256x128xf32>
    %c0_16 = arith.constant 0 : index
    %c0_17 = arith.constant 0 : index
    %c2 = arith.constant 2 : index
    %c0_18 = arith.constant 0 : index
    %18 = vector.load %arg1[%c0_16, %c0_17, %c2, %c0_18] : memref<1x18x18x128xf32, #tpu.memory_space<vmem>>, vector<1x16x16x128xf32>
    %19 = vector.shape_cast %18 : vector<1x16x16x128xf32> to vector<256x128xf32>
    %c2_19 = arith.constant 2 : index
    %c0_20 = arith.constant 0 : index
    %c0_21 = arith.constant 0 : index
    %20 = vector.load %arg3[%c2_19, %c0_20, %c0_21] : memref<9x128x128xf32, #tpu.memory_space<vmem>>, vector<1x128x128xf32>
    %21 = vector.shape_cast %20 : vector<1x128x128xf32> to vector<128x128xf32>
    %cst_22 = arith.constant dense<0.000000e+00> : vector<256x128xf32>
    %22 = tpu.matmul %19, %21, %cst_22 {dimension_numbers = #tpu.dot_dimension_numbers<[1], [0], [0], [1], [0, 0, 1, 1], [], []>} : vector<256x128xf32>, vector<128x128xf32>, vector<256x128xf32> -> vector<256x128xf32>
    %23 = arith.addf %17, %22 : vector<256x128xf32>
    %c0_23 = arith.constant 0 : index
    %c1_24 = arith.constant 1 : index
    %c0_25 = arith.constant 0 : index
    %c0_26 = arith.constant 0 : index
    %24 = vector.load %arg1[%c0_23, %c1_24, %c0_25, %c0_26] : memref<1x18x18x128xf32, #tpu.memory_space<vmem>>, vector<1x16x16x128xf32>
    %25 = vector.shape_cast %24 : vector<1x16x16x128xf32> to vector<256x128xf32>
    %c3 = arith.constant 3 : index
    %c0_27 = arith.constant 0 : index
    %c0_28 = arith.constant 0 : index
    %26 = vector.load %arg3[%c3, %c0_27, %c0_28] : memref<9x128x128xf32, #tpu.memory_space<vmem>>, vector<1x128x128xf32>
    %27 = vector.shape_cast %26 : vector<1x128x128xf32> to vector<128x128xf32>
    %cst_29 = arith.constant dense<0.000000e+00> : vector<256x128xf32>
    %28 = tpu.matmul %25, %27, %cst_29 {dimension_numbers = #tpu.dot_dimension_numbers<[1], [0], [0], [1], [0, 0, 1, 1], [], []>} : vector<256x128xf32>, vector<128x128xf32>, vector<256x128xf32> -> vector<256x128xf32>
    %29 = arith.addf %23, %28 : vector<256x128xf32>
    %c0_30 = arith.constant 0 : index
    %c1_31 = arith.constant 1 : index
    %c1_32 = arith.constant 1 : index
    %c0_33 = arith.constant 0 : index
    %30 = vector.load %arg1[%c0_30, %c1_31, %c1_32, %c0_33] : memref<1x18x18x128xf32, #tpu.memory_space<vmem>>, vector<1x16x16x128xf32>
    %31 = vector.shape_cast %30 : vector<1x16x16x128xf32> to vector<256x128xf32>
    %c4 = arith.constant 4 : index
    %c0_34 = arith.constant 0 : index
    %c0_35 = arith.constant 0 : index
    %32 = vector.load %arg3[%c4, %c0_34, %c0_35] : memref<9x128x128xf32, #tpu.memory_space<vmem>>, vector<1x128x128xf32>
    %33 = vector.shape_cast %32 : vector<1x128x128xf32> to vector<128x128xf32>
    %cst_36 = arith.constant dense<0.000000e+00> : vector<256x128xf32>
    %34 = tpu.matmul %31, %33, %cst_36 {dimension_numbers = #tpu.dot_dimension_numbers<[1], [0], [0], [1], [0, 0, 1, 1], [], []>} : vector<256x128xf32>, vector<128x128xf32>, vector<256x128xf32> -> vector<256x128xf32>
    %35 = arith.addf %29, %34 : vector<256x128xf32>
    %c0_37 = arith.constant 0 : index
    %c1_38 = arith.constant 1 : index
    %c2_39 = arith.constant 2 : index
    %c0_40 = arith.constant 0 : index
    %36 = vector.load %arg1[%c0_37, %c1_38, %c2_39, %c0_40] : memref<1x18x18x128xf32, #tpu.memory_space<vmem>>, vector<1x16x16x128xf32>
    %37 = vector.shape_cast %36 : vector<1x16x16x128xf32> to vector<256x128xf32>
    %c5 = arith.constant 5 : index
    %c0_41 = arith.constant 0 : index
    %c0_42 = arith.constant 0 : index
    %38 = vector.load %arg3[%c5, %c0_41, %c0_42] : memref<9x128x128xf32, #tpu.memory_space<vmem>>, vector<1x128x128xf32>
    %39 = vector.shape_cast %38 : vector<1x128x128xf32> to vector<128x128xf32>
    %cst_43 = arith.constant dense<0.000000e+00> : vector<256x128xf32>
    %40 = tpu.matmul %37, %39, %cst_43 {dimension_numbers = #tpu.dot_dimension_numbers<[1], [0], [0], [1], [0, 0, 1, 1], [], []>} : vector<256x128xf32>, vector<128x128xf32>, vector<256x128xf32> -> vector<256x128xf32>
    %41 = arith.addf %35, %40 : vector<256x128xf32>
    %c0_44 = arith.constant 0 : index
    %c2_45 = arith.constant 2 : index
    %c0_46 = arith.constant 0 : index
    %c0_47 = arith.constant 0 : index
    %42 = vector.load %arg1[%c0_44, %c2_45, %c0_46, %c0_47] : memref<1x18x18x128xf32, #tpu.memory_space<vmem>>, vector<1x16x16x128xf32>
    %43 = vector.shape_cast %42 : vector<1x16x16x128xf32> to vector<256x128xf32>
    %c6 = arith.constant 6 : index
    %c0_48 = arith.constant 0 : index
    %c0_49 = arith.constant 0 : index
    %44 = vector.load %arg3[%c6, %c0_48, %c0_49] : memref<9x128x128xf32, #tpu.memory_space<vmem>>, vector<1x128x128xf32>
    %45 = vector.shape_cast %44 : vector<1x128x128xf32> to vector<128x128xf32>
    %cst_50 = arith.constant dense<0.000000e+00> : vector<256x128xf32>
    %46 = tpu.matmul %43, %45, %cst_50 {dimension_numbers = #tpu.dot_dimension_numbers<[1], [0], [0], [1], [0, 0, 1, 1], [], []>} : vector<256x128xf32>, vector<128x128xf32>, vector<256x128xf32> -> vector<256x128xf32>
    %47 = arith.addf %41, %46 : vector<256x128xf32>
    %c0_51 = arith.constant 0 : index
    %c2_52 = arith.constant 2 : index
    %c1_53 = arith.constant 1 : index
    %c0_54 = arith.constant 0 : index
    %48 = vector.load %arg1[%c0_51, %c2_52, %c1_53, %c0_54] : memref<1x18x18x128xf32, #tpu.memory_space<vmem>>, vector<1x16x16x128xf32>
    %49 = vector.shape_cast %48 : vector<1x16x16x128xf32> to vector<256x128xf32>
    %c7 = arith.constant 7 : index
    %c0_55 = arith.constant 0 : index
    %c0_56 = arith.constant 0 : index
    %50 = vector.load %arg3[%c7, %c0_55, %c0_56] : memref<9x128x128xf32, #tpu.memory_space<vmem>>, vector<1x128x128xf32>
    %51 = vector.shape_cast %50 : vector<1x128x128xf32> to vector<128x128xf32>
    %cst_57 = arith.constant dense<0.000000e+00> : vector<256x128xf32>
    %52 = tpu.matmul %49, %51, %cst_57 {dimension_numbers = #tpu.dot_dimension_numbers<[1], [0], [0], [1], [0, 0, 1, 1], [], []>} : vector<256x128xf32>, vector<128x128xf32>, vector<256x128xf32> -> vector<256x128xf32>
    %53 = arith.addf %47, %52 : vector<256x128xf32>
    %c0_58 = arith.constant 0 : index
    %c2_59 = arith.constant 2 : index
    %c2_60 = arith.constant 2 : index
    %c0_61 = arith.constant 0 : index
    %54 = vector.load %arg1[%c0_58, %c2_59, %c2_60, %c0_61] : memref<1x18x18x128xf32, #tpu.memory_space<vmem>>, vector<1x16x16x128xf32>
    %55 = vector.shape_cast %54 : vector<1x16x16x128xf32> to vector<256x128xf32>
    %c8 = arith.constant 8 : index
    %c0_62 = arith.constant 0 : index
    %c0_63 = arith.constant 0 : index
    %56 = vector.load %arg3[%c8, %c0_62, %c0_63] : memref<9x128x128xf32, #tpu.memory_space<vmem>>, vector<1x128x128xf32>
    %57 = vector.shape_cast %56 : vector<1x128x128xf32> to vector<128x128xf32>
    %cst_64 = arith.constant dense<0.000000e+00> : vector<256x128xf32>
    %58 = tpu.matmul %55, %57, %cst_64 {dimension_numbers = #tpu.dot_dimension_numbers<[1], [0], [0], [1], [0, 0, 1, 1], [], []>} : vector<256x128xf32>, vector<128x128xf32>, vector<256x128xf32> -> vector<256x128xf32>
    %59 = arith.addf %53, %58 : vector<256x128xf32>
    %60 = vector.broadcast %1 : vector<1x128xf32> to vector<256x128xf32>
    %61 = arith.mulf %59, %60 : vector<256x128xf32>
    %62 = vector.broadcast %2 : vector<1x128xf32> to vector<256x128xf32>
    %63 = arith.addf %61, %62 : vector<256x128xf32>
    %cst_65 = arith.constant 0.000000e+00 : f32
    %64 = vector.broadcast %cst_65 : f32 to vector<256x128xf32>
    %65 = arith.cmpf oge, %63, %64 : vector<256x128xf32>
    %cst_66 = arith.constant 2.000000e-01 : f32
    %66 = vector.broadcast %cst_66 : f32 to vector<256x128xf32>
    %67 = arith.mulf %66, %63 : vector<256x128xf32>
    %68 = arith.select %65, %63, %67 : vector<256x128xi1>, vector<256x128xf32>
    %cst_67 = arith.constant 0.000000e+00 : f32
    %69 = vector.broadcast %cst_67 : f32 to vector<1x1x18x128xf32>
    %c0_68 = arith.constant 0 : index
    %c0_69 = arith.constant 0 : index
    %c0_70 = arith.constant 0 : index
    %c0_71 = arith.constant 0 : index
    %70 = vector.load %arg7[%c0_68, %c0_69, %c0_70, %c0_71] : memref<1x18x18x128xf32, #tpu.memory_space<vmem>>, vector<1x1x18x128xf32>
    tpu.vector_store %arg7[%c0_68, %c0_69, %c0_70, %c0_71], %69 {strides = array<i32>} : memref<1x18x18x128xf32, #tpu.memory_space<vmem>>, vector<1x1x18x128xf32>,
    %cst_72 = arith.constant 0.000000e+00 : f32
    %71 = vector.broadcast %cst_72 : f32 to vector<1x1x18x128xf32>
    %c0_73 = arith.constant 0 : index
    %c17 = arith.constant 17 : index
    %c0_74 = arith.constant 0 : index
    %c0_75 = arith.constant 0 : index
    %72 = vector.load %arg7[%c0_73, %c17, %c0_74, %c0_75] : memref<1x18x18x128xf32, #tpu.memory_space<vmem>>, vector<1x1x18x128xf32>
    tpu.vector_store %arg7[%c0_73, %c17, %c0_74, %c0_75], %71 {strides = array<i32>} : memref<1x18x18x128xf32, #tpu.memory_space<vmem>>, vector<1x1x18x128xf32>,
    %cst_76 = arith.constant 0.000000e+00 : f32
    %73 = vector.broadcast %cst_76 : f32 to vector<1x18x1x128xf32>
    %c0_77 = arith.constant 0 : index
    %c0_78 = arith.constant 0 : index
    %c0_79 = arith.constant 0 : index
    %c0_80 = arith.constant 0 : index
    %74 = vector.load %arg7[%c0_77, %c0_78, %c0_79, %c0_80] : memref<1x18x18x128xf32, #tpu.memory_space<vmem>>, vector<1x18x1x128xf32>
    tpu.vector_store %arg7[%c0_77, %c0_78, %c0_79, %c0_80], %73 {strides = array<i32>} : memref<1x18x18x128xf32, #tpu.memory_space<vmem>>, vector<1x18x1x128xf32>,
    %cst_81 = arith.constant 0.000000e+00 : f32
    %75 = vector.broadcast %cst_81 : f32 to vector<1x18x1x128xf32>
    %c0_82 = arith.constant 0 : index
    %c0_83 = arith.constant 0 : index
    %c17_84 = arith.constant 17 : index
    %c0_85 = arith.constant 0 : index
    %76 = vector.load %arg7[%c0_82, %c0_83, %c17_84, %c0_85] : memref<1x18x18x128xf32, #tpu.memory_space<vmem>>, vector<1x18x1x128xf32>
    tpu.vector_store %arg7[%c0_82, %c0_83, %c17_84, %c0_85], %75 {strides = array<i32>} : memref<1x18x18x128xf32, #tpu.memory_space<vmem>>, vector<1x18x1x128xf32>,
    %77 = vector.shape_cast %68 : vector<256x128xf32> to vector<1x16x16x128xf32>
    %c0_86 = arith.constant 0 : index
    %c1_87 = arith.constant 1 : index
    %c1_88 = arith.constant 1 : index
    %c0_89 = arith.constant 0 : index
    %78 = vector.load %arg7[%c0_86, %c1_87, %c1_88, %c0_89] : memref<1x18x18x128xf32, #tpu.memory_space<vmem>>, vector<1x16x16x128xf32>
    tpu.vector_store %arg7[%c0_86, %c1_87, %c1_88, %c0_89], %77 {strides = array<i32>} : memref<1x18x18x128xf32, #tpu.memory_space<vmem>>, vector<1x16x16x128xf32>,
    %cst_90 = arith.constant 0.000000e+00 : f32
    %79 = vector.broadcast %cst_90 : f32 to vector<256x128xf32>
    %c0_91 = arith.constant 0 : index
    %c0_92 = arith.constant 0 : index
    %c0_93 = arith.constant 0 : index
    %c0_94 = arith.constant 0 : index
    %80 = vector.load %arg7[%c0_91, %c0_92, %c0_93, %c0_94] : memref<1x18x18x128xf32, #tpu.memory_space<vmem>>, vector<1x16x16x128xf32>
    %81 = vector.shape_cast %80 : vector<1x16x16x128xf32> to vector<256x128xf32>
    %c0_95 = arith.constant 0 : index
    %c0_96 = arith.constant 0 : index
    %c0_97 = arith.constant 0 : index
    %82 = vector.load %arg4[%c0_95, %c0_96, %c0_97] : memref<9x128x128xf32, #tpu.memory_space<vmem>>, vector<1x128x128xf32>
    %83 = vector.shape_cast %82 : vector<1x128x128xf32> to vector<128x128xf32>
    %cst_98 = arith.constant dense<0.000000e+00> : vector<256x128xf32>
    %84 = tpu.matmul %81, %83, %cst_98 {dimension_numbers = #tpu.dot_dimension_numbers<[1], [0], [0], [1], [0, 0, 1, 1], [], []>} : vector<256x128xf32>, vector<128x128xf32>, vector<256x128xf32> -> vector<256x128xf32>
    %85 = arith.addf %79, %84 : vector<256x128xf32>
    %c0_99 = arith.constant 0 : index
    %c0_100 = arith.constant 0 : index
    %c1_101 = arith.constant 1 : index
    %c0_102 = arith.constant 0 : index
    %86 = vector.load %arg7[%c0_99, %c0_100, %c1_101, %c0_102] : memref<1x18x18x128xf32, #tpu.memory_space<vmem>>, vector<1x16x16x128xf32>
    %87 = vector.shape_cast %86 : vector<1x16x16x128xf32> to vector<256x128xf32>
    %c1_103 = arith.constant 1 : index
    %c0_104 = arith.constant 0 : index
    %c0_105 = arith.constant 0 : index
    %88 = vector.load %arg4[%c1_103, %c0_104, %c0_105] : memref<9x128x128xf32, #tpu.memory_space<vmem>>, vector<1x128x128xf32>
    %89 = vector.shape_cast %88 : vector<1x128x128xf32> to vector<128x128xf32>
    %cst_106 = arith.constant dense<0.000000e+00> : vector<256x128xf32>
    %90 = tpu.matmul %87, %89, %cst_106 {dimension_numbers = #tpu.dot_dimension_numbers<[1], [0], [0], [1], [0, 0, 1, 1], [], []>} : vector<256x128xf32>, vector<128x128xf32>, vector<256x128xf32> -> vector<256x128xf32>
    %91 = arith.addf %85, %90 : vector<256x128xf32>
    %c0_107 = arith.constant 0 : index
    %c0_108 = arith.constant 0 : index
    %c2_109 = arith.constant 2 : index
    %c0_110 = arith.constant 0 : index
    %92 = vector.load %arg7[%c0_107, %c0_108, %c2_109, %c0_110] : memref<1x18x18x128xf32, #tpu.memory_space<vmem>>, vector<1x16x16x128xf32>
    %93 = vector.shape_cast %92 : vector<1x16x16x128xf32> to vector<256x128xf32>
    %c2_111 = arith.constant 2 : index
    %c0_112 = arith.constant 0 : index
    %c0_113 = arith.constant 0 : index
    %94 = vector.load %arg4[%c2_111, %c0_112, %c0_113] : memref<9x128x128xf32, #tpu.memory_space<vmem>>, vector<1x128x128xf32>
    %95 = vector.shape_cast %94 : vector<1x128x128xf32> to vector<128x128xf32>
    %cst_114 = arith.constant dense<0.000000e+00> : vector<256x128xf32>
    %96 = tpu.matmul %93, %95, %cst_114 {dimension_numbers = #tpu.dot_dimension_numbers<[1], [0], [0], [1], [0, 0, 1, 1], [], []>} : vector<256x128xf32>, vector<128x128xf32>, vector<256x128xf32> -> vector<256x128xf32>
    %97 = arith.addf %91, %96 : vector<256x128xf32>
    %c0_115 = arith.constant 0 : index
    %c1_116 = arith.constant 1 : index
    %c0_117 = arith.constant 0 : index
    %c0_118 = arith.constant 0 : index
    %98 = vector.load %arg7[%c0_115, %c1_116, %c0_117, %c0_118] : memref<1x18x18x128xf32, #tpu.memory_space<vmem>>, vector<1x16x16x128xf32>
    %99 = vector.shape_cast %98 : vector<1x16x16x128xf32> to vector<256x128xf32>
    %c3_119 = arith.constant 3 : index
    %c0_120 = arith.constant 0 : index
    %c0_121 = arith.constant 0 : index
    %100 = vector.load %arg4[%c3_119, %c0_120, %c0_121] : memref<9x128x128xf32, #tpu.memory_space<vmem>>, vector<1x128x128xf32>
    %101 = vector.shape_cast %100 : vector<1x128x128xf32> to vector<128x128xf32>
    %cst_122 = arith.constant dense<0.000000e+00> : vector<256x128xf32>
    %102 = tpu.matmul %99, %101, %cst_122 {dimension_numbers = #tpu.dot_dimension_numbers<[1], [0], [0], [1], [0, 0, 1, 1], [], []>} : vector<256x128xf32>, vector<128x128xf32>, vector<256x128xf32> -> vector<256x128xf32>
    %103 = arith.addf %97, %102 : vector<256x128xf32>
    %c0_123 = arith.constant 0 : index
    %c1_124 = arith.constant 1 : index
    %c1_125 = arith.constant 1 : index
    %c0_126 = arith.constant 0 : index
    %104 = vector.load %arg7[%c0_123, %c1_124, %c1_125, %c0_126] : memref<1x18x18x128xf32, #tpu.memory_space<vmem>>, vector<1x16x16x128xf32>
    %105 = vector.shape_cast %104 : vector<1x16x16x128xf32> to vector<256x128xf32>
    %c4_127 = arith.constant 4 : index
    %c0_128 = arith.constant 0 : index
    %c0_129 = arith.constant 0 : index
    %106 = vector.load %arg4[%c4_127, %c0_128, %c0_129] : memref<9x128x128xf32, #tpu.memory_space<vmem>>, vector<1x128x128xf32>
    %107 = vector.shape_cast %106 : vector<1x128x128xf32> to vector<128x128xf32>
    %cst_130 = arith.constant dense<0.000000e+00> : vector<256x128xf32>
    %108 = tpu.matmul %105, %107, %cst_130 {dimension_numbers = #tpu.dot_dimension_numbers<[1], [0], [0], [1], [0, 0, 1, 1], [], []>} : vector<256x128xf32>, vector<128x128xf32>, vector<256x128xf32> -> vector<256x128xf32>
    %109 = arith.addf %103, %108 : vector<256x128xf32>
    %c0_131 = arith.constant 0 : index
    %c1_132 = arith.constant 1 : index
    %c2_133 = arith.constant 2 : index
    %c0_134 = arith.constant 0 : index
    %110 = vector.load %arg7[%c0_131, %c1_132, %c2_133, %c0_134] : memref<1x18x18x128xf32, #tpu.memory_space<vmem>>, vector<1x16x16x128xf32>
    %111 = vector.shape_cast %110 : vector<1x16x16x128xf32> to vector<256x128xf32>
    %c5_135 = arith.constant 5 : index
    %c0_136 = arith.constant 0 : index
    %c0_137 = arith.constant 0 : index
    %112 = vector.load %arg4[%c5_135, %c0_136, %c0_137] : memref<9x128x128xf32, #tpu.memory_space<vmem>>, vector<1x128x128xf32>
    %113 = vector.shape_cast %112 : vector<1x128x128xf32> to vector<128x128xf32>
    %cst_138 = arith.constant dense<0.000000e+00> : vector<256x128xf32>
    %114 = tpu.matmul %111, %113, %cst_138 {dimension_numbers = #tpu.dot_dimension_numbers<[1], [0], [0], [1], [0, 0, 1, 1], [], []>} : vector<256x128xf32>, vector<128x128xf32>, vector<256x128xf32> -> vector<256x128xf32>
    %115 = arith.addf %109, %114 : vector<256x128xf32>
    %c0_139 = arith.constant 0 : index
    %c2_140 = arith.constant 2 : index
    %c0_141 = arith.constant 0 : index
    %c0_142 = arith.constant 0 : index
    %116 = vector.load %arg7[%c0_139, %c2_140, %c0_141, %c0_142] : memref<1x18x18x128xf32, #tpu.memory_space<vmem>>, vector<1x16x16x128xf32>
    %117 = vector.shape_cast %116 : vector<1x16x16x128xf32> to vector<256x128xf32>
    %c6_143 = arith.constant 6 : index
    %c0_144 = arith.constant 0 : index
    %c0_145 = arith.constant 0 : index
    %118 = vector.load %arg4[%c6_143, %c0_144, %c0_145] : memref<9x128x128xf32, #tpu.memory_space<vmem>>, vector<1x128x128xf32>
    %119 = vector.shape_cast %118 : vector<1x128x128xf32> to vector<128x128xf32>
    %cst_146 = arith.constant dense<0.000000e+00> : vector<256x128xf32>
    %120 = tpu.matmul %117, %119, %cst_146 {dimension_numbers = #tpu.dot_dimension_numbers<[1], [0], [0], [1], [0, 0, 1, 1], [], []>} : vector<256x128xf32>, vector<128x128xf32>, vector<256x128xf32> -> vector<256x128xf32>
    %121 = arith.addf %115, %120 : vector<256x128xf32>
    %c0_147 = arith.constant 0 : index
    %c2_148 = arith.constant 2 : index
    %c1_149 = arith.constant 1 : index
    %c0_150 = arith.constant 0 : index
    %122 = vector.load %arg7[%c0_147, %c2_148, %c1_149, %c0_150] : memref<1x18x18x128xf32, #tpu.memory_space<vmem>>, vector<1x16x16x128xf32>
    %123 = vector.shape_cast %122 : vector<1x16x16x128xf32> to vector<256x128xf32>
    %c7_151 = arith.constant 7 : index
    %c0_152 = arith.constant 0 : index
    %c0_153 = arith.constant 0 : index
    %124 = vector.load %arg4[%c7_151, %c0_152, %c0_153] : memref<9x128x128xf32, #tpu.memory_space<vmem>>, vector<1x128x128xf32>
    %125 = vector.shape_cast %124 : vector<1x128x128xf32> to vector<128x128xf32>
    %cst_154 = arith.constant dense<0.000000e+00> : vector<256x128xf32>
    %126 = tpu.matmul %123, %125, %cst_154 {dimension_numbers = #tpu.dot_dimension_numbers<[1], [0], [0], [1], [0, 0, 1, 1], [], []>} : vector<256x128xf32>, vector<128x128xf32>, vector<256x128xf32> -> vector<256x128xf32>
    %127 = arith.addf %121, %126 : vector<256x128xf32>
    %c0_155 = arith.constant 0 : index
    %c2_156 = arith.constant 2 : index
    %c2_157 = arith.constant 2 : index
    %c0_158 = arith.constant 0 : index
    %128 = vector.load %arg7[%c0_155, %c2_156, %c2_157, %c0_158] : memref<1x18x18x128xf32, #tpu.memory_space<vmem>>, vector<1x16x16x128xf32>
    %129 = vector.shape_cast %128 : vector<1x16x16x128xf32> to vector<256x128xf32>
    %c8_159 = arith.constant 8 : index
    %c0_160 = arith.constant 0 : index
    %c0_161 = arith.constant 0 : index
    %130 = vector.load %arg4[%c8_159, %c0_160, %c0_161] : memref<9x128x128xf32, #tpu.memory_space<vmem>>, vector<1x128x128xf32>
    %131 = vector.shape_cast %130 : vector<1x128x128xf32> to vector<128x128xf32>
    %cst_162 = arith.constant dense<0.000000e+00> : vector<256x128xf32>
    %132 = tpu.matmul %129, %131, %cst_162 {dimension_numbers = #tpu.dot_dimension_numbers<[1], [0], [0], [1], [0, 0, 1, 1], [], []>} : vector<256x128xf32>, vector<128x128xf32>, vector<256x128xf32> -> vector<256x128xf32>
    %133 = arith.addf %127, %132 : vector<256x128xf32>
    %c0_163 = arith.constant 0 : index
    %c0_164 = arith.constant 0 : index
    %c0_165 = arith.constant 0 : index
    %c0_166 = arith.constant 0 : index
    %134 = vector.load %arg2[%c0_163, %c0_164, %c0_165, %c0_166] : memref<1x16x16x128xf32, #tpu.memory_space<vmem>>, vector<1x16x16x128xf32>
    %135 = vector.shape_cast %134 : vector<1x16x16x128xf32> to vector<256x128xf32>
    %136 = vector.broadcast %3 : vector<1x128xf32> to vector<256x128xf32>
    %137 = arith.mulf %133, %136 : vector<256x128xf32>
    %138 = vector.broadcast %4 : vector<1x128xf32> to vector<256x128xf32>
    %139 = arith.addf %137, %138 : vector<256x128xf32>
    %140 = arith.addf %139, %135 : vector<256x128xf32>
    %141 = vector.shape_cast %140 : vector<256x128xf32> to vector<1x16x16x128xf32>
    %c0_167 = arith.constant 0 : index
    %c0_168 = arith.constant 0 : index
    %c0_169 = arith.constant 0 : index
    %c0_170 = arith.constant 0 : index
    %142 = vector.load %arg6[%c0_167, %c0_168, %c0_169, %c0_170] : memref<1x16x16x128xf32, #tpu.memory_space<vmem>>, vector<1x16x16x128xf32>
    tpu.vector_store %arg6[%c0_167, %c0_168, %c0_169, %c0_170], %141 {strides = array<i32>} : memref<1x16x16x128xf32, #tpu.memory_space<vmem>>, vector<1x16x16x128xf32>,
    return
  }
  func.func @transform_0(%arg0: i32) -> (i32, i32, i32, i32) {
    %c0_i32 = arith.constant 0 : i32
    %c0_i32_0 = arith.constant 0 : i32
    %c0_i32_1 = arith.constant 0 : i32
    %c0_i32_2 = arith.constant 0 : i32
    return %arg0, %c0_i32, %c0_i32_0, %c0_i32_1 : i32, i32, i32, i32
  }
  func.func @transform_1(%arg0: i32) -> (i32, i32, i32, i32) {
    %c0_i32 = arith.constant 0 : i32
    %c0_i32_0 = arith.constant 0 : i32
    %c0_i32_1 = arith.constant 0 : i32
    %c0_i32_2 = arith.constant 0 : i32
    return %arg0, %c0_i32, %c0_i32_0, %c0_i32_1 : i32, i32, i32, i32
  }
  func.func @transform_2(%arg0: i32) -> (i32, i32, i32) {
    %c0_i32 = arith.constant 0 : i32
    %c0_i32_0 = arith.constant 0 : i32
    %c0_i32_1 = arith.constant 0 : i32
    %c0_i32_2 = arith.constant 0 : i32
    return %c0_i32, %c0_i32_0, %c0_i32_1 : i32, i32, i32
  }
  func.func @transform_3(%arg0: i32) -> (i32, i32, i32) {
    %c0_i32 = arith.constant 0 : i32
    %c0_i32_0 = arith.constant 0 : i32
    %c0_i32_1 = arith.constant 0 : i32
    %c0_i32_2 = arith.constant 0 : i32
    return %c0_i32, %c0_i32_0, %c0_i32_1 : i32, i32, i32
  }
  func.func @transform_4(%arg0: i32) -> (i32, i32) {
    %c0_i32 = arith.constant 0 : i32
    %c0_i32_0 = arith.constant 0 : i32
    %c0_i32_1 = arith.constant 0 : i32
    return %c0_i32, %c0_i32_0 : i32, i32
  }
  func.func @transform_5(%arg0: i32) -> (i32, i32, i32, i32) {
    %c0_i32 = arith.constant 0 : i32
    %c0_i32_0 = arith.constant 0 : i32
    %c0_i32_1 = arith.constant 0 : i32
    %c0_i32_2 = arith.constant 0 : i32
    return %arg0, %c0_i32, %c0_i32_0, %c0_i32_1 : i32, i32, i32, i32
  }
}

</mosaic_0001>

<llo_original>
// kernel: residual_block_forward.1
$region0: #{residual_block_forward.1}
  #allocation0 [shape = 'u32[]', space=smem, size = 0x4, offset = 0x4, fixed_abs, tag = 'smem constant byte address 0x4 - core index']
  #allocation1 [shape = 'u32[144,128]{1,0:T(1,128)}', space=vmem, size = 0x12000, scoped, tag = 'internal scratch']
  #allocation2 [shape = 'f32[1,18,18,128]{3,2,1,0:T(8,128)}', space=vmem, size = 0x36000, scoped, tag = 'scratch operand']
  %s0 = inlined_call_operand.vmem [shape: f32[2,18,18,128], index: 0, kind: input, shape index: {}]
  %s1 = inlined_call_operand.vmem [shape: f32[2,16,16,128], index: 1, kind: input, shape index: {}]
  %s2 = inlined_call_operand.vmem [shape: f32[9,128,128], index: 2, kind: input, shape index: {}]
  %s3 = inlined_call_operand.vmem [shape: f32[9,128,128], index: 3, kind: input, shape index: {}]
  %s4 = inlined_call_operand.vmem [shape: f32[4,128], index: 4, kind: input, shape index: {}]
  %s5 = inlined_call_operand.vmem [shape: f32[2,16,16,128], index: 5, kind: output, shape index: {}]
  %s6 = sld [smem:[#allocation0]]
  $region53: #{residual_block_forward.1} parent=0
    _
  %s8 = ssub.s32 1, %s6
  %s9 = scalar_select 0, %s8, %s6
  loop: start=0, step=1, limit=4
  $region2: #{residual_block_forward.1} parent=0 // loop_pre_header
    _
  $region3: #{residual_block_forward.1} parent=0 // loop_header
    %s11 = sphi 0, %s15
    %p12 = scmp.ge.s32.totalorder %s11, 4
    %s21 = sphi 0, %s23
    %s24 = sphi 0, %s21
    %s25 = sphi 0, %s24
    %s41 = sphi 0, %s25
    %s47 = sphi 0, %s49
    %s50 = sphi 0, %s47
    %s51 = sphi 0, %s50
    %s67 = sphi 0, %s51
    %s71 = sphi 0, %s71
    %s73 = sphi 0, %s71
    %s74 = sphi 0, %s73
    %s88 = sphi 0, %s74
    %s92 = sphi 0, %s92
    %s94 = sphi 0, %s92
    %s95 = sphi 0, %s94
    %s109 = sphi 0, %s95
    %s113 = sphi 0, %s113
    %s115 = sphi 0, %s113
    %s116 = sphi 0, %s115
    %s130 = sphi 0, %s116
    %s136 = sphi 0, %s138
    %s139 = sphi 0, %s136
    %s140 = sphi 0, %s139
    %s156 = sphi 0, %s140
  $region4: #{residual_block_forward.1} parent=0 // loop_header_branch
    %14 = sbr.rel (%p12) target = $region8
  $region5: #{residual_block_forward.1} parent=0 // loop_body
    %s16 = ssub.s32 %s11, 1
    %s17 = ssub.s32 %s11, 2
    %s18 = sadd.s32 %s11, 1
    %s19 = ssub.s32 %s11, %s18
    %p20 = scmp.eq.s32.totalorder %s19, 0
    %s22 = sadd.s32 %s21, 1
    %s23 = scalar_select %p20, %s21, %s22
    %p26 = pneg %p20
    %p27 = scmp.eq.s32.totalorder %s11, 1
    %p28 = por %p26, %p27
    %p29 = scmp.ne.s32.totalorder %s21, %s24
    %p30 = scmp.eq.s32.totalorder %s11, 0
    %p31 = por %p29, %p30
    %p32 = scmp.ne.s32.totalorder %s21, %s24
    %p33 = scmp.eq.s32.totalorder %s16, 1
    %p34 = por %p32, %p33
    %p35 = scmp.ne.s32.totalorder %s24, %s25
    %p36 = scmp.eq.s32.totalorder %s16, 0
    %p37 = por %p35, %p36
    %p38 = scmp.ne.s32.totalorder %s24, %s25
    %p39 = scmp.eq.s32.totalorder %s17, 1
    %p40 = por %p38, %p39
    %p42 = scmp.ne.s32.totalorder %s25, %s41
    %p43 = scmp.eq.s32.totalorder %s17, 0
    %p44 = por %p42, %p43
    %s45 = ssub.s32 %s11, %s18
    %p46 = scmp.eq.s32.totalorder %s45, 0
    %s48 = sadd.s32 %s47, 1
    %s49 = scalar_select %p46, %s47, %s48
    %p52 = pneg %p46
    %p53 = scmp.eq.s32.totalorder %s11, 1
    %p54 = por %p52, %p53
    %p55 = scmp.ne.s32.totalorder %s47, %s50
    %p56 = scmp.eq.s32.totalorder %s11, 0
    %p57 = por %p55, %p56
    %p58 = scmp.ne.s32.totalorder %s47, %s50
    %p59 = scmp.eq.s32.totalorder %s16, 1
    %p60 = por %p58, %p59
    %p61 = scmp.ne.s32.totalorder %s50, %s51
    %p62 = scmp.eq.s32.totalorder %s16, 0
    %p63 = por %p61, %p62
    %p64 = scmp.ne.s32.totalorder %s50, %s51
    %p65 = scmp.eq.s32.totalorder %s17, 1
    %p66 = por %p64, %p65
    %p68 = scmp.ne.s32.totalorder %s51, %s67
    %p69 = scmp.eq.s32.totalorder %s17, 0
    %p70 = por %p68, %p69
    %s72 = sadd.s32 %s71, 1
    %p75 = scmp.eq.s32.totalorder %s11, 1
    %p76 = scmp.ne.s32.totalorder %s71, %s73
    %p77 = scmp.eq.s32.totalorder %s11, 0
    %p78 = por %p76, %p77
    %p79 = scmp.ne.s32.totalorder %s71, %s73
    %p80 = scmp.eq.s32.totalorder %s16, 1
    %p81 = por %p79, %p80
    %p82 = scmp.ne.s32.totalorder %s73, %s74
    %p83 = scmp.eq.s32.totalorder %s16, 0
    %p84 = por %p82, %p83
    %p85 = scmp.ne.s32.totalorder %s73, %s74
    %p86 = scmp.eq.s32.totalorder %s17, 1
    %p87 = por %p85, %p86
    %p89 = scmp.ne.s32.totalorder %s74, %s88
    %p90 = scmp.eq.s32.totalorder %s17, 0
    %p91 = por %p89, %p90
    %s93 = sadd.s32 %s92, 1
    %p96 = scmp.eq.s32.totalorder %s11, 1
    %p97 = scmp.ne.s32.totalorder %s92, %s94
    %p98 = scmp.eq.s32.totalorder %s11, 0
    %p99 = por %p97, %p98
    %p100 = scmp.ne.s32.totalorder %s92, %s94
    %p101 = scmp.eq.s32.totalorder %s16, 1
    %p102 = por %p100, %p101
    %p103 = scmp.ne.s32.totalorder %s94, %s95
    %p104 = scmp.eq.s32.totalorder %s16, 0
    %p105 = por %p103, %p104
    %p106 = scmp.ne.s32.totalorder %s94, %s95
    %p107 = scmp.eq.s32.totalorder %s17, 1
    %p108 = por %p106, %p107
    %p110 = scmp.ne.s32.totalorder %s95, %s109
    %p111 = scmp.eq.s32.totalorder %s17, 0
    %p112 = por %p110, %p111
    %s114 = sadd.s32 %s113, 1
    %p117 = scmp.eq.s32.totalorder %s11, 1
    %p118 = scmp.ne.s32.totalorder %s113, %s115
    %p119 = scmp.eq.s32.totalorder %s11, 0
    %p120 = por %p118, %p119
    %p121 = scmp.ne.s32.totalorder %s113, %s115
    %p122 = scmp.eq.s32.totalorder %s16, 1
    %p123 = por %p121, %p122
    %p124 = scmp.ne.s32.totalorder %s115, %s116
    %p125 = scmp.eq.s32.totalorder %s16, 0
    %p126 = por %p124, %p125
    %p127 = scmp.ne.s32.totalorder %s115, %s116
    %p128 = scmp.eq.s32.totalorder %s17, 1
    %p129 = por %p127, %p128
    %p131 = scmp.ne.s32.totalorder %s116, %s130
    %p132 = scmp.eq.s32.totalorder %s17, 0
    %p133 = por %p131, %p132
    %s134 = ssub.s32 %s11, %s18
    %p135 = scmp.eq.s32.totalorder %s134, 0
    %s137 = sadd.s32 %s136, 1
    %s138 = scalar_select %p135, %s136, %s137
    %p141 = pneg %p135
    %p142 = scmp.eq.s32.totalorder %s11, 1
    %p143 = por %p141, %p142
    %p144 = scmp.ne.s32.totalorder %s136, %s139
    %p145 = scmp.eq.s32.totalorder %s11, 0
    %p146 = por %p144, %p145
    %p147 = scmp.ne.s32.totalorder %s136, %s139
    %p148 = scmp.eq.s32.totalorder %s16, 1
    %p149 = por %p147, %p148
    %p150 = scmp.ne.s32.totalorder %s139, %s140
    %p151 = scmp.eq.s32.totalorder %s16, 0
    %p152 = por %p150, %p151
    %p153 = scmp.ne.s32.totalorder %s139, %s140
    %p154 = scmp.eq.s32.totalorder %s17, 1
    %p155 = por %p153, %p154
    %p157 = scmp.ne.s32.totalorder %s140, %s156
    %p158 = scmp.eq.s32.totalorder %s17, 0
    %p159 = por %p157, %p158
    %p160 = scmp.le.s32.totalorder 1, %s11
    %p161 = scmp.lt.s32.totalorder %s11, 3
    %p162 = pnand %p160, %p161
    %p163 = pneg %p162
    // Predicated region
    $region9: #{residual_block_forward.1} parent=5 // pred_check
      _
    $region10: #{residual_block_forward.1} parent=5 // pred_check_branch
      %165 = sbr.rel (%p162) target = $region12
    $region11: #{residual_block_forward.1} parent=5 // pred_region
      %s166 = ssub.s32 %s11, 1
      // Predicated region
      $region13: #{residual_block_forward.1} parent=11 // pred_check
        %p167 = pneg %p84
      $region14: #{residual_block_forward.1} parent=11 // pred_check_branch
        %169 = sbr.rel (%p167) target = $region16
      $region15: #{residual_block_forward.1} parent=11 // pred_region
        _
      $region16: #{residual_block_forward.1} parent=11 // pred_fallthru
        _
      // Predicated region
      $region17: #{residual_block_forward.1} parent=11 // pred_check
        %p170 = pneg %p105
      $region18: #{residual_block_forward.1} parent=11 // pred_check_branch
        %172 = sbr.rel (%p170) target = $region20
      $region19: #{residual_block_forward.1} parent=11 // pred_region
        _
      $region20: #{residual_block_forward.1} parent=11 // pred_fallthru
        _
      // Predicated region
      $region21: #{residual_block_forward.1} parent=11 // pred_check
        %p173 = pneg %p126
      $region22: #{residual_block_forward.1} parent=11 // pred_check_branch
        %175 = sbr.rel (%p173) target = $region24
      $region23: #{residual_block_forward.1} parent=11 // pred_region
        _
      $region24: #{residual_block_forward.1} parent=11 // pred_fallthru
        _
    $region12: #{residual_block_forward.1} parent=5 // pred_fallthru
      _
    %p176 = scmp.lt.s32.totalorder %s11, 2
    // Predicated region
    $region25: #{residual_block_forward.1} parent=5 // pred_check
      %p177 = pneg %p176
    $region26: #{residual_block_forward.1} parent=5 // pred_check_branch
      %179 = sbr.rel (%p177) target = $region28
    $region27: #{residual_block_forward.1} parent=5 // pred_region
      // Predicated region
      $region29: #{residual_block_forward.1} parent=27 // pred_check
        %p180 = pneg %p31
      $region30: #{residual_block_forward.1} parent=27 // pred_check_branch
        %182 = sbr.rel (%p180) target = $region32
      $region31: #{residual_block_forward.1} parent=27 // pred_region
        %p183 = scmp.lt.s32.totalorder %s11, 1
        %s184 = scalar_select %p183, %s11, 1
        %s185 = smul.addr %s184, 54
        %s186 = smul.addr %s185, 8
        %s187 = scalar_lea.vmem %s0, %s186
      $region32: #{residual_block_forward.1} parent=27 // pred_fallthru
        _
      // Predicated region
      $region33: #{residual_block_forward.1} parent=27 // pred_check
        %p188 = pneg %p57
      $region34: #{residual_block_forward.1} parent=27 // pred_check_branch
        %190 = sbr.rel (%p188) target = $region36
      $region35: #{residual_block_forward.1} parent=27 // pred_region
        %p191 = scmp.lt.s32.totalorder %s11, 1
        %s192 = scalar_select %p191, %s11, 1
        %s193 = smul.addr %s192, 32
        %s194 = smul.addr %s193, 8
        %s195 = scalar_lea.vmem %s1, %s194
      $region36: #{residual_block_forward.1} parent=27 // pred_fallthru
        _
    $region28: #{residual_block_forward.1} parent=5 // pred_fallthru
      _
    %p196 = scmp.le.s32.totalorder 1, %s11
    %p197 = scmp.lt.s32.totalorder %s11, 3
    %p198 = pnand %p196, %p197
    %p199 = pneg %p198
    // Predicated region
    $region37: #{residual_block_forward.1} parent=5 // pred_check
      _
    $region38: #{residual_block_forward.1} parent=5 // pred_check_branch
      %201 = sbr.rel (%p198) target = $region40
    $region39: #{residual_block_forward.1} parent=5 // pred_region
      %s202 = ssub.s32 %s11, 1
      %p203 = scmp.lt.s32.totalorder %s16, 1
      %s204 = scalar_select %p203, %s16, 1
      %s205 = smul.addr %s204, 54
      %s206 = smul.addr %s205, 8
      %s207 = scalar_lea.vmem %s0, %s206
      %p208 = pneg %p37
      %p209 = pneg %p34
      %p210 = scmp.lt.s32.totalorder %s16, 1
      %s211 = scalar_select %p210, %s16, 1
      %s212 = smul.addr %s211, 32
      %s213 = smul.addr %s212, 8
      %s214 = scalar_lea.vmem %s1, %s213
      %p215 = pneg %p63
      %p216 = pneg %p60
      %p217 = pneg %p84
      %p218 = pneg %p81
      %p219 = pneg %p105
      %p220 = pneg %p102
      %p221 = pneg %p126
      %p222 = pneg %p123
      %p223 = pneg %p152
      %p224 = pneg %p149
      %p225 = scmp.lt.s32.totalorder %s16, 1
      %s226 = scalar_select %p225, %s16, 1
      %s227 = smul.addr %s226, 32
      %s228 = smul.addr %s227, 8
      %s229 = scalar_lea.vmem %s5, %s228
      %p230 = scmp.lt.s32.totalorder %s16, 1
      %s231 = scalar_select %p230, %s16, 1
      %s232 = smul.addr %s231, 54
      %s233 = smul.addr %s232, 8
      %s234 = scalar_lea.vmem %s0, %s233
      %p235 = scmp.lt.s32.totalorder %s16, 1
      %s236 = scalar_select %p235, %s16, 1
      %s237 = smul.addr %s236, 32
      %s238 = smul.addr %s237, 8
      %s239 = scalar_lea.vmem %s1, %s238
      %p240 = scmp.lt.s32.totalorder %s16, 1
      %s241 = scalar_select %p240, %s16, 1
      %s242 = smul.addr %s241, 32
      %s243 = smul.addr %s242, 8
      %s244 = scalar_lea.vmem %s5, %s243
      %v245 = vld [vmem:[%s4] sm:$0xf]
      %v246 = vld [vmem:[%s234] sm:$0xff]
      %v247 = vld [vmem:[%s234 + $0x8] sm:$0xff]
      %v248 = vld [vmem:[%s234 + $0x18] sm:$0xff]
      %v249 = vld [vmem:[%s234 + $0x20] sm:$0xff]
      %v250 = vld [vmem:[%s234 + $0x30] sm:$0xff]
      %v251 = vld [vmem:[%s234 + $0x38] sm:$0xff]
      %v252 = vld [vmem:[%s234 + $0x48] sm:$0xff]
      %v253 = vld [vmem:[%s234 + $0x50] sm:$0xff]
      %v254 = vld [vmem:[%s234 + $0x60] sm:$0xff]
      %v255 = vld [vmem:[%s234 + $0x68] sm:$0xff]
      %v256 = vld [vmem:[%s234 + $0x78] sm:$0xff]
      %v257 = vld [vmem:[%s234 + $0x80] sm:$0xff]
      %v258 = vld [vmem:[%s234 + $0x90] sm:$0xff]
      %v259 = vld [vmem:[%s234 + $0x98] sm:$0xff]
      %v260 = vld [vmem:[%s234 + $0xa8] sm:$0xff]
      %v261 = vld [vmem:[%s234 + $0xb0] sm:$0xff]
      %v262 = vld [vmem:[%s234 + $0xc0] sm:$0xff]
      %v263 = vld [vmem:[%s234 + $0xc8] sm:$0xff]
      %v264 = vld [vmem:[%s234 + $0xd8] sm:$0xff]
      %v265 = vld [vmem:[%s234 + $0xe0] sm:$0xff]
      %v266 = vld [vmem:[%s234 + $0xf0] sm:$0xff]
      %v267 = vld [vmem:[%s234 + $0xf8] sm:$0xff]
      %v268 = vld [vmem:[%s234 + $0x108] sm:$0xff]
      %v269 = vld [vmem:[%s234 + $0x110] sm:$0xff]
      %v270 = vld [vmem:[%s234 + $0x120] sm:$0xff]
      %v271 = vld [vmem:[%s234 + $0x128] sm:$0xff]
      %v272 = vld [vmem:[%s234 + $0x138] sm:$0xff]
      %v273 = vld [vmem:[%s234 + $0x140] sm:$0xff]
      %v274 = vld [vmem:[%s234 + $0x150] sm:$0xff]
      %v275 = vld [vmem:[%s234 + $0x158] sm:$0xff]
      %v276 = vld [vmem:[%s234 + $0x168] sm:$0xff]
      %v277 = vld [vmem:[%s234 + $0x170] sm:$0xff]
      %v278 = vld [vmem:[%s2] sm:$0xff]
      %v279 = vld [vmem:[%s2 + $0x8] sm:$0xff]
      %v280 = vld [vmem:[%s2 + $0x10] sm:$0xff]
      %v281 = vld [vmem:[%s2 + $0x18] sm:$0xff]
      %v282 = vld [vmem:[%s2 + $0x20] sm:$0xff]
      %v283 = vld [vmem:[%s2 + $0x28] sm:$0xff]
      %v284 = vld [vmem:[%s2 + $0x30] sm:$0xff]
      %v285 = vld [vmem:[%s2 + $0x38] sm:$0xff]
      %v286 = vld [vmem:[%s2 + $0x40] sm:$0xff]
      %v287 = vld [vmem:[%s2 + $0x48] sm:$0xff]
      %v288 = vld [vmem:[%s2 + $0x50] sm:$0xff]
      %v289 = vld [vmem:[%s2 + $0x58] sm:$0xff]
      %v290 = vld [vmem:[%s2 + $0x60] sm:$0xff]
      %v291 = vld [vmem:[%s2 + $0x68] sm:$0xff]
      %v292 = vld [vmem:[%s2 + $0x70] sm:$0xff]
      %v293 = vld [vmem:[%s2 + $0x78] sm:$0xff]
      %v294 = vld [vmem:[%s234 + $0x1] sm:$0xff]
      %v295 = vld [vmem:[%s234 + $0x9] sm:$0xff]
      %v296 = vld [vmem:[%s234 + $0x19] sm:$0xff]
      %v297 = vld [vmem:[%s234 + $0x21] sm:$0xff]
      %v298 = vld [vmem:[%s234 + $0x31] sm:$0xff]
      %v299 = vld [vmem:[%s234 + $0x39] sm:$0xff]
      %v300 = vld [vmem:[%s234 + $0x49] sm:$0xff]
      %v301 = vld [vmem:[%s234 + $0x51] sm:$0xff]
      %v302 = vld [vmem:[%s234 + $0x61] sm:$0xff]
      %v303 = vld [vmem:[%s234 + $0x69] sm:$0xff]
      %v304 = vld [vmem:[%s234 + $0x79] sm:$0xff]
      %v305 = vld [vmem:[%s234 + $0x81] sm:$0xff]
      %v306 = vld [vmem:[%s234 + $0x91] sm:$0xff]
      %v307 = vld [vmem:[%s234 + $0x99] sm:$0xff]
      %v308 = vld [vmem:[%s234 + $0xa9] sm:$0xff]
      %v309 = vld [vmem:[%s234 + $0xb1] sm:$0xff]
      %v310 = vld [vmem:[%s234 + $0xc1] sm:$0xff]
      %v311 = vld [vmem:[%s234 + $0xc9] sm:$0xff]
      %v312 = vld [vmem:[%s234 + $0xd9] sm:$0xff]
      %v313 = vld [vmem:[%s234 + $0xe1] sm:$0xff]
      %v314 = vld [vmem:[%s234 + $0xf1] sm:$0xff]
      %v315 = vld [vmem:[%s234 + $0xf9] sm:$0xff]
      %v316 = vld [vmem:[%s234 + $0x109] sm:$0xff]
      %v317 = vld [vmem:[%s234 + $0x111] sm:$0xff]
      %v318 = vld [vmem:[%s234 + $0x121] sm:$0xff]
      %v319 = vld [vmem:[%s234 + $0x129] sm:$0xff]
      %v320 = vld [vmem:[%s234 + $0x139] sm:$0xff]
      %v321 = vld [vmem:[%s234 + $0x141] sm:$0xff]
      %v322 = vld [vmem:[%s234 + $0x151] sm:$0xff]
      %v323 = vld [vmem:[%s234 + $0x159] sm:$0xff]
      %v324 = vld [vmem:[%s234 + $0x169] sm:$0xff]
      %v325 = vld [vmem:[%s234 + $0x171] sm:$0xff]
      %s326 = scalar_lea.vmem %s2, 128
      %v327 = vld [vmem:[%s326] sm:$0xff]
      %v328 = vld [vmem:[%s326 + $0x8] sm:$0xff]
      %v329 = vld [vmem:[%s326 + $0x10] sm:$0xff]
      %v330 = vld [vmem:[%s326 + $0x18] sm:$0xff]
      %v331 = vld [vmem:[%s326 + $0x20] sm:$0xff]
      %v332 = vld [vmem:[%s326 + $0x28] sm:$0xff]
      %v333 = vld [vmem:[%s326 + $0x30] sm:$0xff]
      %v334 = vld [vmem:[%s326 + $0x38] sm:$0xff]
      %v335 = vld [vmem:[%s326 + $0x40] sm:$0xff]
      %v336 = vld [vmem:[%s326 + $0x48] sm:$0xff]
      %v337 = vld [vmem:[%s326 + $0x50] sm:$0xff]
      %v338 = vld [vmem:[%s326 + $0x58] sm:$0xff]
      %v339 = vld [vmem:[%s326 + $0x60] sm:$0xff]
      %v340 = vld [vmem:[%s326 + $0x68] sm:$0xff]
      %v341 = vld [vmem:[%s326 + $0x70] sm:$0xff]
      %v342 = vld [vmem:[%s326 + $0x78] sm:$0xff]
      %343 = vmatprep.subr.mxu0 0.0
      %344 = vmatpush1.msra.mxu0 %v327
      %345 = vmatprep.subr.mxu0 0.0
      %346 = vmatpush1.msra.mxu0 %v328
      %347 = vmatprep.subr.mxu0 0.0
      %348 = vmatpush1.msra.mxu0 %v329
      %349 = vmatprep.subr.mxu0 0.0
      %350 = vmatpush1.msra.mxu0 %v330
      %351 = vmatprep.subr.mxu0 0.0
      %352 = vmatpush1.msra.mxu0 %v331
      %353 = vmatprep.subr.mxu0 0.0
      %354 = vmatpush1.msra.mxu0 %v332
      %355 = vmatprep.subr.mxu0 0.0
      %356 = vmatpush1.msra.mxu0 %v333
      %357 = vmatprep.subr.mxu0 0.0
      %358 = vmatpush1.msra.mxu0 %v334
      %359 = vmatprep.subr.mxu0 0.0
      %360 = vmatpush1.msra.mxu0 %v335
      %361 = vmatprep.subr.mxu0 0.0
      %362 = vmatpush1.msra.mxu0 %v336
      %363 = vmatprep.subr.mxu0 0.0
      %364 = vmatpush1.msra.mxu0 %v337
      %365 = vmatprep.subr.mxu0 0.0
      %366 = vmatpush1.msra.mxu0 %v338
      %367 = vmatprep.subr.mxu0 0.0
      %368 = vmatpush1.msra.mxu0 %v339
      %369 = vmatprep.subr.mxu0 0.0
      %370 = vmatpush1.msra.mxu0 %v340
      %371 = vmatprep.subr.mxu0 0.0
      %372 = vmatpush1.msra.mxu0 %v341
      %373 = vmatprep.subr.mxu0 0.0
      %374 = vmatpush1.msra.mxu0 %v342
      %375 = vmatprep.subr.mxu0 0.0
      %376 = vmatpush1.msra.mxu0 0.0
      %377 = vmatprep.subr.mxu0 0.0
      %378 = vmatpush1.msra.mxu0 0.0
      %379 = vmatprep.subr.mxu0 0.0
      %380 = vmatpush1.msra.mxu0 0.0
      %381 = vmatprep.subr.mxu0 0.0
      %382 = vmatpush1.msra.mxu0 0.0
      %383 = vmatprep.subr.mxu0 0.0
      %384 = vmatpush1.msra.mxu0 0.0
      %385 = vmatprep.subr.mxu0 0.0
      %386 = vmatpush1.msra.mxu0 0.0
      %387 = vmatprep.subr.mxu0 0.0
      %388 = vmatpush1.msra.mxu0 0.0
      %389 = vmatprep.subr.mxu0 0.0
      %390 = vmatpush1.msra.mxu0 0.0
      %391 = vmatprep.subr.mxu0 0.0
      %392 = vmatpush1.msra.mxu0 0.0
      %393 = vmatprep.subr.mxu0 0.0
      %394 = vmatpush1.msra.mxu0 0.0
      %395 = vmatprep.subr.mxu0 0.0
      %396 = vmatpush1.msra.mxu0 0.0
      %397 = vmatprep.subr.mxu0 0.0
      %398 = vmatpush1.msra.mxu0 0.0
      %399 = vmatprep.subr.mxu0 0.0
      %400 = vmatpush1.msra.mxu0 0.0
      %401 = vmatprep.subr.mxu0 0.0
      %402 = vmatpush1.msra.mxu0 0.0
      %403 = vmatprep.subr.mxu0 0.0
      %404 = vmatpush1.msra.mxu0 0.0
      %405 = vmatprep.subr.mxu0 0.0
      %406 = vmatpush1.msra.mxu0 0.0
      %407 = vmatprep.mubr.f32.mxu0 0.0
      %408 = vmatmul.mubr.f32.gmra.mrb[0].mxu0 %v294
      %v409 = vpop.f32.mrb[0].mxu0
      %v410 = vadd.f32 0.0, %v409
      %v411 = vpop.f32.mrb[0].mxu0
      %412 = vmatprep.mubr.f32.mxu0 0.0
      %413 = vmatmul.mubr.f32.gmra.mrb[0].mxu0 %v295
      %v414 = vpop.f32.mrb[0].mxu0
      %v415 = vadd.f32 0.0, %v414
      %v416 = vpop.f32.mrb[0].mxu0
      %417 = vmatprep.mubr.f32.mxu0 0.0
      %418 = vmatmul.mubr.f32.gmra.mrb[0].mxu0 %v296
      %v419 = vpop.f32.mrb[0].mxu0
      %v420 = vadd.f32 0.0, %v419
      %v421 = vpop.f32.mrb[0].mxu0
      %422 = vmatprep.mubr.f32.mxu0 0.0
      %423 = vmatmul.mubr.f32.gmra.mrb[0].mxu0 %v297
      %v424 = vpop.f32.mrb[0].mxu0
      %v425 = vadd.f32 0.0, %v424
      %v426 = vpop.f32.mrb[0].mxu0
      %427 = vmatprep.mubr.f32.mxu0 0.0
      %428 = vmatmul.mubr.f32.gmra.mrb[0].mxu0 %v298
      %v429 = vpop.f32.mrb[0].mxu0
      %v430 = vadd.f32 0.0, %v429
      %v431 = vpop.f32.mrb[0].mxu0
      %432 = vmatprep.mubr.f32.mxu0 0.0
      %433 = vmatmul.mubr.f32.gmra.mrb[0].mxu0 %v299
      %v434 = vpop.f32.mrb[0].mxu0
      %v435 = vadd.f32 0.0, %v434
      %v436 = vpop.f32.mrb[0].mxu0
      %437 = vmatprep.mubr.f32.mxu0 0.0
      %438 = vmatmul.mubr.f32.gmra.mrb[0].mxu0 %v300
      %v439 = vpop.f32.mrb[0].mxu0
      %v440 = vadd.f32 0.0, %v439
      %v441 = vpop.f32.mrb[0].mxu0
      %442 = vmatprep.mubr.f32.mxu0 0.0
      %443 = vmatmul.mubr.f32.gmra.mrb[0].mxu0 %v301
      %v444 = vpop.f32.mrb[0].mxu0
      %v445 = vadd.f32 0.0, %v444
      %v446 = vpop.f32.mrb[0].mxu0
      %447 = vmatprep.mubr.f32.mxu0 0.0
      %448 = vmatmul.mubr.f32.gmra.mrb[0].mxu0 %v302
      %v449 = vpop.f32.mrb[0].mxu0
      %v450 = vadd.f32 0.0, %v449
      %v451 = vpop.f32.mrb[0].mxu0
      %452 = vmatprep.mubr.f32.mxu0 0.0
      %453 = vmatmul.mubr.f32.gmra.mrb[0].mxu0 %v303
      %v454 = vpop.f32.mrb[0].mxu0
      %v455 = vadd.f32 0.0, %v454
      %v456 = vpop.f32.mrb[0].mxu0
      %457 = vmatprep.mubr.f32.mxu0 0.0
      %458 = vmatmul.mubr.f32.gmra.mrb[0].mxu0 %v304
      %v459 = vpop.f32.mrb[0].mxu0
      %v460 = vadd.f32 0.0, %v459
      %v461 = vpop.f32.mrb[0].mxu0
      %462 = vmatprep.mubr.f32.mxu0 0.0
      %463 = vmatmul.mubr.f32.gmra.mrb[0].mxu0 %v305
      %v464 = vpop.f32.mrb[0].mxu0
      %v465 = vadd.f32 0.0, %v464
      %v466 = vpop.f32.mrb[0].mxu0
      %467 = vmatprep.mubr.f32.mxu0 0.0
      %468 = vmatmul.mubr.f32.gmra.mrb[0].mxu0 %v306
      %v469 = vpop.f32.mrb[0].mxu0
      %v470 = vadd.f32 0.0, %v469
      %v471 = vpop.f32.mrb[0].mxu0
      %472 = vmatprep.mubr.f32.mxu0 0.0
      %473 = vmatmul.mubr.f32.gmra.mrb[0].mxu0 %v307
      %v474 = vpop.f32.mrb[0].mxu0
      %v475 = vadd.f32 0.0, %v474
      %v476 = vpop.f32.mrb[0].mxu0
      %477 = vmatprep.mubr.f32.mxu0 0.0
      %478 = vmatmul.mubr.f32.gmra.mrb[0].mxu0 %v308
      %v479 = vpop.f32.mrb[0].mxu0
      %v480 = vadd.f32 0.0, %v479
      %v481 = vpop.f32.mrb[0].mxu0
      %482 = vmatprep.mubr.f32.mxu0 0.0
      %483 = vmatmul.mubr.f32.gmra.mrb[0].mxu0 %v309
      %v484 = vpop.f32.mrb[0].mxu0
      %v485 = vadd.f32 0.0, %v484
      %v486 = vpop.f32.mrb[0].mxu0
      %487 = vmatprep.mubr.f32.mxu0 0.0
      %488 = vmatmul.mubr.f32.gmra.mrb[0].mxu0 %v310
      %v489 = vpop.f32.mrb[0].mxu0
      %v490 = vadd.f32 0.0, %v489
      %v491 = vpop.f32.mrb[0].mxu0
      %492 = vmatprep.mubr.f32.mxu0 0.0
      %493 = vmatmul.mubr.f32.gmra.mrb[0].mxu0 %v311
      %v494 = vpop.f32.mrb[0].mxu0
      %v495 = vadd.f32 0.0, %v494
      %v496 = vpop.f32.mrb[0].mxu0
      %497 = vmatprep.mubr.f32.mxu0 0.0
      %498 = vmatmul.mubr.f32.gmra.mrb[0].mxu0 %v312
      %v499 = vpop.f32.mrb[0].mxu0
      %v500 = vadd.f32 0.0, %v499
      %v501 = vpop.f32.mrb[0].mxu0
      %502 = vmatprep.mubr.f32.mxu0 0.0
      %503 = vmatmul.mubr.f32.gmra.mrb[0].mxu0 %v313
      %v504 = vpop.f32.mrb[0].mxu0
      %v505 = vadd.f32 0.0, %v504
      %v506 = vpop.f32.mrb[0].mxu0
      %507 = vmatprep.mubr.f32.mxu0 0.0
      %508 = vmatmul.mubr.f32.gmra.mrb[0].mxu0 %v314
      %v509 = vpop.f32.mrb[0].mxu0
      %v510 = vadd.f32 0.0, %v509
      %v511 = vpop.f32.mrb[0].mxu0
      %512 = vmatprep.mubr.f32.mxu0 0.0
      %513 = vmatmul.mubr.f32.gmra.mrb[0].mxu0 %v315
      %v514 = vpop.f32.mrb[0].mxu0
      %v515 = vadd.f32 0.0, %v514
      %v516 = vpop.f32.mrb[0].mxu0
      %517 = vmatprep.mubr.f32.mxu0 0.0
      %518 = vmatmul.mubr.f32.gmra.mrb[0].mxu0 %v316
      %v519 = vpop.f32.mrb[0].mxu0
      %v520 = vadd.f32 0.0, %v519
      %v521 = vpop.f32.mrb[0].mxu0
      %522 = vmatprep.mubr.f32.mxu0 0.0
      %523 = vmatmul.mubr.f32.gmra.mrb[0].mxu0 %v317
      %v524 = vpop.f32.mrb[0].mxu0
      %v525 = vadd.f32 0.0, %v524
      %v526 = vpop.f32.mrb[0].mxu0
      %527 = vmatprep.mubr.f32.mxu0 0.0
      %528 = vmatmul.mubr.f32.gmra.mrb[0].mxu0 %v318
      %v529 = vpop.f32.mrb[0].mxu0
      %v530 = vadd.f32 0.0, %v529
      %v531 = vpop.f32.mrb[0].mxu0
      %532 = vmatprep.mubr.f32.mxu0 0.0
      %533 = vmatmul.mubr.f32.gmra.mrb[0].mxu0 %v319
      %v534 = vpop.f32.mrb[0].mxu0
      %v535 = vadd.f32 0.0, %v534
      %v536 = vpop.f32.mrb[0].mxu0
      %537 = vmatprep.mubr.f32.mxu0 0.0
      %538 = vmatmul.mubr.f32.gmra.mrb[0].mxu0 %v320
      %v539 = vpop.f32.mrb[0].mxu0
      %v540 = vadd.f32 0.0, %v539
      %v541 = vpop.f32.mrb[0].mxu0
      %542 = vmatprep.mubr.f32.mxu0 0.0
      %543 = vmatmul.mubr.f32.gmra.mrb[0].mxu0 %v321
      %v544 = vpop.f32.mrb[0].mxu0
      %v545 = vadd.f32 0.0, %v544
      %v546 = vpop.f32.mrb[0].mxu0
      %547 = vmatprep.mubr.f32.mxu0 0.0
      %548 = vmatmul.mubr.f32.gmra.mrb[0].mxu0 %v322
      %v549 = vpop.f32.mrb[0].mxu0
      %v550 = vadd.f32 0.0, %v549
      %v551 = vpop.f32.mrb[0].mxu0
      %552 = vmatprep.mubr.f32.mxu0 0.0
      %553 = vmatmul.mubr.f32.gmra.mrb[0].mxu0 %v323
      %v554 = vpop.f32.mrb[0].mxu0
      %v555 = vadd.f32 0.0, %v554
      %v556 = vpop.f32.mrb[0].mxu0
      %557 = vmatprep.mubr.f32.mxu0 0.0
      %558 = vmatmul.mubr.f32.gmra.mrb[0].mxu0 %v324
      %v559 = vpop.f32.mrb[0].mxu0
      %v560 = vadd.f32 0.0, %v559
      %v561 = vpop.f32.mrb[0].mxu0
      %562 = vmatprep.mubr.f32.mxu0 0.0
      %563 = vmatmul.mubr.f32.gmra.mrb[0].mxu0 %v325
      %v564 = vpop.f32.mrb[0].mxu0
      %v565 = vadd.f32 0.0, %v564
      %v566 = vpop.f32.mrb[0].mxu0
      %567 = vdwg.mxu0
      %568 = vmatprep.subr.mxu0 0.0
      %569 = vmatpush1.msra.mxu0 %v278
      %570 = vmatprep.subr.mxu0 0.0
      %571 = vmatpush1.msra.mxu0 %v279
      %572 = vmatprep.subr.mxu0 0.0
      %573 = vmatpush1.msra.mxu0 %v280
      %574 = vmatprep.subr.mxu0 0.0
      %575 = vmatpush1.msra.mxu0 %v281
      %576 = vmatprep.subr.mxu0 0.0
      %577 = vmatpush1.msra.mxu0 %v282
      %578 = vmatprep.subr.mxu0 0.0
      %579 = vmatpush1.msra.mxu0 %v283
      %580 = vmatprep.subr.mxu0 0.0
      %581 = vmatpush1.msra.mxu0 %v284
      %582 = vmatprep.subr.mxu0 0.0
      %583 = vmatpush1.msra.mxu0 %v285
      %584 = vmatprep.subr.mxu0 0.0
      %585 = vmatpush1.msra.mxu0 %v286
      %586 = vmatprep.subr.mxu0 0.0
      %587 = vmatpush1.msra.mxu0 %v287
      %588 = vmatprep.subr.mxu0 0.0
      %589 = vmatpush1.msra.mxu0 %v288
      %590 = vmatprep.subr.mxu0 0.0
      %591 = vmatpush1.msra.mxu0 %v289
      %592 = vmatprep.subr.mxu0 0.0
      %593 = vmatpush1.msra.mxu0 %v290
      %594 = vmatprep.subr.mxu0 0.0
      %595 = vmatpush1.msra.mxu0 %v291
      %596 = vmatprep.subr.mxu0 0.0
      %597 = vmatpush1.msra.mxu0 %v292
      %598 = vmatprep.subr.mxu0 0.0
      %599 = vmatpush1.msra.mxu0 %v293
      %600 = vmatprep.subr.mxu0 0.0
      %601 = vmatpush1.msra.mxu0 0.0
      %602 = vmatprep.subr.mxu0 0.0
      %603 = vmatpush1.msra.mxu0 0.0
      %604 = vmatprep.subr.mxu0 0.0
      %605 = vmatpush1.msra.mxu0 0.0
      %606 = vmatprep.subr.mxu0 0.0
      %607 = vmatpush1.msra.mxu0 0.0
      %608 = vmatprep.subr.mxu0 0.0
      %609 = vmatpush1.msra.mxu0 0.0
      %610 = vmatprep.subr.mxu0 0.0
      %611 = vmatpush1.msra.mxu0 0.0
      %612 = vmatprep.subr.mxu0 0.0
      %613 = vmatpush1.msra.mxu0 0.0
      %614 = vmatprep.subr.mxu0 0.0
      %615 = vmatpush1.msra.mxu0 0.0
      %616 = vmatprep.subr.mxu0 0.0
      %617 = vmatpush1.msra.mxu0 0.0
      %618 = vmatprep.subr.mxu0 0.0
      %619 = vmatpush1.msra.mxu0 0.0
      %620 = vmatprep.subr.mxu0 0.0
      %621 = vmatpush1.msra.mxu0 0.0
      %622 = vmatprep.subr.mxu0 0.0
      %623 = vmatpush1.msra.mxu0 0.0
      %624 = vmatprep.subr.mxu0 0.0
      %625 = vmatpush1.msra.mxu0 0.0
      %626 = vmatprep.subr.mxu0 0.0
      %627 = vmatpush1.msra.mxu0 0.0
      %628 = vmatprep.subr.mxu0 0.0
      %629 = vmatpush1.msra.mxu0 0.0
      %630 = vmatprep.subr.mxu0 0.0
      %631 = vmatpush1.msra.mxu0 0.0
      %632 = vmatprep.mubr.f32.mxu0 0.0
      %633 = vmatmul.mubr.f32.gmra.mrb[0].mxu0 %v246
      %v634 = vpop.f32.mrb[0].mxu0
      %v635 = vadd.f32 %v410, %v634
      %v636 = vpop.f32.mrb[0].mxu0
      %637 = vmatprep.mubr.f32.mxu0 0.0
      %638 = vmatmul.mubr.f32.gmra.mrb[0].mxu0 %v247
      %v639 = vpop.f32.mrb[0].mxu0
      %v640 = vadd.f32 %v415, %v639
      %v641 = vpop.f32.mrb[0].mxu0
      %642 = vmatprep.mubr.f32.mxu0 0.0
      %643 = vmatmul.mubr.f32.gmra.mrb[0].mxu0 %v248
      %v644 = vpop.f32.mrb[0].mxu0
      %v645 = vadd.f32 %v420, %v644
      %v646 = vpop.f32.mrb[0].mxu0
      %647 = vmatprep.mubr.f32.mxu0 0.0
      %648 = vmatmul.mubr.f32.gmra.mrb[0].mxu0 %v249
      %v649 = vpop.f32.mrb[0].mxu0
      %v650 = vadd.f32 %v425, %v649
      %v651 = vpop.f32.mrb[0].mxu0
      %652 = vmatprep.mubr.f32.mxu0 0.0
      %653 = vmatmul.mubr.f32.gmra.mrb[0].mxu0 %v250
      %v654 = vpop.f32.mrb[0].mxu0
      %v655 = vadd.f32 %v430, %v654
      %v656 = vpop.f32.mrb[0].mxu0
      %657 = vmatprep.mubr.f32.mxu0 0.0
      %658 = vmatmul.mubr.f32.gmra.mrb[0].mxu0 %v251
      %v659 = vpop.f32.mrb[0].mxu0
      %v660 = vadd.f32 %v435, %v659
      %v661 = vpop.f32.mrb[0].mxu0
      %662 = vmatprep.mubr.f32.mxu0 0.0
      %663 = vmatmul.mubr.f32.gmra.mrb[0].mxu0 %v252
      %v664 = vpop.f32.mrb[0].mxu0
      %v665 = vadd.f32 %v440, %v664
      %v666 = vpop.f32.mrb[0].mxu0
      %667 = vmatprep.mubr.f32.mxu0 0.0
      %668 = vmatmul.mubr.f32.gmra.mrb[0].mxu0 %v253
      %v669 = vpop.f32.mrb[0].mxu0
      %v670 = vadd.f32 %v445, %v669
      %v671 = vpop.f32.mrb[0].mxu0
      %672 = vmatprep.mubr.f32.mxu0 0.0
      %673 = vmatmul.mubr.f32.gmra.mrb[0].mxu0 %v254
      %v674 = vpop.f32.mrb[0].mxu0
      %v675 = vadd.f32 %v450, %v674
      %v676 = vpop.f32.mrb[0].mxu0
      %677 = vmatprep.mubr.f32.mxu0 0.0
      %678 = vmatmul.mubr.f32.gmra.mrb[0].mxu0 %v255
      %v679 = vpop.f32.mrb[0].mxu0
      %v680 = vadd.f32 %v455, %v679
      %v681 = vpop.f32.mrb[0].mxu0
      %682 = vmatprep.mubr.f32.mxu0 0.0
      %683 = vmatmul.mubr.f32.gmra.mrb[0].mxu0 %v256
      %v684 = vpop.f32.mrb[0].mxu0
      %v685 = vadd.f32 %v460, %v684
      %v686 = vpop.f32.mrb[0].mxu0
      %687 = vmatprep.mubr.f32.mxu0 0.0
      %688 = vmatmul.mubr.f32.gmra.mrb[0].mxu0 %v257
      %v689 = vpop.f32.mrb[0].mxu0
      %v690 = vadd.f32 %v465, %v689
      %v691 = vpop.f32.mrb[0].mxu0
      %692 = vmatprep.mubr.f32.mxu0 0.0
      %693 = vmatmul.mubr.f32.gmra.mrb[0].mxu0 %v258
      %v694 = vpop.f32.mrb[0].mxu0
      %v695 = vadd.f32 %v470, %v694
      %v696 = vpop.f32.mrb[0].mxu0
      %697 = vmatprep.mubr.f32.mxu0 0.0
      %698 = vmatmul.mubr.f32.gmra.mrb[0].mxu0 %v259
      %v699 = vpop.f32.mrb[0].mxu0
      %v700 = vadd.f32 %v475, %v699
      %v701 = vpop.f32.mrb[0].mxu0
      %702 = vmatprep.mubr.f32.mxu0 0.0
      %703 = vmatmul.mubr.f32.gmra.mrb[0].mxu0 %v260
      %v704 = vpop.f32.mrb[0].mxu0
      %v705 = vadd.f32 %v480, %v704
      %v706 = vpop.f32.mrb[0].mxu0
      %707 = vmatprep.mubr.f32.mxu0 0.0
      %708 = vmatmul.mubr.f32.gmra.mrb[0].mxu0 %v261
      %v709 = vpop.f32.mrb[0].mxu0
      %v710 = vadd.f32 %v485, %v709
      %v711 = vpop.f32.mrb[0].mxu0
      %712 = vmatprep.mubr.f32.mxu0 0.0
      %713 = vmatmul.mubr.f32.gmra.mrb[0].mxu0 %v262
      %v714 = vpop.f32.mrb[0].mxu0
      %v715 = vadd.f32 %v490, %v714
      %v716 = vpop.f32.mrb[0].mxu0
      %717 = vmatprep.mubr.f32.mxu0 0.0
      %718 = vmatmul.mubr.f32.gmra.mrb[0].mxu0 %v263
      %v719 = vpop.f32.mrb[0].mxu0
      %v720 = vadd.f32 %v495, %v719
      %v721 = vpop.f32.mrb[0].mxu0
      %722 = vmatprep.mubr.f32.mxu0 0.0
      %723 = vmatmul.mubr.f32.gmra.mrb[0].mxu0 %v264
      %v724 = vpop.f32.mrb[0].mxu0
      %v725 = vadd.f32 %v500, %v724
      %v726 = vpop.f32.mrb[0].mxu0
      %727 = vmatprep.mubr.f32.mxu0 0.0
      %728 = vmatmul.mubr.f32.gmra.mrb[0].mxu0 %v265
      %v729 = vpop.f32.mrb[0].mxu0
      %v730 = vadd.f32 %v505, %v729
      %v731 = vpop.f32.mrb[0].mxu0
      %732 = vmatprep.mubr.f32.mxu0 0.0
      %733 = vmatmul.mubr.f32.gmra.mrb[0].mxu0 %v266
      %v734 = vpop.f32.mrb[0].mxu0
      %v735 = vadd.f32 %v510, %v734
      %v736 = vpop.f32.mrb[0].mxu0
      %737 = vmatprep.mubr.f32.mxu0 0.0
      %738 = vmatmul.mubr.f32.gmra.mrb[0].mxu0 %v267
      %v739 = vpop.f32.mrb[0].mxu0
      %v740 = vadd.f32 %v515, %v739
      %v741 = vpop.f32.mrb[0].mxu0
      %742 = vmatprep.mubr.f32.mxu0 0.0
      %743 = vmatmul.mubr.f32.gmra.mrb[0].mxu0 %v268
      %v744 = vpop.f32.mrb[0].mxu0
      %v745 = vadd.f32 %v520, %v744
      %v746 = vpop.f32.mrb[0].mxu0
      %747 = vmatprep.mubr.f32.mxu0 0.0
      %748 = vmatmul.mubr.f32.gmra.mrb[0].mxu0 %v269
      %v749 = vpop.f32.mrb[0].mxu0
      %v750 = vadd.f32 %v525, %v749
      %v751 = vpop.f32.mrb[0].mxu0
      %752 = vmatprep.mubr.f32.mxu0 0.0
      %753 = vmatmul.mubr.f32.gmra.mrb[0].mxu0 %v270
      %v754 = vpop.f32.mrb[0].mxu0
      %v755 = vadd.f32 %v530, %v754
      %v756 = vpop.f32.mrb[0].mxu0
      %757 = vmatprep.mubr.f32.mxu0 0.0
      %758 = vmatmul.mubr.f32.gmra.mrb[0].mxu0 %v271
      %v759 = vpop.f32.mrb[0].mxu0
      %v760 = vadd.f32 %v535, %v759
      %v761 = vpop.f32.mrb[0].mxu0
      %762 = vmatprep.mubr.f32.mxu0 0.0
      %763 = vmatmul.mubr.f32.gmra.mrb[0].mxu0 %v272
      %v764 = vpop.f32.mrb[0].mxu0
      %v765 = vadd.f32 %v540, %v764
      %v766 = vpop.f32.mrb[0].mxu0
      %767 = vmatprep.mubr.f32.mxu0 0.0
      %768 = vmatmul.mubr.f32.gmra.mrb[0].mxu0 %v273
      %v769 = vpop.f32.mrb[0].mxu0
      %v770 = vadd.f32 %v545, %v769
      %v771 = vpop.f32.mrb[0].mxu0
      %772 = vmatprep.mubr.f32.mxu0 0.0
      %773 = vmatmul.mubr.f32.gmra.mrb[0].mxu0 %v274
      %v774 = vpop.f32.mrb[0].mxu0
      %v775 = vadd.f32 %v550, %v774
      %v776 = vpop.f32.mrb[0].mxu0
      %777 = vmatprep.mubr.f32.mxu0 0.0
      %778 = vmatmul.mubr.f32.gmra.mrb[0].mxu0 %v275
      %v779 = vpop.f32.mrb[0].mxu0
      %v780 = vadd.f32 %v555, %v779
      %v781 = vpop.f32.mrb[0].mxu0
      %782 = vmatprep.mubr.f32.mxu0 0.0
      %783 = vmatmul.mubr.f32.gmra.mrb[0].mxu0 %v276
      %v784 = vpop.f32.mrb[0].mxu0
      %v785 = vadd.f32 %v560, %v784
      %v786 = vpop.f32.mrb[0].mxu0
      %787 = vmatprep.mubr.f32.mxu0 0.0
      %788 = vmatmul.mubr.f32.gmra.mrb[0].mxu0 %v277
      %v789 = vpop.f32.mrb[0].mxu0
      %v790 = vadd.f32 %v565, %v789
      %v791 = vpop.f32.mrb[0].mxu0
      %792 = vdwg.mxu0
      %v793 = vld [vmem:[%s234 + $0x2] sm:$0xff]
      %v794 = vld [vmem:[%s234 + $0xa] sm:$0xff]
      %v795 = vld [vmem:[%s234 + $0x1a] sm:$0xff]
      %v796 = vld [vmem:[%s234 + $0x22] sm:$0xff]
      %v797 = vld [vmem:[%s234 + $0x32] sm:$0xff]
      %v798 = vld [vmem:[%s234 + $0x3a] sm:$0xff]
      %v799 = vld [vmem:[%s234 + $0x4a] sm:$0xff]
      %v800 = vld [vmem:[%s234 + $0x52] sm:$0xff]
      %v801 = vld [vmem:[%s234 + $0x62] sm:$0xff]
      %v802 = vld [vmem:[%s234 + $0x6a] sm:$0xff]
      %v803 = vld [vmem:[%s234 + $0x7a] sm:$0xff]
      %v804 = vld [vmem:[%s234 + $0x82] sm:$0xff]
      %v805 = vld [vmem:[%s234 + $0x92] sm:$0xff]
      %v806 = vld [vmem:[%s234 + $0x9a] sm:$0xff]
      %v807 = vld [vmem:[%s234 + $0xaa] sm:$0xff]
      %v808 = vld [vmem:[%s234 + $0xb2] sm:$0xff]
      %v809 = vld [vmem:[%s234 + $0xc2] sm:$0xff]
      %v810 = vld [vmem:[%s234 + $0xca] sm:$0xff]
      %v811 = vld [vmem:[%s234 + $0xda] sm:$0xff]
      %v812 = vld [vmem:[%s234 + $0xe2] sm:$0xff]
      %v813 = vld [vmem:[%s234 + $0xf2] sm:$0xff]
      %v814 = vld [vmem:[%s234 + $0xfa] sm:$0xff]
      %v815 = vld [vmem:[%s234 + $0x10a] sm:$0xff]
      %v816 = vld [vmem:[%s234 + $0x112] sm:$0xff]
      %v817 = vld [vmem:[%s234 + $0x122] sm:$0xff]
      %v818 = vld [vmem:[%s234 + $0x12a] sm:$0xff]
      %v819 = vld [vmem:[%s234 + $0x13a] sm:$0xff]
      %v820 = vld [vmem:[%s234 + $0x142] sm:$0xff]
      %v821 = vld [vmem:[%s234 + $0x152] sm:$0xff]
      %v822 = vld [vmem:[%s234 + $0x15a] sm:$0xff]
      %v823 = vld [vmem:[%s234 + $0x16a] sm:$0xff]
      %v824 = vld [vmem:[%s234 + $0x172] sm:$0xff]
      %s825 = scalar_lea.vmem %s2, 256
      %v826 = vld [vmem:[%s825] sm:$0xff]
      %v827 = vld [vmem:[%s825 + $0x8] sm:$0xff]
      %v828 = vld [vmem:[%s825 + $0x10] sm:$0xff]
      %v829 = vld [vmem:[%s825 + $0x18] sm:$0xff]
      %v830 = vld [vmem:[%s825 + $0x20] sm:$0xff]
      %v831 = vld [vmem:[%s825 + $0x28] sm:$0xff]
      %v832 = vld [vmem:[%s825 + $0x30] sm:$0xff]
      %v833 = vld [vmem:[%s825 + $0x38] sm:$0xff]
      %v834 = vld [vmem:[%s825 + $0x40] sm:$0xff]
      %v835 = vld [vmem:[%s825 + $0x48] sm:$0xff]
      %v836 = vld [vmem:[%s825 + $0x50] sm:$0xff]
      %v837 = vld [vmem:[%s825 + $0x58] sm:$0xff]
      %v838 = vld [vmem:[%s825 + $0x60] sm:$0xff]
      %v839 = vld [vmem:[%s825 + $0x68] sm:$0xff]
      %v840 = vld [vmem:[%s825 + $0x70] sm:$0xff]
      %v841 = vld [vmem:[%s825 + $0x78] sm:$0xff]
      %842 = vmatprep.subr.mxu0 0.0
      %843 = vmatpush1.msra.mxu0 %v826
      %844 = vmatprep.subr.mxu0 0.0
      %845 = vmatpush1.msra.mxu0 %v827
      %846 = vmatprep.subr.mxu0 0.0
      %847 = vmatpush1.msra.mxu0 %v828
      %848 = vmatprep.subr.mxu0 0.0
      %849 = vmatpush1.msra.mxu0 %v829
      %850 = vmatprep.subr.mxu0 0.0
      %851 = vmatpush1.msra.mxu0 %v830
      %852 = vmatprep.subr.mxu0 0.0
      %853 = vmatpush1.msra.mxu0 %v831
      %854 = vmatprep.subr.mxu0 0.0
      %855 = vmatpush1.msra.mxu0 %v832
      %856 = vmatprep.subr.mxu0 0.0
      %857 = vmatpush1.msra.mxu0 %v833
      %858 = vmatprep.subr.mxu0 0.0
      %859 = vmatpush1.msra.mxu0 %v834
      %860 = vmatprep.subr.mxu0 0.0
      %861 = vmatpush1.msra.mxu0 %v835
      %862 = vmatprep.subr.mxu0 0.0
      %863 = vmatpush1.msra.mxu0 %v836
      %864 = vmatprep.subr.mxu0 0.0
      %865 = vmatpush1.msra.mxu0 %v837
      %866 = vmatprep.subr.mxu0 0.0
      %867 = vmatpush1.msra.mxu0 %v838
      %868 = vmatprep.subr.mxu0 0.0
      %869 = vmatpush1.msra.mxu0 %v839
      %870 = vmatprep.subr.mxu0 0.0
      %871 = vmatpush1.msra.mxu0 %v840
      %872 = vmatprep.subr.mxu0 0.0
      %873 = vmatpush1.msra.mxu0 %v841
      %874 = vmatprep.subr.mxu0 0.0
      %875 = vmatpush1.msra.mxu0 0.0
      %876 = vmatprep.subr.mxu0 0.0
      %877 = vmatpush1.msra.mxu0 0.0
      %878 = vmatprep.subr.mxu0 0.0
      %879 = vmatpush1.msra.mxu0 0.0
      %880 = vmatprep.subr.mxu0 0.0
      %881 = vmatpush1.msra.mxu0 0.0
      %882 = vmatprep.subr.mxu0 0.0
      %883 = vmatpush1.msra.mxu0 0.0
      %884 = vmatprep.subr.mxu0 0.0
      %885 = vmatpush1.msra.mxu0 0.0
      %886 = vmatprep.subr.mxu0 0.0
      %887 = vmatpush1.msra.mxu0 0.0
      %888 = vmatprep.subr.mxu0 0.0
      %889 = vmatpush1.msra.mxu0 0.0
      %890 = vmatprep.subr.mxu0 0.0
      %891 = vmatpush1.msra.mxu0 0.0
      %892 = vmatprep.subr.mxu0 0.0
      %893 = vmatpush1.msra.mxu0 0.0
      %894 = vmatprep.subr.mxu0 0.0
      %895 = vmatpush1.msra.mxu0 0.0
      %896 = vmatprep.subr.mxu0 0.0
      %897 = vmatpush1.msra.mxu0 0.0
      %898 = vmatprep.subr.mxu0 0.0
      %899 = vmatpush1.msra.mxu0 0.0
      %900 = vmatprep.subr.mxu0 0.0
      %901 = vmatpush1.msra.mxu0 0.0
      %902 = vmatprep.subr.mxu0 0.0
      %903 = vmatpush1.msra.mxu0 0.0
      %904 = vmatprep.subr.mxu0 0.0
      %905 = vmatpush1.msra.mxu0 0.0
      %906 = vmatprep.mubr.f32.mxu0 0.0
      %907 = vmatmul.mubr.f32.gmra.mrb[0].mxu0 %v793
      %v908 = vpop.f32.mrb[0].mxu0
      %v909 = vadd.f32 0.0, %v908
      %v910 = vpop.f32.mrb[0].mxu0
      %911 = vmatprep.mubr.f32.mxu0 0.0
      %912 = vmatmul.mubr.f32.gmra.mrb[0].mxu0 %v794
      %v913 = vpop.f32.mrb[0].mxu0
      %v914 = vadd.f32 0.0, %v913
      %v915 = vpop.f32.mrb[0].mxu0
      %916 = vmatprep.mubr.f32.mxu0 0.0
      %917 = vmatmul.mubr.f32.gmra.mrb[0].mxu0 %v795
      %v918 = vpop.f32.mrb[0].mxu0
      %v919 = vadd.f32 0.0, %v918
      %v920 = vpop.f32.mrb[0].mxu0
      %921 = vmatprep.mubr.f32.mxu0 0.0
      %922 = vmatmul.mubr.f32.gmra.mrb[0].mxu0 %v796
      %v923 = vpop.f32.mrb[0].mxu0
      %v924 = vadd.f32 0.0, %v923
      %v925 = vpop.f32.mrb[0].mxu0
      %926 = vmatprep.mubr.f32.mxu0 0.0
      %927 = vmatmul.mubr.f32.gmra.mrb[0].mxu0 %v797
      %v928 = vpop.f32.mrb[0].mxu0
      %v929 = vadd.f32 0.0, %v928
      %v930 = vpop.f32.mrb[0].mxu0
      %931 = vmatprep.mubr.f32.mxu0 0.0
      %932 = vmatmul.mubr.f32.gmra.mrb[0].mxu0 %v798
      %v933 = vpop.f32.mrb[0].mxu0
      %v934 = vadd.f32 0.0, %v933
      %v935 = vpop.f32.mrb[0].mxu0
      %936 = vmatprep.mubr.f32.mxu0 0.0
      %937 = vmatmul.mubr.f32.gmra.mrb[0].mxu0 %v799
      %v938 = vpop.f32.mrb[0].mxu0
      %v939 = vadd.f32 0.0, %v938
      %v940 = vpop.f32.mrb[0].mxu0
      %941 = vmatprep.mubr.f32.mxu0 0.0
      %942 = vmatmul.mubr.f32.gmra.mrb[0].mxu0 %v800
      %v943 = vpop.f32.mrb[0].mxu0
      %v944 = vadd.f32 0.0, %v943
      %v945 = vpop.f32.mrb[0].mxu0
      %946 = vmatprep.mubr.f32.mxu0 0.0
      %947 = vmatmul.mubr.f32.gmra.mrb[0].mxu0 %v801
      %v948 = vpop.f32.mrb[0].mxu0
      %v949 = vadd.f32 0.0, %v948
      %v950 = vpop.f32.mrb[0].mxu0
      %951 = vmatprep.mubr.f32.mxu0 0.0
      %952 = vmatmul.mubr.f32.gmra.mrb[0].mxu0 %v802
      %v953 = vpop.f32.mrb[0].mxu0
      %v954 = vadd.f32 0.0, %v953
      %v955 = vpop.f32.mrb[0].mxu0
      %956 = vmatprep.mubr.f32.mxu0 0.0
      %957 = vmatmul.mubr.f32.gmra.mrb[0].mxu0 %v803
      %v958 = vpop.f32.mrb[0].mxu0
      %v959 = vadd.f32 0.0, %v958
      %v960 = vpop.f32.mrb[0].mxu0
      %961 = vmatprep.mubr.f32.mxu0 0.0
      %962 = vmatmul.mubr.f32.gmra.mrb[0].mxu0 %v804
      %v963 = vpop.f32.mrb[0].mxu0
      %v964 = vadd.f32 0.0, %v963
      %v965 = vpop.f32.mrb[0].mxu0
      %966 = vmatprep.mubr.f32.mxu0 0.0
      %967 = vmatmul.mubr.f32.gmra.mrb[0].mxu0 %v805
      %v968 = vpop.f32.mrb[0].mxu0
      %v969 = vadd.f32 0.0, %v968
      %v970 = vpop.f32.mrb[0].mxu0
      %971 = vmatprep.mubr.f32.mxu0 0.0
      %972 = vmatmul.mubr.f32.gmra.mrb[0].mxu0 %v806
      %v973 = vpop.f32.mrb[0].mxu0
      %v974 = vadd.f32 0.0, %v973
      %v975 = vpop.f32.mrb[0].mxu0
      %976 = vmatprep.mubr.f32.mxu0 0.0
      %977 = vmatmul.mubr.f32.gmra.mrb[0].mxu0 %v807
      %v978 = vpop.f32.mrb[0].mxu0
      %v979 = vadd.f32 0.0, %v978
      %v980 = vpop.f32.mrb[0].mxu0
      %981 = vmatprep.mubr.f32.mxu0 0.0
      %982 = vmatmul.mubr.f32.gmra.mrb[0].mxu0 %v808
      %v983 = vpop.f32.mrb[0].mxu0
      %v984 = vadd.f32 0.0, %v983
      %v985 = vpop.f32.mrb[0].mxu0
      %986 = vmatprep.mubr.f32.mxu0 0.0
      %987 = vmatmul.mubr.f32.gmra.mrb[0].mxu0 %v809
      %v988 = vpop.f32.mrb[0].mxu0
      %v989 = vadd.f32 0.0, %v988
      %v990 = vpop.f32.mrb[0].mxu0
      %991 = vmatprep.mubr.f32.mxu0 0.0
      %992 = vmatmul.mubr.f32.gmra.mrb[0].mxu0 %v810
      %v993 = vpop.f32.mrb[0].mxu0
      %v994 = vadd.f32 0.0, %v993
      %v995 = vpop.f32.mrb[0].mxu0
      %996 = vmatprep.mubr.f32.mxu0 0.0
      %997 = vmatmul.mubr.f32.gmra.mrb[0].mxu0 %v811
      %v998 = vpop.f32.mrb[0].mxu0
      %v999 = vadd.f32 0.0, %v998
      %v1000 = vpop.f32.mrb[0].mxu0
      %1001 = vmatprep.mubr.f32.mxu0 0.0
      %1002 = vmatmul.mubr.f32.gmra.mrb[0].mxu0 %v812
      %v1003 = vpop.f32.mrb[0].mxu0
      %v1004 = vadd.f32 0.0, %v1003
      %v1005 = vpop.f32.mrb[0].mxu0
      %1006 = vmatprep.mubr.f32.mxu0 0.0
      %1007 = vmatmul.mubr.f32.gmra.mrb[0].mxu0 %v813
      %v1008 = vpop.f32.mrb[0].mxu0
      %v1009 = vadd.f32 0.0, %v1008
      %v1010 = vpop.f32.mrb[0].mxu0
      %1011 = vmatprep.mubr.f32.mxu0 0.0
      %1012 = vmatmul.mubr.f32.gmra.mrb[0].mxu0 %v814
      %v1013 = vpop.f32.mrb[0].mxu0
      %v1014 = vadd.f32 0.0, %v1013
      %v1015 = vpop.f32.mrb[0].mxu0
      %1016 = vmatprep.mubr.f32.mxu0 0.0
      %1017 = vmatmul.mubr.f32.gmra.mrb[0].mxu0 %v815
      %v1018 = vpop.f32.mrb[0].mxu0
      %v1019 = vadd.f32 0.0, %v1018
      %v1020 = vpop.f32.mrb[0].mxu0
      %1021 = vmatprep.mubr.f32.mxu0 0.0
      %1022 = vmatmul.mubr.f32.gmra.mrb[0].mxu0 %v816
      %v1023 = vpop.f32.mrb[0].mxu0
      %v1024 = vadd.f32 0.0, %v1023
      %v1025 = vpop.f32.mrb[0].mxu0
      %1026 = vmatprep.mubr.f32.mxu0 0.0
      %1027 = vmatmul.mubr.f32.gmra.mrb[0].mxu0 %v817
      %v1028 = vpop.f32.mrb[0].mxu0
      %v1029 = vadd.f32 0.0, %v1028
      %v1030 = vpop.f32.mrb[0].mxu0
      %1031 = vmatprep.mubr.f32.mxu0 0.0
      %1032 = vmatmul.mubr.f32.gmra.mrb[0].mxu0 %v818
      %v1033 = vpop.f32.mrb[0].mxu0
      %v1034 = vadd.f32 0.0, %v1033
      %v1035 = vpop.f32.mrb[0].mxu0
      %1036 = vmatprep.mubr.f32.mxu0 0.0
      %1037 = vmatmul.mubr.f32.gmra.mrb[0].mxu0 %v819
      %v1038 = vpop.f32.mrb[0].mxu0
      %v1039 = vadd.f32 0.0, %v1038
      %v1040 = vpop.f32.mrb[0].mxu0
      %1041 = vmatprep.mubr.f32.mxu0 0.0
      %1042 = vmatmul.mubr.f32.gmra.mrb[0].mxu0 %v820
      %v1043 = vpop.f32.mrb[0].mxu0
      %v1044 = vadd.f32 0.0, %v1043
      %v1045 = vpop.f32.mrb[0].mxu0
      %1046 = vmatprep.mubr.f32.mxu0 0.0
      %1047 = vmatmul.mubr.f32.gmra.mrb[0].mxu0 %v821
      %v1048 = vpop.f32.mrb[0].mxu0
      %v1049 = vadd.f32 0.0, %v1048
      %v1050 = vpop.f32.mrb[0].mxu0
      %1051 = vmatprep.mubr.f32.mxu0 0.0
      %1052 = vmatmul.mubr.f32.gmra.mrb[0].mxu0 %v822
      %v1053 = vpop.f32.mrb[0].mxu0
      %v1054 = vadd.f32 0.0, %v1053
      %v1055 = vpop.f32.mrb[0].mxu0
      %1056 = vmatprep.mubr.f32.mxu0 0.0
      %1057 = vmatmul.mubr.f32.gmra.mrb[0].mxu0 %v823
      %v1058 = vpop.f32.mrb[0].mxu0
      %v1059 = vadd.f32 0.0, %v1058
      %v1060 = vpop.f32.mrb[0].mxu0
      %1061 = vmatprep.mubr.f32.mxu0 0.0
      %1062 = vmatmul.mubr.f32.gmra.mrb[0].mxu0 %v824
      %v1063 = vpop.f32.mrb[0].mxu0
      %v1064 = vadd.f32 0.0, %v1063
      %v1065 = vpop.f32.mrb[0].mxu0
      %1066 = vdwg.mxu0
      %v1067 = vadd.f32 %v635, %v909
      %v1068 = vadd.f32 %v640, %v914
      %v1069 = vadd.f32 %v645, %v919
      %v1070 = vadd.f32 %v650, %v924
      %v1071 = vadd.f32 %v655, %v929
      %v1072 = vadd.f32 %v660, %v934
      %v1073 = vadd.f32 %v665, %v939
      %v1074 = vadd.f32 %v670, %v944
      %v1075 = vadd.f32 %v675, %v949
      %v1076 = vadd.f32 %v680, %v954
      %v1077 = vadd.f32 %v685, %v959
      %v1078 = vadd.f32 %v690, %v964
      %v1079 = vadd.f32 %v695, %v969
      %v1080 = vadd.f32 %v700, %v974
      %v1081 = vadd.f32 %v705, %v979
      %v1082 = vadd.f32 %v710, %v984
      %v1083 = vadd.f32 %v715, %v989
      %v1084 = vadd.f32 %v720, %v994
      %v1085 = vadd.f32 %v725, %v999
      %v1086 = vadd.f32 %v730, %v1004
      %v1087 = vadd.f32 %v735, %v1009
      %v1088 = vadd.f32 %v740, %v1014
      %v1089 = vadd.f32 %v745, %v1019
      %v1090 = vadd.f32 %v750, %v1024
      %v1091 = vadd.f32 %v755, %v1029
      %v1092 = vadd.f32 %v760, %v1034
      %v1093 = vadd.f32 %v765, %v1039
      %v1094 = vadd.f32 %v770, %v1044
      %v1095 = vadd.f32 %v775, %v1049
      %v1096 = vadd.f32 %v780, %v1054
      %v1097 = vadd.f32 %v785, %v1059
      %v1098 = vadd.f32 %v790, %v1064
      %s1099 = scalar_lea.vmem %s234, 24
      %v1100 = vld [vmem:[%s1099] sm:$0xff]
      %v1101 = vld [vmem:[%s1099 + $0x8] sm:$0xff]
      %v1102 = vld [vmem:[%s1099 + $0x18] sm:$0xff]
      %v1103 = vld [vmem:[%s1099 + $0x20] sm:$0xff]
      %v1104 = vld [vmem:[%s1099 + $0x30] sm:$0xff]
      %v1105 = vld [vmem:[%s1099 + $0x38] sm:$0xff]
      %v1106 = vld [vmem:[%s1099 + $0x48] sm:$0xff]
      %v1107 = vld [vmem:[%s1099 + $0x50] sm:$0xff]
      %v1108 = vld [vmem:[%s1099 + $0x60] sm:$0xff]
      %v1109 = vld [vmem:[%s1099 + $0x68] sm:$0xff]
      %v1110 = vld [vmem:[%s1099 + $0x78] sm:$0xff]
      %v1111 = vld [vmem:[%s1099 + $0x80] sm:$0xff]
      %v1112 = vld [vmem:[%s1099 + $0x90] sm:$0xff]
      %v1113 = vld [vmem:[%s1099 + $0x98] sm:$0xff]
      %v1114 = vld [vmem:[%s1099 + $0xa8] sm:$0xff]
      %v1115 = vld [vmem:[%s1099 + $0xb0] sm:$0xff]
      %v1116 = vld [vmem:[%s1099 + $0xc0] sm:$0xff]
      %v1117 = vld [vmem:[%s1099 + $0xc8] sm:$0xff]
      %v1118 = vld [vmem:[%s1099 + $0xd8] sm:$0xff]
      %v1119 = vld [vmem:[%s1099 + $0xe0] sm:$0xff]
      %v1120 = vld [vmem:[%s1099 + $0xf0] sm:$0xff]
      %v1121 = vld [vmem:[%s1099 + $0xf8] sm:$0xff]
      %v1122 = vld [vmem:[%s1099 + $0x108] sm:$0xff]
      %v1123 = vld [vmem:[%s1099 + $0x110] sm:$0xff]
      %v1124 = vld [vmem:[%s1099 + $0x120] sm:$0xff]
      %v1125 = vld [vmem:[%s1099 + $0x128] sm:$0xff]
      %v1126 = vld [vmem:[%s1099 + $0x138] sm:$0xff]
      %v1127 = vld [vmem:[%s1099 + $0x140] sm:$0xff]
      %v1128 = vld [vmem:[%s1099 + $0x150] sm:$0xff]
      %v1129 = vld [vmem:[%s1099 + $0x158] sm:$0xff]
      %v1130 = vld [vmem:[%s1099 + $0x168] sm:$0xff]
      %v1131 = vld [vmem:[%s1099 + $0x170] sm:$0xff]
      %s1132 = scalar_lea.vmem %s2, 384
      %v1133 = vld [vmem:[%s1132] sm:$0xff]
      %v1134 = vld [vmem:[%s1132 + $0x8] sm:$0xff]
      %v1135 = vld [vmem:[%s1132 + $0x10] sm:$0xff]
      %v1136 = vld [vmem:[%s1132 + $0x18] sm:$0xff]
      %v1137 = vld [vmem:[%s1132 + $0x20] sm:$0xff]
      %v1138 = vld [vmem:[%s1132 + $0x28] sm:$0xff]
      %v1139 = vld [vmem:[%s1132 + $0x30] sm:$0xff]
      %v1140 = vld [vmem:[%s1132 + $0x38] sm:$0xff]
      %v1141 = vld [vmem:[%s1132 + $0x40] sm:$0xff]
      %v1142 = vld [vmem:[%s1132 + $0x48] sm:$0xff]
      %v1143 = vld [vmem:[%s1132 + $0x50] sm:$0xff]
      %v1144 = vld [vmem:[%s1132 + $0x58] sm:$0xff]
      %v1145 = vld [vmem:[%s1132 + $0x60] sm:$0xff]
      %v1146 = vld [vmem:[%s1132 + $0x68] sm:$0xff]
      %v1147 = vld [vmem:[%s1132 + $0x70] sm:$0xff]
      %v1148 = vld [vmem:[%s1132 + $0x78] sm:$0xff]
      %1149 = vmatprep.subr.mxu0 0.0
      %1150 = vmatpush1.msra.mxu0 %v1133
      %1151 = vmatprep.subr.mxu0 0.0
      %1152 = vmatpush1.msra.mxu0 %v1134
      %1153 = vmatprep.subr.mxu0 0.0
      %1154 = vmatpush1.msra.mxu0 %v1135
      %1155 = vmatprep.subr.mxu0 0.0
      %1156 = vmatpush1.msra.mxu0 %v1136
      %1157 = vmatprep.subr.mxu0 0.0
      %1158 = vmatpush1.msra.mxu0 %v1137
      %1159 = vmatprep.subr.mxu0 0.0
      %1160 = vmatpush1.msra.mxu0 %v1138
      %1161 = vmatprep.subr.mxu0 0.0
      %1162 = vmatpush1.msra.mxu0 %v1139
      %1163 = vmatprep.subr.mxu0 0.0
      %1164 = vmatpush1.msra.mxu0 %v1140
      %1165 = vmatprep.subr.mxu0 0.0
      %1166 = vmatpush1.msra.mxu0 %v1141
      %1167 = vmatprep.subr.mxu0 0.0
      %1168 = vmatpush1.msra.mxu0 %v1142
      %1169 = vmatprep.subr.mxu0 0.0
      %1170 = vmatpush1.msra.mxu0 %v1143
      %1171 = vmatprep.subr.mxu0 0.0
      %1172 = vmatpush1.msra.mxu0 %v1144
      %1173 = vmatprep.subr.mxu0 0.0
      %1174 = vmatpush1.msra.mxu0 %v1145
      %1175 = vmatprep.subr.mxu0 0.0
      %1176 = vmatpush1.msra.mxu0 %v1146
      %1177 = vmatprep.subr.mxu0 0.0
      %1178 = vmatpush1.msra.mxu0 %v1147
      %1179 = vmatprep.subr.mxu0 0.0
      %1180 = vmatpush1.msra.mxu0 %v1148
      %1181 = vmatprep.subr.mxu0 0.0
      %1182 = vmatpush1.msra.mxu0 0.0
      %1183 = vmatprep.subr.mxu0 0.0
      %1184 = vmatpush1.msra.mxu0 0.0
      %1185 = vmatprep.subr.mxu0 0.0
      %1186 = vmatpush1.msra.mxu0 0.0
      %1187 = vmatprep.subr.mxu0 0.0
      %1188 = vmatpush1.msra.mxu0 0.0
      %1189 = vmatprep.subr.mxu0 0.0
      %1190 = vmatpush1.msra.mxu0 0.0
      %1191 = vmatprep.subr.mxu0 0.0
      %1192 = vmatpush1.msra.mxu0 0.0
      %1193 = vmatprep.subr.mxu0 0.0
      %1194 = vmatpush1.msra.mxu0 0.0
      %1195 = vmatprep.subr.mxu0 0.0
      %1196 = vmatpush1.msra.mxu0 0.0
      %1197 = vmatprep.subr.mxu0 0.0
      %1198 = vmatpush1.msra.mxu0 0.0
      %1199 = vmatprep.subr.mxu0 0.0
      %1200 = vmatpush1.msra.mxu0 0.0
      %1201 = vmatprep.subr.mxu0 0.0
      %1202 = vmatpush1.msra.mxu0 0.0
      %1203 = vmatprep.subr.mxu0 0.0
      %1204 = vmatpush1.msra.mxu0 0.0
      %1205 = vmatprep.subr.mxu0 0.0
      %1206 = vmatpush1.msra.mxu0 0.0
      %1207 = vmatprep.subr.mxu0 0.0
      %1208 = vmatpush1.msra.mxu0 0.0
      %1209 = vmatprep.subr.mxu0 0.0
      %1210 = vmatpush1.msra.mxu0 0.0
      %1211 = vmatprep.subr.mxu0 0.0
      %1212 = vmatpush1.msra.mxu0 0.0
      %1213 = vmatprep.mubr.f32.mxu0 0.0
      %1214 = vmatmul.mubr.f32.gmra.mrb[0].mxu0 %v1100
      %v1215 = vpop.f32.mrb[0].mxu0
      %v1216 = vadd.f32 0.0, %v1215
      %v1217 = vpop.f32.mrb[0].mxu0
      %1218 = vmatprep.mubr.f32.mxu0 0.0
      %1219 = vmatmul.mubr.f32.gmra.mrb[0].mxu0 %v1101
      %v1220 = vpop.f32.mrb[0].mxu0
      %v1221 = vadd.f32 0.0, %v1220
      %v1222 = vpop.f32.mrb[0].mxu0
      %1223 = vmatprep.mubr.f32.mxu0 0.0
      %1224 = vmatmul.mubr.f32.gmra.mrb[0].mxu0 %v1102
      %v1225 = vpop.f32.mrb[0].mxu0
      %v1226 = vadd.f32 0.0, %v1225
      %v1227 = vpop.f32.mrb[0].mxu0
      %1228 = vmatprep.mubr.f32.mxu0 0.0
      %1229 = vmatmul.mubr.f32.gmra.mrb[0].mxu0 %v1103
      %v1230 = vpop.f32.mrb[0].mxu0
      %v1231 = vadd.f32 0.0, %v1230
      %v1232 = vpop.f32.mrb[0].mxu0
      %1233 = vmatprep.mubr.f32.mxu0 0.0
      %1234 = vmatmul.mubr.f32.gmra.mrb[0].mxu0 %v1104
      %v1235 = vpop.f32.mrb[0].mxu0
      %v1236 = vadd.f32 0.0, %v1235
      %v1237 = vpop.f32.mrb[0].mxu0
      %1238 = vmatprep.mubr.f32.mxu0 0.0
      %1239 = vmatmul.mubr.f32.gmra.mrb[0].mxu0 %v1105
      %v1240 = vpop.f32.mrb[0].mxu0
      %v1241 = vadd.f32 0.0, %v1240
      %v1242 = vpop.f32.mrb[0].mxu0
      %1243 = vmatprep.mubr.f32.mxu0 0.0
      %1244 = vmatmul.mubr.f32.gmra.mrb[0].mxu0 %v1106
      %v1245 = vpop.f32.mrb[0].mxu0
      %v1246 = vadd.f32 0.0, %v1245
      %v1247 = vpop.f32.mrb[0].mxu0
      %1248 = vmatprep.mubr.f32.mxu0 0.0
      %1249 = vmatmul.mubr.f32.gmra.mrb[0].mxu0 %v1107
      %v1250 = vpop.f32.mrb[0].mxu0
      %v1251 = vadd.f32 0.0, %v1250
      %v1252 = vpop.f32.mrb[0].mxu0
      %1253 = vmatprep.mubr.f32.mxu0 0.0
      %1254 = vmatmul.mubr.f32.gmra.mrb[0].mxu0 %v1108
      %v1255 = vpop.f32.mrb[0].mxu0
      %v1256 = vadd.f32 0.0, %v1255
      %v1257 = vpop.f32.mrb[0].mxu0
      %1258 = vmatprep.mubr.f32.mxu0 0.0
      %1259 = vmatmul.mubr.f32.gmra.mrb[0].mxu0 %v1109
      %v1260 = vpop.f32.mrb[0].mxu0
      %v1261 = vadd.f32 0.0, %v1260
      %v1262 = vpop.f32.mrb[0].mxu0
      %1263 = vmatprep.mubr.f32.mxu0 0.0
      %1264 = vmatmul.mubr.f32.gmra.mrb[0].mxu0 %v1110
      %v1265 = vpop.f32.mrb[0].mxu0
      %v1266 = vadd.f32 0.0, %v1265
      %v1267 = vpop.f32.mrb[0].mxu0
      %1268 = vmatprep.mubr.f32.mxu0 0.0
      %1269 = vmatmul.mubr.f32.gmra.mrb[0].mxu0 %v1111
      %v1270 = vpop.f32.mrb[0].mxu0
      %v1271 = vadd.f32 0.0, %v1270
      %v1272 = vpop.f32.mrb[0].mxu0
      %1273 = vmatprep.mubr.f32.mxu0 0.0
      %1274 = vmatmul.mubr.f32.gmra.mrb[0].mxu0 %v1112
      %v1275 = vpop.f32.mrb[0].mxu0
      %v1276 = vadd.f32 0.0, %v1275
      %v1277 = vpop.f32.mrb[0].mxu0
      %1278 = vmatprep.mubr.f32.mxu0 0.0
      %1279 = vmatmul.mubr.f32.gmra.mrb[0].mxu0 %v1113
      %v1280 = vpop.f32.mrb[0].mxu0
      %v1281 = vadd.f32 0.0, %v1280
      %v1282 = vpop.f32.mrb[0].mxu0
      %1283 = vmatprep.mubr.f32.mxu0 0.0
      %1284 = vmatmul.mubr.f32.gmra.mrb[0].mxu0 %v1114
      %v1285 = vpop.f32.mrb[0].mxu0
      %v1286 = vadd.f32 0.0, %v1285
      %v1287 = vpop.f32.mrb[0].mxu0
      %1288 = vmatprep.mubr.f32.mxu0 0.0
      %1289 = vmatmul.mubr.f32.gmra.mrb[0].mxu0 %v1115
      %v1290 = vpop.f32.mrb[0].mxu0
      %v1291 = vadd.f32 0.0, %v1290
      %v1292 = vpop.f32.mrb[0].mxu0
      %1293 = vmatprep.mubr.f32.mxu0 0.0
      %1294 = vmatmul.mubr.f32.gmra.mrb[0].mxu0 %v1116
      %v1295 = vpop.f32.mrb[0].mxu0
      %v1296 = vadd.f32 0.0, %v1295
      %v1297 = vpop.f32.mrb[0].mxu0
      %1298 = vmatprep.mubr.f32.mxu0 0.0
      %1299 = vmatmul.mubr.f32.gmra.mrb[0].mxu0 %v1117
      %v1300 = vpop.f32.mrb[0].mxu0
      %v1301 = vadd.f32 0.0, %v1300
      %v1302 = vpop.f32.mrb[0].mxu0
      %1303 = vmatprep.mubr.f32.mxu0 0.0
      %1304 = vmatmul.mubr.f32.gmra.mrb[0].mxu0 %v1118
      %v1305 = vpop.f32.mrb[0].mxu0
      %v1306 = vadd.f32 0.0, %v1305
      %v1307 = vpop.f32.mrb[0].mxu0
      %1308 = vmatprep.mubr.f32.mxu0 0.0
      %1309 = vmatmul.mubr.f32.gmra.mrb[0].mxu0 %v1119
      %v1310 = vpop.f32.mrb[0].mxu0
      %v1311 = vadd.f32 0.0, %v1310
      %v1312 = vpop.f32.mrb[0].mxu0
      %1313 = vmatprep.mubr.f32.mxu0 0.0
      %1314 = vmatmul.mubr.f32.gmra.mrb[0].mxu0 %v1120
      %v1315 = vpop.f32.mrb[0].mxu0
      %v1316 = vadd.f32 0.0, %v1315
      %v1317 = vpop.f32.mrb[0].mxu0
      %1318 = vmatprep.mubr.f32.mxu0 0.0
      %1319 = vmatmul.mubr.f32.gmra.mrb[0].mxu0 %v1121
      %v1320 = vpop.f32.mrb[0].mxu0
      %v1321 = vadd.f32 0.0, %v1320
      %v1322 = vpop.f32.mrb[0].mxu0
      %1323 = vmatprep.mubr.f32.mxu0 0.0
      %1324 = vmatmul.mubr.f32.gmra.mrb[0].mxu0 %v1122
      %v1325 = vpop.f32.mrb[0].mxu0
      %v1326 = vadd.f32 0.0, %v1325
      %v1327 = vpop.f32.mrb[0].mxu0
      %1328 = vmatprep.mubr.f32.mxu0 0.0
      %1329 = vmatmul.mubr.f32.gmra.mrb[0].mxu0 %v1123
      %v1330 = vpop.f32.mrb[0].mxu0
      %v1331 = vadd.f32 0.0, %v1330
      %v1332 = vpop.f32.mrb[0].mxu0
      %1333 = vmatprep.mubr.f32.mxu0 0.0
      %1334 = vmatmul.mubr.f32.gmra.mrb[0].mxu0 %v1124
      %v1335 = vpop.f32.mrb[0].mxu0
      %v1336 = vadd.f32 0.0, %v1335
      %v1337 = vpop.f32.mrb[0].mxu0
      %1338 = vmatprep.mubr.f32.mxu0 0.0
      %1339 = vmatmul.mubr.f32.gmra.mrb[0].mxu0 %v1125
      %v1340 = vpop.f32.mrb[0].mxu0
      %v1341 = vadd.f32 0.0, %v1340
      %v1342 = vpop.f32.mrb[0].mxu0
      %1343 = vmatprep.mubr.f32.mxu0 0.0
      %1344 = vmatmul.mubr.f32.gmra.mrb[0].mxu0 %v1126
      %v1345 = vpop.f32.mrb[0].mxu0
      %v1346 = vadd.f32 0.0, %v1345
      %v1347 = vpop.f32.mrb[0].mxu0
      %1348 = vmatprep.mubr.f32.mxu0 0.0
      %1349 = vmatmul.mubr.f32.gmra.mrb[0].mxu0 %v1127
      %v1350 = vpop.f32.mrb[0].mxu0
      %v1351 = vadd.f32 0.0, %v1350
      %v1352 = vpop.f32.mrb[0].mxu0
      %1353 = vmatprep.mubr.f32.mxu0 0.0
      %1354 = vmatmul.mubr.f32.gmra.mrb[0].mxu0 %v1128
      %v1355 = vpop.f32.mrb[0].mxu0
      %v1356 = vadd.f32 0.0, %v1355
      %v1357 = vpop.f32.mrb[0].mxu0
      %1358 = vmatprep.mubr.f32.mxu0 0.0
      %1359 = vmatmul.mubr.f32.gmra.mrb[0].mxu0 %v1129
      %v1360 = vpop.f32.mrb[0].mxu0
      %v1361 = vadd.f32 0.0, %v1360
      %v1362 = vpop.f32.mrb[0].mxu0
      %1363 = vmatprep.mubr.f32.mxu0 0.0
      %1364 = vmatmul.mubr.f32.gmra.mrb[0].mxu0 %v1130
      %v1365 = vpop.f32.mrb[0].mxu0
      %v1366 = vadd.f32 0.0, %v1365
      %v1367 = vpop.f32.mrb[0].mxu0
      %1368 = vmatprep.mubr.f32.mxu0 0.0
      %1369 = vmatmul.mubr.f32.gmra.mrb[0].mxu0 %v1131
      %v1370 = vpop.f32.mrb[0].mxu0
      %v1371 = vadd.f32 0.0, %v1370
      %v1372 = vpop.f32.mrb[0].mxu0
      %1373 = vdwg.mxu0
      %v1374 = vadd.f32 %v1067, %v1216
      %v1375 = vadd.f32 %v1068, %v1221
      %v1376 = vadd.f32 %v1069, %v1226
      %v1377 = vadd.f32 %v1070, %v1231
      %v1378 = vadd.f32 %v1071, %v1236
      %v1379 = vadd.f32 %v1072, %v1241
      %v1380 = vadd.f32 %v1073, %v1246
      %v1381 = vadd.f32 %v1074, %v1251
      %v1382 = vadd.f32 %v1075, %v1256
      %v1383 = vadd.f32 %v1076, %v1261
      %v1384 = vadd.f32 %v1077, %v1266
      %v1385 = vadd.f32 %v1078, %v1271
      %v1386 = vadd.f32 %v1079, %v1276
      %v1387 = vadd.f32 %v1080, %v1281
      %v1388 = vadd.f32 %v1081, %v1286
      %v1389 = vadd.f32 %v1082, %v1291
      %v1390 = vadd.f32 %v1083, %v1296
      %v1391 = vadd.f32 %v1084, %v1301
      %v1392 = vadd.f32 %v1085, %v1306
      %v1393 = vadd.f32 %v1086, %v1311
      %v1394 = vadd.f32 %v1087, %v1316
      %v1395 = vadd.f32 %v1088, %v1321
      %v1396 = vadd.f32 %v1089, %v1326
      %v1397 = vadd.f32 %v1090, %v1331
      %v1398 = vadd.f32 %v1091, %v1336
      %v1399 = vadd.f32 %v1092, %v1341
      %v1400 = vadd.f32 %v1093, %v1346
      %v1401 = vadd.f32 %v1094, %v1351
      %v1402 = vadd.f32 %v1095, %v1356
      %v1403 = vadd.f32 %v1096, %v1361
      %v1404 = vadd.f32 %v1097, %v1366
      %v1405 = vadd.f32 %v1098, %v1371
      %v1406 = vld [vmem:[%s1099 + $0x1] sm:$0xff]
      %v1407 = vld [vmem:[%s1099 + $0x9] sm:$0xff]
      %v1408 = vld [vmem:[%s1099 + $0x19] sm:$0xff]
      %v1409 = vld [vmem:[%s1099 + $0x21] sm:$0xff]
      %v1410 = vld [vmem:[%s1099 + $0x31] sm:$0xff]
      %v1411 = vld [vmem:[%s1099 + $0x39] sm:$0xff]
      %v1412 = vld [vmem:[%s1099 + $0x49] sm:$0xff]
      %v1413 = vld [vmem:[%s1099 + $0x51] sm:$0xff]
      %v1414 = vld [vmem:[%s1099 + $0x61] sm:$0xff]
      %v1415 = vld [vmem:[%s1099 + $0x69] sm:$0xff]
      %v1416 = vld [vmem:[%s1099 + $0x79] sm:$0xff]
      %v1417 = vld [vmem:[%s1099 + $0x81] sm:$0xff]
      %v1418 = vld [vmem:[%s1099 + $0x91] sm:$0xff]
      %v1419 = vld [vmem:[%s1099 + $0x99] sm:$0xff]
      %v1420 = vld [vmem:[%s1099 + $0xa9] sm:$0xff]
      %v1421 = vld [vmem:[%s1099 + $0xb1] sm:$0xff]
      %v1422 = vld [vmem:[%s1099 + $0xc1] sm:$0xff]
      %v1423 = vld [vmem:[%s1099 + $0xc9] sm:$0xff]
      %v1424 = vld [vmem:[%s1099 + $0xd9] sm:$0xff]
      %v1425 = vld [vmem:[%s1099 + $0xe1] sm:$0xff]
      %v1426 = vld [vmem:[%s1099 + $0xf1] sm:$0xff]
      %v1427 = vld [vmem:[%s1099 + $0xf9] sm:$0xff]
      %v1428 = vld [vmem:[%s1099 + $0x109] sm:$0xff]
      %v1429 = vld [vmem:[%s1099 + $0x111] sm:$0xff]
      %v1430 = vld [vmem:[%s1099 + $0x121] sm:$0xff]
      %v1431 = vld [vmem:[%s1099 + $0x129] sm:$0xff]
      %v1432 = vld [vmem:[%s1099 + $0x139] sm:$0xff]
      %v1433 = vld [vmem:[%s1099 + $0x141] sm:$0xff]
      %v1434 = vld [vmem:[%s1099 + $0x151] sm:$0xff]
      %v1435 = vld [vmem:[%s1099 + $0x159] sm:$0xff]
      %v1436 = vld [vmem:[%s1099 + $0x169] sm:$0xff]
      %v1437 = vld [vmem:[%s1099 + $0x171] sm:$0xff]
      %s1438 = scalar_lea.vmem %s2, 512
      %v1439 = vld [vmem:[%s1438] sm:$0xff]
      %v1440 = vld [vmem:[%s1438 + $0x8] sm:$0xff]
      %v1441 = vld [vmem:[%s1438 + $0x10] sm:$0xff]
      %v1442 = vld [vmem:[%s1438 + $0x18] sm:$0xff]
      %v1443 = vld [vmem:[%s1438 + $0x20] sm:$0xff]
      %v1444 = vld [vmem:[%s1438 + $0x28] sm:$0xff]
      %v1445 = vld [vmem:[%s1438 + $0x30] sm:$0xff]
      %v1446 = vld [vmem:[%s1438 + $0x38] sm:$0xff]
      %v1447 = vld [vmem:[%s1438 + $0x40] sm:$0xff]
      %v1448 = vld [vmem:[%s1438 + $0x48] sm:$0xff]
      %v1449 = vld [vmem:[%s1438 + $0x50] sm:$0xff]
      %v1450 = vld [vmem:[%s1438 + $0x58] sm:$0xff]
      %v1451 = vld [vmem:[%s1438 + $0x60] sm:$0xff]
      %v1452 = vld [vmem:[%s1438 + $0x68] sm:$0xff]
      %v1453 = vld [vmem:[%s1438 + $0x70] sm:$0xff]
      %v1454 = vld [vmem:[%s1438 + $0x78] sm:$0xff]
      %1455 = vmatprep.subr.mxu0 0.0
      %1456 = vmatpush1.msra.mxu0 %v1439
      %1457 = vmatprep.subr.mxu0 0.0
      %1458 = vmatpush1.msra.mxu0 %v1440
      %1459 = vmatprep.subr.mxu0 0.0
      %1460 = vmatpush1.msra.mxu0 %v1441
      %1461 = vmatprep.subr.mxu0 0.0
      %1462 = vmatpush1.msra.mxu0 %v1442
      %1463 = vmatprep.subr.mxu0 0.0
      %1464 = vmatpush1.msra.mxu0 %v1443
      %1465 = vmatprep.subr.mxu0 0.0
      %1466 = vmatpush1.msra.mxu0 %v1444
      %1467 = vmatprep.subr.mxu0 0.0
      %1468 = vmatpush1.msra.mxu0 %v1445
      %1469 = vmatprep.subr.mxu0 0.0
      %1470 = vmatpush1.msra.mxu0 %v1446
      %1471 = vmatprep.subr.mxu0 0.0
      %1472 = vmatpush1.msra.mxu0 %v1447
      %1473 = vmatprep.subr.mxu0 0.0
      %1474 = vmatpush1.msra.mxu0 %v1448
      %1475 = vmatprep.subr.mxu0 0.0
      %1476 = vmatpush1.msra.mxu0 %v1449
      %1477 = vmatprep.subr.mxu0 0.0
      %1478 = vmatpush1.msra.mxu0 %v1450
      %1479 = vmatprep.subr.mxu0 0.0
      %1480 = vmatpush1.msra.mxu0 %v1451
      %1481 = vmatprep.subr.mxu0 0.0
      %1482 = vmatpush1.msra.mxu0 %v1452
      %1483 = vmatprep.subr.mxu0 0.0
      %1484 = vmatpush1.msra.mxu0 %v1453
      %1485 = vmatprep.subr.mxu0 0.0
      %1486 = vmatpush1.msra.mxu0 %v1454
      %1487 = vmatprep.subr.mxu0 0.0
      %1488 = vmatpush1.msra.mxu0 0.0
      %1489 = vmatprep.subr.mxu0 0.0
      %1490 = vmatpush1.msra.mxu0 0.0
      %1491 = vmatprep.subr.mxu0 0.0
      %1492 = vmatpush1.msra.mxu0 0.0
      %1493 = vmatprep.subr.mxu0 0.0
      %1494 = vmatpush1.msra.mxu0 0.0
      %1495 = vmatprep.subr.mxu0 0.0
      %1496 = vmatpush1.msra.mxu0 0.0
      %1497 = vmatprep.subr.mxu0 0.0
      %1498 = vmatpush1.msra.mxu0 0.0
      %1499 = vmatprep.subr.mxu0 0.0
      %1500 = vmatpush1.msra.mxu0 0.0
      %1501 = vmatprep.subr.mxu0 0.0
      %1502 = vmatpush1.msra.mxu0 0.0
      %1503 = vmatprep.subr.mxu0 0.0
      %1504 = vmatpush1.msra.mxu0 0.0
      %1505 = vmatprep.subr.mxu0 0.0
      %1506 = vmatpush1.msra.mxu0 0.0
      %1507 = vmatprep.subr.mxu0 0.0
      %1508 = vmatpush1.msra.mxu0 0.0
      %1509 = vmatprep.subr.mxu0 0.0
      %1510 = vmatpush1.msra.mxu0 0.0
      %1511 = vmatprep.subr.mxu0 0.0
      %1512 = vmatpush1.msra.mxu0 0.0
      %1513 = vmatprep.subr.mxu0 0.0
      %1514 = vmatpush1.msra.mxu0 0.0
      %1515 = vmatprep.subr.mxu0 0.0
      %1516 = vmatpush1.msra.mxu0 0.0
      %1517 = vmatprep.subr.mxu0 0.0
      %1518 = vmatpush1.msra.mxu0 0.0
      %1519 = vmatprep.mubr.f32.mxu0 0.0
      %1520 = vmatmul.mubr.f32.gmra.mrb[0].mxu0 %v1406
      %v1521 = vpop.f32.mrb[0].mxu0
      %v1522 = vadd.f32 0.0, %v1521
      %v1523 = vpop.f32.mrb[0].mxu0
      %1524 = vmatprep.mubr.f32.mxu0 0.0
      %1525 = vmatmul.mubr.f32.gmra.mrb[0].mxu0 %v1407
      %v1526 = vpop.f32.mrb[0].mxu0
      %v1527 = vadd.f32 0.0, %v1526
      %v1528 = vpop.f32.mrb[0].mxu0
      %1529 = vmatprep.mubr.f32.mxu0 0.0
      %1530 = vmatmul.mubr.f32.gmra.mrb[0].mxu0 %v1408
      %v1531 = vpop.f32.mrb[0].mxu0
      %v1532 = vadd.f32 0.0, %v1531
      %v1533 = vpop.f32.mrb[0].mxu0
      %1534 = vmatprep.mubr.f32.mxu0 0.0
      %1535 = vmatmul.mubr.f32.gmra.mrb[0].mxu0 %v1409
      %v1536 = vpop.f32.mrb[0].mxu0
      %v1537 = vadd.f32 0.0, %v1536
      %v1538 = vpop.f32.mrb[0].mxu0
      %1539 = vmatprep.mubr.f32.mxu0 0.0
      %1540 = vmatmul.mubr.f32.gmra.mrb[0].mxu0 %v1410
      %v1541 = vpop.f32.mrb[0].mxu0
      %v1542 = vadd.f32 0.0, %v1541
      %v1543 = vpop.f32.mrb[0].mxu0
      %1544 = vmatprep.mubr.f32.mxu0 0.0
      %1545 = vmatmul.mubr.f32.gmra.mrb[0].mxu0 %v1411
      %v1546 = vpop.f32.mrb[0].mxu0
      %v1547 = vadd.f32 0.0, %v1546
      %v1548 = vpop.f32.mrb[0].mxu0
      %1549 = vmatprep.mubr.f32.mxu0 0.0
      %1550 = vmatmul.mubr.f32.gmra.mrb[0].mxu0 %v1412
      %v1551 = vpop.f32.mrb[0].mxu0
      %v1552 = vadd.f32 0.0, %v1551
      %v1553 = vpop.f32.mrb[0].mxu0
      %1554 = vmatprep.mubr.f32.mxu0 0.0
      %1555 = vmatmul.mubr.f32.gmra.mrb[0].mxu0 %v1413
      %v1556 = vpop.f32.mrb[0].mxu0
      %v1557 = vadd.f32 0.0, %v1556
      %v1558 = vpop.f32.mrb[0].mxu0
      %1559 = vmatprep.mubr.f32.mxu0 0.0
      %1560 = vmatmul.mubr.f32.gmra.mrb[0].mxu0 %v1414
      %v1561 = vpop.f32.mrb[0].mxu0
      %v1562 = vadd.f32 0.0, %v1561
      %v1563 = vpop.f32.mrb[0].mxu0
      %1564 = vmatprep.mubr.f32.mxu0 0.0
      %1565 = vmatmul.mubr.f32.gmra.mrb[0].mxu0 %v1415
      %v1566 = vpop.f32.mrb[0].mxu0
      %v1567 = vadd.f32 0.0, %v1566
      %v1568 = vpop.f32.mrb[0].mxu0
      %1569 = vmatprep.mubr.f32.mxu0 0.0
      %1570 = vmatmul.mubr.f32.gmra.mrb[0].mxu0 %v1416
      %v1571 = vpop.f32.mrb[0].mxu0
      %v1572 = vadd.f32 0.0, %v1571
      %v1573 = vpop.f32.mrb[0].mxu0
      %1574 = vmatprep.mubr.f32.mxu0 0.0
      %1575 = vmatmul.mubr.f32.gmra.mrb[0].mxu0 %v1417
      %v1576 = vpop.f32.mrb[0].mxu0
      %v1577 = vadd.f32 0.0, %v1576
      %v1578 = vpop.f32.mrb[0].mxu0
      %1579 = vmatprep.mubr.f32.mxu0 0.0
      %1580 = vmatmul.mubr.f32.gmra.mrb[0].mxu0 %v1418
      %v1581 = vpop.f32.mrb[0].mxu0
      %v1582 = vadd.f32 0.0, %v1581
      %v1583 = vpop.f32.mrb[0].mxu0
      %1584 = vmatprep.mubr.f32.mxu0 0.0
      %1585 = vmatmul.mubr.f32.gmra.mrb[0].mxu0 %v1419
      %v1586 = vpop.f32.mrb[0].mxu0
      %v1587 = vadd.f32 0.0, %v1586
      %v1588 = vpop.f32.mrb[0].mxu0
      %1589 = vmatprep.mubr.f32.mxu0 0.0
      %1590 = vmatmul.mubr.f32.gmra.mrb[0].mxu0 %v1420
      %v1591 = vpop.f32.mrb[0].mxu0
      %v1592 = vadd.f32 0.0, %v1591
      %v1593 = vpop.f32.mrb[0].mxu0
      %1594 = vmatprep.mubr.f32.mxu0 0.0
      %1595 = vmatmul.mubr.f32.gmra.mrb[0].mxu0 %v1421
      %v1596 = vpop.f32.mrb[0].mxu0
      %v1597 = vadd.f32 0.0, %v1596
      %v1598 = vpop.f32.mrb[0].mxu0
      %1599 = vmatprep.mubr.f32.mxu0 0.0
      %1600 = vmatmul.mubr.f32.gmra.mrb[0].mxu0 %v1422
      %v1601 = vpop.f32.mrb[0].mxu0
      %v1602 = vadd.f32 0.0, %v1601
      %v1603 = vpop.f32.mrb[0].mxu0
      %1604 = vmatprep.mubr.f32.mxu0 0.0
      %1605 = vmatmul.mubr.f32.gmra.mrb[0].mxu0 %v1423
      %v1606 = vpop.f32.mrb[0].mxu0
      %v1607 = vadd.f32 0.0, %v1606
      %v1608 = vpop.f32.mrb[0].mxu0
      %1609 = vmatprep.mubr.f32.mxu0 0.0
      %1610 = vmatmul.mubr.f32.gmra.mrb[0].mxu0 %v1424
      %v1611 = vpop.f32.mrb[0].mxu0
      %v1612 = vadd.f32 0.0, %v1611
      %v1613 = vpop.f32.mrb[0].mxu0
      %1614 = vmatprep.mubr.f32.mxu0 0.0
      %1615 = vmatmul.mubr.f32.gmra.mrb[0].mxu0 %v1425
      %v1616 = vpop.f32.mrb[0].mxu0
      %v1617 = vadd.f32 0.0, %v1616
      %v1618 = vpop.f32.mrb[0].mxu0
      %1619 = vmatprep.mubr.f32.mxu0 0.0
      %1620 = vmatmul.mubr.f32.gmra.mrb[0].mxu0 %v1426
      %v1621 = vpop.f32.mrb[0].mxu0
      %v1622 = vadd.f32 0.0, %v1621
      %v1623 = vpop.f32.mrb[0].mxu0
      %1624 = vmatprep.mubr.f32.mxu0 0.0
      %1625 = vmatmul.mubr.f32.gmra.mrb[0].mxu0 %v1427
      %v1626 = vpop.f32.mrb[0].mxu0
      %v1627 = vadd.f32 0.0, %v1626
      %v1628 = vpop.f32.mrb[0].mxu0
      %1629 = vmatprep.mubr.f32.mxu0 0.0
      %1630 = vmatmul.mubr.f32.gmra.mrb[0].mxu0 %v1428
      %v1631 = vpop.f32.mrb[0].mxu0
      %v1632 = vadd.f32 0.0, %v1631
      %v1633 = vpop.f32.mrb[0].mxu0
      %1634 = vmatprep.mubr.f32.mxu0 0.0
      %1635 = vmatmul.mubr.f32.gmra.mrb[0].mxu0 %v1429
      %v1636 = vpop.f32.mrb[0].mxu0
      %v1637 = vadd.f32 0.0, %v1636
      %v1638 = vpop.f32.mrb[0].mxu0
      %1639 = vmatprep.mubr.f32.mxu0 0.0
      %1640 = vmatmul.mubr.f32.gmra.mrb[0].mxu0 %v1430
      %v1641 = vpop.f32.mrb[0].mxu0
      %v1642 = vadd.f32 0.0, %v1641
      %v1643 = vpop.f32.mrb[0].mxu0
      %1644 = vmatprep.mubr.f32.mxu0 0.0
      %1645 = vmatmul.mubr.f32.gmra.mrb[0].mxu0 %v1431
      %v1646 = vpop.f32.mrb[0].mxu0
      %v1647 = vadd.f32 0.0, %v1646
      %v1648 = vpop.f32.mrb[0].mxu0
      %1649 = vmatprep.mubr.f32.mxu0 0.0
      %1650 = vmatmul.mubr.f32.gmra.mrb[0].mxu0 %v1432
      %v1651 = vpop.f32.mrb[0].mxu0
      %v1652 = vadd.f32 0.0, %v1651
      %v1653 = vpop.f32.mrb[0].mxu0
      %1654 = vmatprep.mubr.f32.mxu0 0.0
      %1655 = vmatmul.mubr.f32.gmra.mrb[0].mxu0 %v1433
      %v1656 = vpop.f32.mrb[0].mxu0
      %v1657 = vadd.f32 0.0, %v1656
      %v1658 = vpop.f32.mrb[0].mxu0
      %1659 = vmatprep.mubr.f32.mxu0 0.0
      %1660 = vmatmul.mubr.f32.gmra.mrb[0].mxu0 %v1434
      %v1661 = vpop.f32.mrb[0].mxu0
      %v1662 = vadd.f32 0.0, %v1661
      %v1663 = vpop.f32.mrb[0].mxu0
      %1664 = vmatprep.mubr.f32.mxu0 0.0
      %1665 = vmatmul.mubr.f32.gmra.mrb[0].mxu0 %v1435
      %v1666 = vpop.f32.mrb[0].mxu0
      %v1667 = vadd.f32 0.0, %v1666
      %v1668 = vpop.f32.mrb[0].mxu0
      %1669 = vmatprep.mubr.f32.mxu0 0.0
      %1670 = vmatmul.mubr.f32.gmra.mrb[0].mxu0 %v1436
      %v1671 = vpop.f32.mrb[0].mxu0
      %v1672 = vadd.f32 0.0, %v1671
      %v1673 = vpop.f32.mrb[0].mxu0
      %1674 = vmatprep.mubr.f32.mxu0 0.0
      %1675 = vmatmul.mubr.f32.gmra.mrb[0].mxu0 %v1437
      %v1676 = vpop.f32.mrb[0].mxu0
      %v1677 = vadd.f32 0.0, %v1676
      %v1678 = vpop.f32.mrb[0].mxu0
      %1679 = vdwg.mxu0
      %v1680 = vadd.f32 %v1374, %v1522
      %v1681 = vadd.f32 %v1375, %v1527
      %v1682 = vadd.f32 %v1376, %v1532
      %v1683 = vadd.f32 %v1377, %v1537
      %v1684 = vadd.f32 %v1378, %v1542
      %v1685 = vadd.f32 %v1379, %v1547
      %v1686 = vadd.f32 %v1380, %v1552
      %v1687 = vadd.f32 %v1381, %v1557
      %v1688 = vadd.f32 %v1382, %v1562
      %v1689 = vadd.f32 %v1383, %v1567
      %v1690 = vadd.f32 %v1384, %v1572
      %v1691 = vadd.f32 %v1385, %v1577
      %v1692 = vadd.f32 %v1386, %v1582
      %v1693 = vadd.f32 %v1387, %v1587
      %v1694 = vadd.f32 %v1388, %v1592
      %v1695 = vadd.f32 %v1389, %v1597
      %v1696 = vadd.f32 %v1390, %v1602
      %v1697 = vadd.f32 %v1391, %v1607
      %v1698 = vadd.f32 %v1392, %v1612
      %v1699 = vadd.f32 %v1393, %v1617
      %v1700 = vadd.f32 %v1394, %v1622
      %v1701 = vadd.f32 %v1395, %v1627
      %v1702 = vadd.f32 %v1396, %v1632
      %v1703 = vadd.f32 %v1397, %v1637
      %v1704 = vadd.f32 %v1398, %v1642
      %v1705 = vadd.f32 %v1399, %v1647
      %v1706 = vadd.f32 %v1400, %v1652
      %v1707 = vadd.f32 %v1401, %v1657
      %v1708 = vadd.f32 %v1402, %v1662
      %v1709 = vadd.f32 %v1403, %v1667
      %v1710 = vadd.f32 %v1404, %v1672
      %v1711 = vadd.f32 %v1405, %v1677
      %v1712 = vld [vmem:[%s1099 + $0x2] sm:$0xff]
      %v1713 = vld [vmem:[%s1099 + $0xa] sm:$0xff]
      %v1714 = vld [vmem:[%s1099 + $0x1a] sm:$0xff]
      %v1715 = vld [vmem:[%s1099 + $0x22] sm:$0xff]
      %v1716 = vld [vmem:[%s1099 + $0x32] sm:$0xff]
      %v1717 = vld [vmem:[%s1099 + $0x3a] sm:$0xff]
      %v1718 = vld [vmem:[%s1099 + $0x4a] sm:$0xff]
      %v1719 = vld [vmem:[%s1099 + $0x52] sm:$0xff]
      %v1720 = vld [vmem:[%s1099 + $0x62] sm:$0xff]
      %v1721 = vld [vmem:[%s1099 + $0x6a] sm:$0xff]
      %v1722 = vld [vmem:[%s1099 + $0x7a] sm:$0xff]
      %v1723 = vld [vmem:[%s1099 + $0x82] sm:$0xff]
      %v1724 = vld [vmem:[%s1099 + $0x92] sm:$0xff]
      %v1725 = vld [vmem:[%s1099 + $0x9a] sm:$0xff]
      %v1726 = vld [vmem:[%s1099 + $0xaa] sm:$0xff]
      %v1727 = vld [vmem:[%s1099 + $0xb2] sm:$0xff]
      %v1728 = vld [vmem:[%s1099 + $0xc2] sm:$0xff]
      %v1729 = vld [vmem:[%s1099 + $0xca] sm:$0xff]
      %v1730 = vld [vmem:[%s1099 + $0xda] sm:$0xff]
      %v1731 = vld [vmem:[%s1099 + $0xe2] sm:$0xff]
      %v1732 = vld [vmem:[%s1099 + $0xf2] sm:$0xff]
      %v1733 = vld [vmem:[%s1099 + $0xfa] sm:$0xff]
      %v1734 = vld [vmem:[%s1099 + $0x10a] sm:$0xff]
      %v1735 = vld [vmem:[%s1099 + $0x112] sm:$0xff]
      %v1736 = vld [vmem:[%s1099 + $0x122] sm:$0xff]
      %v1737 = vld [vmem:[%s1099 + $0x12a] sm:$0xff]
      %v1738 = vld [vmem:[%s1099 + $0x13a] sm:$0xff]
      %v1739 = vld [vmem:[%s1099 + $0x142] sm:$0xff]
      %v1740 = vld [vmem:[%s1099 + $0x152] sm:$0xff]
      %v1741 = vld [vmem:[%s1099 + $0x15a] sm:$0xff]
      %v1742 = vld [vmem:[%s1099 + $0x16a] sm:$0xff]
      %v1743 = vld [vmem:[%s1099 + $0x172] sm:$0xff]
      %s1744 = scalar_lea.vmem %s2, 640
      %v1745 = vld [vmem:[%s1744] sm:$0xff]
      %v1746 = vld [vmem:[%s1744 + $0x8] sm:$0xff]
      %v1747 = vld [vmem:[%s1744 + $0x10] sm:$0xff]
      %v1748 = vld [vmem:[%s1744 + $0x18] sm:$0xff]
      %v1749 = vld [vmem:[%s1744 + $0x20] sm:$0xff]
      %v1750 = vld [vmem:[%s1744 + $0x28] sm:$0xff]
      %v1751 = vld [vmem:[%s1744 + $0x30] sm:$0xff]
      %v1752 = vld [vmem:[%s1744 + $0x38] sm:$0xff]
      %v1753 = vld [vmem:[%s1744 + $0x40] sm:$0xff]
      %v1754 = vld [vmem:[%s1744 + $0x48] sm:$0xff]
      %v1755 = vld [vmem:[%s1744 + $0x50] sm:$0xff]
      %v1756 = vld [vmem:[%s1744 + $0x58] sm:$0xff]
      %v1757 = vld [vmem:[%s1744 + $0x60] sm:$0xff]
      %v1758 = vld [vmem:[%s1744 + $0x68] sm:$0xff]
      %v1759 = vld [vmem:[%s1744 + $0x70] sm:$0xff]
      %v1760 = vld [vmem:[%s1744 + $0x78] sm:$0xff]
      %1761 = vmatprep.subr.mxu0 0.0
      %1762 = vmatpush1.msra.mxu0 %v1745
      %1763 = vmatprep.subr.mxu0 0.0
      %1764 = vmatpush1.msra.mxu0 %v1746
      %1765 = vmatprep.subr.mxu0 0.0
      %1766 = vmatpush1.msra.mxu0 %v1747
      %1767 = vmatprep.subr.mxu0 0.0
      %1768 = vmatpush1.msra.mxu0 %v1748
      %1769 = vmatprep.subr.mxu0 0.0
      %1770 = vmatpush1.msra.mxu0 %v1749
      %1771 = vmatprep.subr.mxu0 0.0
      %1772 = vmatpush1.msra.mxu0 %v1750
      %1773 = vmatprep.subr.mxu0 0.0
      %1774 = vmatpush1.msra.mxu0 %v1751
      %1775 = vmatprep.subr.mxu0 0.0
      %1776 = vmatpush1.msra.mxu0 %v1752
      %1777 = vmatprep.subr.mxu0 0.0
      %1778 = vmatpush1.msra.mxu0 %v1753
      %1779 = vmatprep.subr.mxu0 0.0
      %1780 = vmatpush1.msra.mxu0 %v1754
      %1781 = vmatprep.subr.mxu0 0.0
      %1782 = vmatpush1.msra.mxu0 %v1755
      %1783 = vmatprep.subr.mxu0 0.0
      %1784 = vmatpush1.msra.mxu0 %v1756
      %1785 = vmatprep.subr.mxu0 0.0
      %1786 = vmatpush1.msra.mxu0 %v1757
      %1787 = vmatprep.subr.mxu0 0.0
      %1788 = vmatpush1.msra.mxu0 %v1758
      %1789 = vmatprep.subr.mxu0 0.0
      %1790 = vmatpush1.msra.mxu0 %v1759
      %1791 = vmatprep.subr.mxu0 0.0
      %1792 = vmatpush1.msra.mxu0 %v1760
      %1793 = vmatprep.subr.mxu0 0.0
      %1794 = vmatpush1.msra.mxu0 0.0
      %1795 = vmatprep.subr.mxu0 0.0
      %1796 = vmatpush1.msra.mxu0 0.0
      %1797 = vmatprep.subr.mxu0 0.0
      %1798 = vmatpush1.msra.mxu0 0.0
      %1799 = vmatprep.subr.mxu0 0.0
      %1800 = vmatpush1.msra.mxu0 0.0
      %1801 = vmatprep.subr.mxu0 0.0
      %1802 = vmatpush1.msra.mxu0 0.0
      %1803 = vmatprep.subr.mxu0 0.0
      %1804 = vmatpush1.msra.mxu0 0.0
      %1805 = vmatprep.subr.mxu0 0.0
      %1806 = vmatpush1.msra.mxu0 0.0
      %1807 = vmatprep.subr.mxu0 0.0
      %1808 = vmatpush1.msra.mxu0 0.0
      %1809 = vmatprep.subr.mxu0 0.0
      %1810 = vmatpush1.msra.mxu0 0.0
      %1811 = vmatprep.subr.mxu0 0.0
      %1812 = vmatpush1.msra.mxu0 0.0
      %1813 = vmatprep.subr.mxu0 0.0
      %1814 = vmatpush1.msra.mxu0 0.0
      %1815 = vmatprep.subr.mxu0 0.0
      %1816 = vmatpush1.msra.mxu0 0.0
      %1817 = vmatprep.subr.mxu0 0.0
      %1818 = vmatpush1.msra.mxu0 0.0
      %1819 = vmatprep.subr.mxu0 0.0
      %1820 = vmatpush1.msra.mxu0 0.0
      %1821 = vmatprep.subr.mxu0 0.0
      %1822 = vmatpush1.msra.mxu0 0.0
      %1823 = vmatprep.subr.mxu0 0.0
      %1824 = vmatpush1.msra.mxu0 0.0
      %1825 = vmatprep.mubr.f32.mxu0 0.0
      %1826 = vmatmul.mubr.f32.gmra.mrb[0].mxu0 %v1712
      %v1827 = vpop.f32.mrb[0].mxu0
      %v1828 = vadd.f32 0.0, %v1827
      %v1829 = vpop.f32.mrb[0].mxu0
      %1830 = vmatprep.mubr.f32.mxu0 0.0
      %1831 = vmatmul.mubr.f32.gmra.mrb[0].mxu0 %v1713
      %v1832 = vpop.f32.mrb[0].mxu0
      %v1833 = vadd.f32 0.0, %v1832
      %v1834 = vpop.f32.mrb[0].mxu0
      %1835 = vmatprep.mubr.f32.mxu0 0.0
      %1836 = vmatmul.mubr.f32.gmra.mrb[0].mxu0 %v1714
      %v1837 = vpop.f32.mrb[0].mxu0
      %v1838 = vadd.f32 0.0, %v1837
      %v1839 = vpop.f32.mrb[0].mxu0
      %1840 = vmatprep.mubr.f32.mxu0 0.0
      %1841 = vmatmul.mubr.f32.gmra.mrb[0].mxu0 %v1715
      %v1842 = vpop.f32.mrb[0].mxu0
      %v1843 = vadd.f32 0.0, %v1842
      %v1844 = vpop.f32.mrb[0].mxu0
      %1845 = vmatprep.mubr.f32.mxu0 0.0
      %1846 = vmatmul.mubr.f32.gmra.mrb[0].mxu0 %v1716
      %v1847 = vpop.f32.mrb[0].mxu0
      %v1848 = vadd.f32 0.0, %v1847
      %v1849 = vpop.f32.mrb[0].mxu0
      %1850 = vmatprep.mubr.f32.mxu0 0.0
      %1851 = vmatmul.mubr.f32.gmra.mrb[0].mxu0 %v1717
      %v1852 = vpop.f32.mrb[0].mxu0
      %v1853 = vadd.f32 0.0, %v1852
      %v1854 = vpop.f32.mrb[0].mxu0
      %1855 = vmatprep.mubr.f32.mxu0 0.0
      %1856 = vmatmul.mubr.f32.gmra.mrb[0].mxu0 %v1718
      %v1857 = vpop.f32.mrb[0].mxu0
      %v1858 = vadd.f32 0.0, %v1857
      %v1859 = vpop.f32.mrb[0].mxu0
      %1860 = vmatprep.mubr.f32.mxu0 0.0
      %1861 = vmatmul.mubr.f32.gmra.mrb[0].mxu0 %v1719
      %v1862 = vpop.f32.mrb[0].mxu0
      %v1863 = vadd.f32 0.0, %v1862
      %v1864 = vpop.f32.mrb[0].mxu0
      %1865 = vmatprep.mubr.f32.mxu0 0.0
      %1866 = vmatmul.mubr.f32.gmra.mrb[0].mxu0 %v1720
      %v1867 = vpop.f32.mrb[0].mxu0
      %v1868 = vadd.f32 0.0, %v1867
      %v1869 = vpop.f32.mrb[0].mxu0
      %1870 = vmatprep.mubr.f32.mxu0 0.0
      %1871 = vmatmul.mubr.f32.gmra.mrb[0].mxu0 %v1721
      %v1872 = vpop.f32.mrb[0].mxu0
      %v1873 = vadd.f32 0.0, %v1872
      %v1874 = vpop.f32.mrb[0].mxu0
      %1875 = vmatprep.mubr.f32.mxu0 0.0
      %1876 = vmatmul.mubr.f32.gmra.mrb[0].mxu0 %v1722
      %v1877 = vpop.f32.mrb[0].mxu0
      %v1878 = vadd.f32 0.0, %v1877
      %v1879 = vpop.f32.mrb[0].mxu0
      %1880 = vmatprep.mubr.f32.mxu0 0.0
      %1881 = vmatmul.mubr.f32.gmra.mrb[0].mxu0 %v1723
      %v1882 = vpop.f32.mrb[0].mxu0
      %v1883 = vadd.f32 0.0, %v1882
      %v1884 = vpop.f32.mrb[0].mxu0
      %1885 = vmatprep.mubr.f32.mxu0 0.0
      %1886 = vmatmul.mubr.f32.gmra.mrb[0].mxu0 %v1724
      %v1887 = vpop.f32.mrb[0].mxu0
      %v1888 = vadd.f32 0.0, %v1887
      %v1889 = vpop.f32.mrb[0].mxu0
      %1890 = vmatprep.mubr.f32.mxu0 0.0
      %1891 = vmatmul.mubr.f32.gmra.mrb[0].mxu0 %v1725
      %v1892 = vpop.f32.mrb[0].mxu0
      %v1893 = vadd.f32 0.0, %v1892
      %v1894 = vpop.f32.mrb[0].mxu0
      %1895 = vmatprep.mubr.f32.mxu0 0.0
      %1896 = vmatmul.mubr.f32.gmra.mrb[0].mxu0 %v1726
      %v1897 = vpop.f32.mrb[0].mxu0
      %v1898 = vadd.f32 0.0, %v1897
      %v1899 = vpop.f32.mrb[0].mxu0
      %1900 = vmatprep.mubr.f32.mxu0 0.0
      %1901 = vmatmul.mubr.f32.gmra.mrb[0].mxu0 %v1727
      %v1902 = vpop.f32.mrb[0].mxu0
      %v1903 = vadd.f32 0.0, %v1902
      %v1904 = vpop.f32.mrb[0].mxu0
      %1905 = vmatprep.mubr.f32.mxu0 0.0
      %1906 = vmatmul.mubr.f32.gmra.mrb[0].mxu0 %v1728
      %v1907 = vpop.f32.mrb[0].mxu0
      %v1908 = vadd.f32 0.0, %v1907
      %v1909 = vpop.f32.mrb[0].mxu0
      %1910 = vmatprep.mubr.f32.mxu0 0.0
      %1911 = vmatmul.mubr.f32.gmra.mrb[0].mxu0 %v1729
      %v1912 = vpop.f32.mrb[0].mxu0
      %v1913 = vadd.f32 0.0, %v1912
      %v1914 = vpop.f32.mrb[0].mxu0
      %1915 = vmatprep.mubr.f32.mxu0 0.0
      %1916 = vmatmul.mubr.f32.gmra.mrb[0].mxu0 %v1730
      %v1917 = vpop.f32.mrb[0].mxu0
      %v1918 = vadd.f32 0.0, %v1917
      %v1919 = vpop.f32.mrb[0].mxu0
      %1920 = vmatprep.mubr.f32.mxu0 0.0
      %1921 = vmatmul.mubr.f32.gmra.mrb[0].mxu0 %v1731
      %v1922 = vpop.f32.mrb[0].mxu0
      %v1923 = vadd.f32 0.0, %v1922
      %v1924 = vpop.f32.mrb[0].mxu0
      %1925 = vmatprep.mubr.f32.mxu0 0.0
      %1926 = vmatmul.mubr.f32.gmra.mrb[0].mxu0 %v1732
      %v1927 = vpop.f32.mrb[0].mxu0
      %v1928 = vadd.f32 0.0, %v1927
      %v1929 = vpop.f32.mrb[0].mxu0
      %1930 = vmatprep.mubr.f32.mxu0 0.0
      %1931 = vmatmul.mubr.f32.gmra.mrb[0].mxu0 %v1733
      %v1932 = vpop.f32.mrb[0].mxu0
      %v1933 = vadd.f32 0.0, %v1932
      %v1934 = vpop.f32.mrb[0].mxu0
      %1935 = vmatprep.mubr.f32.mxu0 0.0
      %1936 = vmatmul.mubr.f32.gmra.mrb[0].mxu0 %v1734
      %v1937 = vpop.f32.mrb[0].mxu0
      %v1938 = vadd.f32 0.0, %v1937
      %v1939 = vpop.f32.mrb[0].mxu0
      %1940 = vmatprep.mubr.f32.mxu0 0.0
      %1941 = vmatmul.mubr.f32.gmra.mrb[0].mxu0 %v1735
      %v1942 = vpop.f32.mrb[0].mxu0
      %v1943 = vadd.f32 0.0, %v1942
      %v1944 = vpop.f32.mrb[0].mxu0
      %1945 = vmatprep.mubr.f32.mxu0 0.0
      %1946 = vmatmul.mubr.f32.gmra.mrb[0].mxu0 %v1736
      %v1947 = vpop.f32.mrb[0].mxu0
      %v1948 = vadd.f32 0.0, %v1947
      %v1949 = vpop.f32.mrb[0].mxu0
      %1950 = vmatprep.mubr.f32.mxu0 0.0
      %1951 = vmatmul.mubr.f32.gmra.mrb[0].mxu0 %v1737
      %v1952 = vpop.f32.mrb[0].mxu0
      %v1953 = vadd.f32 0.0, %v1952
      %v1954 = vpop.f32.mrb[0].mxu0
      %1955 = vmatprep.mubr.f32.mxu0 0.0
      %1956 = vmatmul.mubr.f32.gmra.mrb[0].mxu0 %v1738
      %v1957 = vpop.f32.mrb[0].mxu0
      %v1958 = vadd.f32 0.0, %v1957
      %v1959 = vpop.f32.mrb[0].mxu0
      %1960 = vmatprep.mubr.f32.mxu0 0.0
      %1961 = vmatmul.mubr.f32.gmra.mrb[0].mxu0 %v1739
      %v1962 = vpop.f32.mrb[0].mxu0
      %v1963 = vadd.f32 0.0, %v1962
      %v1964 = vpop.f32.mrb[0].mxu0
      %1965 = vmatprep.mubr.f32.mxu0 0.0
      %1966 = vmatmul.mubr.f32.gmra.mrb[0].mxu0 %v1740
      %v1967 = vpop.f32.mrb[0].mxu0
      %v1968 = vadd.f32 0.0, %v1967
      %v1969 = vpop.f32.mrb[0].mxu0
      %1970 = vmatprep.mubr.f32.mxu0 0.0
      %1971 = vmatmul.mubr.f32.gmra.mrb[0].mxu0 %v1741
      %v1972 = vpop.f32.mrb[0].mxu0
      %v1973 = vadd.f32 0.0, %v1972
      %v1974 = vpop.f32.mrb[0].mxu0
      %1975 = vmatprep.mubr.f32.mxu0 0.0
      %1976 = vmatmul.mubr.f32.gmra.mrb[0].mxu0 %v1742
      %v1977 = vpop.f32.mrb[0].mxu0
      %v1978 = vadd.f32 0.0, %v1977
      %v1979 = vpop.f32.mrb[0].mxu0
      %1980 = vmatprep.mubr.f32.mxu0 0.0
      %1981 = vmatmul.mubr.f32.gmra.mrb[0].mxu0 %v1743
      %v1982 = vpop.f32.mrb[0].mxu0
      %v1983 = vadd.f32 0.0, %v1982
      %v1984 = vpop.f32.mrb[0].mxu0
      %1985 = vdwg.mxu0
      %v1986 = vadd.f32 %v1680, %v1828
      %v1987 = vadd.f32 %v1681, %v1833
      %v1988 = vadd.f32 %v1682, %v1838
      %v1989 = vadd.f32 %v1683, %v1843
      %v1990 = vadd.f32 %v1684, %v1848
      %v1991 = vadd.f32 %v1685, %v1853
      %v1992 = vadd.f32 %v1686, %v1858
      %v1993 = vadd.f32 %v1687, %v1863
      %v1994 = vadd.f32 %v1688, %v1868
      %v1995 = vadd.f32 %v1689, %v1873
      %v1996 = vadd.f32 %v1690, %v1878
      %v1997 = vadd.f32 %v1691, %v1883
      %v1998 = vadd.f32 %v1692, %v1888
      %v1999 = vadd.f32 %v1693, %v1893
      %v2000 = vadd.f32 %v1694, %v1898
      %v2001 = vadd.f32 %v1695, %v1903
      %v2002 = vadd.f32 %v1696, %v1908
      %v2003 = vadd.f32 %v1697, %v1913
      %v2004 = vadd.f32 %v1698, %v1918
      %v2005 = vadd.f32 %v1699, %v1923
      %v2006 = vadd.f32 %v1700, %v1928
      %v2007 = vadd.f32 %v1701, %v1933
      %v2008 = vadd.f32 %v1702, %v1938
      %v2009 = vadd.f32 %v1703, %v1943
      %v2010 = vadd.f32 %v1704, %v1948
      %v2011 = vadd.f32 %v1705, %v1953
      %v2012 = vadd.f32 %v1706, %v1958
      %v2013 = vadd.f32 %v1707, %v1963
      %v2014 = vadd.f32 %v1708, %v1968
      %v2015 = vadd.f32 %v1709, %v1973
      %v2016 = vadd.f32 %v1710, %v1978
      %v2017 = vadd.f32 %v1711, %v1983
      %s2018 = scalar_lea.vmem %s234, 48
      %v2019 = vld [vmem:[%s2018] sm:$0xff]
      %v2020 = vld [vmem:[%s2018 + $0x8] sm:$0xff]
      %v2021 = vld [vmem:[%s2018 + $0x18] sm:$0xff]
      %v2022 = vld [vmem:[%s2018 + $0x20] sm:$0xff]
      %v2023 = vld [vmem:[%s2018 + $0x30] sm:$0xff]
      %v2024 = vld [vmem:[%s2018 + $0x38] sm:$0xff]
      %v2025 = vld [vmem:[%s2018 + $0x48] sm:$0xff]
      %v2026 = vld [vmem:[%s2018 + $0x50] sm:$0xff]
      %v2027 = vld [vmem:[%s2018 + $0x60] sm:$0xff]
      %v2028 = vld [vmem:[%s2018 + $0x68] sm:$0xff]
      %v2029 = vld [vmem:[%s2018 + $0x78] sm:$0xff]
      %v2030 = vld [vmem:[%s2018 + $0x80] sm:$0xff]
      %v2031 = vld [vmem:[%s2018 + $0x90] sm:$0xff]
      %v2032 = vld [vmem:[%s2018 + $0x98] sm:$0xff]
      %v2033 = vld [vmem:[%s2018 + $0xa8] sm:$0xff]
      %v2034 = vld [vmem:[%s2018 + $0xb0] sm:$0xff]
      %v2035 = vld [vmem:[%s2018 + $0xc0] sm:$0xff]
      %v2036 = vld [vmem:[%s2018 + $0xc8] sm:$0xff]
      %v2037 = vld [vmem:[%s2018 + $0xd8] sm:$0xff]
      %v2038 = vld [vmem:[%s2018 + $0xe0] sm:$0xff]
      %v2039 = vld [vmem:[%s2018 + $0xf0] sm:$0xff]
      %v2040 = vld [vmem:[%s2018 + $0xf8] sm:$0xff]
      %v2041 = vld [vmem:[%s2018 + $0x108] sm:$0xff]
      %v2042 = vld [vmem:[%s2018 + $0x110] sm:$0xff]
      %v2043 = vld [vmem:[%s2018 + $0x120] sm:$0xff]
      %v2044 = vld [vmem:[%s2018 + $0x128] sm:$0xff]
      %v2045 = vld [vmem:[%s2018 + $0x138] sm:$0xff]
      %v2046 = vld [vmem:[%s2018 + $0x140] sm:$0xff]
      %v2047 = vld [vmem:[%s2018 + $0x150] sm:$0xff]
      %v2048 = vld [vmem:[%s2018 + $0x158] sm:$0xff]
      %v2049 = vld [vmem:[%s2018 + $0x168] sm:$0xff]
      %v2050 = vld [vmem:[%s2018 + $0x170] sm:$0xff]
      %s2051 = scalar_lea.vmem %s2, 768
      %v2052 = vld [vmem:[%s2051] sm:$0xff]
      %v2053 = vld [vmem:[%s2051 + $0x8] sm:$0xff]
      %v2054 = vld [vmem:[%s2051 + $0x10] sm:$0xff]
      %v2055 = vld [vmem:[%s2051 + $0x18] sm:$0xff]
      %v2056 = vld [vmem:[%s2051 + $0x20] sm:$0xff]
      %v2057 = vld [vmem:[%s2051 + $0x28] sm:$0xff]
      %v2058 = vld [vmem:[%s2051 + $0x30] sm:$0xff]
      %v2059 = vld [vmem:[%s2051 + $0x38] sm:$0xff]
      %v2060 = vld [vmem:[%s2051 + $0x40] sm:$0xff]
      %v2061 = vld [vmem:[%s2051 + $0x48] sm:$0xff]
      %v2062 = vld [vmem:[%s2051 + $0x50] sm:$0xff]
      %v2063 = vld [vmem:[%s2051 + $0x58] sm:$0xff]
      %v2064 = vld [vmem:[%s2051 + $0x60] sm:$0xff]
      %v2065 = vld [vmem:[%s2051 + $0x68] sm:$0xff]
      %v2066 = vld [vmem:[%s2051 + $0x70] sm:$0xff]
      %v2067 = vld [vmem:[%s2051 + $0x78] sm:$0xff]
      %2068 = vmatprep.subr.mxu0 0.0
      %2069 = vmatpush1.msra.mxu0 %v2052
      %2070 = vmatprep.subr.mxu0 0.0
      %2071 = vmatpush1.msra.mxu0 %v2053
      %2072 = vmatprep.subr.mxu0 0.0
      %2073 = vmatpush1.msra.mxu0 %v2054
      %2074 = vmatprep.subr.mxu0 0.0
      %2075 = vmatpush1.msra.mxu0 %v2055
      %2076 = vmatprep.subr.mxu0 0.0
      %2077 = vmatpush1.msra.mxu0 %v2056
      %2078 = vmatprep.subr.mxu0 0.0
      %2079 = vmatpush1.msra.mxu0 %v2057
      %2080 = vmatprep.subr.mxu0 0.0
      %2081 = vmatpush1.msra.mxu0 %v2058
      %2082 = vmatprep.subr.mxu0 0.0
      %2083 = vmatpush1.msra.mxu0 %v2059
      %2084 = vmatprep.subr.mxu0 0.0
      %2085 = vmatpush1.msra.mxu0 %v2060
      %2086 = vmatprep.subr.mxu0 0.0
      %2087 = vmatpush1.msra.mxu0 %v2061
      %2088 = vmatprep.subr.mxu0 0.0
      %2089 = vmatpush1.msra.mxu0 %v2062
      %2090 = vmatprep.subr.mxu0 0.0
      %2091 = vmatpush1.msra.mxu0 %v2063
      %2092 = vmatprep.subr.mxu0 0.0
      %2093 = vmatpush1.msra.mxu0 %v2064
      %2094 = vmatprep.subr.mxu0 0.0
      %2095 = vmatpush1.msra.mxu0 %v2065
      %2096 = vmatprep.subr.mxu0 0.0
      %2097 = vmatpush1.msra.mxu0 %v2066
      %2098 = vmatprep.subr.mxu0 0.0
      %2099 = vmatpush1.msra.mxu0 %v2067
      %2100 = vmatprep.subr.mxu0 0.0
      %2101 = vmatpush1.msra.mxu0 0.0
      %2102 = vmatprep.subr.mxu0 0.0
      %2103 = vmatpush1.msra.mxu0 0.0
      %2104 = vmatprep.subr.mxu0 0.0
      %2105 = vmatpush1.msra.mxu0 0.0
      %2106 = vmatprep.subr.mxu0 0.0
      %2107 = vmatpush1.msra.mxu0 0.0
      %2108 = vmatprep.subr.mxu0 0.0
      %2109 = vmatpush1.msra.mxu0 0.0
      %2110 = vmatprep.subr.mxu0 0.0
      %2111 = vmatpush1.msra.mxu0 0.0
      %2112 = vmatprep.subr.mxu0 0.0
      %2113 = vmatpush1.msra.mxu0 0.0
      %2114 = vmatprep.subr.mxu0 0.0
      %2115 = vmatpush1.msra.mxu0 0.0
      %2116 = vmatprep.subr.mxu0 0.0
      %2117 = vmatpush1.msra.mxu0 0.0
      %2118 = vmatprep.subr.mxu0 0.0
      %2119 = vmatpush1.msra.mxu0 0.0
      %2120 = vmatprep.subr.mxu0 0.0
      %2121 = vmatpush1.msra.mxu0 0.0
      %2122 = vmatprep.subr.mxu0 0.0
      %2123 = vmatpush1.msra.mxu0 0.0
      %2124 = vmatprep.subr.mxu0 0.0
      %2125 = vmatpush1.msra.mxu0 0.0
      %2126 = vmatprep.subr.mxu0 0.0
      %2127 = vmatpush1.msra.mxu0 0.0
      %2128 = vmatprep.subr.mxu0 0.0
      %2129 = vmatpush1.msra.mxu0 0.0
      %2130 = vmatprep.subr.mxu0 0.0
      %2131 = vmatpush1.msra.mxu0 0.0
      %2132 = vmatprep.mubr.f32.mxu0 0.0
      %2133 = vmatmul.mubr.f32.gmra.mrb[0].mxu0 %v2019
      %v2134 = vpop.f32.mrb[0].mxu0
      %v2135 = vadd.f32 0.0, %v2134
      %v2136 = vpop.f32.mrb[0].mxu0
      %2137 = vmatprep.mubr.f32.mxu0 0.0
      %2138 = vmatmul.mubr.f32.gmra.mrb[0].mxu0 %v2020
      %v2139 = vpop.f32.mrb[0].mxu0
      %v2140 = vadd.f32 0.0, %v2139
      %v2141 = vpop.f32.mrb[0].mxu0
      %2142 = vmatprep.mubr.f32.mxu0 0.0
      %2143 = vmatmul.mubr.f32.gmra.mrb[0].mxu0 %v2021
      %v2144 = vpop.f32.mrb[0].mxu0
      %v2145 = vadd.f32 0.0, %v2144
      %v2146 = vpop.f32.mrb[0].mxu0
      %2147 = vmatprep.mubr.f32.mxu0 0.0
      %2148 = vmatmul.mubr.f32.gmra.mrb[0].mxu0 %v2022
      %v2149 = vpop.f32.mrb[0].mxu0
      %v2150 = vadd.f32 0.0, %v2149
      %v2151 = vpop.f32.mrb[0].mxu0
      %2152 = vmatprep.mubr.f32.mxu0 0.0
      %2153 = vmatmul.mubr.f32.gmra.mrb[0].mxu0 %v2023
      %v2154 = vpop.f32.mrb[0].mxu0
      %v2155 = vadd.f32 0.0, %v2154
      %v2156 = vpop.f32.mrb[0].mxu0
      %2157 = vmatprep.mubr.f32.mxu0 0.0
      %2158 = vmatmul.mubr.f32.gmra.mrb[0].mxu0 %v2024
      %v2159 = vpop.f32.mrb[0].mxu0
      %v2160 = vadd.f32 0.0, %v2159
      %v2161 = vpop.f32.mrb[0].mxu0
      %2162 = vmatprep.mubr.f32.mxu0 0.0
      %2163 = vmatmul.mubr.f32.gmra.mrb[0].mxu0 %v2025
      %v2164 = vpop.f32.mrb[0].mxu0
      %v2165 = vadd.f32 0.0, %v2164
      %v2166 = vpop.f32.mrb[0].mxu0
      %2167 = vmatprep.mubr.f32.mxu0 0.0
      %2168 = vmatmul.mubr.f32.gmra.mrb[0].mxu0 %v2026
      %v2169 = vpop.f32.mrb[0].mxu0
      %v2170 = vadd.f32 0.0, %v2169
      %v2171 = vpop.f32.mrb[0].mxu0
      %2172 = vmatprep.mubr.f32.mxu0 0.0
      %2173 = vmatmul.mubr.f32.gmra.mrb[0].mxu0 %v2027
      %v2174 = vpop.f32.mrb[0].mxu0
      %v2175 = vadd.f32 0.0, %v2174
      %v2176 = vpop.f32.mrb[0].mxu0
      %2177 = vmatprep.mubr.f32.mxu0 0.0
      %2178 = vmatmul.mubr.f32.gmra.mrb[0].mxu0 %v2028
      %v2179 = vpop.f32.mrb[0].mxu0
      %v2180 = vadd.f32 0.0, %v2179
      %v2181 = vpop.f32.mrb[0].mxu0
      %2182 = vmatprep.mubr.f32.mxu0 0.0
      %2183 = vmatmul.mubr.f32.gmra.mrb[0].mxu0 %v2029
      %v2184 = vpop.f32.mrb[0].mxu0
      %v2185 = vadd.f32 0.0, %v2184
      %v2186 = vpop.f32.mrb[0].mxu0
      %2187 = vmatprep.mubr.f32.mxu0 0.0
      %2188 = vmatmul.mubr.f32.gmra.mrb[0].mxu0 %v2030
      %v2189 = vpop.f32.mrb[0].mxu0
      %v2190 = vadd.f32 0.0, %v2189
      %v2191 = vpop.f32.mrb[0].mxu0
      %2192 = vmatprep.mubr.f32.mxu0 0.0
      %2193 = vmatmul.mubr.f32.gmra.mrb[0].mxu0 %v2031
      %v2194 = vpop.f32.mrb[0].mxu0
      %v2195 = vadd.f32 0.0, %v2194
      %v2196 = vpop.f32.mrb[0].mxu0
      %2197 = vmatprep.mubr.f32.mxu0 0.0
      %2198 = vmatmul.mubr.f32.gmra.mrb[0].mxu0 %v2032
      %v2199 = vpop.f32.mrb[0].mxu0
      %v2200 = vadd.f32 0.0, %v2199
      %v2201 = vpop.f32.mrb[0].mxu0
      %2202 = vmatprep.mubr.f32.mxu0 0.0
      %2203 = vmatmul.mubr.f32.gmra.mrb[0].mxu0 %v2033
      %v2204 = vpop.f32.mrb[0].mxu0
      %v2205 = vadd.f32 0.0, %v2204
      %v2206 = vpop.f32.mrb[0].mxu0
      %2207 = vmatprep.mubr.f32.mxu0 0.0
      %2208 = vmatmul.mubr.f32.gmra.mrb[0].mxu0 %v2034
      %v2209 = vpop.f32.mrb[0].mxu0
      %v2210 = vadd.f32 0.0, %v2209
      %v2211 = vpop.f32.mrb[0].mxu0
      %2212 = vmatprep.mubr.f32.mxu0 0.0
      %2213 = vmatmul.mubr.f32.gmra.mrb[0].mxu0 %v2035
      %v2214 = vpop.f32.mrb[0].mxu0
      %v2215 = vadd.f32 0.0, %v2214
      %v2216 = vpop.f32.mrb[0].mxu0
      %2217 = vmatprep.mubr.f32.mxu0 0.0
      %2218 = vmatmul.mubr.f32.gmra.mrb[0].mxu0 %v2036
      %v2219 = vpop.f32.mrb[0].mxu0
      %v2220 = vadd.f32 0.0, %v2219
      %v2221 = vpop.f32.mrb[0].mxu0
      %2222 = vmatprep.mubr.f32.mxu0 0.0
      %2223 = vmatmul.mubr.f32.gmra.mrb[0].mxu0 %v2037
      %v2224 = vpop.f32.mrb[0].mxu0
      %v2225 = vadd.f32 0.0, %v2224
      %v2226 = vpop.f32.mrb[0].mxu0
      %2227 = vmatprep.mubr.f32.mxu0 0.0
      %2228 = vmatmul.mubr.f32.gmra.mrb[0].mxu0 %v2038
      %v2229 = vpop.f32.mrb[0].mxu0
      %v2230 = vadd.f32 0.0, %v2229
      %v2231 = vpop.f32.mrb[0].mxu0
      %2232 = vmatprep.mubr.f32.mxu0 0.0
      %2233 = vmatmul.mubr.f32.gmra.mrb[0].mxu0 %v2039
      %v2234 = vpop.f32.mrb[0].mxu0
      %v2235 = vadd.f32 0.0, %v2234
      %v2236 = vpop.f32.mrb[0].mxu0
      %2237 = vmatprep.mubr.f32.mxu0 0.0
      %2238 = vmatmul.mubr.f32.gmra.mrb[0].mxu0 %v2040
      %v2239 = vpop.f32.mrb[0].mxu0
      %v2240 = vadd.f32 0.0, %v2239
      %v2241 = vpop.f32.mrb[0].mxu0
      %2242 = vmatprep.mubr.f32.mxu0 0.0
      %2243 = vmatmul.mubr.f32.gmra.mrb[0].mxu0 %v2041
      %v2244 = vpop.f32.mrb[0].mxu0
      %v2245 = vadd.f32 0.0, %v2244
      %v2246 = vpop.f32.mrb[0].mxu0
      %2247 = vmatprep.mubr.f32.mxu0 0.0
      %2248 = vmatmul.mubr.f32.gmra.mrb[0].mxu0 %v2042
      %v2249 = vpop.f32.mrb[0].mxu0
      %v2250 = vadd.f32 0.0, %v2249
      %v2251 = vpop.f32.mrb[0].mxu0
      %2252 = vmatprep.mubr.f32.mxu0 0.0
      %2253 = vmatmul.mubr.f32.gmra.mrb[0].mxu0 %v2043
      %v2254 = vpop.f32.mrb[0].mxu0
      %v2255 = vadd.f32 0.0, %v2254
      %v2256 = vpop.f32.mrb[0].mxu0
      %2257 = vmatprep.mubr.f32.mxu0 0.0
      %2258 = vmatmul.mubr.f32.gmra.mrb[0].mxu0 %v2044
      %v2259 = vpop.f32.mrb[0].mxu0
      %v2260 = vadd.f32 0.0, %v2259
      %v2261 = vpop.f32.mrb[0].mxu0
      %2262 = vmatprep.mubr.f32.mxu0 0.0
      %2263 = vmatmul.mubr.f32.gmra.mrb[0].mxu0 %v2045
      %v2264 = vpop.f32.mrb[0].mxu0
      %v2265 = vadd.f32 0.0, %v2264
      %v2266 = vpop.f32.mrb[0].mxu0
      %2267 = vmatprep.mubr.f32.mxu0 0.0
      %2268 = vmatmul.mubr.f32.gmra.mrb[0].mxu0 %v2046
      %v2269 = vpop.f32.mrb[0].mxu0
      %v2270 = vadd.f32 0.0, %v2269
      %v2271 = vpop.f32.mrb[0].mxu0
      %2272 = vmatprep.mubr.f32.mxu0 0.0
      %2273 = vmatmul.mubr.f32.gmra.mrb[0].mxu0 %v2047
      %v2274 = vpop.f32.mrb[0].mxu0
      %v2275 = vadd.f32 0.0, %v2274
      %v2276 = vpop.f32.mrb[0].mxu0
      %2277 = vmatprep.mubr.f32.mxu0 0.0
      %2278 = vmatmul.mubr.f32.gmra.mrb[0].mxu0 %v2048
      %v2279 = vpop.f32.mrb[0].mxu0
      %v2280 = vadd.f32 0.0, %v2279
      %v2281 = vpop.f32.mrb[0].mxu0
      %2282 = vmatprep.mubr.f32.mxu0 0.0
      %2283 = vmatmul.mubr.f32.gmra.mrb[0].mxu0 %v2049
      %v2284 = vpop.f32.mrb[0].mxu0
      %v2285 = vadd.f32 0.0, %v2284
      %v2286 = vpop.f32.mrb[0].mxu0
      %2287 = vmatprep.mubr.f32.mxu0 0.0
      %2288 = vmatmul.mubr.f32.gmra.mrb[0].mxu0 %v2050
      %v2289 = vpop.f32.mrb[0].mxu0
      %v2290 = vadd.f32 0.0, %v2289
      %v2291 = vpop.f32.mrb[0].mxu0
      %2292 = vdwg.mxu0
      %v2293 = vadd.f32 %v1986, %v2135
      %v2294 = vadd.f32 %v1987, %v2140
      %v2295 = vadd.f32 %v1988, %v2145
      %v2296 = vadd.f32 %v1989, %v2150
      %v2297 = vadd.f32 %v1990, %v2155
      %v2298 = vadd.f32 %v1991, %v2160
      %v2299 = vadd.f32 %v1992, %v2165
      %v2300 = vadd.f32 %v1993, %v2170
      %v2301 = vadd.f32 %v1994, %v2175
      %v2302 = vadd.f32 %v1995, %v2180
      %v2303 = vadd.f32 %v1996, %v2185
      %v2304 = vadd.f32 %v1997, %v2190
      %v2305 = vadd.f32 %v1998, %v2195
      %v2306 = vadd.f32 %v1999, %v2200
      %v2307 = vadd.f32 %v2000, %v2205
      %v2308 = vadd.f32 %v2001, %v2210
      %v2309 = vadd.f32 %v2002, %v2215
      %v2310 = vadd.f32 %v2003, %v2220
      %v2311 = vadd.f32 %v2004, %v2225
      %v2312 = vadd.f32 %v2005, %v2230
      %v2313 = vadd.f32 %v2006, %v2235
      %v2314 = vadd.f32 %v2007, %v2240
      %v2315 = vadd.f32 %v2008, %v2245
      %v2316 = vadd.f32 %v2009, %v2250
      %v2317 = vadd.f32 %v2010, %v2255
      %v2318 = vadd.f32 %v2011, %v2260
      %v2319 = vadd.f32 %v2012, %v2265
      %v2320 = vadd.f32 %v2013, %v2270
      %v2321 = vadd.f32 %v2014, %v2275
      %v2322 = vadd.f32 %v2015, %v2280
      %v2323 = vadd.f32 %v2016, %v2285
      %v2324 = vadd.f32 %v2017, %v2290
      %v2325 = vld [vmem:[%s2018 + $0x1] sm:$0xff]
      %v2326 = vld [vmem:[%s2018 + $0x9] sm:$0xff]
      %v2327 = vld [vmem:[%s2018 + $0x19] sm:$0xff]
      %v2328 = vld [vmem:[%s2018 + $0x21] sm:$0xff]
      %v2329 = vld [vmem:[%s2018 + $0x31] sm:$0xff]
      %v2330 = vld [vmem:[%s2018 + $0x39] sm:$0xff]
      %v2331 = vld [vmem:[%s2018 + $0x49] sm:$0xff]
      %v2332 = vld [vmem:[%s2018 + $0x51] sm:$0xff]
      %v2333 = vld [vmem:[%s2018 + $0x61] sm:$0xff]
      %v2334 = vld [vmem:[%s2018 + $0x69] sm:$0xff]
      %v2335 = vld [vmem:[%s2018 + $0x79] sm:$0xff]
      %v2336 = vld [vmem:[%s2018 + $0x81] sm:$0xff]
      %v2337 = vld [vmem:[%s2018 + $0x91] sm:$0xff]
      %v2338 = vld [vmem:[%s2018 + $0x99] sm:$0xff]
      %v2339 = vld [vmem:[%s2018 + $0xa9] sm:$0xff]
      %v2340 = vld [vmem:[%s2018 + $0xb1] sm:$0xff]
      %v2341 = vld [vmem:[%s2018 + $0xc1] sm:$0xff]
      %v2342 = vld [vmem:[%s2018 + $0xc9] sm:$0xff]
      %v2343 = vld [vmem:[%s2018 + $0xd9] sm:$0xff]
      %v2344 = vld [vmem:[%s2018 + $0xe1] sm:$0xff]
      %v2345 = vld [vmem:[%s2018 + $0xf1] sm:$0xff]
      %v2346 = vld [vmem:[%s2018 + $0xf9] sm:$0xff]
      %v2347 = vld [vmem:[%s2018 + $0x109] sm:$0xff]
      %v2348 = vld [vmem:[%s2018 + $0x111] sm:$0xff]
      %v2349 = vld [vmem:[%s2018 + $0x121] sm:$0xff]
      %v2350 = vld [vmem:[%s2018 + $0x129] sm:$0xff]
      %v2351 = vld [vmem:[%s2018 + $0x139] sm:$0xff]
      %v2352 = vld [vmem:[%s2018 + $0x141] sm:$0xff]
      %v2353 = vld [vmem:[%s2018 + $0x151] sm:$0xff]
      %v2354 = vld [vmem:[%s2018 + $0x159] sm:$0xff]
      %v2355 = vld [vmem:[%s2018 + $0x169] sm:$0xff]
      %v2356 = vld [vmem:[%s2018 + $0x171] sm:$0xff]
      %s2357 = scalar_lea.vmem %s2, 896
      %v2358 = vld [vmem:[%s2357] sm:$0xff]
      %v2359 = vld [vmem:[%s2357 + $0x8] sm:$0xff]
      %v2360 = vld [vmem:[%s2357 + $0x10] sm:$0xff]
      %v2361 = vld [vmem:[%s2357 + $0x18] sm:$0xff]
      %v2362 = vld [vmem:[%s2357 + $0x20] sm:$0xff]
      %v2363 = vld [vmem:[%s2357 + $0x28] sm:$0xff]
      %v2364 = vld [vmem:[%s2357 + $0x30] sm:$0xff]
      %v2365 = vld [vmem:[%s2357 + $0x38] sm:$0xff]
      %v2366 = vld [vmem:[%s2357 + $0x40] sm:$0xff]
      %v2367 = vld [vmem:[%s2357 + $0x48] sm:$0xff]
      %v2368 = vld [vmem:[%s2357 + $0x50] sm:$0xff]
      %v2369 = vld [vmem:[%s2357 + $0x58] sm:$0xff]
      %v2370 = vld [vmem:[%s2357 + $0x60] sm:$0xff]
      %v2371 = vld [vmem:[%s2357 + $0x68] sm:$0xff]
      %v2372 = vld [vmem:[%s2357 + $0x70] sm:$0xff]
      %v2373 = vld [vmem:[%s2357 + $0x78] sm:$0xff]
      %2374 = vmatprep.subr.mxu0 0.0
      %2375 = vmatpush1.msra.mxu0 %v2358
      %2376 = vmatprep.subr.mxu0 0.0
      %2377 = vmatpush1.msra.mxu0 %v2359
      %2378 = vmatprep.subr.mxu0 0.0
      %2379 = vmatpush1.msra.mxu0 %v2360
      %2380 = vmatprep.subr.mxu0 0.0
      %2381 = vmatpush1.msra.mxu0 %v2361
      %2382 = vmatprep.subr.mxu0 0.0
      %2383 = vmatpush1.msra.mxu0 %v2362
      %2384 = vmatprep.subr.mxu0 0.0
      %2385 = vmatpush1.msra.mxu0 %v2363
      %2386 = vmatprep.subr.mxu0 0.0
      %2387 = vmatpush1.msra.mxu0 %v2364
      %2388 = vmatprep.subr.mxu0 0.0
      %2389 = vmatpush1.msra.mxu0 %v2365
      %2390 = vmatprep.subr.mxu0 0.0
      %2391 = vmatpush1.msra.mxu0 %v2366
      %2392 = vmatprep.subr.mxu0 0.0
      %2393 = vmatpush1.msra.mxu0 %v2367
      %2394 = vmatprep.subr.mxu0 0.0
      %2395 = vmatpush1.msra.mxu0 %v2368
      %2396 = vmatprep.subr.mxu0 0.0
      %2397 = vmatpush1.msra.mxu0 %v2369
      %2398 = vmatprep.subr.mxu0 0.0
      %2399 = vmatpush1.msra.mxu0 %v2370
      %2400 = vmatprep.subr.mxu0 0.0
      %2401 = vmatpush1.msra.mxu0 %v2371
      %2402 = vmatprep.subr.mxu0 0.0
      %2403 = vmatpush1.msra.mxu0 %v2372
      %2404 = vmatprep.subr.mxu0 0.0
      %2405 = vmatpush1.msra.mxu0 %v2373
      %2406 = vmatprep.subr.mxu0 0.0
      %2407 = vmatpush1.msra.mxu0 0.0
      %2408 = vmatprep.subr.mxu0 0.0
      %2409 = vmatpush1.msra.mxu0 0.0
      %2410 = vmatprep.subr.mxu0 0.0
      %2411 = vmatpush1.msra.mxu0 0.0
      %2412 = vmatprep.subr.mxu0 0.0
      %2413 = vmatpush1.msra.mxu0 0.0
      %2414 = vmatprep.subr.mxu0 0.0
      %2415 = vmatpush1.msra.mxu0 0.0
      %2416 = vmatprep.subr.mxu0 0.0
      %2417 = vmatpush1.msra.mxu0 0.0
      %2418 = vmatprep.subr.mxu0 0.0
      %2419 = vmatpush1.msra.mxu0 0.0
      %2420 = vmatprep.subr.mxu0 0.0
      %2421 = vmatpush1.msra.mxu0 0.0
      %2422 = vmatprep.subr.mxu0 0.0
      %2423 = vmatpush1.msra.mxu0 0.0
      %2424 = vmatprep.subr.mxu0 0.0
      %2425 = vmatpush1.msra.mxu0 0.0
      %2426 = vmatprep.subr.mxu0 0.0
      %2427 = vmatpush1.msra.mxu0 0.0
      %2428 = vmatprep.subr.mxu0 0.0
      %2429 = vmatpush1.msra.mxu0 0.0
      %2430 = vmatprep.subr.mxu0 0.0
      %2431 = vmatpush1.msra.mxu0 0.0
      %2432 = vmatprep.subr.mxu0 0.0
      %2433 = vmatpush1.msra.mxu0 0.0
      %2434 = vmatprep.subr.mxu0 0.0
      %2435 = vmatpush1.msra.mxu0 0.0
      %2436 = vmatprep.subr.mxu0 0.0
      %2437 = vmatpush1.msra.mxu0 0.0
      %2438 = vmatprep.mubr.f32.mxu0 0.0
      %2439 = vmatmul.mubr.f32.gmra.mrb[0].mxu0 %v2325
      %v2440 = vpop.f32.mrb[0].mxu0
      %v2441 = vadd.f32 0.0, %v2440
      %v2442 = vpop.f32.mrb[0].mxu0
      %2443 = vmatprep.mubr.f32.mxu0 0.0
      %2444 = vmatmul.mubr.f32.gmra.mrb[0].mxu0 %v2326
      %v2445 = vpop.f32.mrb[0].mxu0
      %v2446 = vadd.f32 0.0, %v2445
      %v2447 = vpop.f32.mrb[0].mxu0
      %2448 = vmatprep.mubr.f32.mxu0 0.0
      %2449 = vmatmul.mubr.f32.gmra.mrb[0].mxu0 %v2327
      %v2450 = vpop.f32.mrb[0].mxu0
      %v2451 = vadd.f32 0.0, %v2450
      %v2452 = vpop.f32.mrb[0].mxu0
      %2453 = vmatprep.mubr.f32.mxu0 0.0
      %2454 = vmatmul.mubr.f32.gmra.mrb[0].mxu0 %v2328
      %v2455 = vpop.f32.mrb[0].mxu0
      %v2456 = vadd.f32 0.0, %v2455
      %v2457 = vpop.f32.mrb[0].mxu0
      %2458 = vmatprep.mubr.f32.mxu0 0.0
      %2459 = vmatmul.mubr.f32.gmra.mrb[0].mxu0 %v2329
      %v2460 = vpop.f32.mrb[0].mxu0
      %v2461 = vadd.f32 0.0, %v2460
      %v2462 = vpop.f32.mrb[0].mxu0
      %2463 = vmatprep.mubr.f32.mxu0 0.0
      %2464 = vmatmul.mubr.f32.gmra.mrb[0].mxu0 %v2330
      %v2465 = vpop.f32.mrb[0].mxu0
      %v2466 = vadd.f32 0.0, %v2465
      %v2467 = vpop.f32.mrb[0].mxu0
      %2468 = vmatprep.mubr.f32.mxu0 0.0
      %2469 = vmatmul.mubr.f32.gmra.mrb[0].mxu0 %v2331
      %v2470 = vpop.f32.mrb[0].mxu0
      %v2471 = vadd.f32 0.0, %v2470
      %v2472 = vpop.f32.mrb[0].mxu0
      %2473 = vmatprep.mubr.f32.mxu0 0.0
      %2474 = vmatmul.mubr.f32.gmra.mrb[0].mxu0 %v2332
      %v2475 = vpop.f32.mrb[0].mxu0
      %v2476 = vadd.f32 0.0, %v2475
      %v2477 = vpop.f32.mrb[0].mxu0
      %2478 = vmatprep.mubr.f32.mxu0 0.0
      %2479 = vmatmul.mubr.f32.gmra.mrb[0].mxu0 %v2333
      %v2480 = vpop.f32.mrb[0].mxu0
      %v2481 = vadd.f32 0.0, %v2480
      %v2482 = vpop.f32.mrb[0].mxu0
      %2483 = vmatprep.mubr.f32.mxu0 0.0
      %2484 = vmatmul.mubr.f32.gmra.mrb[0].mxu0 %v2334
      %v2485 = vpop.f32.mrb[0].mxu0
      %v2486 = vadd.f32 0.0, %v2485
      %v2487 = vpop.f32.mrb[0].mxu0
      %2488 = vmatprep.mubr.f32.mxu0 0.0
      %2489 = vmatmul.mubr.f32.gmra.mrb[0].mxu0 %v2335
      %v2490 = vpop.f32.mrb[0].mxu0
      %v2491 = vadd.f32 0.0, %v2490
      %v2492 = vpop.f32.mrb[0].mxu0
      %2493 = vmatprep.mubr.f32.mxu0 0.0
      %2494 = vmatmul.mubr.f32.gmra.mrb[0].mxu0 %v2336
      %v2495 = vpop.f32.mrb[0].mxu0
      %v2496 = vadd.f32 0.0, %v2495
      %v2497 = vpop.f32.mrb[0].mxu0
      %2498 = vmatprep.mubr.f32.mxu0 0.0
      %2499 = vmatmul.mubr.f32.gmra.mrb[0].mxu0 %v2337
      %v2500 = vpop.f32.mrb[0].mxu0
      %v2501 = vadd.f32 0.0, %v2500
      %v2502 = vpop.f32.mrb[0].mxu0
      %2503 = vmatprep.mubr.f32.mxu0 0.0
      %2504 = vmatmul.mubr.f32.gmra.mrb[0].mxu0 %v2338
      %v2505 = vpop.f32.mrb[0].mxu0
      %v2506 = vadd.f32 0.0, %v2505
      %v2507 = vpop.f32.mrb[0].mxu0
      %2508 = vmatprep.mubr.f32.mxu0 0.0
      %2509 = vmatmul.mubr.f32.gmra.mrb[0].mxu0 %v2339
      %v2510 = vpop.f32.mrb[0].mxu0
      %v2511 = vadd.f32 0.0, %v2510
      %v2512 = vpop.f32.mrb[0].mxu0
      %2513 = vmatprep.mubr.f32.mxu0 0.0
      %2514 = vmatmul.mubr.f32.gmra.mrb[0].mxu0 %v2340
      %v2515 = vpop.f32.mrb[0].mxu0
      %v2516 = vadd.f32 0.0, %v2515
      %v2517 = vpop.f32.mrb[0].mxu0
      %2518 = vmatprep.mubr.f32.mxu0 0.0
      %2519 = vmatmul.mubr.f32.gmra.mrb[0].mxu0 %v2341
      %v2520 = vpop.f32.mrb[0].mxu0
      %v2521 = vadd.f32 0.0, %v2520
      %v2522 = vpop.f32.mrb[0].mxu0
      %2523 = vmatprep.mubr.f32.mxu0 0.0
      %2524 = vmatmul.mubr.f32.gmra.mrb[0].mxu0 %v2342
      %v2525 = vpop.f32.mrb[0].mxu0
      %v2526 = vadd.f32 0.0, %v2525
      %v2527 = vpop.f32.mrb[0].mxu0
      %2528 = vmatprep.mubr.f32.mxu0 0.0
      %2529 = vmatmul.mubr.f32.gmra.mrb[0].mxu0 %v2343
      %v2530 = vpop.f32.mrb[0].mxu0
      %v2531 = vadd.f32 0.0, %v2530
      %v2532 = vpop.f32.mrb[0].mxu0
      %2533 = vmatprep.mubr.f32.mxu0 0.0
      %2534 = vmatmul.mubr.f32.gmra.mrb[0].mxu0 %v2344
      %v2535 = vpop.f32.mrb[0].mxu0
      %v2536 = vadd.f32 0.0, %v2535
      %v2537 = vpop.f32.mrb[0].mxu0
      %2538 = vmatprep.mubr.f32.mxu0 0.0
      %2539 = vmatmul.mubr.f32.gmra.mrb[0].mxu0 %v2345
      %v2540 = vpop.f32.mrb[0].mxu0
      %v2541 = vadd.f32 0.0, %v2540
      %v2542 = vpop.f32.mrb[0].mxu0
      %2543 = vmatprep.mubr.f32.mxu0 0.0
      %2544 = vmatmul.mubr.f32.gmra.mrb[0].mxu0 %v2346
      %v2545 = vpop.f32.mrb[0].mxu0
      %v2546 = vadd.f32 0.0, %v2545
      %v2547 = vpop.f32.mrb[0].mxu0
      %2548 = vmatprep.mubr.f32.mxu0 0.0
      %2549 = vmatmul.mubr.f32.gmra.mrb[0].mxu0 %v2347
      %v2550 = vpop.f32.mrb[0].mxu0
      %v2551 = vadd.f32 0.0, %v2550
      %v2552 = vpop.f32.mrb[0].mxu0
      %2553 = vmatprep.mubr.f32.mxu0 0.0
      %2554 = vmatmul.mubr.f32.gmra.mrb[0].mxu0 %v2348
      %v2555 = vpop.f32.mrb[0].mxu0
      %v2556 = vadd.f32 0.0, %v2555
      %v2557 = vpop.f32.mrb[0].mxu0
      %2558 = vmatprep.mubr.f32.mxu0 0.0
      %2559 = vmatmul.mubr.f32.gmra.mrb[0].mxu0 %v2349
      %v2560 = vpop.f32.mrb[0].mxu0
      %v2561 = vadd.f32 0.0, %v2560
      %v2562 = vpop.f32.mrb[0].mxu0
      %2563 = vmatprep.mubr.f32.mxu0 0.0
      %2564 = vmatmul.mubr.f32.gmra.mrb[0].mxu0 %v2350
      %v2565 = vpop.f32.mrb[0].mxu0
      %v2566 = vadd.f32 0.0, %v2565
      %v2567 = vpop.f32.mrb[0].mxu0
      %2568 = vmatprep.mubr.f32.mxu0 0.0
      %2569 = vmatmul.mubr.f32.gmra.mrb[0].mxu0 %v2351
      %v2570 = vpop.f32.mrb[0].mxu0
      %v2571 = vadd.f32 0.0, %v2570
      %v2572 = vpop.f32.mrb[0].mxu0
      %2573 = vmatprep.mubr.f32.mxu0 0.0
      %2574 = vmatmul.mubr.f32.gmra.mrb[0].mxu0 %v2352
      %v2575 = vpop.f32.mrb[0].mxu0
      %v2576 = vadd.f32 0.0, %v2575
      %v2577 = vpop.f32.mrb[0].mxu0
      %2578 = vmatprep.mubr.f32.mxu0 0.0
      %2579 = vmatmul.mubr.f32.gmra.mrb[0].mxu0 %v2353
      %v2580 = vpop.f32.mrb[0].mxu0
      %v2581 = vadd.f32 0.0, %v2580
      %v2582 = vpop.f32.mrb[0].mxu0
      %2583 = vmatprep.mubr.f32.mxu0 0.0
      %2584 = vmatmul.mubr.f32.gmra.mrb[0].mxu0 %v2354
      %v2585 = vpop.f32.mrb[0].mxu0
      %v2586 = vadd.f32 0.0, %v2585
      %v2587 = vpop.f32.mrb[0].mxu0
      %2588 = vmatprep.mubr.f32.mxu0 0.0
      %2589 = vmatmul.mubr.f32.gmra.mrb[0].mxu0 %v2355
      %v2590 = vpop.f32.mrb[0].mxu0
      %v2591 = vadd.f32 0.0, %v2590
      %v2592 = vpop.f32.mrb[0].mxu0
      %2593 = vmatprep.mubr.f32.mxu0 0.0
      %2594 = vmatmul.mubr.f32.gmra.mrb[0].mxu0 %v2356
      %v2595 = vpop.f32.mrb[0].mxu0
      %v2596 = vadd.f32 0.0, %v2595
      %v2597 = vpop.f32.mrb[0].mxu0
      %2598 = vdwg.mxu0
      %v2599 = vadd.f32 %v2293, %v2441
      %v2600 = vadd.f32 %v2294, %v2446
      %v2601 = vadd.f32 %v2295, %v2451
      %v2602 = vadd.f32 %v2296, %v2456
      %v2603 = vadd.f32 %v2297, %v2461
      %v2604 = vadd.f32 %v2298, %v2466
      %v2605 = vadd.f32 %v2299, %v2471
      %v2606 = vadd.f32 %v2300, %v2476
      %v2607 = vadd.f32 %v2301, %v2481
      %v2608 = vadd.f32 %v2302, %v2486
      %v2609 = vadd.f32 %v2303, %v2491
      %v2610 = vadd.f32 %v2304, %v2496
      %v2611 = vadd.f32 %v2305, %v2501
      %v2612 = vadd.f32 %v2306, %v2506
      %v2613 = vadd.f32 %v2307, %v2511
      %v2614 = vadd.f32 %v2308, %v2516
      %v2615 = vadd.f32 %v2309, %v2521
      %v2616 = vadd.f32 %v2310, %v2526
      %v2617 = vadd.f32 %v2311, %v2531
      %v2618 = vadd.f32 %v2312, %v2536
      %v2619 = vadd.f32 %v2313, %v2541
      %v2620 = vadd.f32 %v2314, %v2546
      %v2621 = vadd.f32 %v2315, %v2551
      %v2622 = vadd.f32 %v2316, %v2556
      %v2623 = vadd.f32 %v2317, %v2561
      %v2624 = vadd.f32 %v2318, %v2566
      %v2625 = vadd.f32 %v2319, %v2571
      %v2626 = vadd.f32 %v2320, %v2576
      %v2627 = vadd.f32 %v2321, %v2581
      %v2628 = vadd.f32 %v2322, %v2586
      %v2629 = vadd.f32 %v2323, %v2591
      %v2630 = vadd.f32 %v2324, %v2596
      %v2631 = vld [vmem:[%s2018 + $0x2] sm:$0xff]
      %v2632 = vld [vmem:[%s2018 + $0xa] sm:$0xff]
      %v2633 = vld [vmem:[%s2018 + $0x1a] sm:$0xff]
      %v2634 = vld [vmem:[%s2018 + $0x22] sm:$0xff]
      %v2635 = vld [vmem:[%s2018 + $0x32] sm:$0xff]
      %v2636 = vld [vmem:[%s2018 + $0x3a] sm:$0xff]
      %v2637 = vld [vmem:[%s2018 + $0x4a] sm:$0xff]
      %v2638 = vld [vmem:[%s2018 + $0x52] sm:$0xff]
      %v2639 = vld [vmem:[%s2018 + $0x62] sm:$0xff]
      %v2640 = vld [vmem:[%s2018 + $0x6a] sm:$0xff]
      %v2641 = vld [vmem:[%s2018 + $0x7a] sm:$0xff]
      %v2642 = vld [vmem:[%s2018 + $0x82] sm:$0xff]
      %v2643 = vld [vmem:[%s2018 + $0x92] sm:$0xff]
      %v2644 = vld [vmem:[%s2018 + $0x9a] sm:$0xff]
      %v2645 = vld [vmem:[%s2018 + $0xaa] sm:$0xff]
      %v2646 = vld [vmem:[%s2018 + $0xb2] sm:$0xff]
      %v2647 = vld [vmem:[%s2018 + $0xc2] sm:$0xff]
      %v2648 = vld [vmem:[%s2018 + $0xca] sm:$0xff]
      %v2649 = vld [vmem:[%s2018 + $0xda] sm:$0xff]
      %v2650 = vld [vmem:[%s2018 + $0xe2] sm:$0xff]
      %v2651 = vld [vmem:[%s2018 + $0xf2] sm:$0xff]
      %v2652 = vld [vmem:[%s2018 + $0xfa] sm:$0xff]
      %v2653 = vld [vmem:[%s2018 + $0x10a] sm:$0xff]
      %v2654 = vld [vmem:[%s2018 + $0x112] sm:$0xff]
      %v2655 = vld [vmem:[%s2018 + $0x122] sm:$0xff]
      %v2656 = vld [vmem:[%s2018 + $0x12a] sm:$0xff]
      %v2657 = vld [vmem:[%s2018 + $0x13a] sm:$0xff]
      %v2658 = vld [vmem:[%s2018 + $0x142] sm:$0xff]
      %v2659 = vld [vmem:[%s2018 + $0x152] sm:$0xff]
      %v2660 = vld [vmem:[%s2018 + $0x15a] sm:$0xff]
      %v2661 = vld [vmem:[%s2018 + $0x16a] sm:$0xff]
      %v2662 = vld [vmem:[%s2018 + $0x172] sm:$0xff]
      %s2663 = scalar_lea.vmem %s2, 1024
      %v2664 = vld [vmem:[%s2663] sm:$0xff]
      %v2665 = vld [vmem:[%s2663 + $0x8] sm:$0xff]
      %v2666 = vld [vmem:[%s2663 + $0x10] sm:$0xff]
      %v2667 = vld [vmem:[%s2663 + $0x18] sm:$0xff]
      %v2668 = vld [vmem:[%s2663 + $0x20] sm:$0xff]
      %v2669 = vld [vmem:[%s2663 + $0x28] sm:$0xff]
      %v2670 = vld [vmem:[%s2663 + $0x30] sm:$0xff]
      %v2671 = vld [vmem:[%s2663 + $0x38] sm:$0xff]
      %v2672 = vld [vmem:[%s2663 + $0x40] sm:$0xff]
      %v2673 = vld [vmem:[%s2663 + $0x48] sm:$0xff]
      %v2674 = vld [vmem:[%s2663 + $0x50] sm:$0xff]
      %v2675 = vld [vmem:[%s2663 + $0x58] sm:$0xff]
      %v2676 = vld [vmem:[%s2663 + $0x60] sm:$0xff]
      %v2677 = vld [vmem:[%s2663 + $0x68] sm:$0xff]
      %v2678 = vld [vmem:[%s2663 + $0x70] sm:$0xff]
      %v2679 = vld [vmem:[%s2663 + $0x78] sm:$0xff]
      %2680 = vmatprep.subr.mxu0 0.0
      %2681 = vmatpush1.msra.mxu0 %v2664
      %2682 = vmatprep.subr.mxu0 0.0
      %2683 = vmatpush1.msra.mxu0 %v2665
      %2684 = vmatprep.subr.mxu0 0.0
      %2685 = vmatpush1.msra.mxu0 %v2666
      %2686 = vmatprep.subr.mxu0 0.0
      %2687 = vmatpush1.msra.mxu0 %v2667
      %2688 = vmatprep.subr.mxu0 0.0
      %2689 = vmatpush1.msra.mxu0 %v2668
      %2690 = vmatprep.subr.mxu0 0.0
      %2691 = vmatpush1.msra.mxu0 %v2669
      %2692 = vmatprep.subr.mxu0 0.0
      %2693 = vmatpush1.msra.mxu0 %v2670
      %2694 = vmatprep.subr.mxu0 0.0
      %2695 = vmatpush1.msra.mxu0 %v2671
      %2696 = vmatprep.subr.mxu0 0.0
      %2697 = vmatpush1.msra.mxu0 %v2672
      %2698 = vmatprep.subr.mxu0 0.0
      %2699 = vmatpush1.msra.mxu0 %v2673
      %2700 = vmatprep.subr.mxu0 0.0
      %2701 = vmatpush1.msra.mxu0 %v2674
      %2702 = vmatprep.subr.mxu0 0.0
      %2703 = vmatpush1.msra.mxu0 %v2675
      %2704 = vmatprep.subr.mxu0 0.0
      %2705 = vmatpush1.msra.mxu0 %v2676
      %2706 = vmatprep.subr.mxu0 0.0
      %2707 = vmatpush1.msra.mxu0 %v2677
      %2708 = vmatprep.subr.mxu0 0.0
      %2709 = vmatpush1.msra.mxu0 %v2678
      %2710 = vmatprep.subr.mxu0 0.0
      %2711 = vmatpush1.msra.mxu0 %v2679
      %2712 = vmatprep.subr.mxu0 0.0
      %2713 = vmatpush1.msra.mxu0 0.0
      %2714 = vmatprep.subr.mxu0 0.0
      %2715 = vmatpush1.msra.mxu0 0.0
      %2716 = vmatprep.subr.mxu0 0.0
      %2717 = vmatpush1.msra.mxu0 0.0
      %2718 = vmatprep.subr.mxu0 0.0
      %2719 = vmatpush1.msra.mxu0 0.0
      %2720 = vmatprep.subr.mxu0 0.0
      %2721 = vmatpush1.msra.mxu0 0.0
      %2722 = vmatprep.subr.mxu0 0.0
      %2723 = vmatpush1.msra.mxu0 0.0
      %2724 = vmatprep.subr.mxu0 0.0
      %2725 = vmatpush1.msra.mxu0 0.0
      %2726 = vmatprep.subr.mxu0 0.0
      %2727 = vmatpush1.msra.mxu0 0.0
      %2728 = vmatprep.subr.mxu0 0.0
      %2729 = vmatpush1.msra.mxu0 0.0
      %2730 = vmatprep.subr.mxu0 0.0
      %2731 = vmatpush1.msra.mxu0 0.0
      %2732 = vmatprep.subr.mxu0 0.0
      %2733 = vmatpush1.msra.mxu0 0.0
      %2734 = vmatprep.subr.mxu0 0.0
      %2735 = vmatpush1.msra.mxu0 0.0
      %2736 = vmatprep.subr.mxu0 0.0
      %2737 = vmatpush1.msra.mxu0 0.0
      %2738 = vmatprep.subr.mxu0 0.0
      %2739 = vmatpush1.msra.mxu0 0.0
      %2740 = vmatprep.subr.mxu0 0.0
      %2741 = vmatpush1.msra.mxu0 0.0
      %2742 = vmatprep.subr.mxu0 0.0
      %2743 = vmatpush1.msra.mxu0 0.0
      %2744 = vmatprep.mubr.f32.mxu0 0.0
      %2745 = vmatmul.mubr.f32.gmra.mrb[0].mxu0 %v2631
      %v2746 = vpop.f32.mrb[0].mxu0
      %v2747 = vadd.f32 0.0, %v2746
      %v2748 = vpop.f32.mrb[0].mxu0
      %2749 = vmatprep.mubr.f32.mxu0 0.0
      %2750 = vmatmul.mubr.f32.gmra.mrb[0].mxu0 %v2632
      %v2751 = vpop.f32.mrb[0].mxu0
      %v2752 = vadd.f32 0.0, %v2751
      %v2753 = vpop.f32.mrb[0].mxu0
      %2754 = vmatprep.mubr.f32.mxu0 0.0
      %2755 = vmatmul.mubr.f32.gmra.mrb[0].mxu0 %v2633
      %v2756 = vpop.f32.mrb[0].mxu0
      %v2757 = vadd.f32 0.0, %v2756
      %v2758 = vpop.f32.mrb[0].mxu0
      %2759 = vmatprep.mubr.f32.mxu0 0.0
      %2760 = vmatmul.mubr.f32.gmra.mrb[0].mxu0 %v2634
      %v2761 = vpop.f32.mrb[0].mxu0
      %v2762 = vadd.f32 0.0, %v2761
      %v2763 = vpop.f32.mrb[0].mxu0
      %2764 = vmatprep.mubr.f32.mxu0 0.0
      %2765 = vmatmul.mubr.f32.gmra.mrb[0].mxu0 %v2635
      %v2766 = vpop.f32.mrb[0].mxu0
      %v2767 = vadd.f32 0.0, %v2766
      %v2768 = vpop.f32.mrb[0].mxu0
      %2769 = vmatprep.mubr.f32.mxu0 0.0
      %2770 = vmatmul.mubr.f32.gmra.mrb[0].mxu0 %v2636
      %v2771 = vpop.f32.mrb[0].mxu0
      %v2772 = vadd.f32 0.0, %v2771
      %v2773 = vpop.f32.mrb[0].mxu0
      %2774 = vmatprep.mubr.f32.mxu0 0.0
      %2775 = vmatmul.mubr.f32.gmra.mrb[0].mxu0 %v2637
      %v2776 = vpop.f32.mrb[0].mxu0
      %v2777 = vadd.f32 0.0, %v2776
      %v2778 = vpop.f32.mrb[0].mxu0
      %2779 = vmatprep.mubr.f32.mxu0 0.0
      %2780 = vmatmul.mubr.f32.gmra.mrb[0].mxu0 %v2638
      %v2781 = vpop.f32.mrb[0].mxu0
      %v2782 = vadd.f32 0.0, %v2781
      %v2783 = vpop.f32.mrb[0].mxu0
      %2784 = vmatprep.mubr.f32.mxu0 0.0
      %2785 = vmatmul.mubr.f32.gmra.mrb[0].mxu0 %v2639
      %v2786 = vpop.f32.mrb[0].mxu0
      %v2787 = vadd.f32 0.0, %v2786
      %v2788 = vpop.f32.mrb[0].mxu0
      %2789 = vmatprep.mubr.f32.mxu0 0.0
      %2790 = vmatmul.mubr.f32.gmra.mrb[0].mxu0 %v2640
      %v2791 = vpop.f32.mrb[0].mxu0
      %v2792 = vadd.f32 0.0, %v2791
      %v2793 = vpop.f32.mrb[0].mxu0
      %2794 = vmatprep.mubr.f32.mxu0 0.0
      %2795 = vmatmul.mubr.f32.gmra.mrb[0].mxu0 %v2641
      %v2796 = vpop.f32.mrb[0].mxu0
      %v2797 = vadd.f32 0.0, %v2796
      %v2798 = vpop.f32.mrb[0].mxu0
      %2799 = vmatprep.mubr.f32.mxu0 0.0
      %2800 = vmatmul.mubr.f32.gmra.mrb[0].mxu0 %v2642
      %v2801 = vpop.f32.mrb[0].mxu0
      %v2802 = vadd.f32 0.0, %v2801
      %v2803 = vpop.f32.mrb[0].mxu0
      %2804 = vmatprep.mubr.f32.mxu0 0.0
      %2805 = vmatmul.mubr.f32.gmra.mrb[0].mxu0 %v2643
      %v2806 = vpop.f32.mrb[0].mxu0
      %v2807 = vadd.f32 0.0, %v2806
      %v2808 = vpop.f32.mrb[0].mxu0
      %2809 = vmatprep.mubr.f32.mxu0 0.0
      %2810 = vmatmul.mubr.f32.gmra.mrb[0].mxu0 %v2644
      %v2811 = vpop.f32.mrb[0].mxu0
      %v2812 = vadd.f32 0.0, %v2811
      %v2813 = vpop.f32.mrb[0].mxu0
      %2814 = vmatprep.mubr.f32.mxu0 0.0
      %2815 = vmatmul.mubr.f32.gmra.mrb[0].mxu0 %v2645
      %v2816 = vpop.f32.mrb[0].mxu0
      %v2817 = vadd.f32 0.0, %v2816
      %v2818 = vpop.f32.mrb[0].mxu0
      %2819 = vmatprep.mubr.f32.mxu0 0.0
      %2820 = vmatmul.mubr.f32.gmra.mrb[0].mxu0 %v2646
      %v2821 = vpop.f32.mrb[0].mxu0
      %v2822 = vadd.f32 0.0, %v2821
      %v2823 = vpop.f32.mrb[0].mxu0
      %2824 = vmatprep.mubr.f32.mxu0 0.0
      %2825 = vmatmul.mubr.f32.gmra.mrb[0].mxu0 %v2647
      %v2826 = vpop.f32.mrb[0].mxu0
      %v2827 = vadd.f32 0.0, %v2826
      %v2828 = vpop.f32.mrb[0].mxu0
      %2829 = vmatprep.mubr.f32.mxu0 0.0
      %2830 = vmatmul.mubr.f32.gmra.mrb[0].mxu0 %v2648
      %v2831 = vpop.f32.mrb[0].mxu0
      %v2832 = vadd.f32 0.0, %v2831
      %v2833 = vpop.f32.mrb[0].mxu0
      %2834 = vmatprep.mubr.f32.mxu0 0.0
      %2835 = vmatmul.mubr.f32.gmra.mrb[0].mxu0 %v2649
      %v2836 = vpop.f32.mrb[0].mxu0
      %v2837 = vadd.f32 0.0, %v2836
      %v2838 = vpop.f32.mrb[0].mxu0
      %2839 = vmatprep.mubr.f32.mxu0 0.0
      %2840 = vmatmul.mubr.f32.gmra.mrb[0].mxu0 %v2650
      %v2841 = vpop.f32.mrb[0].mxu0
      %v2842 = vadd.f32 0.0, %v2841
      %v2843 = vpop.f32.mrb[0].mxu0
      %2844 = vmatprep.mubr.f32.mxu0 0.0
      %2845 = vmatmul.mubr.f32.gmra.mrb[0].mxu0 %v2651
      %v2846 = vpop.f32.mrb[0].mxu0
      %v2847 = vadd.f32 0.0, %v2846
      %v2848 = vpop.f32.mrb[0].mxu0
      %2849 = vmatprep.mubr.f32.mxu0 0.0
      %2850 = vmatmul.mubr.f32.gmra.mrb[0].mxu0 %v2652
      %v2851 = vpop.f32.mrb[0].mxu0
      %v2852 = vadd.f32 0.0, %v2851
      %v2853 = vpop.f32.mrb[0].mxu0
      %2854 = vmatprep.mubr.f32.mxu0 0.0
      %2855 = vmatmul.mubr.f32.gmra.mrb[0].mxu0 %v2653
      %v2856 = vpop.f32.mrb[0].mxu0
      %v2857 = vadd.f32 0.0, %v2856
      %v2858 = vpop.f32.mrb[0].mxu0
      %2859 = vmatprep.mubr.f32.mxu0 0.0
      %2860 = vmatmul.mubr.f32.gmra.mrb[0].mxu0 %v2654
      %v2861 = vpop.f32.mrb[0].mxu0
      %v2862 = vadd.f32 0.0, %v2861
      %v2863 = vpop.f32.mrb[0].mxu0
      %2864 = vmatprep.mubr.f32.mxu0 0.0
      %2865 = vmatmul.mubr.f32.gmra.mrb[0].mxu0 %v2655
      %v2866 = vpop.f32.mrb[0].mxu0
      %v2867 = vadd.f32 0.0, %v2866
      %v2868 = vpop.f32.mrb[0].mxu0
      %2869 = vmatprep.mubr.f32.mxu0 0.0
      %2870 = vmatmul.mubr.f32.gmra.mrb[0].mxu0 %v2656
      %v2871 = vpop.f32.mrb[0].mxu0
      %v2872 = vadd.f32 0.0, %v2871
      %v2873 = vpop.f32.mrb[0].mxu0
      %2874 = vmatprep.mubr.f32.mxu0 0.0
      %2875 = vmatmul.mubr.f32.gmra.mrb[0].mxu0 %v2657
      %v2876 = vpop.f32.mrb[0].mxu0
      %v2877 = vadd.f32 0.0, %v2876
      %v2878 = vpop.f32.mrb[0].mxu0
      %2879 = vmatprep.mubr.f32.mxu0 0.0
      %2880 = vmatmul.mubr.f32.gmra.mrb[0].mxu0 %v2658
      %v2881 = vpop.f32.mrb[0].mxu0
      %v2882 = vadd.f32 0.0, %v2881
      %v2883 = vpop.f32.mrb[0].mxu0
      %2884 = vmatprep.mubr.f32.mxu0 0.0
      %2885 = vmatmul.mubr.f32.gmra.mrb[0].mxu0 %v2659
      %v2886 = vpop.f32.mrb[0].mxu0
      %v2887 = vadd.f32 0.0, %v2886
      %v2888 = vpop.f32.mrb[0].mxu0
      %2889 = vmatprep.mubr.f32.mxu0 0.0
      %2890 = vmatmul.mubr.f32.gmra.mrb[0].mxu0 %v2660
      %v2891 = vpop.f32.mrb[0].mxu0
      %v2892 = vadd.f32 0.0, %v2891
      %v2893 = vpop.f32.mrb[0].mxu0
      %2894 = vmatprep.mubr.f32.mxu0 0.0
      %2895 = vmatmul.mubr.f32.gmra.mrb[0].mxu0 %v2661
      %v2896 = vpop.f32.mrb[0].mxu0
      %v2897 = vadd.f32 0.0, %v2896
      %v2898 = vpop.f32.mrb[0].mxu0
      %2899 = vmatprep.mubr.f32.mxu0 0.0
      %2900 = vmatmul.mubr.f32.gmra.mrb[0].mxu0 %v2662
      %v2901 = vpop.f32.mrb[0].mxu0
      %v2902 = vadd.f32 0.0, %v2901
      %v2903 = vpop.f32.mrb[0].mxu0
      %2904 = vdwg.mxu0
      %v2905 = vadd.f32 %v2599, %v2747
      %v2906 = vadd.f32 %v2600, %v2752
      %v2907 = vadd.f32 %v2601, %v2757
      %v2908 = vadd.f32 %v2602, %v2762
      %v2909 = vadd.f32 %v2603, %v2767
      %v2910 = vadd.f32 %v2604, %v2772
      %v2911 = vadd.f32 %v2605, %v2777
      %v2912 = vadd.f32 %v2606, %v2782
      %v2913 = vadd.f32 %v2607, %v2787
      %v2914 = vadd.f32 %v2608, %v2792
      %v2915 = vadd.f32 %v2609, %v2797
      %v2916 = vadd.f32 %v2610, %v2802
      %v2917 = vadd.f32 %v2611, %v2807
      %v2918 = vadd.f32 %v2612, %v2812
      %v2919 = vadd.f32 %v2613, %v2817
      %v2920 = vadd.f32 %v2614, %v2822
      %v2921 = vadd.f32 %v2615, %v2827
      %v2922 = vadd.f32 %v2616, %v2832
      %v2923 = vadd.f32 %v2617, %v2837
      %v2924 = vadd.f32 %v2618, %v2842
      %v2925 = vadd.f32 %v2619, %v2847
      %v2926 = vadd.f32 %v2620, %v2852
      %v2927 = vadd.f32 %v2621, %v2857
      %v2928 = vadd.f32 %v2622, %v2862
      %v2929 = vadd.f32 %v2623, %v2867
      %v2930 = vadd.f32 %v2624, %v2872
      %v2931 = vadd.f32 %v2625, %v2877
      %v2932 = vadd.f32 %v2626, %v2882
      %v2933 = vadd.f32 %v2627, %v2887
      %v2934 = vadd.f32 %v2628, %v2892
      %v2935 = vadd.f32 %v2629, %v2897
      %v2936 = vadd.f32 %v2630, %v2902
      %v2937 = vlaneseq
      %v2938 = vshrl.u32 %v2937, 7
      %v2939 = vsub.s32 0, %v2938
      %v2940 = vrot.slane %v245, %v2939
      %v2941 = vmul.f32 %v2905, %v2940
      %v2942 = vmul.f32 %v2906, %v2940
      %v2943 = vmul.f32 %v2907, %v2940
      %v2944 = vmul.f32 %v2908, %v2940
      %v2945 = vmul.f32 %v2909, %v2940
      %v2946 = vmul.f32 %v2910, %v2940
      %v2947 = vmul.f32 %v2911, %v2940
      %v2948 = vmul.f32 %v2912, %v2940
      %v2949 = vmul.f32 %v2913, %v2940
      %v2950 = vmul.f32 %v2914, %v2940
      %v2951 = vmul.f32 %v2915, %v2940
      %v2952 = vmul.f32 %v2916, %v2940
      %v2953 = vmul.f32 %v2917, %v2940
      %v2954 = vmul.f32 %v2918, %v2940
      %v2955 = vmul.f32 %v2919, %v2940
      %v2956 = vmul.f32 %v2920, %v2940
      %v2957 = vmul.f32 %v2921, %v2940
      %v2958 = vmul.f32 %v2922, %v2940
      %v2959 = vmul.f32 %v2923, %v2940
      %v2960 = vmul.f32 %v2924, %v2940
      %v2961 = vmul.f32 %v2925, %v2940
      %v2962 = vmul.f32 %v2926, %v2940
      %v2963 = vmul.f32 %v2927, %v2940
      %v2964 = vmul.f32 %v2928, %v2940
      %v2965 = vmul.f32 %v2929, %v2940
      %v2966 = vmul.f32 %v2930, %v2940
      %v2967 = vmul.f32 %v2931, %v2940
      %v2968 = vmul.f32 %v2932, %v2940
      %v2969 = vmul.f32 %v2933, %v2940
      %v2970 = vmul.f32 %v2934, %v2940
      %v2971 = vmul.f32 %v2935, %v2940
      %v2972 = vmul.f32 %v2936, %v2940
      %v2973 = vlaneseq
      %v2974 = vshrl.u32 %v2973, 7
      %v2975 = vsub.s32 1, %v2974
      %v2976 = vrot.slane %v245, %v2975
      %v2977 = vadd.f32 %v2941, %v2976
      %v2978 = vadd.f32 %v2942, %v2976
      %v2979 = vadd.f32 %v2943, %v2976
      %v2980 = vadd.f32 %v2944, %v2976
      %v2981 = vadd.f32 %v2945, %v2976
      %v2982 = vadd.f32 %v2946, %v2976
      %v2983 = vadd.f32 %v2947, %v2976
      %v2984 = vadd.f32 %v2948, %v2976
      %v2985 = vadd.f32 %v2949, %v2976
      %v2986 = vadd.f32 %v2950, %v2976
      %v2987 = vadd.f32 %v2951, %v2976
      %v2988 = vadd.f32 %v2952, %v2976
      %v2989 = vadd.f32 %v2953, %v2976
      %v2990 = vadd.f32 %v2954, %v2976
      %v2991 = vadd.f32 %v2955, %v2976
      %v2992 = vadd.f32 %v2956, %v2976
      %v2993 = vadd.f32 %v2957, %v2976
      %v2994 = vadd.f32 %v2958, %v2976
      %v2995 = vadd.f32 %v2959, %v2976
      %v2996 = vadd.f32 %v2960, %v2976
      %v2997 = vadd.f32 %v2961, %v2976
      %v2998 = vadd.f32 %v2962, %v2976
      %v2999 = vadd.f32 %v2963, %v2976
      %v3000 = vadd.f32 %v2964, %v2976
      %v3001 = vadd.f32 %v2965, %v2976
      %v3002 = vadd.f32 %v2966, %v2976
      %v3003 = vadd.f32 %v2967, %v2976
      %v3004 = vadd.f32 %v2968, %v2976
      %v3005 = vadd.f32 %v2969, %v2976
      %v3006 = vadd.f32 %v2970, %v2976
      %v3007 = vadd.f32 %v2971, %v2976
      %v3008 = vadd.f32 %v2972, %v2976
      %vm3009 = vcmp.ge.f32.partialorder %v2977, 0.0
      %vm3010 = vcmp.ge.f32.partialorder %v2978, 0.0
      %vm3011 = vcmp.ge.f32.partialorder %v2979, 0.0
      %vm3012 = vcmp.ge.f32.partialorder %v2980, 0.0
      %vm3013 = vcmp.ge.f32.partialorder %v2981, 0.0
      %vm3014 = vcmp.ge.f32.partialorder %v2982, 0.0
      %vm3015 = vcmp.ge.f32.partialorder %v2983, 0.0
      %vm3016 = vcmp.ge.f32.partialorder %v2984, 0.0
      %vm3017 = vcmp.ge.f32.partialorder %v2985, 0.0
      %vm3018 = vcmp.ge.f32.partialorder %v2986, 0.0
      %vm3019 = vcmp.ge.f32.partialorder %v2987, 0.0
      %vm3020 = vcmp.ge.f32.partialorder %v2988, 0.0
      %vm3021 = vcmp.ge.f32.partialorder %v2989, 0.0
      %vm3022 = vcmp.ge.f32.partialorder %v2990, 0.0
      %vm3023 = vcmp.ge.f32.partialorder %v2991, 0.0
      %vm3024 = vcmp.ge.f32.partialorder %v2992, 0.0
      %vm3025 = vcmp.ge.f32.partialorder %v2993, 0.0
      %vm3026 = vcmp.ge.f32.partialorder %v2994, 0.0
      %vm3027 = vcmp.ge.f32.partialorder %v2995, 0.0
      %vm3028 = vcmp.ge.f32.partialorder %v2996, 0.0
      %vm3029 = vcmp.ge.f32.partialorder %v2997, 0.0
      %vm3030 = vcmp.ge.f32.partialorder %v2998, 0.0
      %vm3031 = vcmp.ge.f32.partialorder %v2999, 0.0
      %vm3032 = vcmp.ge.f32.partialorder %v3000, 0.0
      %vm3033 = vcmp.ge.f32.partialorder %v3001, 0.0
      %vm3034 = vcmp.ge.f32.partialorder %v3002, 0.0
      %vm3035 = vcmp.ge.f32.partialorder %v3003, 0.0
      %vm3036 = vcmp.ge.f32.partialorder %v3004, 0.0
      %vm3037 = vcmp.ge.f32.partialorder %v3005, 0.0
      %vm3038 = vcmp.ge.f32.partialorder %v3006, 0.0
      %vm3039 = vcmp.ge.f32.partialorder %v3007, 0.0
      %vm3040 = vcmp.ge.f32.partialorder %v3008, 0.0
      %v3041 = vmul.f32 %v2977, 0.2
      %v3042 = vmul.f32 %v2978, 0.2
      %v3043 = vmul.f32 %v2979, 0.2
      %v3044 = vmul.f32 %v2980, 0.2
      %v3045 = vmul.f32 %v2981, 0.2
      %v3046 = vmul.f32 %v2982, 0.2
      %v3047 = vmul.f32 %v2983, 0.2
      %v3048 = vmul.f32 %v2984, 0.2
      %v3049 = vmul.f32 %v2985, 0.2
      %v3050 = vmul.f32 %v2986, 0.2
      %v3051 = vmul.f32 %v2987, 0.2
      %v3052 = vmul.f32 %v2988, 0.2
      %v3053 = vmul.f32 %v2989, 0.2
      %v3054 = vmul.f32 %v2990, 0.2
      %v3055 = vmul.f32 %v2991, 0.2
      %v3056 = vmul.f32 %v2992, 0.2
      %v3057 = vmul.f32 %v2993, 0.2
      %v3058 = vmul.f32 %v2994, 0.2
      %v3059 = vmul.f32 %v2995, 0.2
      %v3060 = vmul.f32 %v2996, 0.2
      %v3061 = vmul.f32 %v2997, 0.2
      %v3062 = vmul.f32 %v2998, 0.2
      %v3063 = vmul.f32 %v2999, 0.2
      %v3064 = vmul.f32 %v3000, 0.2
      %v3065 = vmul.f32 %v3001, 0.2
      %v3066 = vmul.f32 %v3002, 0.2
      %v3067 = vmul.f32 %v3003, 0.2
      %v3068 = vmul.f32 %v3004, 0.2
      %v3069 = vmul.f32 %v3005, 0.2
      %v3070 = vmul.f32 %v3006, 0.2
      %v3071 = vmul.f32 %v3007, 0.2
      %v3072 = vmul.f32 %v3008, 0.2
      %v3073 = vsel %vm3009, %v2977, %v3041
      %v3074 = vsel %vm3010, %v2978, %v3042
      %v3075 = vsel %vm3011, %v2979, %v3043
      %v3076 = vsel %vm3012, %v2980, %v3044
      %v3077 = vsel %vm3013, %v2981, %v3045
      %v3078 = vsel %vm3014, %v2982, %v3046
      %v3079 = vsel %vm3015, %v2983, %v3047
      %v3080 = vsel %vm3016, %v2984, %v3048
      %v3081 = vsel %vm3017, %v2985, %v3049
      %v3082 = vsel %vm3018, %v2986, %v3050
      %v3083 = vsel %vm3019, %v2987, %v3051
      %v3084 = vsel %vm3020, %v2988, %v3052
      %v3085 = vsel %vm3021, %v2989, %v3053
      %v3086 = vsel %vm3022, %v2990, %v3054
      %v3087 = vsel %vm3023, %v2991, %v3055
      %v3088 = vsel %vm3024, %v2992, %v3056
      %v3089 = vsel %vm3025, %v2993, %v3057
      %v3090 = vsel %vm3026, %v2994, %v3058
      %v3091 = vsel %vm3027, %v2995, %v3059
      %v3092 = vsel %vm3028, %v2996, %v3060
      %v3093 = vsel %vm3029, %v2997, %v3061
      %v3094 = vsel %vm3030, %v2998, %v3062
      %v3095 = vsel %vm3031, %v2999, %v3063
      %v3096 = vsel %vm3032, %v3000, %v3064
      %v3097 = vsel %vm3033, %v3001, %v3065
      %v3098 = vsel %vm3034, %v3002, %v3066
      %v3099 = vsel %vm3035, %v3003, %v3067
      %v3100 = vsel %vm3036, %v3004, %v3068
      %v3101 = vsel %vm3037, %v3005, %v3069
      %v3102 = vsel %vm3038, %v3006, %v3070
      %v3103 = vsel %vm3039, %v3007, %v3071
      %v3104 = vsel %vm3040, %v3008, %v3072
      %3105 = vst [vmem:[#allocation2] sm:$0xff] 0.0
      %3106 = vst [vmem:[#allocation2 + $0x8] sm:$0xff] 0.0
      %3107 = vst [vmem:[#allocation2 + $0x10] sm:$0x3] 0.0
      %s3108 = scalar_lea.vmem [#allocation2], 408
      %3109 = vst [vmem:[%s3108] sm:$0xff] 0.0
      %3110 = vst [vmem:[%s3108 + $0x8] sm:$0xff] 0.0
      %3111 = vst [vmem:[%s3108 + $0x10] sm:$0x3] 0.0
      %3112 = vst [vmem:[#allocation2] sm:$0x1] 0.0
      %3113 = vst [vmem:[#allocation2 + $0x18] sm:$0x1] 0.0
      %3114 = vst [vmem:[#allocation2 + $0x30] sm:$0x1] 0.0
      %3115 = vst [vmem:[#allocation2 + $0x48] sm:$0x1] 0.0
      %3116 = vst [vmem:[#allocation2 + $0x60] sm:$0x1] 0.0
      %3117 = vst [vmem:[#allocation2 + $0x78] sm:$0x1] 0.0
      %3118 = vst [vmem:[#allocation2 + $0x90] sm:$0x1] 0.0
      %3119 = vst [vmem:[#allocation2 + $0xa8] sm:$0x1] 0.0
      %3120 = vst [vmem:[#allocation2 + $0xc0] sm:$0x1] 0.0
      %3121 = vst [vmem:[#allocation2 + $0xd8] sm:$0x1] 0.0
      %3122 = vst [vmem:[#allocation2 + $0xf0] sm:$0x1] 0.0
      %3123 = vst [vmem:[#allocation2 + $0x108] sm:$0x1] 0.0
      %3124 = vst [vmem:[#allocation2 + $0x120] sm:$0x1] 0.0
      %3125 = vst [vmem:[#allocation2 + $0x138] sm:$0x1] 0.0
      %3126 = vst [vmem:[#allocation2 + $0x150] sm:$0x1] 0.0
      %3127 = vst [vmem:[#allocation2 + $0x168] sm:$0x1] 0.0
      %3128 = vst [vmem:[#allocation2 + $0x180] sm:$0x1] 0.0
      %3129 = vst [vmem:[#allocation2 + $0x198] sm:$0x1] 0.0
      %3130 = vst [vmem:[#allocation2 + $0x11] sm:$0x1] 0.0
      %3131 = vst [vmem:[#allocation2 + $0x29] sm:$0x1] 0.0
      %3132 = vst [vmem:[#allocation2 + $0x41] sm:$0x1] 0.0
      %3133 = vst [vmem:[#allocation2 + $0x59] sm:$0x1] 0.0
      %3134 = vst [vmem:[#allocation2 + $0x71] sm:$0x1] 0.0
      %3135 = vst [vmem:[#allocation2 + $0x89] sm:$0x1] 0.0
      %3136 = vst [vmem:[#allocation2 + $0xa1] sm:$0x1] 0.0
      %3137 = vst [vmem:[#allocation2 + $0xb9] sm:$0x1] 0.0
      %3138 = vst [vmem:[#allocation2 + $0xd1] sm:$0x1] 0.0
      %3139 = vst [vmem:[#allocation2 + $0xe9] sm:$0x1] 0.0
      %3140 = vst [vmem:[#allocation2 + $0x101] sm:$0x1] 0.0
      %3141 = vst [vmem:[#allocation2 + $0x119] sm:$0x1] 0.0
      %3142 = vst [vmem:[#allocation2 + $0x131] sm:$0x1] 0.0
      %3143 = vst [vmem:[#allocation2 + $0x149] sm:$0x1] 0.0
      %3144 = vst [vmem:[#allocation2 + $0x161] sm:$0x1] 0.0
      %3145 = vst [vmem:[#allocation2 + $0x179] sm:$0x1] 0.0
      %3146 = vst [vmem:[#allocation2 + $0x191] sm:$0x1] 0.0
      %3147 = vst [vmem:[#allocation2 + $0x1a9] sm:$0x1] 0.0
      %s3148 = scalar_lea.vmem [#allocation2], 24
      %3149 = vst [vmem:[%s3148 + $0x1] sm:$0xff] %v3073
      %3150 = vst [vmem:[%s3148 + $0x9] sm:$0xff] %v3074
      %3151 = vst [vmem:[%s3148 + $0x19] sm:$0xff] %v3075
      %3152 = vst [vmem:[%s3148 + $0x21] sm:$0xff] %v3076
      %3153 = vst [vmem:[%s3148 + $0x31] sm:$0xff] %v3077
      %3154 = vst [vmem:[%s3148 + $0x39] sm:$0xff] %v3078
      %3155 = vst [vmem:[%s3148 + $0x49] sm:$0xff] %v3079
      %3156 = vst [vmem:[%s3148 + $0x51] sm:$0xff] %v3080
      %3157 = vst [vmem:[%s3148 + $0x61] sm:$0xff] %v3081
      %3158 = vst [vmem:[%s3148 + $0x69] sm:$0xff] %v3082
      %3159 = vst [vmem:[%s3148 + $0x79] sm:$0xff] %v3083
      %3160 = vst [vmem:[%s3148 + $0x81] sm:$0xff] %v3084
      %3161 = vst [vmem:[%s3148 + $0x91] sm:$0xff] %v3085
      %3162 = vst [vmem:[%s3148 + $0x99] sm:$0xff] %v3086
      %3163 = vst [vmem:[%s3148 + $0xa9] sm:$0xff] %v3087
      %3164 = vst [vmem:[%s3148 + $0xb1] sm:$0xff] %v3088
      %3165 = vst [vmem:[%s3148 + $0xc1] sm:$0xff] %v3089
      %3166 = vst [vmem:[%s3148 + $0xc9] sm:$0xff] %v3090
      %3167 = vst [vmem:[%s3148 + $0xd9] sm:$0xff] %v3091
      %3168 = vst [vmem:[%s3148 + $0xe1] sm:$0xff] %v3092
      %3169 = vst [vmem:[%s3148 + $0xf1] sm:$0xff] %v3093
      %3170 = vst [vmem:[%s3148 + $0xf9] sm:$0xff] %v3094
      %3171 = vst [vmem:[%s3148 + $0x109] sm:$0xff] %v3095
      %3172 = vst [vmem:[%s3148 + $0x111] sm:$0xff] %v3096
      %3173 = vst [vmem:[%s3148 + $0x121] sm:$0xff] %v3097
      %3174 = vst [vmem:[%s3148 + $0x129] sm:$0xff] %v3098
      %3175 = vst [vmem:[%s3148 + $0x139] sm:$0xff] %v3099
      %3176 = vst [vmem:[%s3148 + $0x141] sm:$0xff] %v3100
      %3177 = vst [vmem:[%s3148 + $0x151] sm:$0xff] %v3101
      %3178 = vst [vmem:[%s3148 + $0x159] sm:$0xff] %v3102
      %3179 = vst [vmem:[%s3148 + $0x169] sm:$0xff] %v3103
      %3180 = vst [vmem:[%s3148 + $0x171] sm:$0xff] %v3104
      %v3181 = vld [vmem:[#allocation2] sm:$0xff]
      %v3182 = vld [vmem:[#allocation2 + $0x8] sm:$0xff]
      %v3183 = vld [vmem:[#allocation2 + $0x18] sm:$0xff]
      %v3184 = vld [vmem:[#allocation2 + $0x20] sm:$0xff]
      %v3185 = vld [vmem:[#allocation2 + $0x30] sm:$0xff]
      %v3186 = vld [vmem:[#allocation2 + $0x38] sm:$0xff]
      %v3187 = vld [vmem:[#allocation2 + $0x48] sm:$0xff]
      %v3188 = vld [vmem:[#allocation2 + $0x50] sm:$0xff]
      %v3189 = vld [vmem:[#allocation2 + $0x60] sm:$0xff]
      %v3190 = vld [vmem:[#allocation2 + $0x68] sm:$0xff]
      %v3191 = vld [vmem:[#allocation2 + $0x78] sm:$0xff]
      %v3192 = vld [vmem:[#allocation2 + $0x80] sm:$0xff]
      %v3193 = vld [vmem:[#allocation2 + $0x90] sm:$0xff]
      %v3194 = vld [vmem:[#allocation2 + $0x98] sm:$0xff]
      %v3195 = vld [vmem:[#allocation2 + $0xa8] sm:$0xff]
      %v3196 = vld [vmem:[#allocation2 + $0xb0] sm:$0xff]
      %v3197 = vld [vmem:[#allocation2 + $0xc0] sm:$0xff]
      %v3198 = vld [vmem:[#allocation2 + $0xc8] sm:$0xff]
      %v3199 = vld [vmem:[#allocation2 + $0xd8] sm:$0xff]
      %v3200 = vld [vmem:[#allocation2 + $0xe0] sm:$0xff]
      %v3201 = vld [vmem:[#allocation2 + $0xf0] sm:$0xff]
      %v3202 = vld [vmem:[#allocation2 + $0xf8] sm:$0xff]
      %v3203 = vld [vmem:[#allocation2 + $0x108] sm:$0xff]
      %v3204 = vld [vmem:[#allocation2 + $0x110] sm:$0xff]
      %v3205 = vld [vmem:[#allocation2 + $0x120] sm:$0xff]
      %v3206 = vld [vmem:[#allocation2 + $0x128] sm:$0xff]
      %v3207 = vld [vmem:[#allocation2 + $0x138] sm:$0xff]
      %v3208 = vld [vmem:[#allocation2 + $0x140] sm:$0xff]
      %v3209 = vld [vmem:[#allocation2 + $0x150] sm:$0xff]
      %v3210 = vld [vmem:[#allocation2 + $0x158] sm:$0xff]
      %v3211 = vld [vmem:[#allocation2 + $0x168] sm:$0xff]
      %v3212 = vld [vmem:[#allocation2 + $0x170] sm:$0xff]
      %v3213 = vld [vmem:[%s3] sm:$0xff]
      %v3214 = vld [vmem:[%s3 + $0x8] sm:$0xff]
      %v3215 = vld [vmem:[%s3 + $0x10] sm:$0xff]
      %v3216 = vld [vmem:[%s3 + $0x18] sm:$0xff]
      %v3217 = vld [vmem:[%s3 + $0x20] sm:$0xff]
      %v3218 = vld [vmem:[%s3 + $0x28] sm:$0xff]
      %v3219 = vld [vmem:[%s3 + $0x30] sm:$0xff]
      %v3220 = vld [vmem:[%s3 + $0x38] sm:$0xff]
      %v3221 = vld [vmem:[%s3 + $0x40] sm:$0xff]
      %v3222 = vld [vmem:[%s3 + $0x48] sm:$0xff]
      %v3223 = vld [vmem:[%s3 + $0x50] sm:$0xff]
      %v3224 = vld [vmem:[%s3 + $0x58] sm:$0xff]
      %v3225 = vld [vmem:[%s3 + $0x60] sm:$0xff]
      %v3226 = vld [vmem:[%s3 + $0x68] sm:$0xff]
      %v3227 = vld [vmem:[%s3 + $0x70] sm:$0xff]
      %v3228 = vld [vmem:[%s3 + $0x78] sm:$0xff]
      %v3229 = vld [vmem:[#allocation2 + $0x1] sm:$0xff]
      %v3230 = vld [vmem:[#allocation2 + $0x9] sm:$0xff]
      %v3231 = vld [vmem:[#allocation2 + $0x19] sm:$0xff]
      %v3232 = vld [vmem:[#allocation2 + $0x21] sm:$0xff]
      %v3233 = vld [vmem:[#allocation2 + $0x31] sm:$0xff]
      %v3234 = vld [vmem:[#allocation2 + $0x39] sm:$0xff]
      %v3235 = vld [vmem:[#allocation2 + $0x49] sm:$0xff]
      %v3236 = vld [vmem:[#allocation2 + $0x51] sm:$0xff]
      %v3237 = vld [vmem:[#allocation2 + $0x61] sm:$0xff]
      %v3238 = vld [vmem:[#allocation2 + $0x69] sm:$0xff]
      %v3239 = vld [vmem:[#allocation2 + $0x79] sm:$0xff]
      %v3240 = vld [vmem:[#allocation2 + $0x81] sm:$0xff]
      %v3241 = vld [vmem:[#allocation2 + $0x91] sm:$0xff]
      %v3242 = vld [vmem:[#allocation2 + $0x99] sm:$0xff]
      %v3243 = vld [vmem:[#allocation2 + $0xa9] sm:$0xff]
      %v3244 = vld [vmem:[#allocation2 + $0xb1] sm:$0xff]
      %v3245 = vld [vmem:[#allocation2 + $0xc1] sm:$0xff]
      %v3246 = vld [vmem:[#allocation2 + $0xc9] sm:$0xff]
      %v3247 = vld [vmem:[#allocation2 + $0xd9] sm:$0xff]
      %v3248 = vld [vmem:[#allocation2 + $0xe1] sm:$0xff]
      %v3249 = vld [vmem:[#allocation2 + $0xf1] sm:$0xff]
      %v3250 = vld [vmem:[#allocation2 + $0xf9] sm:$0xff]
      %v3251 = vld [vmem:[#allocation2 + $0x109] sm:$0xff]
      %v3252 = vld [vmem:[#allocation2 + $0x111] sm:$0xff]
      %v3253 = vld [vmem:[#allocation2 + $0x121] sm:$0xff]
      %v3254 = vld [vmem:[#allocation2 + $0x129] sm:$0xff]
      %v3255 = vld [vmem:[#allocation2 + $0x139] sm:$0xff]
      %v3256 = vld [vmem:[#allocation2 + $0x141] sm:$0xff]
      %v3257 = vld [vmem:[#allocation2 + $0x151] sm:$0xff]
      %v3258 = vld [vmem:[#allocation2 + $0x159] sm:$0xff]
      %v3259 = vld [vmem:[#allocation2 + $0x169] sm:$0xff]
      %v3260 = vld [vmem:[#allocation2 + $0x171] sm:$0xff]
      %s3261 = scalar_lea.vmem %s3, 128
      %v3262 = vld [vmem:[%s3261] sm:$0xff]
      %v3263 = vld [vmem:[%s3261 + $0x8] sm:$0xff]
      %v3264 = vld [vmem:[%s3261 + $0x10] sm:$0xff]
      %v3265 = vld [vmem:[%s3261 + $0x18] sm:$0xff]
      %v3266 = vld [vmem:[%s3261 + $0x20] sm:$0xff]
      %v3267 = vld [vmem:[%s3261 + $0x28] sm:$0xff]
      %v3268 = vld [vmem:[%s3261 + $0x30] sm:$0xff]
      %v3269 = vld [vmem:[%s3261 + $0x38] sm:$0xff]
      %v3270 = vld [vmem:[%s3261 + $0x40] sm:$0xff]
      %v3271 = vld [vmem:[%s3261 + $0x48] sm:$0xff]
      %v3272 = vld [vmem:[%s3261 + $0x50] sm:$0xff]
      %v3273 = vld [vmem:[%s3261 + $0x58] sm:$0xff]
      %v3274 = vld [vmem:[%s3261 + $0x60] sm:$0xff]
      %v3275 = vld [vmem:[%s3261 + $0x68] sm:$0xff]
      %v3276 = vld [vmem:[%s3261 + $0x70] sm:$0xff]
      %v3277 = vld [vmem:[%s3261 + $0x78] sm:$0xff]
      %3278 = vmatprep.subr.mxu0 0.0
      %3279 = vmatpush1.msra.mxu0 %v3262
      %3280 = vmatprep.subr.mxu0 0.0
      %3281 = vmatpush1.msra.mxu0 %v3263
      %3282 = vmatprep.subr.mxu0 0.0
      %3283 = vmatpush1.msra.mxu0 %v3264
      %3284 = vmatprep.subr.mxu0 0.0
      %3285 = vmatpush1.msra.mxu0 %v3265
      %3286 = vmatprep.subr.mxu0 0.0
      %3287 = vmatpush1.msra.mxu0 %v3266
      %3288 = vmatprep.subr.mxu0 0.0
      %3289 = vmatpush1.msra.mxu0 %v3267
      %3290 = vmatprep.subr.mxu0 0.0
      %3291 = vmatpush1.msra.mxu0 %v3268
      %3292 = vmatprep.subr.mxu0 0.0
      %3293 = vmatpush1.msra.mxu0 %v3269
      %3294 = vmatprep.subr.mxu0 0.0
      %3295 = vmatpush1.msra.mxu0 %v3270
      %3296 = vmatprep.subr.mxu0 0.0
      %3297 = vmatpush1.msra.mxu0 %v3271
      %3298 = vmatprep.subr.mxu0 0.0
      %3299 = vmatpush1.msra.mxu0 %v3272
      %3300 = vmatprep.subr.mxu0 0.0
      %3301 = vmatpush1.msra.mxu0 %v3273
      %3302 = vmatprep.subr.mxu0 0.0
      %3303 = vmatpush1.msra.mxu0 %v3274
      %3304 = vmatprep.subr.mxu0 0.0
      %3305 = vmatpush1.msra.mxu0 %v3275
      %3306 = vmatprep.subr.mxu0 0.0
      %3307 = vmatpush1.msra.mxu0 %v3276
      %3308 = vmatprep.subr.mxu0 0.0
      %3309 = vmatpush1.msra.mxu0 %v3277
      %3310 = vmatprep.subr.mxu0 0.0
      %3311 = vmatpush1.msra.mxu0 0.0
      %3312 = vmatprep.subr.mxu0 0.0
      %3313 = vmatpush1.msra.mxu0 0.0
      %3314 = vmatprep.subr.mxu0 0.0
      %3315 = vmatpush1.msra.mxu0 0.0
      %3316 = vmatprep.subr.mxu0 0.0
      %3317 = vmatpush1.msra.mxu0 0.0
      %3318 = vmatprep.subr.mxu0 0.0
      %3319 = vmatpush1.msra.mxu0 0.0
      %3320 = vmatprep.subr.mxu0 0.0
      %3321 = vmatpush1.msra.mxu0 0.0
      %3322 = vmatprep.subr.mxu0 0.0
      %3323 = vmatpush1.msra.mxu0 0.0
      %3324 = vmatprep.subr.mxu0 0.0
      %3325 = vmatpush1.msra.mxu0 0.0
      %3326 = vmatprep.subr.mxu0 0.0
      %3327 = vmatpush1.msra.mxu0 0.0
      %3328 = vmatprep.subr.mxu0 0.0
      %3329 = vmatpush1.msra.mxu0 0.0
      %3330 = vmatprep.subr.mxu0 0.0
      %3331 = vmatpush1.msra.mxu0 0.0
      %3332 = vmatprep.subr.mxu0 0.0
      %3333 = vmatpush1.msra.mxu0 0.0
      %3334 = vmatprep.subr.mxu0 0.0
      %3335 = vmatpush1.msra.mxu0 0.0
      %3336 = vmatprep.subr.mxu0 0.0
      %3337 = vmatpush1.msra.mxu0 0.0
      %3338 = vmatprep.subr.mxu0 0.0
      %3339 = vmatpush1.msra.mxu0 0.0
      %3340 = vmatprep.subr.mxu0 0.0
      %3341 = vmatpush1.msra.mxu0 0.0
      %3342 = vmatprep.mubr.f32.mxu0 0.0
      %3343 = vmatmul.mubr.f32.gmra.mrb[0].mxu0 %v3229
      %v3344 = vpop.f32.mrb[0].mxu0
      %v3345 = vadd.f32 0.0, %v3344
      %v3346 = vpop.f32.mrb[0].mxu0
      %3347 = vmatprep.mubr.f32.mxu0 0.0
      %3348 = vmatmul.mubr.f32.gmra.mrb[0].mxu0 %v3230
      %v3349 = vpop.f32.mrb[0].mxu0
      %v3350 = vadd.f32 0.0, %v3349
      %v3351 = vpop.f32.mrb[0].mxu0
      %3352 = vmatprep.mubr.f32.mxu0 0.0
      %3353 = vmatmul.mubr.f32.gmra.mrb[0].mxu0 %v3231
      %v3354 = vpop.f32.mrb[0].mxu0
      %v3355 = vadd.f32 0.0, %v3354
      %v3356 = vpop.f32.mrb[0].mxu0
      %3357 = vmatprep.mubr.f32.mxu0 0.0
      %3358 = vmatmul.mubr.f32.gmra.mrb[0].mxu0 %v3232
      %v3359 = vpop.f32.mrb[0].mxu0
      %v3360 = vadd.f32 0.0, %v3359
      %v3361 = vpop.f32.mrb[0].mxu0
      %3362 = vmatprep.mubr.f32.mxu0 0.0
      %3363 = vmatmul.mubr.f32.gmra.mrb[0].mxu0 %v3233
      %v3364 = vpop.f32.mrb[0].mxu0
      %v3365 = vadd.f32 0.0, %v3364
      %v3366 = vpop.f32.mrb[0].mxu0
      %3367 = vmatprep.mubr.f32.mxu0 0.0
      %3368 = vmatmul.mubr.f32.gmra.mrb[0].mxu0 %v3234
      %v3369 = vpop.f32.mrb[0].mxu0
      %v3370 = vadd.f32 0.0, %v3369
      %v3371 = vpop.f32.mrb[0].mxu0
      %3372 = vmatprep.mubr.f32.mxu0 0.0
      %3373 = vmatmul.mubr.f32.gmra.mrb[0].mxu0 %v3235
      %v3374 = vpop.f32.mrb[0].mxu0
      %v3375 = vadd.f32 0.0, %v3374
      %v3376 = vpop.f32.mrb[0].mxu0
      %3377 = vmatprep.mubr.f32.mxu0 0.0
      %3378 = vmatmul.mubr.f32.gmra.mrb[0].mxu0 %v3236
      %v3379 = vpop.f32.mrb[0].mxu0
      %v3380 = vadd.f32 0.0, %v3379
      %v3381 = vpop.f32.mrb[0].mxu0
      %3382 = vmatprep.mubr.f32.mxu0 0.0
      %3383 = vmatmul.mubr.f32.gmra.mrb[0].mxu0 %v3237
      %v3384 = vpop.f32.mrb[0].mxu0
      %v3385 = vadd.f32 0.0, %v3384
      %v3386 = vpop.f32.mrb[0].mxu0
      %3387 = vmatprep.mubr.f32.mxu0 0.0
      %3388 = vmatmul.mubr.f32.gmra.mrb[0].mxu0 %v3238
      %v3389 = vpop.f32.mrb[0].mxu0
      %v3390 = vadd.f32 0.0, %v3389
      %v3391 = vpop.f32.mrb[0].mxu0
      %3392 = vmatprep.mubr.f32.mxu0 0.0
      %3393 = vmatmul.mubr.f32.gmra.mrb[0].mxu0 %v3239
      %v3394 = vpop.f32.mrb[0].mxu0
      %v3395 = vadd.f32 0.0, %v3394
      %v3396 = vpop.f32.mrb[0].mxu0
      %3397 = vmatprep.mubr.f32.mxu0 0.0
      %3398 = vmatmul.mubr.f32.gmra.mrb[0].mxu0 %v3240
      %v3399 = vpop.f32.mrb[0].mxu0
      %v3400 = vadd.f32 0.0, %v3399
      %v3401 = vpop.f32.mrb[0].mxu0
      %3402 = vmatprep.mubr.f32.mxu0 0.0
      %3403 = vmatmul.mubr.f32.gmra.mrb[0].mxu0 %v3241
      %v3404 = vpop.f32.mrb[0].mxu0
      %v3405 = vadd.f32 0.0, %v3404
      %v3406 = vpop.f32.mrb[0].mxu0
      %3407 = vmatprep.mubr.f32.mxu0 0.0
      %3408 = vmatmul.mubr.f32.gmra.mrb[0].mxu0 %v3242
      %v3409 = vpop.f32.mrb[0].mxu0
      %v3410 = vadd.f32 0.0, %v3409
      %v3411 = vpop.f32.mrb[0].mxu0
      %3412 = vmatprep.mubr.f32.mxu0 0.0
      %3413 = vmatmul.mubr.f32.gmra.mrb[0].mxu0 %v3243
      %v3414 = vpop.f32.mrb[0].mxu0
      %v3415 = vadd.f32 0.0, %v3414
      %v3416 = vpop.f32.mrb[0].mxu0
      %3417 = vmatprep.mubr.f32.mxu0 0.0
      %3418 = vmatmul.mubr.f32.gmra.mrb[0].mxu0 %v3244
      %v3419 = vpop.f32.mrb[0].mxu0
      %v3420 = vadd.f32 0.0, %v3419
      %v3421 = vpop.f32.mrb[0].mxu0
      %3422 = vmatprep.mubr.f32.mxu0 0.0
      %3423 = vmatmul.mubr.f32.gmra.mrb[0].mxu0 %v3245
      %v3424 = vpop.f32.mrb[0].mxu0
      %v3425 = vadd.f32 0.0, %v3424
      %v3426 = vpop.f32.mrb[0].mxu0
      %3427 = vmatprep.mubr.f32.mxu0 0.0
      %3428 = vmatmul.mubr.f32.gmra.mrb[0].mxu0 %v3246
      %v3429 = vpop.f32.mrb[0].mxu0
      %v3430 = vadd.f32 0.0, %v3429
      %v3431 = vpop.f32.mrb[0].mxu0
      %3432 = vmatprep.mubr.f32.mxu0 0.0
      %3433 = vmatmul.mubr.f32.gmra.mrb[0].mxu0 %v3247
      %v3434 = vpop.f32.mrb[0].mxu0
      %v3435 = vadd.f32 0.0, %v3434
      %v3436 = vpop.f32.mrb[0].mxu0
      %3437 = vmatprep.mubr.f32.mxu0 0.0
      %3438 = vmatmul.mubr.f32.gmra.mrb[0].mxu0 %v3248
      %v3439 = vpop.f32.mrb[0].mxu0
      %v3440 = vadd.f32 0.0, %v3439
      %v3441 = vpop.f32.mrb[0].mxu0
      %3442 = vmatprep.mubr.f32.mxu0 0.0
      %3443 = vmatmul.mubr.f32.gmra.mrb[0].mxu0 %v3249
      %v3444 = vpop.f32.mrb[0].mxu0
      %v3445 = vadd.f32 0.0, %v3444
      %v3446 = vpop.f32.mrb[0].mxu0
      %3447 = vmatprep.mubr.f32.mxu0 0.0
      %3448 = vmatmul.mubr.f32.gmra.mrb[0].mxu0 %v3250
      %v3449 = vpop.f32.mrb[0].mxu0
      %v3450 = vadd.f32 0.0, %v3449
      %v3451 = vpop.f32.mrb[0].mxu0
      %3452 = vmatprep.mubr.f32.mxu0 0.0
      %3453 = vmatmul.mubr.f32.gmra.mrb[0].mxu0 %v3251
      %v3454 = vpop.f32.mrb[0].mxu0
      %v3455 = vadd.f32 0.0, %v3454
      %v3456 = vpop.f32.mrb[0].mxu0
      %3457 = vmatprep.mubr.f32.mxu0 0.0
      %3458 = vmatmul.mubr.f32.gmra.mrb[0].mxu0 %v3252
      %v3459 = vpop.f32.mrb[0].mxu0
      %v3460 = vadd.f32 0.0, %v3459
      %v3461 = vpop.f32.mrb[0].mxu0
      %3462 = vmatprep.mubr.f32.mxu0 0.0
      %3463 = vmatmul.mubr.f32.gmra.mrb[0].mxu0 %v3253
      %v3464 = vpop.f32.mrb[0].mxu0
      %v3465 = vadd.f32 0.0, %v3464
      %v3466 = vpop.f32.mrb[0].mxu0
      %3467 = vmatprep.mubr.f32.mxu0 0.0
      %3468 = vmatmul.mubr.f32.gmra.mrb[0].mxu0 %v3254
      %v3469 = vpop.f32.mrb[0].mxu0
      %v3470 = vadd.f32 0.0, %v3469
      %v3471 = vpop.f32.mrb[0].mxu0
      %3472 = vmatprep.mubr.f32.mxu0 0.0
      %3473 = vmatmul.mubr.f32.gmra.mrb[0].mxu0 %v3255
      %v3474 = vpop.f32.mrb[0].mxu0
      %v3475 = vadd.f32 0.0, %v3474
      %v3476 = vpop.f32.mrb[0].mxu0
      %3477 = vmatprep.mubr.f32.mxu0 0.0
      %3478 = vmatmul.mubr.f32.gmra.mrb[0].mxu0 %v3256
      %v3479 = vpop.f32.mrb[0].mxu0
      %v3480 = vadd.f32 0.0, %v3479
      %v3481 = vpop.f32.mrb[0].mxu0
      %3482 = vmatprep.mubr.f32.mxu0 0.0
      %3483 = vmatmul.mubr.f32.gmra.mrb[0].mxu0 %v3257
      %v3484 = vpop.f32.mrb[0].mxu0
      %v3485 = vadd.f32 0.0, %v3484
      %v3486 = vpop.f32.mrb[0].mxu0
      %3487 = vmatprep.mubr.f32.mxu0 0.0
      %3488 = vmatmul.mubr.f32.gmra.mrb[0].mxu0 %v3258
      %v3489 = vpop.f32.mrb[0].mxu0
      %v3490 = vadd.f32 0.0, %v3489
      %v3491 = vpop.f32.mrb[0].mxu0
      %3492 = vmatprep.mubr.f32.mxu0 0.0
      %3493 = vmatmul.mubr.f32.gmra.mrb[0].mxu0 %v3259
      %v3494 = vpop.f32.mrb[0].mxu0
      %v3495 = vadd.f32 0.0, %v3494
      %v3496 = vpop.f32.mrb[0].mxu0
      %3497 = vmatprep.mubr.f32.mxu0 0.0
      %3498 = vmatmul.mubr.f32.gmra.mrb[0].mxu0 %v3260
      %v3499 = vpop.f32.mrb[0].mxu0
      %v3500 = vadd.f32 0.0, %v3499
      %v3501 = vpop.f32.mrb[0].mxu0
      %3502 = vdwg.mxu0
      %3503 = vmatprep.subr.mxu0 0.0
      %3504 = vmatpush1.msra.mxu0 %v3213
      %3505 = vmatprep.subr.mxu0 0.0
      %3506 = vmatpush1.msra.mxu0 %v3214
      %3507 = vmatprep.subr.mxu0 0.0
      %3508 = vmatpush1.msra.mxu0 %v3215
      %3509 = vmatprep.subr.mxu0 0.0
      %3510 = vmatpush1.msra.mxu0 %v3216
      %3511 = vmatprep.subr.mxu0 0.0
      %3512 = vmatpush1.msra.mxu0 %v3217
      %3513 = vmatprep.subr.mxu0 0.0
      %3514 = vmatpush1.msra.mxu0 %v3218
      %3515 = vmatprep.subr.mxu0 0.0
      %3516 = vmatpush1.msra.mxu0 %v3219
      %3517 = vmatprep.subr.mxu0 0.0
      %3518 = vmatpush1.msra.mxu0 %v3220
      %3519 = vmatprep.subr.mxu0 0.0
      %3520 = vmatpush1.msra.mxu0 %v3221
      %3521 = vmatprep.subr.mxu0 0.0
      %3522 = vmatpush1.msra.mxu0 %v3222
      %3523 = vmatprep.subr.mxu0 0.0
      %3524 = vmatpush1.msra.mxu0 %v3223
      %3525 = vmatprep.subr.mxu0 0.0
      %3526 = vmatpush1.msra.mxu0 %v3224
      %3527 = vmatprep.subr.mxu0 0.0
      %3528 = vmatpush1.msra.mxu0 %v3225
      %3529 = vmatprep.subr.mxu0 0.0
      %3530 = vmatpush1.msra.mxu0 %v3226
      %3531 = vmatprep.subr.mxu0 0.0
      %3532 = vmatpush1.msra.mxu0 %v3227
      %3533 = vmatprep.subr.mxu0 0.0
      %3534 = vmatpush1.msra.mxu0 %v3228
      %3535 = vmatprep.subr.mxu0 0.0
      %3536 = vmatpush1.msra.mxu0 0.0
      %3537 = vmatprep.subr.mxu0 0.0
      %3538 = vmatpush1.msra.mxu0 0.0
      %3539 = vmatprep.subr.mxu0 0.0
      %3540 = vmatpush1.msra.mxu0 0.0
      %3541 = vmatprep.subr.mxu0 0.0
      %3542 = vmatpush1.msra.mxu0 0.0
      %3543 = vmatprep.subr.mxu0 0.0
      %3544 = vmatpush1.msra.mxu0 0.0
      %3545 = vmatprep.subr.mxu0 0.0
      %3546 = vmatpush1.msra.mxu0 0.0
      %3547 = vmatprep.subr.mxu0 0.0
      %3548 = vmatpush1.msra.mxu0 0.0
      %3549 = vmatprep.subr.mxu0 0.0
      %3550 = vmatpush1.msra.mxu0 0.0
      %3551 = vmatprep.subr.mxu0 0.0
      %3552 = vmatpush1.msra.mxu0 0.0
      %3553 = vmatprep.subr.mxu0 0.0
      %3554 = vmatpush1.msra.mxu0 0.0
      %3555 = vmatprep.subr.mxu0 0.0
      %3556 = vmatpush1.msra.mxu0 0.0
      %3557 = vmatprep.subr.mxu0 0.0
      %3558 = vmatpush1.msra.mxu0 0.0
      %3559 = vmatprep.subr.mxu0 0.0
      %3560 = vmatpush1.msra.mxu0 0.0
      %3561 = vmatprep.subr.mxu0 0.0
      %3562 = vmatpush1.msra.mxu0 0.0
      %3563 = vmatprep.subr.mxu0 0.0
      %3564 = vmatpush1.msra.mxu0 0.0
      %3565 = vmatprep.subr.mxu0 0.0
      %3566 = vmatpush1.msra.mxu0 0.0
      %3567 = vmatprep.mubr.f32.mxu0 0.0
      %3568 = vmatmul.mubr.f32.gmra.mrb[0].mxu0 %v3181
      %v3569 = vpop.f32.mrb[0].mxu0
      %v3570 = vadd.f32 %v3345, %v3569
      %v3571 = vpop.f32.mrb[0].mxu0
      %3572 = vmatprep.mubr.f32.mxu0 0.0
      %3573 = vmatmul.mubr.f32.gmra.mrb[0].mxu0 %v3182
      %v3574 = vpop.f32.mrb[0].mxu0
      %v3575 = vadd.f32 %v3350, %v3574
      %v3576 = vpop.f32.mrb[0].mxu0
      %3577 = vmatprep.mubr.f32.mxu0 0.0
      %3578 = vmatmul.mubr.f32.gmra.mrb[0].mxu0 %v3183
      %v3579 = vpop.f32.mrb[0].mxu0
      %v3580 = vadd.f32 %v3355, %v3579
      %v3581 = vpop.f32.mrb[0].mxu0
      %3582 = vmatprep.mubr.f32.mxu0 0.0
      %3583 = vmatmul.mubr.f32.gmra.mrb[0].mxu0 %v3184
      %v3584 = vpop.f32.mrb[0].mxu0
      %v3585 = vadd.f32 %v3360, %v3584
      %v3586 = vpop.f32.mrb[0].mxu0
      %3587 = vmatprep.mubr.f32.mxu0 0.0
      %3588 = vmatmul.mubr.f32.gmra.mrb[0].mxu0 %v3185
      %v3589 = vpop.f32.mrb[0].mxu0
      %v3590 = vadd.f32 %v3365, %v3589
      %v3591 = vpop.f32.mrb[0].mxu0
      %3592 = vmatprep.mubr.f32.mxu0 0.0
      %3593 = vmatmul.mubr.f32.gmra.mrb[0].mxu0 %v3186
      %v3594 = vpop.f32.mrb[0].mxu0
      %v3595 = vadd.f32 %v3370, %v3594
      %v3596 = vpop.f32.mrb[0].mxu0
      %3597 = vmatprep.mubr.f32.mxu0 0.0
      %3598 = vmatmul.mubr.f32.gmra.mrb[0].mxu0 %v3187
      %v3599 = vpop.f32.mrb[0].mxu0
      %v3600 = vadd.f32 %v3375, %v3599
      %v3601 = vpop.f32.mrb[0].mxu0
      %3602 = vmatprep.mubr.f32.mxu0 0.0
      %3603 = vmatmul.mubr.f32.gmra.mrb[0].mxu0 %v3188
      %v3604 = vpop.f32.mrb[0].mxu0
      %v3605 = vadd.f32 %v3380, %v3604
      %v3606 = vpop.f32.mrb[0].mxu0
      %3607 = vmatprep.mubr.f32.mxu0 0.0
      %3608 = vmatmul.mubr.f32.gmra.mrb[0].mxu0 %v3189
      %v3609 = vpop.f32.mrb[0].mxu0
      %v3610 = vadd.f32 %v3385, %v3609
      %v3611 = vpop.f32.mrb[0].mxu0
      %3612 = vmatprep.mubr.f32.mxu0 0.0
      %3613 = vmatmul.mubr.f32.gmra.mrb[0].mxu0 %v3190
      %v3614 = vpop.f32.mrb[0].mxu0
      %v3615 = vadd.f32 %v3390, %v3614
      %v3616 = vpop.f32.mrb[0].mxu0
      %3617 = vmatprep.mubr.f32.mxu0 0.0
      %3618 = vmatmul.mubr.f32.gmra.mrb[0].mxu0 %v3191
      %v3619 = vpop.f32.mrb[0].mxu0
      %v3620 = vadd.f32 %v3395, %v3619
      %v3621 = vpop.f32.mrb[0].mxu0
      %3622 = vmatprep.mubr.f32.mxu0 0.0
      %3623 = vmatmul.mubr.f32.gmra.mrb[0].mxu0 %v3192
      %v3624 = vpop.f32.mrb[0].mxu0
      %v3625 = vadd.f32 %v3400, %v3624
      %v3626 = vpop.f32.mrb[0].mxu0
      %3627 = vmatprep.mubr.f32.mxu0 0.0
      %3628 = vmatmul.mubr.f32.gmra.mrb[0].mxu0 %v3193
      %v3629 = vpop.f32.mrb[0].mxu0
      %v3630 = vadd.f32 %v3405, %v3629
      %v3631 = vpop.f32.mrb[0].mxu0
      %3632 = vmatprep.mubr.f32.mxu0 0.0
      %3633 = vmatmul.mubr.f32.gmra.mrb[0].mxu0 %v3194
      %v3634 = vpop.f32.mrb[0].mxu0
      %v3635 = vadd.f32 %v3410, %v3634
      %v3636 = vpop.f32.mrb[0].mxu0
      %3637 = vmatprep.mubr.f32.mxu0 0.0
      %3638 = vmatmul.mubr.f32.gmra.mrb[0].mxu0 %v3195
      %v3639 = vpop.f32.mrb[0].mxu0
      %v3640 = vadd.f32 %v3415, %v3639
      %v3641 = vpop.f32.mrb[0].mxu0
      %3642 = vmatprep.mubr.f32.mxu0 0.0
      %3643 = vmatmul.mubr.f32.gmra.mrb[0].mxu0 %v3196
      %v3644 = vpop.f32.mrb[0].mxu0
      %v3645 = vadd.f32 %v3420, %v3644
      %v3646 = vpop.f32.mrb[0].mxu0
      %3647 = vmatprep.mubr.f32.mxu0 0.0
      %3648 = vmatmul.mubr.f32.gmra.mrb[0].mxu0 %v3197
      %v3649 = vpop.f32.mrb[0].mxu0
      %v3650 = vadd.f32 %v3425, %v3649
      %v3651 = vpop.f32.mrb[0].mxu0
      %3652 = vmatprep.mubr.f32.mxu0 0.0
      %3653 = vmatmul.mubr.f32.gmra.mrb[0].mxu0 %v3198
      %v3654 = vpop.f32.mrb[0].mxu0
      %v3655 = vadd.f32 %v3430, %v3654
      %v3656 = vpop.f32.mrb[0].mxu0
      %3657 = vmatprep.mubr.f32.mxu0 0.0
      %3658 = vmatmul.mubr.f32.gmra.mrb[0].mxu0 %v3199
      %v3659 = vpop.f32.mrb[0].mxu0
      %v3660 = vadd.f32 %v3435, %v3659
      %v3661 = vpop.f32.mrb[0].mxu0
      %3662 = vmatprep.mubr.f32.mxu0 0.0
      %3663 = vmatmul.mubr.f32.gmra.mrb[0].mxu0 %v3200
      %v3664 = vpop.f32.mrb[0].mxu0
      %v3665 = vadd.f32 %v3440, %v3664
      %v3666 = vpop.f32.mrb[0].mxu0
      %3667 = vmatprep.mubr.f32.mxu0 0.0
      %3668 = vmatmul.mubr.f32.gmra.mrb[0].mxu0 %v3201
      %v3669 = vpop.f32.mrb[0].mxu0
      %v3670 = vadd.f32 %v3445, %v3669
      %v3671 = vpop.f32.mrb[0].mxu0
      %3672 = vmatprep.mubr.f32.mxu0 0.0
      %3673 = vmatmul.mubr.f32.gmra.mrb[0].mxu0 %v3202
      %v3674 = vpop.f32.mrb[0].mxu0
      %v3675 = vadd.f32 %v3450, %v3674
      %v3676 = vpop.f32.mrb[0].mxu0
      %3677 = vmatprep.mubr.f32.mxu0 0.0
      %3678 = vmatmul.mubr.f32.gmra.mrb[0].mxu0 %v3203
      %v3679 = vpop.f32.mrb[0].mxu0
      %v3680 = vadd.f32 %v3455, %v3679
      %v3681 = vpop.f32.mrb[0].mxu0
      %3682 = vmatprep.mubr.f32.mxu0 0.0
      %3683 = vmatmul.mubr.f32.gmra.mrb[0].mxu0 %v3204
      %v3684 = vpop.f32.mrb[0].mxu0
      %v3685 = vadd.f32 %v3460, %v3684
      %v3686 = vpop.f32.mrb[0].mxu0
      %3687 = vmatprep.mubr.f32.mxu0 0.0
      %3688 = vmatmul.mubr.f32.gmra.mrb[0].mxu0 %v3205
      %v3689 = vpop.f32.mrb[0].mxu0
      %v3690 = vadd.f32 %v3465, %v3689
      %v3691 = vpop.f32.mrb[0].mxu0
      %3692 = vmatprep.mubr.f32.mxu0 0.0
      %3693 = vmatmul.mubr.f32.gmra.mrb[0].mxu0 %v3206
      %v3694 = vpop.f32.mrb[0].mxu0
      %v3695 = vadd.f32 %v3470, %v3694
      %v3696 = vpop.f32.mrb[0].mxu0
      %3697 = vmatprep.mubr.f32.mxu0 0.0
      %3698 = vmatmul.mubr.f32.gmra.mrb[0].mxu0 %v3207
      %v3699 = vpop.f32.mrb[0].mxu0
      %v3700 = vadd.f32 %v3475, %v3699
      %v3701 = vpop.f32.mrb[0].mxu0
      %3702 = vmatprep.mubr.f32.mxu0 0.0
      %3703 = vmatmul.mubr.f32.gmra.mrb[0].mxu0 %v3208
      %v3704 = vpop.f32.mrb[0].mxu0
      %v3705 = vadd.f32 %v3480, %v3704
      %v3706 = vpop.f32.mrb[0].mxu0
      %3707 = vmatprep.mubr.f32.mxu0 0.0
      %3708 = vmatmul.mubr.f32.gmra.mrb[0].mxu0 %v3209
      %v3709 = vpop.f32.mrb[0].mxu0
      %v3710 = vadd.f32 %v3485, %v3709
      %v3711 = vpop.f32.mrb[0].mxu0
      %3712 = vmatprep.mubr.f32.mxu0 0.0
      %3713 = vmatmul.mubr.f32.gmra.mrb[0].mxu0 %v3210
      %v3714 = vpop.f32.mrb[0].mxu0
      %v3715 = vadd.f32 %v3490, %v3714
      %v3716 = vpop.f32.mrb[0].mxu0
      %3717 = vmatprep.mubr.f32.mxu0 0.0
      %3718 = vmatmul.mubr.f32.gmra.mrb[0].mxu0 %v3211
      %v3719 = vpop.f32.mrb[0].mxu0
      %v3720 = vadd.f32 %v3495, %v3719
      %v3721 = vpop.f32.mrb[0].mxu0
      %3722 = vmatprep.mubr.f32.mxu0 0.0
      %3723 = vmatmul.mubr.f32.gmra.mrb[0].mxu0 %v3212
      %v3724 = vpop.f32.mrb[0].mxu0
      %v3725 = vadd.f32 %v3500, %v3724
      %v3726 = vpop.f32.mrb[0].mxu0
      %3727 = vdwg.mxu0
      %v3728 = vld [vmem:[#allocation2 + $0x2] sm:$0xff]
      %v3729 = vld [vmem:[#allocation2 + $0xa] sm:$0xff]
      %v3730 = vld [vmem:[#allocation2 + $0x1a] sm:$0xff]
      %v3731 = vld [vmem:[#allocation2 + $0x22] sm:$0xff]
      %v3732 = vld [vmem:[#allocation2 + $0x32] sm:$0xff]
      %v3733 = vld [vmem:[#allocation2 + $0x3a] sm:$0xff]
      %v3734 = vld [vmem:[#allocation2 + $0x4a] sm:$0xff]
      %v3735 = vld [vmem:[#allocation2 + $0x52] sm:$0xff]
      %v3736 = vld [vmem:[#allocation2 + $0x62] sm:$0xff]
      %v3737 = vld [vmem:[#allocation2 + $0x6a] sm:$0xff]
      %v3738 = vld [vmem:[#allocation2 + $0x7a] sm:$0xff]
      %v3739 = vld [vmem:[#allocation2 + $0x82] sm:$0xff]
      %v3740 = vld [vmem:[#allocation2 + $0x92] sm:$0xff]
      %v3741 = vld [vmem:[#allocation2 + $0x9a] sm:$0xff]
      %v3742 = vld [vmem:[#allocation2 + $0xaa] sm:$0xff]
      %v3743 = vld [vmem:[#allocation2 + $0xb2] sm:$0xff]
      %v3744 = vld [vmem:[#allocation2 + $0xc2] sm:$0xff]
      %v3745 = vld [vmem:[#allocation2 + $0xca] sm:$0xff]
      %v3746 = vld [vmem:[#allocation2 + $0xda] sm:$0xff]
      %v3747 = vld [vmem:[#allocation2 + $0xe2] sm:$0xff]
      %v3748 = vld [vmem:[#allocation2 + $0xf2] sm:$0xff]
      %v3749 = vld [vmem:[#allocation2 + $0xfa] sm:$0xff]
      %v3750 = vld [vmem:[#allocation2 + $0x10a] sm:$0xff]
      %v3751 = vld [vmem:[#allocation2 + $0x112] sm:$0xff]
      %v3752 = vld [vmem:[#allocation2 + $0x122] sm:$0xff]
      %v3753 = vld [vmem:[#allocation2 + $0x12a] sm:$0xff]
      %v3754 = vld [vmem:[#allocation2 + $0x13a] sm:$0xff]
      %v3755 = vld [vmem:[#allocation2 + $0x142] sm:$0xff]
      %v3756 = vld [vmem:[#allocation2 + $0x152] sm:$0xff]
      %v3757 = vld [vmem:[#allocation2 + $0x15a] sm:$0xff]
      %v3758 = vld [vmem:[#allocation2 + $0x16a] sm:$0xff]
      %v3759 = vld [vmem:[#allocation2 + $0x172] sm:$0xff]
      %s3760 = scalar_lea.vmem %s3, 256
      %v3761 = vld [vmem:[%s3760] sm:$0xff]
      %v3762 = vld [vmem:[%s3760 + $0x8] sm:$0xff]
      %v3763 = vld [vmem:[%s3760 + $0x10] sm:$0xff]
      %v3764 = vld [vmem:[%s3760 + $0x18] sm:$0xff]
      %v3765 = vld [vmem:[%s3760 + $0x20] sm:$0xff]
      %v3766 = vld [vmem:[%s3760 + $0x28] sm:$0xff]
      %v3767 = vld [vmem:[%s3760 + $0x30] sm:$0xff]
      %v3768 = vld [vmem:[%s3760 + $0x38] sm:$0xff]
      %v3769 = vld [vmem:[%s3760 + $0x40] sm:$0xff]
      %v3770 = vld [vmem:[%s3760 + $0x48] sm:$0xff]
      %v3771 = vld [vmem:[%s3760 + $0x50] sm:$0xff]
      %v3772 = vld [vmem:[%s3760 + $0x58] sm:$0xff]
      %v3773 = vld [vmem:[%s3760 + $0x60] sm:$0xff]
      %v3774 = vld [vmem:[%s3760 + $0x68] sm:$0xff]
      %v3775 = vld [vmem:[%s3760 + $0x70] sm:$0xff]
      %v3776 = vld [vmem:[%s3760 + $0x78] sm:$0xff]
      %3777 = vmatprep.subr.mxu0 0.0
      %3778 = vmatpush1.msra.mxu0 %v3761
      %3779 = vmatprep.subr.mxu0 0.0
      %3780 = vmatpush1.msra.mxu0 %v3762
      %3781 = vmatprep.subr.mxu0 0.0
      %3782 = vmatpush1.msra.mxu0 %v3763
      %3783 = vmatprep.subr.mxu0 0.0
      %3784 = vmatpush1.msra.mxu0 %v3764
      %3785 = vmatprep.subr.mxu0 0.0
      %3786 = vmatpush1.msra.mxu0 %v3765
      %3787 = vmatprep.subr.mxu0 0.0
      %3788 = vmatpush1.msra.mxu0 %v3766
      %3789 = vmatprep.subr.mxu0 0.0
      %3790 = vmatpush1.msra.mxu0 %v3767
      %3791 = vmatprep.subr.mxu0 0.0
      %3792 = vmatpush1.msra.mxu0 %v3768
      %3793 = vmatprep.subr.mxu0 0.0
      %3794 = vmatpush1.msra.mxu0 %v3769
      %3795 = vmatprep.subr.mxu0 0.0
      %3796 = vmatpush1.msra.mxu0 %v3770
      %3797 = vmatprep.subr.mxu0 0.0
      %3798 = vmatpush1.msra.mxu0 %v3771
      %3799 = vmatprep.subr.mxu0 0.0
      %3800 = vmatpush1.msra.mxu0 %v3772
      %3801 = vmatprep.subr.mxu0 0.0
      %3802 = vmatpush1.msra.mxu0 %v3773
      %3803 = vmatprep.subr.mxu0 0.0
      %3804 = vmatpush1.msra.mxu0 %v3774
      %3805 = vmatprep.subr.mxu0 0.0
      %3806 = vmatpush1.msra.mxu0 %v3775
      %3807 = vmatprep.subr.mxu0 0.0
      %3808 = vmatpush1.msra.mxu0 %v3776
      %3809 = vmatprep.subr.mxu0 0.0
      %3810 = vmatpush1.msra.mxu0 0.0
      %3811 = vmatprep.subr.mxu0 0.0
      %3812 = vmatpush1.msra.mxu0 0.0
      %3813 = vmatprep.subr.mxu0 0.0
      %3814 = vmatpush1.msra.mxu0 0.0
      %3815 = vmatprep.subr.mxu0 0.0
      %3816 = vmatpush1.msra.mxu0 0.0
      %3817 = vmatprep.subr.mxu0 0.0
      %3818 = vmatpush1.msra.mxu0 0.0
      %3819 = vmatprep.subr.mxu0 0.0
      %3820 = vmatpush1.msra.mxu0 0.0
      %3821 = vmatprep.subr.mxu0 0.0
      %3822 = vmatpush1.msra.mxu0 0.0
      %3823 = vmatprep.subr.mxu0 0.0
      %3824 = vmatpush1.msra.mxu0 0.0
      %3825 = vmatprep.subr.mxu0 0.0
      %3826 = vmatpush1.msra.mxu0 0.0
      %3827 = vmatprep.subr.mxu0 0.0
      %3828 = vmatpush1.msra.mxu0 0.0
      %3829 = vmatprep.subr.mxu0 0.0
      %3830 = vmatpush1.msra.mxu0 0.0
      %3831 = vmatprep.subr.mxu0 0.0
      %3832 = vmatpush1.msra.mxu0 0.0
      %3833 = vmatprep.subr.mxu0 0.0
      %3834 = vmatpush1.msra.mxu0 0.0
      %3835 = vmatprep.subr.mxu0 0.0
      %3836 = vmatpush1.msra.mxu0 0.0
      %3837 = vmatprep.subr.mxu0 0.0
      %3838 = vmatpush1.msra.mxu0 0.0
      %3839 = vmatprep.subr.mxu0 0.0
      %3840 = vmatpush1.msra.mxu0 0.0
      %3841 = vmatprep.mubr.f32.mxu0 0.0
      %3842 = vmatmul.mubr.f32.gmra.mrb[0].mxu0 %v3728
      %v3843 = vpop.f32.mrb[0].mxu0
      %v3844 = vadd.f32 0.0, %v3843
      %v3845 = vpop.f32.mrb[0].mxu0
      %3846 = vmatprep.mubr.f32.mxu0 0.0
      %3847 = vmatmul.mubr.f32.gmra.mrb[0].mxu0 %v3729
      %v3848 = vpop.f32.mrb[0].mxu0
      %v3849 = vadd.f32 0.0, %v3848
      %v3850 = vpop.f32.mrb[0].mxu0
      %3851 = vmatprep.mubr.f32.mxu0 0.0
      %3852 = vmatmul.mubr.f32.gmra.mrb[0].mxu0 %v3730
      %v3853 = vpop.f32.mrb[0].mxu0
      %v3854 = vadd.f32 0.0, %v3853
      %v3855 = vpop.f32.mrb[0].mxu0
      %3856 = vmatprep.mubr.f32.mxu0 0.0
      %3857 = vmatmul.mubr.f32.gmra.mrb[0].mxu0 %v3731
      %v3858 = vpop.f32.mrb[0].mxu0
      %v3859 = vadd.f32 0.0, %v3858
      %v3860 = vpop.f32.mrb[0].mxu0
      %3861 = vmatprep.mubr.f32.mxu0 0.0
      %3862 = vmatmul.mubr.f32.gmra.mrb[0].mxu0 %v3732
      %v3863 = vpop.f32.mrb[0].mxu0
      %v3864 = vadd.f32 0.0, %v3863
      %v3865 = vpop.f32.mrb[0].mxu0
      %3866 = vmatprep.mubr.f32.mxu0 0.0
      %3867 = vmatmul.mubr.f32.gmra.mrb[0].mxu0 %v3733
      %v3868 = vpop.f32.mrb[0].mxu0
      %v3869 = vadd.f32 0.0, %v3868
      %v3870 = vpop.f32.mrb[0].mxu0
      %3871 = vmatprep.mubr.f32.mxu0 0.0
      %3872 = vmatmul.mubr.f32.gmra.mrb[0].mxu0 %v3734
      %v3873 = vpop.f32.mrb[0].mxu0
      %v3874 = vadd.f32 0.0, %v3873
      %v3875 = vpop.f32.mrb[0].mxu0
      %3876 = vmatprep.mubr.f32.mxu0 0.0
      %3877 = vmatmul.mubr.f32.gmra.mrb[0].mxu0 %v3735
      %v3878 = vpop.f32.mrb[0].mxu0
      %v3879 = vadd.f32 0.0, %v3878
      %v3880 = vpop.f32.mrb[0].mxu0
      %3881 = vmatprep.mubr.f32.mxu0 0.0
      %3882 = vmatmul.mubr.f32.gmra.mrb[0].mxu0 %v3736
      %v3883 = vpop.f32.mrb[0].mxu0
      %v3884 = vadd.f32 0.0, %v3883
      %v3885 = vpop.f32.mrb[0].mxu0
      %3886 = vmatprep.mubr.f32.mxu0 0.0
      %3887 = vmatmul.mubr.f32.gmra.mrb[0].mxu0 %v3737
      %v3888 = vpop.f32.mrb[0].mxu0
      %v3889 = vadd.f32 0.0, %v3888
      %v3890 = vpop.f32.mrb[0].mxu0
      %3891 = vmatprep.mubr.f32.mxu0 0.0
      %3892 = vmatmul.mubr.f32.gmra.mrb[0].mxu0 %v3738
      %v3893 = vpop.f32.mrb[0].mxu0
      %v3894 = vadd.f32 0.0, %v3893
      %v3895 = vpop.f32.mrb[0].mxu0
      %3896 = vmatprep.mubr.f32.mxu0 0.0
      %3897 = vmatmul.mubr.f32.gmra.mrb[0].mxu0 %v3739
      %v3898 = vpop.f32.mrb[0].mxu0
      %v3899 = vadd.f32 0.0, %v3898
      %v3900 = vpop.f32.mrb[0].mxu0
      %3901 = vmatprep.mubr.f32.mxu0 0.0
      %3902 = vmatmul.mubr.f32.gmra.mrb[0].mxu0 %v3740
      %v3903 = vpop.f32.mrb[0].mxu0
      %v3904 = vadd.f32 0.0, %v3903
      %v3905 = vpop.f32.mrb[0].mxu0
      %3906 = vmatprep.mubr.f32.mxu0 0.0
      %3907 = vmatmul.mubr.f32.gmra.mrb[0].mxu0 %v3741
      %v3908 = vpop.f32.mrb[0].mxu0
      %v3909 = vadd.f32 0.0, %v3908
      %v3910 = vpop.f32.mrb[0].mxu0
      %3911 = vmatprep.mubr.f32.mxu0 0.0
      %3912 = vmatmul.mubr.f32.gmra.mrb[0].mxu0 %v3742
      %v3913 = vpop.f32.mrb[0].mxu0
      %v3914 = vadd.f32 0.0, %v3913
      %v3915 = vpop.f32.mrb[0].mxu0
      %3916 = vmatprep.mubr.f32.mxu0 0.0
      %3917 = vmatmul.mubr.f32.gmra.mrb[0].mxu0 %v3743
      %v3918 = vpop.f32.mrb[0].mxu0
      %v3919 = vadd.f32 0.0, %v3918
      %v3920 = vpop.f32.mrb[0].mxu0
      %3921 = vmatprep.mubr.f32.mxu0 0.0
      %3922 = vmatmul.mubr.f32.gmra.mrb[0].mxu0 %v3744
      %v3923 = vpop.f32.mrb[0].mxu0
      %v3924 = vadd.f32 0.0, %v3923
      %v3925 = vpop.f32.mrb[0].mxu0
      %3926 = vmatprep.mubr.f32.mxu0 0.0
      %3927 = vmatmul.mubr.f32.gmra.mrb[0].mxu0 %v3745
      %v3928 = vpop.f32.mrb[0].mxu0
      %v3929 = vadd.f32 0.0, %v3928
      %v3930 = vpop.f32.mrb[0].mxu0
      %3931 = vmatprep.mubr.f32.mxu0 0.0
      %3932 = vmatmul.mubr.f32.gmra.mrb[0].mxu0 %v3746
      %v3933 = vpop.f32.mrb[0].mxu0
      %v3934 = vadd.f32 0.0, %v3933
      %v3935 = vpop.f32.mrb[0].mxu0
      %3936 = vmatprep.mubr.f32.mxu0 0.0
      %3937 = vmatmul.mubr.f32.gmra.mrb[0].mxu0 %v3747
      %v3938 = vpop.f32.mrb[0].mxu0
      %v3939 = vadd.f32 0.0, %v3938
      %v3940 = vpop.f32.mrb[0].mxu0
      %3941 = vmatprep.mubr.f32.mxu0 0.0
      %3942 = vmatmul.mubr.f32.gmra.mrb[0].mxu0 %v3748
      %v3943 = vpop.f32.mrb[0].mxu0
      %v3944 = vadd.f32 0.0, %v3943
      %v3945 = vpop.f32.mrb[0].mxu0
      %3946 = vmatprep.mubr.f32.mxu0 0.0
      %3947 = vmatmul.mubr.f32.gmra.mrb[0].mxu0 %v3749
      %v3948 = vpop.f32.mrb[0].mxu0
      %v3949 = vadd.f32 0.0, %v3948
      %v3950 = vpop.f32.mrb[0].mxu0
      %3951 = vmatprep.mubr.f32.mxu0 0.0
      %3952 = vmatmul.mubr.f32.gmra.mrb[0].mxu0 %v3750
      %v3953 = vpop.f32.mrb[0].mxu0
      %v3954 = vadd.f32 0.0, %v3953
      %v3955 = vpop.f32.mrb[0].mxu0
      %3956 = vmatprep.mubr.f32.mxu0 0.0
      %3957 = vmatmul.mubr.f32.gmra.mrb[0].mxu0 %v3751
      %v3958 = vpop.f32.mrb[0].mxu0
      %v3959 = vadd.f32 0.0, %v3958
      %v3960 = vpop.f32.mrb[0].mxu0
      %3961 = vmatprep.mubr.f32.mxu0 0.0
      %3962 = vmatmul.mubr.f32.gmra.mrb[0].mxu0 %v3752
      %v3963 = vpop.f32.mrb[0].mxu0
      %v3964 = vadd.f32 0.0, %v3963
      %v3965 = vpop.f32.mrb[0].mxu0
      %3966 = vmatprep.mubr.f32.mxu0 0.0
      %3967 = vmatmul.mubr.f32.gmra.mrb[0].mxu0 %v3753
      %v3968 = vpop.f32.mrb[0].mxu0
      %v3969 = vadd.f32 0.0, %v3968
      %v3970 = vpop.f32.mrb[0].mxu0
      %3971 = vmatprep.mubr.f32.mxu0 0.0
      %3972 = vmatmul.mubr.f32.gmra.mrb[0].mxu0 %v3754
      %v3973 = vpop.f32.mrb[0].mxu0
      %v3974 = vadd.f32 0.0, %v3973
      %v3975 = vpop.f32.mrb[0].mxu0
      %3976 = vmatprep.mubr.f32.mxu0 0.0
      %3977 = vmatmul.mubr.f32.gmra.mrb[0].mxu0 %v3755
      %v3978 = vpop.f32.mrb[0].mxu0
      %v3979 = vadd.f32 0.0, %v3978
      %v3980 = vpop.f32.mrb[0].mxu0
      %3981 = vmatprep.mubr.f32.mxu0 0.0
      %3982 = vmatmul.mubr.f32.gmra.mrb[0].mxu0 %v3756
      %v3983 = vpop.f32.mrb[0].mxu0
      %v3984 = vadd.f32 0.0, %v3983
      %v3985 = vpop.f32.mrb[0].mxu0
      %3986 = vmatprep.mubr.f32.mxu0 0.0
      %3987 = vmatmul.mubr.f32.gmra.mrb[0].mxu0 %v3757
      %v3988 = vpop.f32.mrb[0].mxu0
      %v3989 = vadd.f32 0.0, %v3988
      %v3990 = vpop.f32.mrb[0].mxu0
      %3991 = vmatprep.mubr.f32.mxu0 0.0
      %3992 = vmatmul.mubr.f32.gmra.mrb[0].mxu0 %v3758
      %v3993 = vpop.f32.mrb[0].mxu0
      %v3994 = vadd.f32 0.0, %v3993
      %v3995 = vpop.f32.mrb[0].mxu0
      %3996 = vmatprep.mubr.f32.mxu0 0.0
      %3997 = vmatmul.mubr.f32.gmra.mrb[0].mxu0 %v3759
      %v3998 = vpop.f32.mrb[0].mxu0
      %v3999 = vadd.f32 0.0, %v3998
      %v4000 = vpop.f32.mrb[0].mxu0
      %4001 = vdwg.mxu0
      %v4002 = vadd.f32 %v3570, %v3844
      %v4003 = vadd.f32 %v3575, %v3849
      %v4004 = vadd.f32 %v3580, %v3854
      %v4005 = vadd.f32 %v3585, %v3859
      %v4006 = vadd.f32 %v3590, %v3864
      %v4007 = vadd.f32 %v3595, %v3869
      %v4008 = vadd.f32 %v3600, %v3874
      %v4009 = vadd.f32 %v3605, %v3879
      %v4010 = vadd.f32 %v3610, %v3884
      %v4011 = vadd.f32 %v3615, %v3889
      %v4012 = vadd.f32 %v3620, %v3894
      %v4013 = vadd.f32 %v3625, %v3899
      %v4014 = vadd.f32 %v3630, %v3904
      %v4015 = vadd.f32 %v3635, %v3909
      %v4016 = vadd.f32 %v3640, %v3914
      %v4017 = vadd.f32 %v3645, %v3919
      %v4018 = vadd.f32 %v3650, %v3924
      %v4019 = vadd.f32 %v3655, %v3929
      %v4020 = vadd.f32 %v3660, %v3934
      %v4021 = vadd.f32 %v3665, %v3939
      %v4022 = vadd.f32 %v3670, %v3944
      %v4023 = vadd.f32 %v3675, %v3949
      %v4024 = vadd.f32 %v3680, %v3954
      %v4025 = vadd.f32 %v3685, %v3959
      %v4026 = vadd.f32 %v3690, %v3964
      %v4027 = vadd.f32 %v3695, %v3969
      %v4028 = vadd.f32 %v3700, %v3974
      %v4029 = vadd.f32 %v3705, %v3979
      %v4030 = vadd.f32 %v3710, %v3984
      %v4031 = vadd.f32 %v3715, %v3989
      %v4032 = vadd.f32 %v3720, %v3994
      %v4033 = vadd.f32 %v3725, %v3999
      %v4034 = vld [vmem:[%s3148] sm:$0xff]
      %v4035 = vld [vmem:[%s3148 + $0x8] sm:$0xff]
      %v4036 = vld [vmem:[%s3148 + $0x18] sm:$0xff]
      %v4037 = vld [vmem:[%s3148 + $0x20] sm:$0xff]
      %v4038 = vld [vmem:[%s3148 + $0x30] sm:$0xff]
      %v4039 = vld [vmem:[%s3148 + $0x38] sm:$0xff]
      %v4040 = vld [vmem:[%s3148 + $0x48] sm:$0xff]
      %v4041 = vld [vmem:[%s3148 + $0x50] sm:$0xff]
      %v4042 = vld [vmem:[%s3148 + $0x60] sm:$0xff]
      %v4043 = vld [vmem:[%s3148 + $0x68] sm:$0xff]
      %v4044 = vld [vmem:[%s3148 + $0x78] sm:$0xff]
      %v4045 = vld [vmem:[%s3148 + $0x80] sm:$0xff]
      %v4046 = vld [vmem:[%s3148 + $0x90] sm:$0xff]
      %v4047 = vld [vmem:[%s3148 + $0x98] sm:$0xff]
      %v4048 = vld [vmem:[%s3148 + $0xa8] sm:$0xff]
      %v4049 = vld [vmem:[%s3148 + $0xb0] sm:$0xff]
      %v4050 = vld [vmem:[%s3148 + $0xc0] sm:$0xff]
      %v4051 = vld [vmem:[%s3148 + $0xc8] sm:$0xff]
      %v4052 = vld [vmem:[%s3148 + $0xd8] sm:$0xff]
      %v4053 = vld [vmem:[%s3148 + $0xe0] sm:$0xff]
      %v4054 = vld [vmem:[%s3148 + $0xf0] sm:$0xff]
      %v4055 = vld [vmem:[%s3148 + $0xf8] sm:$0xff]
      %v4056 = vld [vmem:[%s3148 + $0x108] sm:$0xff]
      %v4057 = vld [vmem:[%s3148 + $0x110] sm:$0xff]
      %v4058 = vld [vmem:[%s3148 + $0x120] sm:$0xff]
      %v4059 = vld [vmem:[%s3148 + $0x128] sm:$0xff]
      %v4060 = vld [vmem:[%s3148 + $0x138] sm:$0xff]
      %v4061 = vld [vmem:[%s3148 + $0x140] sm:$0xff]
      %v4062 = vld [vmem:[%s3148 + $0x150] sm:$0xff]
      %v4063 = vld [vmem:[%s3148 + $0x158] sm:$0xff]
      %v4064 = vld [vmem:[%s3148 + $0x168] sm:$0xff]
      %v4065 = vld [vmem:[%s3148 + $0x170] sm:$0xff]
      %s4066 = scalar_lea.vmem %s3, 384
      %v4067 = vld [vmem:[%s4066] sm:$0xff]
      %v4068 = vld [vmem:[%s4066 + $0x8] sm:$0xff]
      %v4069 = vld [vmem:[%s4066 + $0x10] sm:$0xff]
      %v4070 = vld [vmem:[%s4066 + $0x18] sm:$0xff]
      %v4071 = vld [vmem:[%s4066 + $0x20] sm:$0xff]
      %v4072 = vld [vmem:[%s4066 + $0x28] sm:$0xff]
      %v4073 = vld [vmem:[%s4066 + $0x30] sm:$0xff]
      %v4074 = vld [vmem:[%s4066 + $0x38] sm:$0xff]
      %v4075 = vld [vmem:[%s4066 + $0x40] sm:$0xff]
      %v4076 = vld [vmem:[%s4066 + $0x48] sm:$0xff]
      %v4077 = vld [vmem:[%s4066 + $0x50] sm:$0xff]
      %v4078 = vld [vmem:[%s4066 + $0x58] sm:$0xff]
      %v4079 = vld [vmem:[%s4066 + $0x60] sm:$0xff]
      %v4080 = vld [vmem:[%s4066 + $0x68] sm:$0xff]
      %v4081 = vld [vmem:[%s4066 + $0x70] sm:$0xff]
      %v4082 = vld [vmem:[%s4066 + $0x78] sm:$0xff]
      %4083 = vmatprep.subr.mxu0 0.0
      %4084 = vmatpush1.msra.mxu0 %v4067
      %4085 = vmatprep.subr.mxu0 0.0
      %4086 = vmatpush1.msra.mxu0 %v4068
      %4087 = vmatprep.subr.mxu0 0.0
      %4088 = vmatpush1.msra.mxu0 %v4069
      %4089 = vmatprep.subr.mxu0 0.0
      %4090 = vmatpush1.msra.mxu0 %v4070
      %4091 = vmatprep.subr.mxu0 0.0
      %4092 = vmatpush1.msra.mxu0 %v4071
      %4093 = vmatprep.subr.mxu0 0.0
      %4094 = vmatpush1.msra.mxu0 %v4072
      %4095 = vmatprep.subr.mxu0 0.0
      %4096 = vmatpush1.msra.mxu0 %v4073
      %4097 = vmatprep.subr.mxu0 0.0
      %4098 = vmatpush1.msra.mxu0 %v4074
      %4099 = vmatprep.subr.mxu0 0.0
      %4100 = vmatpush1.msra.mxu0 %v4075
      %4101 = vmatprep.subr.mxu0 0.0
      %4102 = vmatpush1.msra.mxu0 %v4076
      %4103 = vmatprep.subr.mxu0 0.0
      %4104 = vmatpush1.msra.mxu0 %v4077
      %4105 = vmatprep.subr.mxu0 0.0
      %4106 = vmatpush1.msra.mxu0 %v4078
      %4107 = vmatprep.subr.mxu0 0.0
      %4108 = vmatpush1.msra.mxu0 %v4079
      %4109 = vmatprep.subr.mxu0 0.0
      %4110 = vmatpush1.msra.mxu0 %v4080
      %4111 = vmatprep.subr.mxu0 0.0
      %4112 = vmatpush1.msra.mxu0 %v4081
      %4113 = vmatprep.subr.mxu0 0.0
      %4114 = vmatpush1.msra.mxu0 %v4082
      %4115 = vmatprep.subr.mxu0 0.0
      %4116 = vmatpush1.msra.mxu0 0.0
      %4117 = vmatprep.subr.mxu0 0.0
      %4118 = vmatpush1.msra.mxu0 0.0
      %4119 = vmatprep.subr.mxu0 0.0
      %4120 = vmatpush1.msra.mxu0 0.0
      %4121 = vmatprep.subr.mxu0 0.0
      %4122 = vmatpush1.msra.mxu0 0.0
      %4123 = vmatprep.subr.mxu0 0.0
      %4124 = vmatpush1.msra.mxu0 0.0
      %4125 = vmatprep.subr.mxu0 0.0
      %4126 = vmatpush1.msra.mxu0 0.0
      %4127 = vmatprep.subr.mxu0 0.0
      %4128 = vmatpush1.msra.mxu0 0.0
      %4129 = vmatprep.subr.mxu0 0.0
      %4130 = vmatpush1.msra.mxu0 0.0
      %4131 = vmatprep.subr.mxu0 0.0
      %4132 = vmatpush1.msra.mxu0 0.0
      %4133 = vmatprep.subr.mxu0 0.0
      %4134 = vmatpush1.msra.mxu0 0.0
      %4135 = vmatprep.subr.mxu0 0.0
      %4136 = vmatpush1.msra.mxu0 0.0
      %4137 = vmatprep.subr.mxu0 0.0
      %4138 = vmatpush1.msra.mxu0 0.0
      %4139 = vmatprep.subr.mxu0 0.0
      %4140 = vmatpush1.msra.mxu0 0.0
      %4141 = vmatprep.subr.mxu0 0.0
      %4142 = vmatpush1.msra.mxu0 0.0
      %4143 = vmatprep.subr.mxu0 0.0
      %4144 = vmatpush1.msra.mxu0 0.0
      %4145 = vmatprep.subr.mxu0 0.0
      %4146 = vmatpush1.msra.mxu0 0.0
      %4147 = vmatprep.mubr.f32.mxu0 0.0
      %4148 = vmatmul.mubr.f32.gmra.mrb[0].mxu0 %v4034
      %v4149 = vpop.f32.mrb[0].mxu0
      %v4150 = vadd.f32 0.0, %v4149
      %v4151 = vpop.f32.mrb[0].mxu0
      %4152 = vmatprep.mubr.f32.mxu0 0.0
      %4153 = vmatmul.mubr.f32.gmra.mrb[0].mxu0 %v4035
      %v4154 = vpop.f32.mrb[0].mxu0
      %v4155 = vadd.f32 0.0, %v4154
      %v4156 = vpop.f32.mrb[0].mxu0
      %4157 = vmatprep.mubr.f32.mxu0 0.0
      %4158 = vmatmul.mubr.f32.gmra.mrb[0].mxu0 %v4036
      %v4159 = vpop.f32.mrb[0].mxu0
      %v4160 = vadd.f32 0.0, %v4159
      %v4161 = vpop.f32.mrb[0].mxu0
      %4162 = vmatprep.mubr.f32.mxu0 0.0
      %4163 = vmatmul.mubr.f32.gmra.mrb[0].mxu0 %v4037
      %v4164 = vpop.f32.mrb[0].mxu0
      %v4165 = vadd.f32 0.0, %v4164
      %v4166 = vpop.f32.mrb[0].mxu0
      %4167 = vmatprep.mubr.f32.mxu0 0.0
      %4168 = vmatmul.mubr.f32.gmra.mrb[0].mxu0 %v4038
      %v4169 = vpop.f32.mrb[0].mxu0
      %v4170 = vadd.f32 0.0, %v4169
      %v4171 = vpop.f32.mrb[0].mxu0
      %4172 = vmatprep.mubr.f32.mxu0 0.0
      %4173 = vmatmul.mubr.f32.gmra.mrb[0].mxu0 %v4039
      %v4174 = vpop.f32.mrb[0].mxu0
      %v4175 = vadd.f32 0.0, %v4174
      %v4176 = vpop.f32.mrb[0].mxu0
      %4177 = vmatprep.mubr.f32.mxu0 0.0
      %4178 = vmatmul.mubr.f32.gmra.mrb[0].mxu0 %v4040
      %v4179 = vpop.f32.mrb[0].mxu0
      %v4180 = vadd.f32 0.0, %v4179
      %v4181 = vpop.f32.mrb[0].mxu0
      %4182 = vmatprep.mubr.f32.mxu0 0.0
      %4183 = vmatmul.mubr.f32.gmra.mrb[0].mxu0 %v4041
      %v4184 = vpop.f32.mrb[0].mxu0
      %v4185 = vadd.f32 0.0, %v4184
      %v4186 = vpop.f32.mrb[0].mxu0
      %4187 = vmatprep.mubr.f32.mxu0 0.0
      %4188 = vmatmul.mubr.f32.gmra.mrb[0].mxu0 %v4042
      %v4189 = vpop.f32.mrb[0].mxu0
      %v4190 = vadd.f32 0.0, %v4189
      %v4191 = vpop.f32.mrb[0].mxu0
      %4192 = vmatprep.mubr.f32.mxu0 0.0
      %4193 = vmatmul.mubr.f32.gmra.mrb[0].mxu0 %v4043
      %v4194 = vpop.f32.mrb[0].mxu0
      %v4195 = vadd.f32 0.0, %v4194
      %v4196 = vpop.f32.mrb[0].mxu0
      %4197 = vmatprep.mubr.f32.mxu0 0.0
      %4198 = vmatmul.mubr.f32.gmra.mrb[0].mxu0 %v4044
      %v4199 = vpop.f32.mrb[0].mxu0
      %v4200 = vadd.f32 0.0, %v4199
      %v4201 = vpop.f32.mrb[0].mxu0
      %4202 = vmatprep.mubr.f32.mxu0 0.0
      %4203 = vmatmul.mubr.f32.gmra.mrb[0].mxu0 %v4045
      %v4204 = vpop.f32.mrb[0].mxu0
      %v4205 = vadd.f32 0.0, %v4204
      %v4206 = vpop.f32.mrb[0].mxu0
      %4207 = vmatprep.mubr.f32.mxu0 0.0
      %4208 = vmatmul.mubr.f32.gmra.mrb[0].mxu0 %v4046
      %v4209 = vpop.f32.mrb[0].mxu0
      %v4210 = vadd.f32 0.0, %v4209
      %v4211 = vpop.f32.mrb[0].mxu0
      %4212 = vmatprep.mubr.f32.mxu0 0.0
      %4213 = vmatmul.mubr.f32.gmra.mrb[0].mxu0 %v4047
      %v4214 = vpop.f32.mrb[0].mxu0
      %v4215 = vadd.f32 0.0, %v4214
      %v4216 = vpop.f32.mrb[0].mxu0
      %4217 = vmatprep.mubr.f32.mxu0 0.0
      %4218 = vmatmul.mubr.f32.gmra.mrb[0].mxu0 %v4048
      %v4219 = vpop.f32.mrb[0].mxu0
      %v4220 = vadd.f32 0.0, %v4219
      %v4221 = vpop.f32.mrb[0].mxu0
      %4222 = vmatprep.mubr.f32.mxu0 0.0
      %4223 = vmatmul.mubr.f32.gmra.mrb[0].mxu0 %v4049
      %v4224 = vpop.f32.mrb[0].mxu0
      %v4225 = vadd.f32 0.0, %v4224
      %v4226 = vpop.f32.mrb[0].mxu0
      %4227 = vmatprep.mubr.f32.mxu0 0.0
      %4228 = vmatmul.mubr.f32.gmra.mrb[0].mxu0 %v4050
      %v4229 = vpop.f32.mrb[0].mxu0
      %v4230 = vadd.f32 0.0, %v4229
      %v4231 = vpop.f32.mrb[0].mxu0
      %4232 = vmatprep.mubr.f32.mxu0 0.0
      %4233 = vmatmul.mubr.f32.gmra.mrb[0].mxu0 %v4051
      %v4234 = vpop.f32.mrb[0].mxu0
      %v4235 = vadd.f32 0.0, %v4234
      %v4236 = vpop.f32.mrb[0].mxu0
      %4237 = vmatprep.mubr.f32.mxu0 0.0
      %4238 = vmatmul.mubr.f32.gmra.mrb[0].mxu0 %v4052
      %v4239 = vpop.f32.mrb[0].mxu0
      %v4240 = vadd.f32 0.0, %v4239
      %v4241 = vpop.f32.mrb[0].mxu0
      %4242 = vmatprep.mubr.f32.mxu0 0.0
      %4243 = vmatmul.mubr.f32.gmra.mrb[0].mxu0 %v4053
      %v4244 = vpop.f32.mrb[0].mxu0
      %v4245 = vadd.f32 0.0, %v4244
      %v4246 = vpop.f32.mrb[0].mxu0
      %4247 = vmatprep.mubr.f32.mxu0 0.0
      %4248 = vmatmul.mubr.f32.gmra.mrb[0].mxu0 %v4054
      %v4249 = vpop.f32.mrb[0].mxu0
      %v4250 = vadd.f32 0.0, %v4249
      %v4251 = vpop.f32.mrb[0].mxu0
      %4252 = vmatprep.mubr.f32.mxu0 0.0
      %4253 = vmatmul.mubr.f32.gmra.mrb[0].mxu0 %v4055
      %v4254 = vpop.f32.mrb[0].mxu0
      %v4255 = vadd.f32 0.0, %v4254
      %v4256 = vpop.f32.mrb[0].mxu0
      %4257 = vmatprep.mubr.f32.mxu0 0.0
      %4258 = vmatmul.mubr.f32.gmra.mrb[0].mxu0 %v4056
      %v4259 = vpop.f32.mrb[0].mxu0
      %v4260 = vadd.f32 0.0, %v4259
      %v4261 = vpop.f32.mrb[0].mxu0
      %4262 = vmatprep.mubr.f32.mxu0 0.0
      %4263 = vmatmul.mubr.f32.gmra.mrb[0].mxu0 %v4057
      %v4264 = vpop.f32.mrb[0].mxu0
      %v4265 = vadd.f32 0.0, %v4264
      %v4266 = vpop.f32.mrb[0].mxu0
      %4267 = vmatprep.mubr.f32.mxu0 0.0
      %4268 = vmatmul.mubr.f32.gmra.mrb[0].mxu0 %v4058
      %v4269 = vpop.f32.mrb[0].mxu0
      %v4270 = vadd.f32 0.0, %v4269
      %v4271 = vpop.f32.mrb[0].mxu0
      %4272 = vmatprep.mubr.f32.mxu0 0.0
      %4273 = vmatmul.mubr.f32.gmra.mrb[0].mxu0 %v4059
      %v4274 = vpop.f32.mrb[0].mxu0
      %v4275 = vadd.f32 0.0, %v4274
      %v4276 = vpop.f32.mrb[0].mxu0
      %4277 = vmatprep.mubr.f32.mxu0 0.0
      %4278 = vmatmul.mubr.f32.gmra.mrb[0].mxu0 %v4060
      %v4279 = vpop.f32.mrb[0].mxu0
      %v4280 = vadd.f32 0.0, %v4279
      %v4281 = vpop.f32.mrb[0].mxu0
      %4282 = vmatprep.mubr.f32.mxu0 0.0
      %4283 = vmatmul.mubr.f32.gmra.mrb[0].mxu0 %v4061
      %v4284 = vpop.f32.mrb[0].mxu0
      %v4285 = vadd.f32 0.0, %v4284
      %v4286 = vpop.f32.mrb[0].mxu0
      %4287 = vmatprep.mubr.f32.mxu0 0.0
      %4288 = vmatmul.mubr.f32.gmra.mrb[0].mxu0 %v4062
      %v4289 = vpop.f32.mrb[0].mxu0
      %v4290 = vadd.f32 0.0, %v4289
      %v4291 = vpop.f32.mrb[0].mxu0
      %4292 = vmatprep.mubr.f32.mxu0 0.0
      %4293 = vmatmul.mubr.f32.gmra.mrb[0].mxu0 %v4063
      %v4294 = vpop.f32.mrb[0].mxu0
      %v4295 = vadd.f32 0.0, %v4294
      %v4296 = vpop.f32.mrb[0].mxu0
      %4297 = vmatprep.mubr.f32.mxu0 0.0
      %4298 = vmatmul.mubr.f32.gmra.mrb[0].mxu0 %v4064
      %v4299 = vpop.f32.mrb[0].mxu0
      %v4300 = vadd.f32 0.0, %v4299
      %v4301 = vpop.f32.mrb[0].mxu0
      %4302 = vmatprep.mubr.f32.mxu0 0.0
      %4303 = vmatmul.mubr.f32.gmra.mrb[0].mxu0 %v4065
      %v4304 = vpop.f32.mrb[0].mxu0
      %v4305 = vadd.f32 0.0, %v4304
      %v4306 = vpop.f32.mrb[0].mxu0
      %4307 = vdwg.mxu0
      %v4308 = vadd.f32 %v4002, %v4150
      %v4309 = vadd.f32 %v4003, %v4155
      %v4310 = vadd.f32 %v4004, %v4160
      %v4311 = vadd.f32 %v4005, %v4165
      %v4312 = vadd.f32 %v4006, %v4170
      %v4313 = vadd.f32 %v4007, %v4175
      %v4314 = vadd.f32 %v4008, %v4180
      %v4315 = vadd.f32 %v4009, %v4185
      %v4316 = vadd.f32 %v4010, %v4190
      %v4317 = vadd.f32 %v4011, %v4195
      %v4318 = vadd.f32 %v4012, %v4200
      %v4319 = vadd.f32 %v4013, %v4205
      %v4320 = vadd.f32 %v4014, %v4210
      %v4321 = vadd.f32 %v4015, %v4215
      %v4322 = vadd.f32 %v4016, %v4220
      %v4323 = vadd.f32 %v4017, %v4225
      %v4324 = vadd.f32 %v4018, %v4230
      %v4325 = vadd.f32 %v4019, %v4235
      %v4326 = vadd.f32 %v4020, %v4240
      %v4327 = vadd.f32 %v4021, %v4245
      %v4328 = vadd.f32 %v4022, %v4250
      %v4329 = vadd.f32 %v4023, %v4255
      %v4330 = vadd.f32 %v4024, %v4260
      %v4331 = vadd.f32 %v4025, %v4265
      %v4332 = vadd.f32 %v4026, %v4270
      %v4333 = vadd.f32 %v4027, %v4275
      %v4334 = vadd.f32 %v4028, %v4280
      %v4335 = vadd.f32 %v4029, %v4285
      %v4336 = vadd.f32 %v4030, %v4290
      %v4337 = vadd.f32 %v4031, %v4295
      %v4338 = vadd.f32 %v4032, %v4300
      %v4339 = vadd.f32 %v4033, %v4305
      %v4340 = vld [vmem:[%s3148 + $0x1] sm:$0xff]
      %v4341 = vld [vmem:[%s3148 + $0x9] sm:$0xff]
      %v4342 = vld [vmem:[%s3148 + $0x19] sm:$0xff]
      %v4343 = vld [vmem:[%s3148 + $0x21] sm:$0xff]
      %v4344 = vld [vmem:[%s3148 + $0x31] sm:$0xff]
      %v4345 = vld [vmem:[%s3148 + $0x39] sm:$0xff]
      %v4346 = vld [vmem:[%s3148 + $0x49] sm:$0xff]
      %v4347 = vld [vmem:[%s3148 + $0x51] sm:$0xff]
      %v4348 = vld [vmem:[%s3148 + $0x61] sm:$0xff]
      %v4349 = vld [vmem:[%s3148 + $0x69] sm:$0xff]
      %v4350 = vld [vmem:[%s3148 + $0x79] sm:$0xff]
      %v4351 = vld [vmem:[%s3148 + $0x81] sm:$0xff]
      %v4352 = vld [vmem:[%s3148 + $0x91] sm:$0xff]
      %v4353 = vld [vmem:[%s3148 + $0x99] sm:$0xff]
      %v4354 = vld [vmem:[%s3148 + $0xa9] sm:$0xff]
      %v4355 = vld [vmem:[%s3148 + $0xb1] sm:$0xff]
      %v4356 = vld [vmem:[%s3148 + $0xc1] sm:$0xff]
      %v4357 = vld [vmem:[%s3148 + $0xc9] sm:$0xff]
      %v4358 = vld [vmem:[%s3148 + $0xd9] sm:$0xff]
      %v4359 = vld [vmem:[%s3148 + $0xe1] sm:$0xff]
      %v4360 = vld [vmem:[%s3148 + $0xf1] sm:$0xff]
      %v4361 = vld [vmem:[%s3148 + $0xf9] sm:$0xff]
      %v4362 = vld [vmem:[%s3148 + $0x109] sm:$0xff]
      %v4363 = vld [vmem:[%s3148 + $0x111] sm:$0xff]
      %v4364 = vld [vmem:[%s3148 + $0x121] sm:$0xff]
      %v4365 = vld [vmem:[%s3148 + $0x129] sm:$0xff]
      %v4366 = vld [vmem:[%s3148 + $0x139] sm:$0xff]
      %v4367 = vld [vmem:[%s3148 + $0x141] sm:$0xff]
      %v4368 = vld [vmem:[%s3148 + $0x151] sm:$0xff]
      %v4369 = vld [vmem:[%s3148 + $0x159] sm:$0xff]
      %v4370 = vld [vmem:[%s3148 + $0x169] sm:$0xff]
      %v4371 = vld [vmem:[%s3148 + $0x171] sm:$0xff]
      %s4372 = scalar_lea.vmem %s3, 512
      %v4373 = vld [vmem:[%s4372] sm:$0xff]
      %v4374 = vld [vmem:[%s4372 + $0x8] sm:$0xff]
      %v4375 = vld [vmem:[%s4372 + $0x10] sm:$0xff]
      %v4376 = vld [vmem:[%s4372 + $0x18] sm:$0xff]
      %v4377 = vld [vmem:[%s4372 + $0x20] sm:$0xff]
      %v4378 = vld [vmem:[%s4372 + $0x28] sm:$0xff]
      %v4379 = vld [vmem:[%s4372 + $0x30] sm:$0xff]
      %v4380 = vld [vmem:[%s4372 + $0x38] sm:$0xff]
      %v4381 = vld [vmem:[%s4372 + $0x40] sm:$0xff]
      %v4382 = vld [vmem:[%s4372 + $0x48] sm:$0xff]
      %v4383 = vld [vmem:[%s4372 + $0x50] sm:$0xff]
      %v4384 = vld [vmem:[%s4372 + $0x58] sm:$0xff]
      %v4385 = vld [vmem:[%s4372 + $0x60] sm:$0xff]
      %v4386 = vld [vmem:[%s4372 + $0x68] sm:$0xff]
      %v4387 = vld [vmem:[%s4372 + $0x70] sm:$0xff]
      %v4388 = vld [vmem:[%s4372 + $0x78] sm:$0xff]
      %4389 = vmatprep.subr.mxu0 0.0
      %4390 = vmatpush1.msra.mxu0 %v4373
      %4391 = vmatprep.subr.mxu0 0.0
      %4392 = vmatpush1.msra.mxu0 %v4374
      %4393 = vmatprep.subr.mxu0 0.0
      %4394 = vmatpush1.msra.mxu0 %v4375
      %4395 = vmatprep.subr.mxu0 0.0
      %4396 = vmatpush1.msra.mxu0 %v4376
      %4397 = vmatprep.subr.mxu0 0.0
      %4398 = vmatpush1.msra.mxu0 %v4377
      %4399 = vmatprep.subr.mxu0 0.0
      %4400 = vmatpush1.msra.mxu0 %v4378
      %4401 = vmatprep.subr.mxu0 0.0
      %4402 = vmatpush1.msra.mxu0 %v4379
      %4403 = vmatprep.subr.mxu0 0.0
      %4404 = vmatpush1.msra.mxu0 %v4380
      %4405 = vmatprep.subr.mxu0 0.0
      %4406 = vmatpush1.msra.mxu0 %v4381
      %4407 = vmatprep.subr.mxu0 0.0
      %4408 = vmatpush1.msra.mxu0 %v4382
      %4409 = vmatprep.subr.mxu0 0.0
      %4410 = vmatpush1.msra.mxu0 %v4383
      %4411 = vmatprep.subr.mxu0 0.0
      %4412 = vmatpush1.msra.mxu0 %v4384
      %4413 = vmatprep.subr.mxu0 0.0
      %4414 = vmatpush1.msra.mxu0 %v4385
      %4415 = vmatprep.subr.mxu0 0.0
      %4416 = vmatpush1.msra.mxu0 %v4386
      %4417 = vmatprep.subr.mxu0 0.0
      %4418 = vmatpush1.msra.mxu0 %v4387
      %4419 = vmatprep.subr.mxu0 0.0
      %4420 = vmatpush1.msra.mxu0 %v4388
      %4421 = vmatprep.subr.mxu0 0.0
      %4422 = vmatpush1.msra.mxu0 0.0
      %4423 = vmatprep.subr.mxu0 0.0
      %4424 = vmatpush1.msra.mxu0 0.0
      %4425 = vmatprep.subr.mxu0 0.0
      %4426 = vmatpush1.msra.mxu0 0.0
      %4427 = vmatprep.subr.mxu0 0.0
      %4428 = vmatpush1.msra.mxu0 0.0
      %4429 = vmatprep.subr.mxu0 0.0
      %4430 = vmatpush1.msra.mxu0 0.0
      %4431 = vmatprep.subr.mxu0 0.0
      %4432 = vmatpush1.msra.mxu0 0.0
      %4433 = vmatprep.subr.mxu0 0.0
      %4434 = vmatpush1.msra.mxu0 0.0
      %4435 = vmatprep.subr.mxu0 0.0
      %4436 = vmatpush1.msra.mxu0 0.0
      %4437 = vmatprep.subr.mxu0 0.0
      %4438 = vmatpush1.msra.mxu0 0.0
      %4439 = vmatprep.subr.mxu0 0.0
      %4440 = vmatpush1.msra.mxu0 0.0
      %4441 = vmatprep.subr.mxu0 0.0
      %4442 = vmatpush1.msra.mxu0 0.0
      %4443 = vmatprep.subr.mxu0 0.0
      %4444 = vmatpush1.msra.mxu0 0.0
      %4445 = vmatprep.subr.mxu0 0.0
      %4446 = vmatpush1.msra.mxu0 0.0
      %4447 = vmatprep.subr.mxu0 0.0
      %4448 = vmatpush1.msra.mxu0 0.0
      %4449 = vmatprep.subr.mxu0 0.0
      %4450 = vmatpush1.msra.mxu0 0.0
      %4451 = vmatprep.subr.mxu0 0.0
      %4452 = vmatpush1.msra.mxu0 0.0
      %4453 = vmatprep.mubr.f32.mxu0 0.0
      %4454 = vmatmul.mubr.f32.gmra.mrb[0].mxu0 %v4340
      %v4455 = vpop.f32.mrb[0].mxu0
      %v4456 = vadd.f32 0.0, %v4455
      %v4457 = vpop.f32.mrb[0].mxu0
      %4458 = vmatprep.mubr.f32.mxu0 0.0
      %4459 = vmatmul.mubr.f32.gmra.mrb[0].mxu0 %v4341
      %v4460 = vpop.f32.mrb[0].mxu0
      %v4461 = vadd.f32 0.0, %v4460
      %v4462 = vpop.f32.mrb[0].mxu0
      %4463 = vmatprep.mubr.f32.mxu0 0.0
      %4464 = vmatmul.mubr.f32.gmra.mrb[0].mxu0 %v4342
      %v4465 = vpop.f32.mrb[0].mxu0
      %v4466 = vadd.f32 0.0, %v4465
      %v4467 = vpop.f32.mrb[0].mxu0
      %4468 = vmatprep.mubr.f32.mxu0 0.0
      %4469 = vmatmul.mubr.f32.gmra.mrb[0].mxu0 %v4343
      %v4470 = vpop.f32.mrb[0].mxu0
      %v4471 = vadd.f32 0.0, %v4470
      %v4472 = vpop.f32.mrb[0].mxu0
      %4473 = vmatprep.mubr.f32.mxu0 0.0
      %4474 = vmatmul.mubr.f32.gmra.mrb[0].mxu0 %v4344
      %v4475 = vpop.f32.mrb[0].mxu0
      %v4476 = vadd.f32 0.0, %v4475
      %v4477 = vpop.f32.mrb[0].mxu0
      %4478 = vmatprep.mubr.f32.mxu0 0.0
      %4479 = vmatmul.mubr.f32.gmra.mrb[0].mxu0 %v4345
      %v4480 = vpop.f32.mrb[0].mxu0
      %v4481 = vadd.f32 0.0, %v4480
      %v4482 = vpop.f32.mrb[0].mxu0
      %4483 = vmatprep.mubr.f32.mxu0 0.0
      %4484 = vmatmul.mubr.f32.gmra.mrb[0].mxu0 %v4346
      %v4485 = vpop.f32.mrb[0].mxu0
      %v4486 = vadd.f32 0.0, %v4485
      %v4487 = vpop.f32.mrb[0].mxu0
      %4488 = vmatprep.mubr.f32.mxu0 0.0
      %4489 = vmatmul.mubr.f32.gmra.mrb[0].mxu0 %v4347
      %v4490 = vpop.f32.mrb[0].mxu0
      %v4491 = vadd.f32 0.0, %v4490
      %v4492 = vpop.f32.mrb[0].mxu0
      %4493 = vmatprep.mubr.f32.mxu0 0.0
      %4494 = vmatmul.mubr.f32.gmra.mrb[0].mxu0 %v4348
      %v4495 = vpop.f32.mrb[0].mxu0
      %v4496 = vadd.f32 0.0, %v4495
      %v4497 = vpop.f32.mrb[0].mxu0
      %4498 = vmatprep.mubr.f32.mxu0 0.0
      %4499 = vmatmul.mubr.f32.gmra.mrb[0].mxu0 %v4349
      %v4500 = vpop.f32.mrb[0].mxu0
      %v4501 = vadd.f32 0.0, %v4500
      %v4502 = vpop.f32.mrb[0].mxu0
      %4503 = vmatprep.mubr.f32.mxu0 0.0
      %4504 = vmatmul.mubr.f32.gmra.mrb[0].mxu0 %v4350
      %v4505 = vpop.f32.mrb[0].mxu0
      %v4506 = vadd.f32 0.0, %v4505
      %v4507 = vpop.f32.mrb[0].mxu0
      %4508 = vmatprep.mubr.f32.mxu0 0.0
      %4509 = vmatmul.mubr.f32.gmra.mrb[0].mxu0 %v4351
      %v4510 = vpop.f32.mrb[0].mxu0
      %v4511 = vadd.f32 0.0, %v4510
      %v4512 = vpop.f32.mrb[0].mxu0
      %4513 = vmatprep.mubr.f32.mxu0 0.0
      %4514 = vmatmul.mubr.f32.gmra.mrb[0].mxu0 %v4352
      %v4515 = vpop.f32.mrb[0].mxu0
      %v4516 = vadd.f32 0.0, %v4515
      %v4517 = vpop.f32.mrb[0].mxu0
      %4518 = vmatprep.mubr.f32.mxu0 0.0
      %4519 = vmatmul.mubr.f32.gmra.mrb[0].mxu0 %v4353
      %v4520 = vpop.f32.mrb[0].mxu0
      %v4521 = vadd.f32 0.0, %v4520
      %v4522 = vpop.f32.mrb[0].mxu0
      %4523 = vmatprep.mubr.f32.mxu0 0.0
      %4524 = vmatmul.mubr.f32.gmra.mrb[0].mxu0 %v4354
      %v4525 = vpop.f32.mrb[0].mxu0
      %v4526 = vadd.f32 0.0, %v4525
      %v4527 = vpop.f32.mrb[0].mxu0
      %4528 = vmatprep.mubr.f32.mxu0 0.0
      %4529 = vmatmul.mubr.f32.gmra.mrb[0].mxu0 %v4355
      %v4530 = vpop.f32.mrb[0].mxu0
      %v4531 = vadd.f32 0.0, %v4530
      %v4532 = vpop.f32.mrb[0].mxu0
      %4533 = vmatprep.mubr.f32.mxu0 0.0
      %4534 = vmatmul.mubr.f32.gmra.mrb[0].mxu0 %v4356
      %v4535 = vpop.f32.mrb[0].mxu0
      %v4536 = vadd.f32 0.0, %v4535
      %v4537 = vpop.f32.mrb[0].mxu0
      %4538 = vmatprep.mubr.f32.mxu0 0.0
      %4539 = vmatmul.mubr.f32.gmra.mrb[0].mxu0 %v4357
      %v4540 = vpop.f32.mrb[0].mxu0
      %v4541 = vadd.f32 0.0, %v4540
      %v4542 = vpop.f32.mrb[0].mxu0
      %4543 = vmatprep.mubr.f32.mxu0 0.0
      %4544 = vmatmul.mubr.f32.gmra.mrb[0].mxu0 %v4358
      %v4545 = vpop.f32.mrb[0].mxu0
      %v4546 = vadd.f32 0.0, %v4545
      %v4547 = vpop.f32.mrb[0].mxu0
      %4548 = vmatprep.mubr.f32.mxu0 0.0
      %4549 = vmatmul.mubr.f32.gmra.mrb[0].mxu0 %v4359
      %v4550 = vpop.f32.mrb[0].mxu0
      %v4551 = vadd.f32 0.0, %v4550
      %v4552 = vpop.f32.mrb[0].mxu0
      %4553 = vmatprep.mubr.f32.mxu0 0.0
      %4554 = vmatmul.mubr.f32.gmra.mrb[0].mxu0 %v4360
      %v4555 = vpop.f32.mrb[0].mxu0
      %v4556 = vadd.f32 0.0, %v4555
      %v4557 = vpop.f32.mrb[0].mxu0
      %4558 = vmatprep.mubr.f32.mxu0 0.0
      %4559 = vmatmul.mubr.f32.gmra.mrb[0].mxu0 %v4361
      %v4560 = vpop.f32.mrb[0].mxu0
      %v4561 = vadd.f32 0.0, %v4560
      %v4562 = vpop.f32.mrb[0].mxu0
      %4563 = vmatprep.mubr.f32.mxu0 0.0
      %4564 = vmatmul.mubr.f32.gmra.mrb[0].mxu0 %v4362
      %v4565 = vpop.f32.mrb[0].mxu0
      %v4566 = vadd.f32 0.0, %v4565
      %v4567 = vpop.f32.mrb[0].mxu0
      %4568 = vmatprep.mubr.f32.mxu0 0.0
      %4569 = vmatmul.mubr.f32.gmra.mrb[0].mxu0 %v4363
      %v4570 = vpop.f32.mrb[0].mxu0
      %v4571 = vadd.f32 0.0, %v4570
      %v4572 = vpop.f32.mrb[0].mxu0
      %4573 = vmatprep.mubr.f32.mxu0 0.0
      %4574 = vmatmul.mubr.f32.gmra.mrb[0].mxu0 %v4364
      %v4575 = vpop.f32.mrb[0].mxu0
      %v4576 = vadd.f32 0.0, %v4575
      %v4577 = vpop.f32.mrb[0].mxu0
      %4578 = vmatprep.mubr.f32.mxu0 0.0
      %4579 = vmatmul.mubr.f32.gmra.mrb[0].mxu0 %v4365
      %v4580 = vpop.f32.mrb[0].mxu0
      %v4581 = vadd.f32 0.0, %v4580
      %v4582 = vpop.f32.mrb[0].mxu0
      %4583 = vmatprep.mubr.f32.mxu0 0.0
      %4584 = vmatmul.mubr.f32.gmra.mrb[0].mxu0 %v4366
      %v4585 = vpop.f32.mrb[0].mxu0
      %v4586 = vadd.f32 0.0, %v4585
      %v4587 = vpop.f32.mrb[0].mxu0
      %4588 = vmatprep.mubr.f32.mxu0 0.0
      %4589 = vmatmul.mubr.f32.gmra.mrb[0].mxu0 %v4367
      %v4590 = vpop.f32.mrb[0].mxu0
      %v4591 = vadd.f32 0.0, %v4590
      %v4592 = vpop.f32.mrb[0].mxu0
      %4593 = vmatprep.mubr.f32.mxu0 0.0
      %4594 = vmatmul.mubr.f32.gmra.mrb[0].mxu0 %v4368
      %v4595 = vpop.f32.mrb[0].mxu0
      %v4596 = vadd.f32 0.0, %v4595
      %v4597 = vpop.f32.mrb[0].mxu0
      %4598 = vmatprep.mubr.f32.mxu0 0.0
      %4599 = vmatmul.mubr.f32.gmra.mrb[0].mxu0 %v4369
      %v4600 = vpop.f32.mrb[0].mxu0
      %v4601 = vadd.f32 0.0, %v4600
      %v4602 = vpop.f32.mrb[0].mxu0
      %4603 = vmatprep.mubr.f32.mxu0 0.0
      %4604 = vmatmul.mubr.f32.gmra.mrb[0].mxu0 %v4370
      %v4605 = vpop.f32.mrb[0].mxu0
      %v4606 = vadd.f32 0.0, %v4605
      %v4607 = vpop.f32.mrb[0].mxu0
      %4608 = vmatprep.mubr.f32.mxu0 0.0
      %4609 = vmatmul.mubr.f32.gmra.mrb[0].mxu0 %v4371
      %v4610 = vpop.f32.mrb[0].mxu0
      %v4611 = vadd.f32 0.0, %v4610
      %v4612 = vpop.f32.mrb[0].mxu0
      %4613 = vdwg.mxu0
      %v4614 = vadd.f32 %v4308, %v4456
      %v4615 = vadd.f32 %v4309, %v4461
      %v4616 = vadd.f32 %v4310, %v4466
      %v4617 = vadd.f32 %v4311, %v4471
      %v4618 = vadd.f32 %v4312, %v4476
      %v4619 = vadd.f32 %v4313, %v4481
      %v4620 = vadd.f32 %v4314, %v4486
      %v4621 = vadd.f32 %v4315, %v4491
      %v4622 = vadd.f32 %v4316, %v4496
      %v4623 = vadd.f32 %v4317, %v4501
      %v4624 = vadd.f32 %v4318, %v4506
      %v4625 = vadd.f32 %v4319, %v4511
      %v4626 = vadd.f32 %v4320, %v4516
      %v4627 = vadd.f32 %v4321, %v4521
      %v4628 = vadd.f32 %v4322, %v4526
      %v4629 = vadd.f32 %v4323, %v4531
      %v4630 = vadd.f32 %v4324, %v4536
      %v4631 = vadd.f32 %v4325, %v4541
      %v4632 = vadd.f32 %v4326, %v4546
      %v4633 = vadd.f32 %v4327, %v4551
      %v4634 = vadd.f32 %v4328, %v4556
      %v4635 = vadd.f32 %v4329, %v4561
      %v4636 = vadd.f32 %v4330, %v4566
      %v4637 = vadd.f32 %v4331, %v4571
      %v4638 = vadd.f32 %v4332, %v4576
      %v4639 = vadd.f32 %v4333, %v4581
      %v4640 = vadd.f32 %v4334, %v4586
      %v4641 = vadd.f32 %v4335, %v4591
      %v4642 = vadd.f32 %v4336, %v4596
      %v4643 = vadd.f32 %v4337, %v4601
      %v4644 = vadd.f32 %v4338, %v4606
      %v4645 = vadd.f32 %v4339, %v4611
      %v4646 = vld [vmem:[%s3148 + $0x2] sm:$0xff]
      %v4647 = vld [vmem:[%s3148 + $0xa] sm:$0xff]
      %v4648 = vld [vmem:[%s3148 + $0x1a] sm:$0xff]
      %v4649 = vld [vmem:[%s3148 + $0x22] sm:$0xff]
      %v4650 = vld [vmem:[%s3148 + $0x32] sm:$0xff]
      %v4651 = vld [vmem:[%s3148 + $0x3a] sm:$0xff]
      %v4652 = vld [vmem:[%s3148 + $0x4a] sm:$0xff]
      %v4653 = vld [vmem:[%s3148 + $0x52] sm:$0xff]
      %v4654 = vld [vmem:[%s3148 + $0x62] sm:$0xff]
      %v4655 = vld [vmem:[%s3148 + $0x6a] sm:$0xff]
      %v4656 = vld [vmem:[%s3148 + $0x7a] sm:$0xff]
      %v4657 = vld [vmem:[%s3148 + $0x82] sm:$0xff]
      %v4658 = vld [vmem:[%s3148 + $0x92] sm:$0xff]
      %v4659 = vld [vmem:[%s3148 + $0x9a] sm:$0xff]
      %v4660 = vld [vmem:[%s3148 + $0xaa] sm:$0xff]
      %v4661 = vld [vmem:[%s3148 + $0xb2] sm:$0xff]
      %v4662 = vld [vmem:[%s3148 + $0xc2] sm:$0xff]
      %v4663 = vld [vmem:[%s3148 + $0xca] sm:$0xff]
      %v4664 = vld [vmem:[%s3148 + $0xda] sm:$0xff]
      %v4665 = vld [vmem:[%s3148 + $0xe2] sm:$0xff]
      %v4666 = vld [vmem:[%s3148 + $0xf2] sm:$0xff]
      %v4667 = vld [vmem:[%s3148 + $0xfa] sm:$0xff]
      %v4668 = vld [vmem:[%s3148 + $0x10a] sm:$0xff]
      %v4669 = vld [vmem:[%s3148 + $0x112] sm:$0xff]
      %v4670 = vld [vmem:[%s3148 + $0x122] sm:$0xff]
      %v4671 = vld [vmem:[%s3148 + $0x12a] sm:$0xff]
      %v4672 = vld [vmem:[%s3148 + $0x13a] sm:$0xff]
      %v4673 = vld [vmem:[%s3148 + $0x142] sm:$0xff]
      %v4674 = vld [vmem:[%s3148 + $0x152] sm:$0xff]
      %v4675 = vld [vmem:[%s3148 + $0x15a] sm:$0xff]
      %v4676 = vld [vmem:[%s3148 + $0x16a] sm:$0xff]
      %v4677 = vld [vmem:[%s3148 + $0x172] sm:$0xff]
      %s4678 = scalar_lea.vmem %s3, 640
      %v4679 = vld [vmem:[%s4678] sm:$0xff]
      %v4680 = vld [vmem:[%s4678 + $0x8] sm:$0xff]
      %v4681 = vld [vmem:[%s4678 + $0x10] sm:$0xff]
      %v4682 = vld [vmem:[%s4678 + $0x18] sm:$0xff]
      %v4683 = vld [vmem:[%s4678 + $0x20] sm:$0xff]
      %v4684 = vld [vmem:[%s4678 + $0x28] sm:$0xff]
      %v4685 = vld [vmem:[%s4678 + $0x30] sm:$0xff]
      %v4686 = vld [vmem:[%s4678 + $0x38] sm:$0xff]
      %v4687 = vld [vmem:[%s4678 + $0x40] sm:$0xff]
      %v4688 = vld [vmem:[%s4678 + $0x48] sm:$0xff]
      %v4689 = vld [vmem:[%s4678 + $0x50] sm:$0xff]
      %v4690 = vld [vmem:[%s4678 + $0x58] sm:$0xff]
      %v4691 = vld [vmem:[%s4678 + $0x60] sm:$0xff]
      %v4692 = vld [vmem:[%s4678 + $0x68] sm:$0xff]
      %v4693 = vld [vmem:[%s4678 + $0x70] sm:$0xff]
      %v4694 = vld [vmem:[%s4678 + $0x78] sm:$0xff]
      %4695 = vmatprep.subr.mxu0 0.0
      %4696 = vmatpush1.msra.mxu0 %v4679
      %4697 = vmatprep.subr.mxu0 0.0
      %4698 = vmatpush1.msra.mxu0 %v4680
      %4699 = vmatprep.subr.mxu0 0.0
      %4700 = vmatpush1.msra.mxu0 %v4681
      %4701 = vmatprep.subr.mxu0 0.0
      %4702 = vmatpush1.msra.mxu0 %v4682
      %4703 = vmatprep.subr.mxu0 0.0
      %4704 = vmatpush1.msra.mxu0 %v4683
      %4705 = vmatprep.subr.mxu0 0.0
      %4706 = vmatpush1.msra.mxu0 %v4684
      %4707 = vmatprep.subr.mxu0 0.0
      %4708 = vmatpush1.msra.mxu0 %v4685
      %4709 = vmatprep.subr.mxu0 0.0
      %4710 = vmatpush1.msra.mxu0 %v4686
      %4711 = vmatprep.subr.mxu0 0.0
      %4712 = vmatpush1.msra.mxu0 %v4687
      %4713 = vmatprep.subr.mxu0 0.0
      %4714 = vmatpush1.msra.mxu0 %v4688
      %4715 = vmatprep.subr.mxu0 0.0
      %4716 = vmatpush1.msra.mxu0 %v4689
      %4717 = vmatprep.subr.mxu0 0.0
      %4718 = vmatpush1.msra.mxu0 %v4690
      %4719 = vmatprep.subr.mxu0 0.0
      %4720 = vmatpush1.msra.mxu0 %v4691
      %4721 = vmatprep.subr.mxu0 0.0
      %4722 = vmatpush1.msra.mxu0 %v4692
      %4723 = vmatprep.subr.mxu0 0.0
      %4724 = vmatpush1.msra.mxu0 %v4693
      %4725 = vmatprep.subr.mxu0 0.0
      %4726 = vmatpush1.msra.mxu0 %v4694
      %4727 = vmatprep.subr.mxu0 0.0
      %4728 = vmatpush1.msra.mxu0 0.0
      %4729 = vmatprep.subr.mxu0 0.0
      %4730 = vmatpush1.msra.mxu0 0.0
      %4731 = vmatprep.subr.mxu0 0.0
      %4732 = vmatpush1.msra.mxu0 0.0
      %4733 = vmatprep.subr.mxu0 0.0
      %4734 = vmatpush1.msra.mxu0 0.0
      %4735 = vmatprep.subr.mxu0 0.0
      %4736 = vmatpush1.msra.mxu0 0.0
      %4737 = vmatprep.subr.mxu0 0.0
      %4738 = vmatpush1.msra.mxu0 0.0
      %4739 = vmatprep.subr.mxu0 0.0
      %4740 = vmatpush1.msra.mxu0 0.0
      %4741 = vmatprep.subr.mxu0 0.0
      %4742 = vmatpush1.msra.mxu0 0.0
      %4743 = vmatprep.subr.mxu0 0.0
      %4744 = vmatpush1.msra.mxu0 0.0
      %4745 = vmatprep.subr.mxu0 0.0
      %4746 = vmatpush1.msra.mxu0 0.0
      %4747 = vmatprep.subr.mxu0 0.0
      %4748 = vmatpush1.msra.mxu0 0.0
      %4749 = vmatprep.subr.mxu0 0.0
      %4750 = vmatpush1.msra.mxu0 0.0
      %4751 = vmatprep.subr.mxu0 0.0
      %4752 = vmatpush1.msra.mxu0 0.0
      %4753 = vmatprep.subr.mxu0 0.0
      %4754 = vmatpush1.msra.mxu0 0.0
      %4755 = vmatprep.subr.mxu0 0.0
      %4756 = vmatpush1.msra.mxu0 0.0
      %4757 = vmatprep.subr.mxu0 0.0
      %4758 = vmatpush1.msra.mxu0 0.0
      %4759 = vmatprep.mubr.f32.mxu0 0.0
      %4760 = vmatmul.mubr.f32.gmra.mrb[0].mxu0 %v4646
      %v4761 = vpop.f32.mrb[0].mxu0
      %v4762 = vadd.f32 0.0, %v4761
      %v4763 = vpop.f32.mrb[0].mxu0
      %4764 = vmatprep.mubr.f32.mxu0 0.0
      %4765 = vmatmul.mubr.f32.gmra.mrb[0].mxu0 %v4647
      %v4766 = vpop.f32.mrb[0].mxu0
      %v4767 = vadd.f32 0.0, %v4766
      %v4768 = vpop.f32.mrb[0].mxu0
      %4769 = vmatprep.mubr.f32.mxu0 0.0
      %4770 = vmatmul.mubr.f32.gmra.mrb[0].mxu0 %v4648
      %v4771 = vpop.f32.mrb[0].mxu0
      %v4772 = vadd.f32 0.0, %v4771
      %v4773 = vpop.f32.mrb[0].mxu0
      %4774 = vmatprep.mubr.f32.mxu0 0.0
      %4775 = vmatmul.mubr.f32.gmra.mrb[0].mxu0 %v4649
      %v4776 = vpop.f32.mrb[0].mxu0
      %v4777 = vadd.f32 0.0, %v4776
      %v4778 = vpop.f32.mrb[0].mxu0
      %4779 = vmatprep.mubr.f32.mxu0 0.0
      %4780 = vmatmul.mubr.f32.gmra.mrb[0].mxu0 %v4650
      %v4781 = vpop.f32.mrb[0].mxu0
      %v4782 = vadd.f32 0.0, %v4781
      %v4783 = vpop.f32.mrb[0].mxu0
      %4784 = vmatprep.mubr.f32.mxu0 0.0
      %4785 = vmatmul.mubr.f32.gmra.mrb[0].mxu0 %v4651
      %v4786 = vpop.f32.mrb[0].mxu0
      %v4787 = vadd.f32 0.0, %v4786
      %v4788 = vpop.f32.mrb[0].mxu0
      %4789 = vmatprep.mubr.f32.mxu0 0.0
      %4790 = vmatmul.mubr.f32.gmra.mrb[0].mxu0 %v4652
      %v4791 = vpop.f32.mrb[0].mxu0
      %v4792 = vadd.f32 0.0, %v4791
      %v4793 = vpop.f32.mrb[0].mxu0
      %4794 = vmatprep.mubr.f32.mxu0 0.0
      %4795 = vmatmul.mubr.f32.gmra.mrb[0].mxu0 %v4653
      %v4796 = vpop.f32.mrb[0].mxu0
      %v4797 = vadd.f32 0.0, %v4796
      %v4798 = vpop.f32.mrb[0].mxu0
      %4799 = vmatprep.mubr.f32.mxu0 0.0
      %4800 = vmatmul.mubr.f32.gmra.mrb[0].mxu0 %v4654
      %v4801 = vpop.f32.mrb[0].mxu0
      %v4802 = vadd.f32 0.0, %v4801
      %v4803 = vpop.f32.mrb[0].mxu0
      %4804 = vmatprep.mubr.f32.mxu0 0.0
      %4805 = vmatmul.mubr.f32.gmra.mrb[0].mxu0 %v4655
      %v4806 = vpop.f32.mrb[0].mxu0
      %v4807 = vadd.f32 0.0, %v4806
      %v4808 = vpop.f32.mrb[0].mxu0
      %4809 = vmatprep.mubr.f32.mxu0 0.0
      %4810 = vmatmul.mubr.f32.gmra.mrb[0].mxu0 %v4656
      %v4811 = vpop.f32.mrb[0].mxu0
      %v4812 = vadd.f32 0.0, %v4811
      %v4813 = vpop.f32.mrb[0].mxu0
      %4814 = vmatprep.mubr.f32.mxu0 0.0
      %4815 = vmatmul.mubr.f32.gmra.mrb[0].mxu0 %v4657
      %v4816 = vpop.f32.mrb[0].mxu0
      %v4817 = vadd.f32 0.0, %v4816
      %v4818 = vpop.f32.mrb[0].mxu0
      %4819 = vmatprep.mubr.f32.mxu0 0.0
      %4820 = vmatmul.mubr.f32.gmra.mrb[0].mxu0 %v4658
      %v4821 = vpop.f32.mrb[0].mxu0
      %v4822 = vadd.f32 0.0, %v4821
      %v4823 = vpop.f32.mrb[0].mxu0
      %4824 = vmatprep.mubr.f32.mxu0 0.0
      %4825 = vmatmul.mubr.f32.gmra.mrb[0].mxu0 %v4659
      %v4826 = vpop.f32.mrb[0].mxu0
      %v4827 = vadd.f32 0.0, %v4826
      %v4828 = vpop.f32.mrb[0].mxu0
      %4829 = vmatprep.mubr.f32.mxu0 0.0
      %4830 = vmatmul.mubr.f32.gmra.mrb[0].mxu0 %v4660
      %v4831 = vpop.f32.mrb[0].mxu0
      %v4832 = vadd.f32 0.0, %v4831
      %v4833 = vpop.f32.mrb[0].mxu0
      %4834 = vmatprep.mubr.f32.mxu0 0.0
      %4835 = vmatmul.mubr.f32.gmra.mrb[0].mxu0 %v4661
      %v4836 = vpop.f32.mrb[0].mxu0
      %v4837 = vadd.f32 0.0, %v4836
      %v4838 = vpop.f32.mrb[0].mxu0
      %4839 = vmatprep.mubr.f32.mxu0 0.0
      %4840 = vmatmul.mubr.f32.gmra.mrb[0].mxu0 %v4662
      %v4841 = vpop.f32.mrb[0].mxu0
      %v4842 = vadd.f32 0.0, %v4841
      %v4843 = vpop.f32.mrb[0].mxu0
      %4844 = vmatprep.mubr.f32.mxu0 0.0
      %4845 = vmatmul.mubr.f32.gmra.mrb[0].mxu0 %v4663
      %v4846 = vpop.f32.mrb[0].mxu0
      %v4847 = vadd.f32 0.0, %v4846
      %v4848 = vpop.f32.mrb[0].mxu0
      %4849 = vmatprep.mubr.f32.mxu0 0.0
      %4850 = vmatmul.mubr.f32.gmra.mrb[0].mxu0 %v4664
      %v4851 = vpop.f32.mrb[0].mxu0
      %v4852 = vadd.f32 0.0, %v4851
      %v4853 = vpop.f32.mrb[0].mxu0
      %4854 = vmatprep.mubr.f32.mxu0 0.0
      %4855 = vmatmul.mubr.f32.gmra.mrb[0].mxu0 %v4665
      %v4856 = vpop.f32.mrb[0].mxu0
      %v4857 = vadd.f32 0.0, %v4856
      %v4858 = vpop.f32.mrb[0].mxu0
      %4859 = vmatprep.mubr.f32.mxu0 0.0
      %4860 = vmatmul.mubr.f32.gmra.mrb[0].mxu0 %v4666
      %v4861 = vpop.f32.mrb[0].mxu0
      %v4862 = vadd.f32 0.0, %v4861
      %v4863 = vpop.f32.mrb[0].mxu0
      %4864 = vmatprep.mubr.f32.mxu0 0.0
      %4865 = vmatmul.mubr.f32.gmra.mrb[0].mxu0 %v4667
      %v4866 = vpop.f32.mrb[0].mxu0
      %v4867 = vadd.f32 0.0, %v4866
      %v4868 = vpop.f32.mrb[0].mxu0
      %4869 = vmatprep.mubr.f32.mxu0 0.0
      %4870 = vmatmul.mubr.f32.gmra.mrb[0].mxu0 %v4668
      %v4871 = vpop.f32.mrb[0].mxu0
      %v4872 = vadd.f32 0.0, %v4871
      %v4873 = vpop.f32.mrb[0].mxu0
      %4874 = vmatprep.mubr.f32.mxu0 0.0
      %4875 = vmatmul.mubr.f32.gmra.mrb[0].mxu0 %v4669
      %v4876 = vpop.f32.mrb[0].mxu0
      %v4877 = vadd.f32 0.0, %v4876
      %v4878 = vpop.f32.mrb[0].mxu0
      %4879 = vmatprep.mubr.f32.mxu0 0.0
      %4880 = vmatmul.mubr.f32.gmra.mrb[0].mxu0 %v4670
      %v4881 = vpop.f32.mrb[0].mxu0
      %v4882 = vadd.f32 0.0, %v4881
      %v4883 = vpop.f32.mrb[0].mxu0
      %4884 = vmatprep.mubr.f32.mxu0 0.0
      %4885 = vmatmul.mubr.f32.gmra.mrb[0].mxu0 %v4671
      %v4886 = vpop.f32.mrb[0].mxu0
      %v4887 = vadd.f32 0.0, %v4886
      %v4888 = vpop.f32.mrb[0].mxu0
      %4889 = vmatprep.mubr.f32.mxu0 0.0
      %4890 = vmatmul.mubr.f32.gmra.mrb[0].mxu0 %v4672
      %v4891 = vpop.f32.mrb[0].mxu0
      %v4892 = vadd.f32 0.0, %v4891
      %v4893 = vpop.f32.mrb[0].mxu0
      %4894 = vmatprep.mubr.f32.mxu0 0.0
      %4895 = vmatmul.mubr.f32.gmra.mrb[0].mxu0 %v4673
      %v4896 = vpop.f32.mrb[0].mxu0
      %v4897 = vadd.f32 0.0, %v4896
      %v4898 = vpop.f32.mrb[0].mxu0
      %4899 = vmatprep.mubr.f32.mxu0 0.0
      %4900 = vmatmul.mubr.f32.gmra.mrb[0].mxu0 %v4674
      %v4901 = vpop.f32.mrb[0].mxu0
      %v4902 = vadd.f32 0.0, %v4901
      %v4903 = vpop.f32.mrb[0].mxu0
      %4904 = vmatprep.mubr.f32.mxu0 0.0
      %4905 = vmatmul.mubr.f32.gmra.mrb[0].mxu0 %v4675
      %v4906 = vpop.f32.mrb[0].mxu0
      %v4907 = vadd.f32 0.0, %v4906
      %v4908 = vpop.f32.mrb[0].mxu0
      %4909 = vmatprep.mubr.f32.mxu0 0.0
      %4910 = vmatmul.mubr.f32.gmra.mrb[0].mxu0 %v4676
      %v4911 = vpop.f32.mrb[0].mxu0
      %v4912 = vadd.f32 0.0, %v4911
      %v4913 = vpop.f32.mrb[0].mxu0
      %4914 = vmatprep.mubr.f32.mxu0 0.0
      %4915 = vmatmul.mubr.f32.gmra.mrb[0].mxu0 %v4677
      %v4916 = vpop.f32.mrb[0].mxu0
      %v4917 = vadd.f32 0.0, %v4916
      %v4918 = vpop.f32.mrb[0].mxu0
      %4919 = vdwg.mxu0
      %v4920 = vadd.f32 %v4614, %v4762
      %v4921 = vadd.f32 %v4615, %v4767
      %v4922 = vadd.f32 %v4616, %v4772
      %v4923 = vadd.f32 %v4617, %v4777
      %v4924 = vadd.f32 %v4618, %v4782
      %v4925 = vadd.f32 %v4619, %v4787
      %v4926 = vadd.f32 %v4620, %v4792
      %v4927 = vadd.f32 %v4621, %v4797
      %v4928 = vadd.f32 %v4622, %v4802
      %v4929 = vadd.f32 %v4623, %v4807
      %v4930 = vadd.f32 %v4624, %v4812
      %v4931 = vadd.f32 %v4625, %v4817
      %v4932 = vadd.f32 %v4626, %v4822
      %v4933 = vadd.f32 %v4627, %v4827
      %v4934 = vadd.f32 %v4628, %v4832
      %v4935 = vadd.f32 %v4629, %v4837
      %v4936 = vadd.f32 %v4630, %v4842
      %v4937 = vadd.f32 %v4631, %v4847
      %v4938 = vadd.f32 %v4632, %v4852
      %v4939 = vadd.f32 %v4633, %v4857
      %v4940 = vadd.f32 %v4634, %v4862
      %v4941 = vadd.f32 %v4635, %v4867
      %v4942 = vadd.f32 %v4636, %v4872
      %v4943 = vadd.f32 %v4637, %v4877
      %v4944 = vadd.f32 %v4638, %v4882
      %v4945 = vadd.f32 %v4639, %v4887
      %v4946 = vadd.f32 %v4640, %v4892
      %v4947 = vadd.f32 %v4641, %v4897
      %v4948 = vadd.f32 %v4642, %v4902
      %v4949 = vadd.f32 %v4643, %v4907
      %v4950 = vadd.f32 %v4644, %v4912
      %v4951 = vadd.f32 %v4645, %v4917
      %s4952 = scalar_lea.vmem [#allocation2], 48
      %v4953 = vld [vmem:[%s4952] sm:$0xff]
      %v4954 = vld [vmem:[%s4952 + $0x8] sm:$0xff]
      %v4955 = vld [vmem:[%s4952 + $0x18] sm:$0xff]
      %v4956 = vld [vmem:[%s4952 + $0x20] sm:$0xff]
      %v4957 = vld [vmem:[%s4952 + $0x30] sm:$0xff]
      %v4958 = vld [vmem:[%s4952 + $0x38] sm:$0xff]
      %v4959 = vld [vmem:[%s4952 + $0x48] sm:$0xff]
      %v4960 = vld [vmem:[%s4952 + $0x50] sm:$0xff]
      %v4961 = vld [vmem:[%s4952 + $0x60] sm:$0xff]
      %v4962 = vld [vmem:[%s4952 + $0x68] sm:$0xff]
      %v4963 = vld [vmem:[%s4952 + $0x78] sm:$0xff]
      %v4964 = vld [vmem:[%s4952 + $0x80] sm:$0xff]
      %v4965 = vld [vmem:[%s4952 + $0x90] sm:$0xff]
      %v4966 = vld [vmem:[%s4952 + $0x98] sm:$0xff]
      %v4967 = vld [vmem:[%s4952 + $0xa8] sm:$0xff]
      %v4968 = vld [vmem:[%s4952 + $0xb0] sm:$0xff]
      %v4969 = vld [vmem:[%s4952 + $0xc0] sm:$0xff]
      %v4970 = vld [vmem:[%s4952 + $0xc8] sm:$0xff]
      %v4971 = vld [vmem:[%s4952 + $0xd8] sm:$0xff]
      %v4972 = vld [vmem:[%s4952 + $0xe0] sm:$0xff]
      %v4973 = vld [vmem:[%s4952 + $0xf0] sm:$0xff]
      %v4974 = vld [vmem:[%s4952 + $0xf8] sm:$0xff]
      %v4975 = vld [vmem:[%s4952 + $0x108] sm:$0xff]
      %v4976 = vld [vmem:[%s4952 + $0x110] sm:$0xff]
      %v4977 = vld [vmem:[%s4952 + $0x120] sm:$0xff]
      %v4978 = vld [vmem:[%s4952 + $0x128] sm:$0xff]
      %v4979 = vld [vmem:[%s4952 + $0x138] sm:$0xff]
      %v4980 = vld [vmem:[%s4952 + $0x140] sm:$0xff]
      %v4981 = vld [vmem:[%s4952 + $0x150] sm:$0xff]
      %v4982 = vld [vmem:[%s4952 + $0x158] sm:$0xff]
      %v4983 = vld [vmem:[%s4952 + $0x168] sm:$0xff]
      %v4984 = vld [vmem:[%s4952 + $0x170] sm:$0xff]
      %s4985 = scalar_lea.vmem %s3, 768
      %v4986 = vld [vmem:[%s4985] sm:$0xff]
      %v4987 = vld [vmem:[%s4985 + $0x8] sm:$0xff]
      %v4988 = vld [vmem:[%s4985 + $0x10] sm:$0xff]
      %v4989 = vld [vmem:[%s4985 + $0x18] sm:$0xff]
      %v4990 = vld [vmem:[%s4985 + $0x20] sm:$0xff]
      %v4991 = vld [vmem:[%s4985 + $0x28] sm:$0xff]
      %v4992 = vld [vmem:[%s4985 + $0x30] sm:$0xff]
      %v4993 = vld [vmem:[%s4985 + $0x38] sm:$0xff]
      %v4994 = vld [vmem:[%s4985 + $0x40] sm:$0xff]
      %v4995 = vld [vmem:[%s4985 + $0x48] sm:$0xff]
      %v4996 = vld [vmem:[%s4985 + $0x50] sm:$0xff]
      %v4997 = vld [vmem:[%s4985 + $0x58] sm:$0xff]
      %v4998 = vld [vmem:[%s4985 + $0x60] sm:$0xff]
      %v4999 = vld [vmem:[%s4985 + $0x68] sm:$0xff]
      %v5000 = vld [vmem:[%s4985 + $0x70] sm:$0xff]
      %v5001 = vld [vmem:[%s4985 + $0x78] sm:$0xff]
      %5002 = vmatprep.subr.mxu0 0.0
      %5003 = vmatpush1.msra.mxu0 %v4986
      %5004 = vmatprep.subr.mxu0 0.0
      %5005 = vmatpush1.msra.mxu0 %v4987
      %5006 = vmatprep.subr.mxu0 0.0
      %5007 = vmatpush1.msra.mxu0 %v4988
      %5008 = vmatprep.subr.mxu0 0.0
      %5009 = vmatpush1.msra.mxu0 %v4989
      %5010 = vmatprep.subr.mxu0 0.0
      %5011 = vmatpush1.msra.mxu0 %v4990
      %5012 = vmatprep.subr.mxu0 0.0
      %5013 = vmatpush1.msra.mxu0 %v4991
      %5014 = vmatprep.subr.mxu0 0.0
      %5015 = vmatpush1.msra.mxu0 %v4992
      %5016 = vmatprep.subr.mxu0 0.0
      %5017 = vmatpush1.msra.mxu0 %v4993
      %5018 = vmatprep.subr.mxu0 0.0
      %5019 = vmatpush1.msra.mxu0 %v4994
      %5020 = vmatprep.subr.mxu0 0.0
      %5021 = vmatpush1.msra.mxu0 %v4995
      %5022 = vmatprep.subr.mxu0 0.0
      %5023 = vmatpush1.msra.mxu0 %v4996
      %5024 = vmatprep.subr.mxu0 0.0
      %5025 = vmatpush1.msra.mxu0 %v4997
      %5026 = vmatprep.subr.mxu0 0.0
      %5027 = vmatpush1.msra.mxu0 %v4998
      %5028 = vmatprep.subr.mxu0 0.0
      %5029 = vmatpush1.msra.mxu0 %v4999
      %5030 = vmatprep.subr.mxu0 0.0
      %5031 = vmatpush1.msra.mxu0 %v5000
      %5032 = vmatprep.subr.mxu0 0.0
      %5033 = vmatpush1.msra.mxu0 %v5001
      %5034 = vmatprep.subr.mxu0 0.0
      %5035 = vmatpush1.msra.mxu0 0.0
      %5036 = vmatprep.subr.mxu0 0.0
      %5037 = vmatpush1.msra.mxu0 0.0
      %5038 = vmatprep.subr.mxu0 0.0
      %5039 = vmatpush1.msra.mxu0 0.0
      %5040 = vmatprep.subr.mxu0 0.0
      %5041 = vmatpush1.msra.mxu0 0.0
      %5042 = vmatprep.subr.mxu0 0.0
      %5043 = vmatpush1.msra.mxu0 0.0
      %5044 = vmatprep.subr.mxu0 0.0
      %5045 = vmatpush1.msra.mxu0 0.0
      %5046 = vmatprep.subr.mxu0 0.0
      %5047 = vmatpush1.msra.mxu0 0.0
      %5048 = vmatprep.subr.mxu0 0.0
      %5049 = vmatpush1.msra.mxu0 0.0
      %5050 = vmatprep.subr.mxu0 0.0
      %5051 = vmatpush1.msra.mxu0 0.0
      %5052 = vmatprep.subr.mxu0 0.0
      %5053 = vmatpush1.msra.mxu0 0.0
      %5054 = vmatprep.subr.mxu0 0.0
      %5055 = vmatpush1.msra.mxu0 0.0
      %5056 = vmatprep.subr.mxu0 0.0
      %5057 = vmatpush1.msra.mxu0 0.0
      %5058 = vmatprep.subr.mxu0 0.0
      %5059 = vmatpush1.msra.mxu0 0.0
      %5060 = vmatprep.subr.mxu0 0.0
      %5061 = vmatpush1.msra.mxu0 0.0
      %5062 = vmatprep.subr.mxu0 0.0
      %5063 = vmatpush1.msra.mxu0 0.0
      %5064 = vmatprep.subr.mxu0 0.0
      %5065 = vmatpush1.msra.mxu0 0.0
      %5066 = vmatprep.mubr.f32.mxu0 0.0
      %5067 = vmatmul.mubr.f32.gmra.mrb[0].mxu0 %v4953
      %v5068 = vpop.f32.mrb[0].mxu0
      %v5069 = vadd.f32 0.0, %v5068
      %v5070 = vpop.f32.mrb[0].mxu0
      %5071 = vmatprep.mubr.f32.mxu0 0.0
      %5072 = vmatmul.mubr.f32.gmra.mrb[0].mxu0 %v4954
      %v5073 = vpop.f32.mrb[0].mxu0
      %v5074 = vadd.f32 0.0, %v5073
      %v5075 = vpop.f32.mrb[0].mxu0
      %5076 = vmatprep.mubr.f32.mxu0 0.0
      %5077 = vmatmul.mubr.f32.gmra.mrb[0].mxu0 %v4955
      %v5078 = vpop.f32.mrb[0].mxu0
      %v5079 = vadd.f32 0.0, %v5078
      %v5080 = vpop.f32.mrb[0].mxu0
      %5081 = vmatprep.mubr.f32.mxu0 0.0
      %5082 = vmatmul.mubr.f32.gmra.mrb[0].mxu0 %v4956
      %v5083 = vpop.f32.mrb[0].mxu0
      %v5084 = vadd.f32 0.0, %v5083
      %v5085 = vpop.f32.mrb[0].mxu0
      %5086 = vmatprep.mubr.f32.mxu0 0.0
      %5087 = vmatmul.mubr.f32.gmra.mrb[0].mxu0 %v4957
      %v5088 = vpop.f32.mrb[0].mxu0
      %v5089 = vadd.f32 0.0, %v5088
      %v5090 = vpop.f32.mrb[0].mxu0
      %5091 = vmatprep.mubr.f32.mxu0 0.0
      %5092 = vmatmul.mubr.f32.gmra.mrb[0].mxu0 %v4958
      %v5093 = vpop.f32.mrb[0].mxu0
      %v5094 = vadd.f32 0.0, %v5093
      %v5095 = vpop.f32.mrb[0].mxu0
      %5096 = vmatprep.mubr.f32.mxu0 0.0
      %5097 = vmatmul.mubr.f32.gmra.mrb[0].mxu0 %v4959
      %v5098 = vpop.f32.mrb[0].mxu0
      %v5099 = vadd.f32 0.0, %v5098
      %v5100 = vpop.f32.mrb[0].mxu0
      %5101 = vmatprep.mubr.f32.mxu0 0.0
      %5102 = vmatmul.mubr.f32.gmra.mrb[0].mxu0 %v4960
      %v5103 = vpop.f32.mrb[0].mxu0
      %v5104 = vadd.f32 0.0, %v5103
      %v5105 = vpop.f32.mrb[0].mxu0
      %5106 = vmatprep.mubr.f32.mxu0 0.0
      %5107 = vmatmul.mubr.f32.gmra.mrb[0].mxu0 %v4961
      %v5108 = vpop.f32.mrb[0].mxu0
      %v5109 = vadd.f32 0.0, %v5108
      %v5110 = vpop.f32.mrb[0].mxu0
      %5111 = vmatprep.mubr.f32.mxu0 0.0
      %5112 = vmatmul.mubr.f32.gmra.mrb[0].mxu0 %v4962
      %v5113 = vpop.f32.mrb[0].mxu0
      %v5114 = vadd.f32 0.0, %v5113
      %v5115 = vpop.f32.mrb[0].mxu0
      %5116 = vmatprep.mubr.f32.mxu0 0.0
      %5117 = vmatmul.mubr.f32.gmra.mrb[0].mxu0 %v4963
      %v5118 = vpop.f32.mrb[0].mxu0
      %v5119 = vadd.f32 0.0, %v5118
      %v5120 = vpop.f32.mrb[0].mxu0
      %5121 = vmatprep.mubr.f32.mxu0 0.0
      %5122 = vmatmul.mubr.f32.gmra.mrb[0].mxu0 %v4964
      %v5123 = vpop.f32.mrb[0].mxu0
      %v5124 = vadd.f32 0.0, %v5123
      %v5125 = vpop.f32.mrb[0].mxu0
      %5126 = vmatprep.mubr.f32.mxu0 0.0
      %5127 = vmatmul.mubr.f32.gmra.mrb[0].mxu0 %v4965
      %v5128 = vpop.f32.mrb[0].mxu0
      %v5129 = vadd.f32 0.0, %v5128
      %v5130 = vpop.f32.mrb[0].mxu0
      %5131 = vmatprep.mubr.f32.mxu0 0.0
      %5132 = vmatmul.mubr.f32.gmra.mrb[0].mxu0 %v4966
      %v5133 = vpop.f32.mrb[0].mxu0
      %v5134 = vadd.f32 0.0, %v5133
      %v5135 = vpop.f32.mrb[0].mxu0
      %5136 = vmatprep.mubr.f32.mxu0 0.0
      %5137 = vmatmul.mubr.f32.gmra.mrb[0].mxu0 %v4967
      %v5138 = vpop.f32.mrb[0].mxu0
      %v5139 = vadd.f32 0.0, %v5138
      %v5140 = vpop.f32.mrb[0].mxu0
      %5141 = vmatprep.mubr.f32.mxu0 0.0
      %5142 = vmatmul.mubr.f32.gmra.mrb[0].mxu0 %v4968
      %v5143 = vpop.f32.mrb[0].mxu0
      %v5144 = vadd.f32 0.0, %v5143
      %v5145 = vpop.f32.mrb[0].mxu0
      %5146 = vmatprep.mubr.f32.mxu0 0.0
      %5147 = vmatmul.mubr.f32.gmra.mrb[0].mxu0 %v4969
      %v5148 = vpop.f32.mrb[0].mxu0
      %v5149 = vadd.f32 0.0, %v5148
      %v5150 = vpop.f32.mrb[0].mxu0
      %5151 = vmatprep.mubr.f32.mxu0 0.0
      %5152 = vmatmul.mubr.f32.gmra.mrb[0].mxu0 %v4970
      %v5153 = vpop.f32.mrb[0].mxu0
      %v5154 = vadd.f32 0.0, %v5153
      %v5155 = vpop.f32.mrb[0].mxu0
      %5156 = vmatprep.mubr.f32.mxu0 0.0
      %5157 = vmatmul.mubr.f32.gmra.mrb[0].mxu0 %v4971
      %v5158 = vpop.f32.mrb[0].mxu0
      %v5159 = vadd.f32 0.0, %v5158
      %v5160 = vpop.f32.mrb[0].mxu0
      %5161 = vmatprep.mubr.f32.mxu0 0.0
      %5162 = vmatmul.mubr.f32.gmra.mrb[0].mxu0 %v4972
      %v5163 = vpop.f32.mrb[0].mxu0
      %v5164 = vadd.f32 0.0, %v5163
      %v5165 = vpop.f32.mrb[0].mxu0
      %5166 = vmatprep.mubr.f32.mxu0 0.0
      %5167 = vmatmul.mubr.f32.gmra.mrb[0].mxu0 %v4973
      %v5168 = vpop.f32.mrb[0].mxu0
      %v5169 = vadd.f32 0.0, %v5168
      %v5170 = vpop.f32.mrb[0].mxu0
      %5171 = vmatprep.mubr.f32.mxu0 0.0
      %5172 = vmatmul.mubr.f32.gmra.mrb[0].mxu0 %v4974
      %v5173 = vpop.f32.mrb[0].mxu0
      %v5174 = vadd.f32 0.0, %v5173
      %v5175 = vpop.f32.mrb[0].mxu0
      %5176 = vmatprep.mubr.f32.mxu0 0.0
      %5177 = vmatmul.mubr.f32.gmra.mrb[0].mxu0 %v4975
      %v5178 = vpop.f32.mrb[0].mxu0
      %v5179 = vadd.f32 0.0, %v5178
      %v5180 = vpop.f32.mrb[0].mxu0
      %5181 = vmatprep.mubr.f32.mxu0 0.0
      %5182 = vmatmul.mubr.f32.gmra.mrb[0].mxu0 %v4976
      %v5183 = vpop.f32.mrb[0].mxu0
      %v5184 = vadd.f32 0.0, %v5183
      %v5185 = vpop.f32.mrb[0].mxu0
      %5186 = vmatprep.mubr.f32.mxu0 0.0
      %5187 = vmatmul.mubr.f32.gmra.mrb[0].mxu0 %v4977
      %v5188 = vpop.f32.mrb[0].mxu0
      %v5189 = vadd.f32 0.0, %v5188
      %v5190 = vpop.f32.mrb[0].mxu0
      %5191 = vmatprep.mubr.f32.mxu0 0.0
      %5192 = vmatmul.mubr.f32.gmra.mrb[0].mxu0 %v4978
      %v5193 = vpop.f32.mrb[0].mxu0
      %v5194 = vadd.f32 0.0, %v5193
      %v5195 = vpop.f32.mrb[0].mxu0
      %5196 = vmatprep.mubr.f32.mxu0 0.0
      %5197 = vmatmul.mubr.f32.gmra.mrb[0].mxu0 %v4979
      %v5198 = vpop.f32.mrb[0].mxu0
      %v5199 = vadd.f32 0.0, %v5198
      %v5200 = vpop.f32.mrb[0].mxu0
      %5201 = vmatprep.mubr.f32.mxu0 0.0
      %5202 = vmatmul.mubr.f32.gmra.mrb[0].mxu0 %v4980
      %v5203 = vpop.f32.mrb[0].mxu0
      %v5204 = vadd.f32 0.0, %v5203
      %v5205 = vpop.f32.mrb[0].mxu0
      %5206 = vmatprep.mubr.f32.mxu0 0.0
      %5207 = vmatmul.mubr.f32.gmra.mrb[0].mxu0 %v4981
      %v5208 = vpop.f32.mrb[0].mxu0
      %v5209 = vadd.f32 0.0, %v5208
      %v5210 = vpop.f32.mrb[0].mxu0
      %5211 = vmatprep.mubr.f32.mxu0 0.0
      %5212 = vmatmul.mubr.f32.gmra.mrb[0].mxu0 %v4982
      %v5213 = vpop.f32.mrb[0].mxu0
      %v5214 = vadd.f32 0.0, %v5213
      %v5215 = vpop.f32.mrb[0].mxu0
      %5216 = vmatprep.mubr.f32.mxu0 0.0
      %5217 = vmatmul.mubr.f32.gmra.mrb[0].mxu0 %v4983
      %v5218 = vpop.f32.mrb[0].mxu0
      %v5219 = vadd.f32 0.0, %v5218
      %v5220 = vpop.f32.mrb[0].mxu0
      %5221 = vmatprep.mubr.f32.mxu0 0.0
      %5222 = vmatmul.mubr.f32.gmra.mrb[0].mxu0 %v4984
      %v5223 = vpop.f32.mrb[0].mxu0
      %v5224 = vadd.f32 0.0, %v5223
      %v5225 = vpop.f32.mrb[0].mxu0
      %5226 = vdwg.mxu0
      %v5227 = vadd.f32 %v4920, %v5069
      %v5228 = vadd.f32 %v4921, %v5074
      %v5229 = vadd.f32 %v4922, %v5079
      %v5230 = vadd.f32 %v4923, %v5084
      %v5231 = vadd.f32 %v4924, %v5089
      %v5232 = vadd.f32 %v4925, %v5094
      %v5233 = vadd.f32 %v4926, %v5099
      %v5234 = vadd.f32 %v4927, %v5104
      %v5235 = vadd.f32 %v4928, %v5109
      %v5236 = vadd.f32 %v4929, %v5114
      %v5237 = vadd.f32 %v4930, %v5119
      %v5238 = vadd.f32 %v4931, %v5124
      %v5239 = vadd.f32 %v4932, %v5129
      %v5240 = vadd.f32 %v4933, %v5134
      %v5241 = vadd.f32 %v4934, %v5139
      %v5242 = vadd.f32 %v4935, %v5144
      %v5243 = vadd.f32 %v4936, %v5149
      %v5244 = vadd.f32 %v4937, %v5154
      %v5245 = vadd.f32 %v4938, %v5159
      %v5246 = vadd.f32 %v4939, %v5164
      %v5247 = vadd.f32 %v4940, %v5169
      %v5248 = vadd.f32 %v4941, %v5174
      %v5249 = vadd.f32 %v4942, %v5179
      %v5250 = vadd.f32 %v4943, %v5184
      %v5251 = vadd.f32 %v4944, %v5189
      %v5252 = vadd.f32 %v4945, %v5194
      %v5253 = vadd.f32 %v4946, %v5199
      %v5254 = vadd.f32 %v4947, %v5204
      %v5255 = vadd.f32 %v4948, %v5209
      %v5256 = vadd.f32 %v4949, %v5214
      %v5257 = vadd.f32 %v4950, %v5219
      %v5258 = vadd.f32 %v4951, %v5224
      %v5259 = vld [vmem:[%s4952 + $0x1] sm:$0xff]
      %v5260 = vld [vmem:[%s4952 + $0x9] sm:$0xff]
      %v5261 = vld [vmem:[%s4952 + $0x19] sm:$0xff]
      %v5262 = vld [vmem:[%s4952 + $0x21] sm:$0xff]
      %v5263 = vld [vmem:[%s4952 + $0x31] sm:$0xff]
      %v5264 = vld [vmem:[%s4952 + $0x39] sm:$0xff]
      %v5265 = vld [vmem:[%s4952 + $0x49] sm:$0xff]
      %v5266 = vld [vmem:[%s4952 + $0x51] sm:$0xff]
      %v5267 = vld [vmem:[%s4952 + $0x61] sm:$0xff]
      %v5268 = vld [vmem:[%s4952 + $0x69] sm:$0xff]
      %v5269 = vld [vmem:[%s4952 + $0x79] sm:$0xff]
      %v5270 = vld [vmem:[%s4952 + $0x81] sm:$0xff]
      %v5271 = vld [vmem:[%s4952 + $0x91] sm:$0xff]
      %v5272 = vld [vmem:[%s4952 + $0x99] sm:$0xff]
      %v5273 = vld [vmem:[%s4952 + $0xa9] sm:$0xff]
      %v5274 = vld [vmem:[%s4952 + $0xb1] sm:$0xff]
      %v5275 = vld [vmem:[%s4952 + $0xc1] sm:$0xff]
      %v5276 = vld [vmem:[%s4952 + $0xc9] sm:$0xff]
      %v5277 = vld [vmem:[%s4952 + $0xd9] sm:$0xff]
      %v5278 = vld [vmem:[%s4952 + $0xe1] sm:$0xff]
      %v5279 = vld [vmem:[%s4952 + $0xf1] sm:$0xff]
      %v5280 = vld [vmem:[%s4952 + $0xf9] sm:$0xff]
      %v5281 = vld [vmem:[%s4952 + $0x109] sm:$0xff]
      %v5282 = vld [vmem:[%s4952 + $0x111] sm:$0xff]
      %v5283 = vld [vmem:[%s4952 + $0x121] sm:$0xff]
      %v5284 = vld [vmem:[%s4952 + $0x129] sm:$0xff]
      %v5285 = vld [vmem:[%s4952 + $0x139] sm:$0xff]
      %v5286 = vld [vmem:[%s4952 + $0x141] sm:$0xff]
      %v5287 = vld [vmem:[%s4952 + $0x151] sm:$0xff]
      %v5288 = vld [vmem:[%s4952 + $0x159] sm:$0xff]
      %v5289 = vld [vmem:[%s4952 + $0x169] sm:$0xff]
      %v5290 = vld [vmem:[%s4952 + $0x171] sm:$0xff]
      %s5291 = scalar_lea.vmem %s3, 896
      %v5292 = vld [vmem:[%s5291] sm:$0xff]
      %v5293 = vld [vmem:[%s5291 + $0x8] sm:$0xff]
      %v5294 = vld [vmem:[%s5291 + $0x10] sm:$0xff]
      %v5295 = vld [vmem:[%s5291 + $0x18] sm:$0xff]
      %v5296 = vld [vmem:[%s5291 + $0x20] sm:$0xff]
      %v5297 = vld [vmem:[%s5291 + $0x28] sm:$0xff]
      %v5298 = vld [vmem:[%s5291 + $0x30] sm:$0xff]
      %v5299 = vld [vmem:[%s5291 + $0x38] sm:$0xff]
      %v5300 = vld [vmem:[%s5291 + $0x40] sm:$0xff]
      %v5301 = vld [vmem:[%s5291 + $0x48] sm:$0xff]
      %v5302 = vld [vmem:[%s5291 + $0x50] sm:$0xff]
      %v5303 = vld [vmem:[%s5291 + $0x58] sm:$0xff]
      %v5304 = vld [vmem:[%s5291 + $0x60] sm:$0xff]
      %v5305 = vld [vmem:[%s5291 + $0x68] sm:$0xff]
      %v5306 = vld [vmem:[%s5291 + $0x70] sm:$0xff]
      %v5307 = vld [vmem:[%s5291 + $0x78] sm:$0xff]
      %5308 = vmatprep.subr.mxu0 0.0
      %5309 = vmatpush1.msra.mxu0 %v5292
      %5310 = vmatprep.subr.mxu0 0.0
      %5311 = vmatpush1.msra.mxu0 %v5293
      %5312 = vmatprep.subr.mxu0 0.0
      %5313 = vmatpush1.msra.mxu0 %v5294
      %5314 = vmatprep.subr.mxu0 0.0
      %5315 = vmatpush1.msra.mxu0 %v5295
      %5316 = vmatprep.subr.mxu0 0.0
      %5317 = vmatpush1.msra.mxu0 %v5296
      %5318 = vmatprep.subr.mxu0 0.0
      %5319 = vmatpush1.msra.mxu0 %v5297
      %5320 = vmatprep.subr.mxu0 0.0
      %5321 = vmatpush1.msra.mxu0 %v5298
      %5322 = vmatprep.subr.mxu0 0.0
      %5323 = vmatpush1.msra.mxu0 %v5299
      %5324 = vmatprep.subr.mxu0 0.0
      %5325 = vmatpush1.msra.mxu0 %v5300
      %5326 = vmatprep.subr.mxu0 0.0
      %5327 = vmatpush1.msra.mxu0 %v5301
      %5328 = vmatprep.subr.mxu0 0.0
      %5329 = vmatpush1.msra.mxu0 %v5302
      %5330 = vmatprep.subr.mxu0 0.0
      %5331 = vmatpush1.msra.mxu0 %v5303
      %5332 = vmatprep.subr.mxu0 0.0
      %5333 = vmatpush1.msra.mxu0 %v5304
      %5334 = vmatprep.subr.mxu0 0.0
      %5335 = vmatpush1.msra.mxu0 %v5305
      %5336 = vmatprep.subr.mxu0 0.0
      %5337 = vmatpush1.msra.mxu0 %v5306
      %5338 = vmatprep.subr.mxu0 0.0
      %5339 = vmatpush1.msra.mxu0 %v5307
      %5340 = vmatprep.subr.mxu0 0.0
      %5341 = vmatpush1.msra.mxu0 0.0
      %5342 = vmatprep.subr.mxu0 0.0
      %5343 = vmatpush1.msra.mxu0 0.0
      %5344 = vmatprep.subr.mxu0 0.0
      %5345 = vmatpush1.msra.mxu0 0.0
      %5346 = vmatprep.subr.mxu0 0.0
      %5347 = vmatpush1.msra.mxu0 0.0
      %5348 = vmatprep.subr.mxu0 0.0
      %5349 = vmatpush1.msra.mxu0 0.0
      %5350 = vmatprep.subr.mxu0 0.0
      %5351 = vmatpush1.msra.mxu0 0.0
      %5352 = vmatprep.subr.mxu0 0.0
      %5353 = vmatpush1.msra.mxu0 0.0
      %5354 = vmatprep.subr.mxu0 0.0
      %5355 = vmatpush1.msra.mxu0 0.0
      %5356 = vmatprep.subr.mxu0 0.0
      %5357 = vmatpush1.msra.mxu0 0.0
      %5358 = vmatprep.subr.mxu0 0.0
      %5359 = vmatpush1.msra.mxu0 0.0
      %5360 = vmatprep.subr.mxu0 0.0
      %5361 = vmatpush1.msra.mxu0 0.0
      %5362 = vmatprep.subr.mxu0 0.0
      %5363 = vmatpush1.msra.mxu0 0.0
      %5364 = vmatprep.subr.mxu0 0.0
      %5365 = vmatpush1.msra.mxu0 0.0
      %5366 = vmatprep.subr.mxu0 0.0
      %5367 = vmatpush1.msra.mxu0 0.0
      %5368 = vmatprep.subr.mxu0 0.0
      %5369 = vmatpush1.msra.mxu0 0.0
      %5370 = vmatprep.subr.mxu0 0.0
      %5371 = vmatpush1.msra.mxu0 0.0
      %5372 = vmatprep.mubr.f32.mxu0 0.0
      %5373 = vmatmul.mubr.f32.gmra.mrb[0].mxu0 %v5259
      %v5374 = vpop.f32.mrb[0].mxu0
      %v5375 = vadd.f32 0.0, %v5374
      %v5376 = vpop.f32.mrb[0].mxu0
      %5377 = vmatprep.mubr.f32.mxu0 0.0
      %5378 = vmatmul.mubr.f32.gmra.mrb[0].mxu0 %v5260
      %v5379 = vpop.f32.mrb[0].mxu0
      %v5380 = vadd.f32 0.0, %v5379
      %v5381 = vpop.f32.mrb[0].mxu0
      %5382 = vmatprep.mubr.f32.mxu0 0.0
      %5383 = vmatmul.mubr.f32.gmra.mrb[0].mxu0 %v5261
      %v5384 = vpop.f32.mrb[0].mxu0
      %v5385 = vadd.f32 0.0, %v5384
      %v5386 = vpop.f32.mrb[0].mxu0
      %5387 = vmatprep.mubr.f32.mxu0 0.0
      %5388 = vmatmul.mubr.f32.gmra.mrb[0].mxu0 %v5262
      %v5389 = vpop.f32.mrb[0].mxu0
      %v5390 = vadd.f32 0.0, %v5389
      %v5391 = vpop.f32.mrb[0].mxu0
      %5392 = vmatprep.mubr.f32.mxu0 0.0
      %5393 = vmatmul.mubr.f32.gmra.mrb[0].mxu0 %v5263
      %v5394 = vpop.f32.mrb[0].mxu0
      %v5395 = vadd.f32 0.0, %v5394
      %v5396 = vpop.f32.mrb[0].mxu0
      %5397 = vmatprep.mubr.f32.mxu0 0.0
      %5398 = vmatmul.mubr.f32.gmra.mrb[0].mxu0 %v5264
      %v5399 = vpop.f32.mrb[0].mxu0
      %v5400 = vadd.f32 0.0, %v5399
      %v5401 = vpop.f32.mrb[0].mxu0
      %5402 = vmatprep.mubr.f32.mxu0 0.0
      %5403 = vmatmul.mubr.f32.gmra.mrb[0].mxu0 %v5265
      %v5404 = vpop.f32.mrb[0].mxu0
      %v5405 = vadd.f32 0.0, %v5404
      %v5406 = vpop.f32.mrb[0].mxu0
      %5407 = vmatprep.mubr.f32.mxu0 0.0
      %5408 = vmatmul.mubr.f32.gmra.mrb[0].mxu0 %v5266
      %v5409 = vpop.f32.mrb[0].mxu0
      %v5410 = vadd.f32 0.0, %v5409
      %v5411 = vpop.f32.mrb[0].mxu0
      %5412 = vmatprep.mubr.f32.mxu0 0.0
      %5413 = vmatmul.mubr.f32.gmra.mrb[0].mxu0 %v5267
      %v5414 = vpop.f32.mrb[0].mxu0
      %v5415 = vadd.f32 0.0, %v5414
      %v5416 = vpop.f32.mrb[0].mxu0
      %5417 = vmatprep.mubr.f32.mxu0 0.0
      %5418 = vmatmul.mubr.f32.gmra.mrb[0].mxu0 %v5268
      %v5419 = vpop.f32.mrb[0].mxu0
      %v5420 = vadd.f32 0.0, %v5419
      %v5421 = vpop.f32.mrb[0].mxu0
      %5422 = vmatprep.mubr.f32.mxu0 0.0
      %5423 = vmatmul.mubr.f32.gmra.mrb[0].mxu0 %v5269
      %v5424 = vpop.f32.mrb[0].mxu0
      %v5425 = vadd.f32 0.0, %v5424
      %v5426 = vpop.f32.mrb[0].mxu0
      %5427 = vmatprep.mubr.f32.mxu0 0.0
      %5428 = vmatmul.mubr.f32.gmra.mrb[0].mxu0 %v5270
      %v5429 = vpop.f32.mrb[0].mxu0
      %v5430 = vadd.f32 0.0, %v5429
      %v5431 = vpop.f32.mrb[0].mxu0
      %5432 = vmatprep.mubr.f32.mxu0 0.0
      %5433 = vmatmul.mubr.f32.gmra.mrb[0].mxu0 %v5271
      %v5434 = vpop.f32.mrb[0].mxu0
      %v5435 = vadd.f32 0.0, %v5434
      %v5436 = vpop.f32.mrb[0].mxu0
      %5437 = vmatprep.mubr.f32.mxu0 0.0
      %5438 = vmatmul.mubr.f32.gmra.mrb[0].mxu0 %v5272
      %v5439 = vpop.f32.mrb[0].mxu0
      %v5440 = vadd.f32 0.0, %v5439
      %v5441 = vpop.f32.mrb[0].mxu0
      %5442 = vmatprep.mubr.f32.mxu0 0.0
      %5443 = vmatmul.mubr.f32.gmra.mrb[0].mxu0 %v5273
      %v5444 = vpop.f32.mrb[0].mxu0
      %v5445 = vadd.f32 0.0, %v5444
      %v5446 = vpop.f32.mrb[0].mxu0
      %5447 = vmatprep.mubr.f32.mxu0 0.0
      %5448 = vmatmul.mubr.f32.gmra.mrb[0].mxu0 %v5274
      %v5449 = vpop.f32.mrb[0].mxu0
      %v5450 = vadd.f32 0.0, %v5449
      %v5451 = vpop.f32.mrb[0].mxu0
      %5452 = vmatprep.mubr.f32.mxu0 0.0
      %5453 = vmatmul.mubr.f32.gmra.mrb[0].mxu0 %v5275
      %v5454 = vpop.f32.mrb[0].mxu0
      %v5455 = vadd.f32 0.0, %v5454
      %v5456 = vpop.f32.mrb[0].mxu0
      %5457 = vmatprep.mubr.f32.mxu0 0.0
      %5458 = vmatmul.mubr.f32.gmra.mrb[0].mxu0 %v5276
      %v5459 = vpop.f32.mrb[0].mxu0
      %v5460 = vadd.f32 0.0, %v5459
      %v5461 = vpop.f32.mrb[0].mxu0
      %5462 = vmatprep.mubr.f32.mxu0 0.0
      %5463 = vmatmul.mubr.f32.gmra.mrb[0].mxu0 %v5277
      %v5464 = vpop.f32.mrb[0].mxu0
      %v5465 = vadd.f32 0.0, %v5464
      %v5466 = vpop.f32.mrb[0].mxu0
      %5467 = vmatprep.mubr.f32.mxu0 0.0
      %5468 = vmatmul.mubr.f32.gmra.mrb[0].mxu0 %v5278
      %v5469 = vpop.f32.mrb[0].mxu0
      %v5470 = vadd.f32 0.0, %v5469
      %v5471 = vpop.f32.mrb[0].mxu0
      %5472 = vmatprep.mubr.f32.mxu0 0.0
      %5473 = vmatmul.mubr.f32.gmra.mrb[0].mxu0 %v5279
      %v5474 = vpop.f32.mrb[0].mxu0
      %v5475 = vadd.f32 0.0, %v5474
      %v5476 = vpop.f32.mrb[0].mxu0
      %5477 = vmatprep.mubr.f32.mxu0 0.0
      %5478 = vmatmul.mubr.f32.gmra.mrb[0].mxu0 %v5280
      %v5479 = vpop.f32.mrb[0].mxu0
      %v5480 = vadd.f32 0.0, %v5479
      %v5481 = vpop.f32.mrb[0].mxu0
      %5482 = vmatprep.mubr.f32.mxu0 0.0
      %5483 = vmatmul.mubr.f32.gmra.mrb[0].mxu0 %v5281
      %v5484 = vpop.f32.mrb[0].mxu0
      %v5485 = vadd.f32 0.0, %v5484
      %v5486 = vpop.f32.mrb[0].mxu0
      %5487 = vmatprep.mubr.f32.mxu0 0.0
      %5488 = vmatmul.mubr.f32.gmra.mrb[0].mxu0 %v5282
      %v5489 = vpop.f32.mrb[0].mxu0
      %v5490 = vadd.f32 0.0, %v5489
      %v5491 = vpop.f32.mrb[0].mxu0
      %5492 = vmatprep.mubr.f32.mxu0 0.0
      %5493 = vmatmul.mubr.f32.gmra.mrb[0].mxu0 %v5283
      %v5494 = vpop.f32.mrb[0].mxu0
      %v5495 = vadd.f32 0.0, %v5494
      %v5496 = vpop.f32.mrb[0].mxu0
      %5497 = vmatprep.mubr.f32.mxu0 0.0
      %5498 = vmatmul.mubr.f32.gmra.mrb[0].mxu0 %v5284
      %v5499 = vpop.f32.mrb[0].mxu0
      %v5500 = vadd.f32 0.0, %v5499
      %v5501 = vpop.f32.mrb[0].mxu0
      %5502 = vmatprep.mubr.f32.mxu0 0.0
      %5503 = vmatmul.mubr.f32.gmra.mrb[0].mxu0 %v5285
      %v5504 = vpop.f32.mrb[0].mxu0
      %v5505 = vadd.f32 0.0, %v5504
      %v5506 = vpop.f32.mrb[0].mxu0
      %5507 = vmatprep.mubr.f32.mxu0 0.0
      %5508 = vmatmul.mubr.f32.gmra.mrb[0].mxu0 %v5286
      %v5509 = vpop.f32.mrb[0].mxu0
      %v5510 = vadd.f32 0.0, %v5509
      %v5511 = vpop.f32.mrb[0].mxu0
      %5512 = vmatprep.mubr.f32.mxu0 0.0
      %5513 = vmatmul.mubr.f32.gmra.mrb[0].mxu0 %v5287
      %v5514 = vpop.f32.mrb[0].mxu0
      %v5515 = vadd.f32 0.0, %v5514
      %v5516 = vpop.f32.mrb[0].mxu0
      %5517 = vmatprep.mubr.f32.mxu0 0.0
      %5518 = vmatmul.mubr.f32.gmra.mrb[0].mxu0 %v5288
      %v5519 = vpop.f32.mrb[0].mxu0
      %v5520 = vadd.f32 0.0, %v5519
      %v5521 = vpop.f32.mrb[0].mxu0
      %5522 = vmatprep.mubr.f32.mxu0 0.0
      %5523 = vmatmul.mubr.f32.gmra.mrb[0].mxu0 %v5289
      %v5524 = vpop.f32.mrb[0].mxu0
      %v5525 = vadd.f32 0.0, %v5524
      %v5526 = vpop.f32.mrb[0].mxu0
      %5527 = vmatprep.mubr.f32.mxu0 0.0
      %5528 = vmatmul.mubr.f32.gmra.mrb[0].mxu0 %v5290
      %v5529 = vpop.f32.mrb[0].mxu0
      %v5530 = vadd.f32 0.0, %v5529
      %v5531 = vpop.f32.mrb[0].mxu0
      %5532 = vdwg.mxu0
      %v5533 = vadd.f32 %v5227, %v5375
      %v5534 = vadd.f32 %v5228, %v5380
      %v5535 = vadd.f32 %v5229, %v5385
      %v5536 = vadd.f32 %v5230, %v5390
      %v5537 = vadd.f32 %v5231, %v5395
      %v5538 = vadd.f32 %v5232, %v5400
      %v5539 = vadd.f32 %v5233, %v5405
      %v5540 = vadd.f32 %v5234, %v5410
      %v5541 = vadd.f32 %v5235, %v5415
      %v5542 = vadd.f32 %v5236, %v5420
      %v5543 = vadd.f32 %v5237, %v5425
      %v5544 = vadd.f32 %v5238, %v5430
      %v5545 = vadd.f32 %v5239, %v5435
      %v5546 = vadd.f32 %v5240, %v5440
      %v5547 = vadd.f32 %v5241, %v5445
      %v5548 = vadd.f32 %v5242, %v5450
      %v5549 = vadd.f32 %v5243, %v5455
      %v5550 = vadd.f32 %v5244, %v5460
      %v5551 = vadd.f32 %v5245, %v5465
      %v5552 = vadd.f32 %v5246, %v5470
      %v5553 = vadd.f32 %v5247, %v5475
      %v5554 = vadd.f32 %v5248, %v5480
      %v5555 = vadd.f32 %v5249, %v5485
      %v5556 = vadd.f32 %v5250, %v5490
      %v5557 = vadd.f32 %v5251, %v5495
      %v5558 = vadd.f32 %v5252, %v5500
      %v5559 = vadd.f32 %v5253, %v5505
      %v5560 = vadd.f32 %v5254, %v5510
      %v5561 = vadd.f32 %v5255, %v5515
      %v5562 = vadd.f32 %v5256, %v5520
      %v5563 = vadd.f32 %v5257, %v5525
      %v5564 = vadd.f32 %v5258, %v5530
      %v5565 = vld [vmem:[%s4952 + $0x2] sm:$0xff]
      %v5566 = vld [vmem:[%s4952 + $0xa] sm:$0xff]
      %v5567 = vld [vmem:[%s4952 + $0x1a] sm:$0xff]
      %v5568 = vld [vmem:[%s4952 + $0x22] sm:$0xff]
      %v5569 = vld [vmem:[%s4952 + $0x32] sm:$0xff]
      %v5570 = vld [vmem:[%s4952 + $0x3a] sm:$0xff]
      %v5571 = vld [vmem:[%s4952 + $0x4a] sm:$0xff]
      %v5572 = vld [vmem:[%s4952 + $0x52] sm:$0xff]
      %v5573 = vld [vmem:[%s4952 + $0x62] sm:$0xff]
      %v5574 = vld [vmem:[%s4952 + $0x6a] sm:$0xff]
      %v5575 = vld [vmem:[%s4952 + $0x7a] sm:$0xff]
      %v5576 = vld [vmem:[%s4952 + $0x82] sm:$0xff]
      %v5577 = vld [vmem:[%s4952 + $0x92] sm:$0xff]
      %v5578 = vld [vmem:[%s4952 + $0x9a] sm:$0xff]
      %v5579 = vld [vmem:[%s4952 + $0xaa] sm:$0xff]
      %v5580 = vld [vmem:[%s4952 + $0xb2] sm:$0xff]
      %v5581 = vld [vmem:[%s4952 + $0xc2] sm:$0xff]
      %v5582 = vld [vmem:[%s4952 + $0xca] sm:$0xff]
      %v5583 = vld [vmem:[%s4952 + $0xda] sm:$0xff]
      %v5584 = vld [vmem:[%s4952 + $0xe2] sm:$0xff]
      %v5585 = vld [vmem:[%s4952 + $0xf2] sm:$0xff]
      %v5586 = vld [vmem:[%s4952 + $0xfa] sm:$0xff]
      %v5587 = vld [vmem:[%s4952 + $0x10a] sm:$0xff]
      %v5588 = vld [vmem:[%s4952 + $0x112] sm:$0xff]
      %v5589 = vld [vmem:[%s4952 + $0x122] sm:$0xff]
      %v5590 = vld [vmem:[%s4952 + $0x12a] sm:$0xff]
      %v5591 = vld [vmem:[%s4952 + $0x13a] sm:$0xff]
      %v5592 = vld [vmem:[%s4952 + $0x142] sm:$0xff]
      %v5593 = vld [vmem:[%s4952 + $0x152] sm:$0xff]
      %v5594 = vld [vmem:[%s4952 + $0x15a] sm:$0xff]
      %v5595 = vld [vmem:[%s4952 + $0x16a] sm:$0xff]
      %v5596 = vld [vmem:[%s4952 + $0x172] sm:$0xff]
      %s5597 = scalar_lea.vmem %s3, 1024
      %v5598 = vld [vmem:[%s5597] sm:$0xff]
      %v5599 = vld [vmem:[%s5597 + $0x8] sm:$0xff]
      %v5600 = vld [vmem:[%s5597 + $0x10] sm:$0xff]
      %v5601 = vld [vmem:[%s5597 + $0x18] sm:$0xff]
      %v5602 = vld [vmem:[%s5597 + $0x20] sm:$0xff]
      %v5603 = vld [vmem:[%s5597 + $0x28] sm:$0xff]
      %v5604 = vld [vmem:[%s5597 + $0x30] sm:$0xff]
      %v5605 = vld [vmem:[%s5597 + $0x38] sm:$0xff]
      %v5606 = vld [vmem:[%s5597 + $0x40] sm:$0xff]
      %v5607 = vld [vmem:[%s5597 + $0x48] sm:$0xff]
      %v5608 = vld [vmem:[%s5597 + $0x50] sm:$0xff]
      %v5609 = vld [vmem:[%s5597 + $0x58] sm:$0xff]
      %v5610 = vld [vmem:[%s5597 + $0x60] sm:$0xff]
      %v5611 = vld [vmem:[%s5597 + $0x68] sm:$0xff]
      %v5612 = vld [vmem:[%s5597 + $0x70] sm:$0xff]
      %v5613 = vld [vmem:[%s5597 + $0x78] sm:$0xff]
      %5614 = vmatprep.subr.mxu0 0.0
      %5615 = vmatpush1.msra.mxu0 %v5598
      %5616 = vmatprep.subr.mxu0 0.0
      %5617 = vmatpush1.msra.mxu0 %v5599
      %5618 = vmatprep.subr.mxu0 0.0
      %5619 = vmatpush1.msra.mxu0 %v5600
      %5620 = vmatprep.subr.mxu0 0.0
      %5621 = vmatpush1.msra.mxu0 %v5601
      %5622 = vmatprep.subr.mxu0 0.0
      %5623 = vmatpush1.msra.mxu0 %v5602
      %5624 = vmatprep.subr.mxu0 0.0
      %5625 = vmatpush1.msra.mxu0 %v5603
      %5626 = vmatprep.subr.mxu0 0.0
      %5627 = vmatpush1.msra.mxu0 %v5604
      %5628 = vmatprep.subr.mxu0 0.0
      %5629 = vmatpush1.msra.mxu0 %v5605
      %5630 = vmatprep.subr.mxu0 0.0
      %5631 = vmatpush1.msra.mxu0 %v5606
      %5632 = vmatprep.subr.mxu0 0.0
      %5633 = vmatpush1.msra.mxu0 %v5607
      %5634 = vmatprep.subr.mxu0 0.0
      %5635 = vmatpush1.msra.mxu0 %v5608
      %5636 = vmatprep.subr.mxu0 0.0
      %5637 = vmatpush1.msra.mxu0 %v5609
      %5638 = vmatprep.subr.mxu0 0.0
      %5639 = vmatpush1.msra.mxu0 %v5610
      %5640 = vmatprep.subr.mxu0 0.0
      %5641 = vmatpush1.msra.mxu0 %v5611
      %5642 = vmatprep.subr.mxu0 0.0
      %5643 = vmatpush1.msra.mxu0 %v5612
      %5644 = vmatprep.subr.mxu0 0.0
      %5645 = vmatpush1.msra.mxu0 %v5613
      %5646 = vmatprep.subr.mxu0 0.0
      %5647 = vmatpush1.msra.mxu0 0.0
      %5648 = vmatprep.subr.mxu0 0.0
      %5649 = vmatpush1.msra.mxu0 0.0
      %5650 = vmatprep.subr.mxu0 0.0
      %5651 = vmatpush1.msra.mxu0 0.0
      %5652 = vmatprep.subr.mxu0 0.0
      %5653 = vmatpush1.msra.mxu0 0.0
      %5654 = vmatprep.subr.mxu0 0.0
      %5655 = vmatpush1.msra.mxu0 0.0
      %5656 = vmatprep.subr.mxu0 0.0
      %5657 = vmatpush1.msra.mxu0 0.0
      %5658 = vmatprep.subr.mxu0 0.0
      %5659 = vmatpush1.msra.mxu0 0.0
      %5660 = vmatprep.subr.mxu0 0.0
      %5661 = vmatpush1.msra.mxu0 0.0
      %5662 = vmatprep.subr.mxu0 0.0
      %5663 = vmatpush1.msra.mxu0 0.0
      %5664 = vmatprep.subr.mxu0 0.0
      %5665 = vmatpush1.msra.mxu0 0.0
      %5666 = vmatprep.subr.mxu0 0.0
      %5667 = vmatpush1.msra.mxu0 0.0
      %5668 = vmatprep.subr.mxu0 0.0
      %5669 = vmatpush1.msra.mxu0 0.0
      %5670 = vmatprep.subr.mxu0 0.0
      %5671 = vmatpush1.msra.mxu0 0.0
      %5672 = vmatprep.subr.mxu0 0.0
      %5673 = vmatpush1.msra.mxu0 0.0
      %5674 = vmatprep.subr.mxu0 0.0
      %5675 = vmatpush1.msra.mxu0 0.0
      %5676 = vmatprep.subr.mxu0 0.0
      %5677 = vmatpush1.msra.mxu0 0.0
      %5678 = vmatprep.mubr.f32.mxu0 0.0
      %5679 = vmatmul.mubr.f32.gmra.mrb[0].mxu0 %v5565
      %v5680 = vpop.f32.mrb[0].mxu0
      %v5681 = vadd.f32 0.0, %v5680
      %v5682 = vpop.f32.mrb[0].mxu0
      %5683 = vmatprep.mubr.f32.mxu0 0.0
      %5684 = vmatmul.mubr.f32.gmra.mrb[0].mxu0 %v5566
      %v5685 = vpop.f32.mrb[0].mxu0
      %v5686 = vadd.f32 0.0, %v5685
      %v5687 = vpop.f32.mrb[0].mxu0
      %5688 = vmatprep.mubr.f32.mxu0 0.0
      %5689 = vmatmul.mubr.f32.gmra.mrb[0].mxu0 %v5567
      %v5690 = vpop.f32.mrb[0].mxu0
      %v5691 = vadd.f32 0.0, %v5690
      %v5692 = vpop.f32.mrb[0].mxu0
      %5693 = vmatprep.mubr.f32.mxu0 0.0
      %5694 = vmatmul.mubr.f32.gmra.mrb[0].mxu0 %v5568
      %v5695 = vpop.f32.mrb[0].mxu0
      %v5696 = vadd.f32 0.0, %v5695
      %v5697 = vpop.f32.mrb[0].mxu0
      %5698 = vmatprep.mubr.f32.mxu0 0.0
      %5699 = vmatmul.mubr.f32.gmra.mrb[0].mxu0 %v5569
      %v5700 = vpop.f32.mrb[0].mxu0
      %v5701 = vadd.f32 0.0, %v5700
      %v5702 = vpop.f32.mrb[0].mxu0
      %5703 = vmatprep.mubr.f32.mxu0 0.0
      %5704 = vmatmul.mubr.f32.gmra.mrb[0].mxu0 %v5570
      %v5705 = vpop.f32.mrb[0].mxu0
      %v5706 = vadd.f32 0.0, %v5705
      %v5707 = vpop.f32.mrb[0].mxu0
      %5708 = vmatprep.mubr.f32.mxu0 0.0
      %5709 = vmatmul.mubr.f32.gmra.mrb[0].mxu0 %v5571
      %v5710 = vpop.f32.mrb[0].mxu0
      %v5711 = vadd.f32 0.0, %v5710
      %v5712 = vpop.f32.mrb[0].mxu0
      %5713 = vmatprep.mubr.f32.mxu0 0.0
      %5714 = vmatmul.mubr.f32.gmra.mrb[0].mxu0 %v5572
      %v5715 = vpop.f32.mrb[0].mxu0
      %v5716 = vadd.f32 0.0, %v5715
      %v5717 = vpop.f32.mrb[0].mxu0
      %5718 = vmatprep.mubr.f32.mxu0 0.0
      %5719 = vmatmul.mubr.f32.gmra.mrb[0].mxu0 %v5573
      %v5720 = vpop.f32.mrb[0].mxu0
      %v5721 = vadd.f32 0.0, %v5720
      %v5722 = vpop.f32.mrb[0].mxu0
      %5723 = vmatprep.mubr.f32.mxu0 0.0
      %5724 = vmatmul.mubr.f32.gmra.mrb[0].mxu0 %v5574
      %v5725 = vpop.f32.mrb[0].mxu0
      %v5726 = vadd.f32 0.0, %v5725
      %v5727 = vpop.f32.mrb[0].mxu0
      %5728 = vmatprep.mubr.f32.mxu0 0.0
      %5729 = vmatmul.mubr.f32.gmra.mrb[0].mxu0 %v5575
      %v5730 = vpop.f32.mrb[0].mxu0
      %v5731 = vadd.f32 0.0, %v5730
      %v5732 = vpop.f32.mrb[0].mxu0
      %5733 = vmatprep.mubr.f32.mxu0 0.0
      %5734 = vmatmul.mubr.f32.gmra.mrb[0].mxu0 %v5576
      %v5735 = vpop.f32.mrb[0].mxu0
      %v5736 = vadd.f32 0.0, %v5735
      %v5737 = vpop.f32.mrb[0].mxu0
      %5738 = vmatprep.mubr.f32.mxu0 0.0
      %5739 = vmatmul.mubr.f32.gmra.mrb[0].mxu0 %v5577
      %v5740 = vpop.f32.mrb[0].mxu0
      %v5741 = vadd.f32 0.0, %v5740
      %v5742 = vpop.f32.mrb[0].mxu0
      %5743 = vmatprep.mubr.f32.mxu0 0.0
      %5744 = vmatmul.mubr.f32.gmra.mrb[0].mxu0 %v5578
      %v5745 = vpop.f32.mrb[0].mxu0
      %v5746 = vadd.f32 0.0, %v5745
      %v5747 = vpop.f32.mrb[0].mxu0
      %5748 = vmatprep.mubr.f32.mxu0 0.0
      %5749 = vmatmul.mubr.f32.gmra.mrb[0].mxu0 %v5579
      %v5750 = vpop.f32.mrb[0].mxu0
      %v5751 = vadd.f32 0.0, %v5750
      %v5752 = vpop.f32.mrb[0].mxu0
      %5753 = vmatprep.mubr.f32.mxu0 0.0
      %5754 = vmatmul.mubr.f32.gmra.mrb[0].mxu0 %v5580
      %v5755 = vpop.f32.mrb[0].mxu0
      %v5756 = vadd.f32 0.0, %v5755
      %v5757 = vpop.f32.mrb[0].mxu0
      %5758 = vmatprep.mubr.f32.mxu0 0.0
      %5759 = vmatmul.mubr.f32.gmra.mrb[0].mxu0 %v5581
      %v5760 = vpop.f32.mrb[0].mxu0
      %v5761 = vadd.f32 0.0, %v5760
      %v5762 = vpop.f32.mrb[0].mxu0
      %5763 = vmatprep.mubr.f32.mxu0 0.0
      %5764 = vmatmul.mubr.f32.gmra.mrb[0].mxu0 %v5582
      %v5765 = vpop.f32.mrb[0].mxu0
      %v5766 = vadd.f32 0.0, %v5765
      %v5767 = vpop.f32.mrb[0].mxu0
      %5768 = vmatprep.mubr.f32.mxu0 0.0
      %5769 = vmatmul.mubr.f32.gmra.mrb[0].mxu0 %v5583
      %v5770 = vpop.f32.mrb[0].mxu0
      %v5771 = vadd.f32 0.0, %v5770
      %v5772 = vpop.f32.mrb[0].mxu0
      %5773 = vmatprep.mubr.f32.mxu0 0.0
      %5774 = vmatmul.mubr.f32.gmra.mrb[0].mxu0 %v5584
      %v5775 = vpop.f32.mrb[0].mxu0
      %v5776 = vadd.f32 0.0, %v5775
      %v5777 = vpop.f32.mrb[0].mxu0
      %5778 = vmatprep.mubr.f32.mxu0 0.0
      %5779 = vmatmul.mubr.f32.gmra.mrb[0].mxu0 %v5585
      %v5780 = vpop.f32.mrb[0].mxu0
      %v5781 = vadd.f32 0.0, %v5780
      %v5782 = vpop.f32.mrb[0].mxu0
      %5783 = vmatprep.mubr.f32.mxu0 0.0
      %5784 = vmatmul.mubr.f32.gmra.mrb[0].mxu0 %v5586
      %v5785 = vpop.f32.mrb[0].mxu0
      %v5786 = vadd.f32 0.0, %v5785
      %v5787 = vpop.f32.mrb[0].mxu0
      %5788 = vmatprep.mubr.f32.mxu0 0.0
      %5789 = vmatmul.mubr.f32.gmra.mrb[0].mxu0 %v5587
      %v5790 = vpop.f32.mrb[0].mxu0
      %v5791 = vadd.f32 0.0, %v5790
      %v5792 = vpop.f32.mrb[0].mxu0
      %5793 = vmatprep.mubr.f32.mxu0 0.0
      %5794 = vmatmul.mubr.f32.gmra.mrb[0].mxu0 %v5588
      %v5795 = vpop.f32.mrb[0].mxu0
      %v5796 = vadd.f32 0.0, %v5795
      %v5797 = vpop.f32.mrb[0].mxu0
      %5798 = vmatprep.mubr.f32.mxu0 0.0
      %5799 = vmatmul.mubr.f32.gmra.mrb[0].mxu0 %v5589
      %v5800 = vpop.f32.mrb[0].mxu0
      %v5801 = vadd.f32 0.0, %v5800
      %v5802 = vpop.f32.mrb[0].mxu0
      %5803 = vmatprep.mubr.f32.mxu0 0.0
      %5804 = vmatmul.mubr.f32.gmra.mrb[0].mxu0 %v5590
      %v5805 = vpop.f32.mrb[0].mxu0
      %v5806 = vadd.f32 0.0, %v5805
      %v5807 = vpop.f32.mrb[0].mxu0
      %5808 = vmatprep.mubr.f32.mxu0 0.0
      %5809 = vmatmul.mubr.f32.gmra.mrb[0].mxu0 %v5591
      %v5810 = vpop.f32.mrb[0].mxu0
      %v5811 = vadd.f32 0.0, %v5810
      %v5812 = vpop.f32.mrb[0].mxu0
      %5813 = vmatprep.mubr.f32.mxu0 0.0
      %5814 = vmatmul.mubr.f32.gmra.mrb[0].mxu0 %v5592
      %v5815 = vpop.f32.mrb[0].mxu0
      %v5816 = vadd.f32 0.0, %v5815
      %v5817 = vpop.f32.mrb[0].mxu0
      %5818 = vmatprep.mubr.f32.mxu0 0.0
      %5819 = vmatmul.mubr.f32.gmra.mrb[0].mxu0 %v5593
      %v5820 = vpop.f32.mrb[0].mxu0
      %v5821 = vadd.f32 0.0, %v5820
      %v5822 = vpop.f32.mrb[0].mxu0
      %5823 = vmatprep.mubr.f32.mxu0 0.0
      %5824 = vmatmul.mubr.f32.gmra.mrb[0].mxu0 %v5594
      %v5825 = vpop.f32.mrb[0].mxu0
      %v5826 = vadd.f32 0.0, %v5825
      %v5827 = vpop.f32.mrb[0].mxu0
      %5828 = vmatprep.mubr.f32.mxu0 0.0
      %5829 = vmatmul.mubr.f32.gmra.mrb[0].mxu0 %v5595
      %v5830 = vpop.f32.mrb[0].mxu0
      %v5831 = vadd.f32 0.0, %v5830
      %v5832 = vpop.f32.mrb[0].mxu0
      %5833 = vmatprep.mubr.f32.mxu0 0.0
      %5834 = vmatmul.mubr.f32.gmra.mrb[0].mxu0 %v5596
      %v5835 = vpop.f32.mrb[0].mxu0
      %v5836 = vadd.f32 0.0, %v5835
      %v5837 = vpop.f32.mrb[0].mxu0
      %5838 = vdwg.mxu0
      %v5839 = vadd.f32 %v5533, %v5681
      %v5840 = vadd.f32 %v5534, %v5686
      %v5841 = vadd.f32 %v5535, %v5691
      %v5842 = vadd.f32 %v5536, %v5696
      %v5843 = vadd.f32 %v5537, %v5701
      %v5844 = vadd.f32 %v5538, %v5706
      %v5845 = vadd.f32 %v5539, %v5711
      %v5846 = vadd.f32 %v5540, %v5716
      %v5847 = vadd.f32 %v5541, %v5721
      %v5848 = vadd.f32 %v5542, %v5726
      %v5849 = vadd.f32 %v5543, %v5731
      %v5850 = vadd.f32 %v5544, %v5736
      %v5851 = vadd.f32 %v5545, %v5741
      %v5852 = vadd.f32 %v5546, %v5746
      %v5853 = vadd.f32 %v5547, %v5751
      %v5854 = vadd.f32 %v5548, %v5756
      %v5855 = vadd.f32 %v5549, %v5761
      %v5856 = vadd.f32 %v5550, %v5766
      %v5857 = vadd.f32 %v5551, %v5771
      %v5858 = vadd.f32 %v5552, %v5776
      %v5859 = vadd.f32 %v5553, %v5781
      %v5860 = vadd.f32 %v5554, %v5786
      %v5861 = vadd.f32 %v5555, %v5791
      %v5862 = vadd.f32 %v5556, %v5796
      %v5863 = vadd.f32 %v5557, %v5801
      %v5864 = vadd.f32 %v5558, %v5806
      %v5865 = vadd.f32 %v5559, %v5811
      %v5866 = vadd.f32 %v5560, %v5816
      %v5867 = vadd.f32 %v5561, %v5821
      %v5868 = vadd.f32 %v5562, %v5826
      %v5869 = vadd.f32 %v5563, %v5831
      %v5870 = vadd.f32 %v5564, %v5836
      %v5871 = vld [vmem:[%s239] sm:$0xff]
      %v5872 = vld [vmem:[%s239 + $0x8] sm:$0xff]
      %v5873 = vld [vmem:[%s239 + $0x10] sm:$0xff]
      %v5874 = vld [vmem:[%s239 + $0x18] sm:$0xff]
      %v5875 = vld [vmem:[%s239 + $0x20] sm:$0xff]
      %v5876 = vld [vmem:[%s239 + $0x28] sm:$0xff]
      %v5877 = vld [vmem:[%s239 + $0x30] sm:$0xff]
      %v5878 = vld [vmem:[%s239 + $0x38] sm:$0xff]
      %v5879 = vld [vmem:[%s239 + $0x40] sm:$0xff]
      %v5880 = vld [vmem:[%s239 + $0x48] sm:$0xff]
      %v5881 = vld [vmem:[%s239 + $0x50] sm:$0xff]
      %v5882 = vld [vmem:[%s239 + $0x58] sm:$0xff]
      %v5883 = vld [vmem:[%s239 + $0x60] sm:$0xff]
      %v5884 = vld [vmem:[%s239 + $0x68] sm:$0xff]
      %v5885 = vld [vmem:[%s239 + $0x70] sm:$0xff]
      %v5886 = vld [vmem:[%s239 + $0x78] sm:$0xff]
      %v5887 = vld [vmem:[%s239 + $0x80] sm:$0xff]
      %v5888 = vld [vmem:[%s239 + $0x88] sm:$0xff]
      %v5889 = vld [vmem:[%s239 + $0x90] sm:$0xff]
      %v5890 = vld [vmem:[%s239 + $0x98] sm:$0xff]
      %v5891 = vld [vmem:[%s239 + $0xa0] sm:$0xff]
      %v5892 = vld [vmem:[%s239 + $0xa8] sm:$0xff]
      %v5893 = vld [vmem:[%s239 + $0xb0] sm:$0xff]
      %v5894 = vld [vmem:[%s239 + $0xb8] sm:$0xff]
      %v5895 = vld [vmem:[%s239 + $0xc0] sm:$0xff]
      %v5896 = vld [vmem:[%s239 + $0xc8] sm:$0xff]
      %v5897 = vld [vmem:[%s239 + $0xd0] sm:$0xff]
      %v5898 = vld [vmem:[%s239 + $0xd8] sm:$0xff]
      %v5899 = vld [vmem:[%s239 + $0xe0] sm:$0xff]
      %v5900 = vld [vmem:[%s239 + $0xe8] sm:$0xff]
      %v5901 = vld [vmem:[%s239 + $0xf0] sm:$0xff]
      %v5902 = vld [vmem:[%s239 + $0xf8] sm:$0xff]
      %v5903 = vlaneseq
      %v5904 = vshrl.u32 %v5903, 7
      %v5905 = vsub.s32 2, %v5904
      %v5906 = vrot.slane %v245, %v5905
      %v5907 = vmul.f32 %v5839, %v5906
      %v5908 = vmul.f32 %v5840, %v5906
      %v5909 = vmul.f32 %v5841, %v5906
      %v5910 = vmul.f32 %v5842, %v5906
      %v5911 = vmul.f32 %v5843, %v5906
      %v5912 = vmul.f32 %v5844, %v5906
      %v5913 = vmul.f32 %v5845, %v5906
      %v5914 = vmul.f32 %v5846, %v5906
      %v5915 = vmul.f32 %v5847, %v5906
      %v5916 = vmul.f32 %v5848, %v5906
      %v5917 = vmul.f32 %v5849, %v5906
      %v5918 = vmul.f32 %v5850, %v5906
      %v5919 = vmul.f32 %v5851, %v5906
      %v5920 = vmul.f32 %v5852, %v5906
      %v5921 = vmul.f32 %v5853, %v5906
      %v5922 = vmul.f32 %v5854, %v5906
      %v5923 = vmul.f32 %v5855, %v5906
      %v5924 = vmul.f32 %v5856, %v5906
      %v5925 = vmul.f32 %v5857, %v5906
      %v5926 = vmul.f32 %v5858, %v5906
      %v5927 = vmul.f32 %v5859, %v5906
      %v5928 = vmul.f32 %v5860, %v5906
      %v5929 = vmul.f32 %v5861, %v5906
      %v5930 = vmul.f32 %v5862, %v5906
      %v5931 = vmul.f32 %v5863, %v5906
      %v5932 = vmul.f32 %v5864, %v5906
      %v5933 = vmul.f32 %v5865, %v5906
      %v5934 = vmul.f32 %v5866, %v5906
      %v5935 = vmul.f32 %v5867, %v5906
      %v5936 = vmul.f32 %v5868, %v5906
      %v5937 = vmul.f32 %v5869, %v5906
      %v5938 = vmul.f32 %v5870, %v5906
      %v5939 = vlaneseq
      %v5940 = vshrl.u32 %v5939, 7
      %v5941 = vsub.s32 3, %v5940
      %v5942 = vrot.slane %v245, %v5941
      %v5943 = vadd.f32 %v5907, %v5942
      %v5944 = vadd.f32 %v5908, %v5942
      %v5945 = vadd.f32 %v5909, %v5942
      %v5946 = vadd.f32 %v5910, %v5942
      %v5947 = vadd.f32 %v5911, %v5942
      %v5948 = vadd.f32 %v5912, %v5942
      %v5949 = vadd.f32 %v5913, %v5942
      %v5950 = vadd.f32 %v5914, %v5942
      %v5951 = vadd.f32 %v5915, %v5942
      %v5952 = vadd.f32 %v5916, %v5942
      %v5953 = vadd.f32 %v5917, %v5942
      %v5954 = vadd.f32 %v5918, %v5942
      %v5955 = vadd.f32 %v5919, %v5942
      %v5956 = vadd.f32 %v5920, %v5942
      %v5957 = vadd.f32 %v5921, %v5942
      %v5958 = vadd.f32 %v5922, %v5942
      %v5959 = vadd.f32 %v5923, %v5942
      %v5960 = vadd.f32 %v5924, %v5942
      %v5961 = vadd.f32 %v5925, %v5942
      %v5962 = vadd.f32 %v5926, %v5942
      %v5963 = vadd.f32 %v5927, %v5942
      %v5964 = vadd.f32 %v5928, %v5942
      %v5965 = vadd.f32 %v5929, %v5942
      %v5966 = vadd.f32 %v5930, %v5942
      %v5967 = vadd.f32 %v5931, %v5942
      %v5968 = vadd.f32 %v5932, %v5942
      %v5969 = vadd.f32 %v5933, %v5942
      %v5970 = vadd.f32 %v5934, %v5942
      %v5971 = vadd.f32 %v5935, %v5942
      %v5972 = vadd.f32 %v5936, %v5942
      %v5973 = vadd.f32 %v5937, %v5942
      %v5974 = vadd.f32 %v5938, %v5942
      %v5975 = vadd.f32 %v5943, %v5871
      %v5976 = vadd.f32 %v5944, %v5872
      %v5977 = vadd.f32 %v5945, %v5873
      %v5978 = vadd.f32 %v5946, %v5874
      %v5979 = vadd.f32 %v5947, %v5875
      %v5980 = vadd.f32 %v5948, %v5876
      %v5981 = vadd.f32 %v5949, %v5877
      %v5982 = vadd.f32 %v5950, %v5878
      %v5983 = vadd.f32 %v5951, %v5879
      %v5984 = vadd.f32 %v5952, %v5880
      %v5985 = vadd.f32 %v5953, %v5881
      %v5986 = vadd.f32 %v5954, %v5882
      %v5987 = vadd.f32 %v5955, %v5883
      %v5988 = vadd.f32 %v5956, %v5884
      %v5989 = vadd.f32 %v5957, %v5885
      %v5990 = vadd.f32 %v5958, %v5886
      %v5991 = vadd.f32 %v5959, %v5887
      %v5992 = vadd.f32 %v5960, %v5888
      %v5993 = vadd.f32 %v5961, %v5889
      %v5994 = vadd.f32 %v5962, %v5890
      %v5995 = vadd.f32 %v5963, %v5891
      %v5996 = vadd.f32 %v5964, %v5892
      %v5997 = vadd.f32 %v5965, %v5893
      %v5998 = vadd.f32 %v5966, %v5894
      %v5999 = vadd.f32 %v5967, %v5895
      %v6000 = vadd.f32 %v5968, %v5896
      %v6001 = vadd.f32 %v5969, %v5897
      %v6002 = vadd.f32 %v5970, %v5898
      %v6003 = vadd.f32 %v5971, %v5899
      %v6004 = vadd.f32 %v5972, %v5900
      %v6005 = vadd.f32 %v5973, %v5901
      %v6006 = vadd.f32 %v5974, %v5902
      %6007 = vst [vmem:[%s244] sm:$0xff] %v5975
      %6008 = vst [vmem:[%s244 + $0x8] sm:$0xff] %v5976
      %6009 = vst [vmem:[%s244 + $0x10] sm:$0xff] %v5977
      %6010 = vst [vmem:[%s244 + $0x18] sm:$0xff] %v5978
      %6011 = vst [vmem:[%s244 + $0x20] sm:$0xff] %v5979
      %6012 = vst [vmem:[%s244 + $0x28] sm:$0xff] %v5980
      %6013 = vst [vmem:[%s244 + $0x30] sm:$0xff] %v5981
      %6014 = vst [vmem:[%s244 + $0x38] sm:$0xff] %v5982
      %6015 = vst [vmem:[%s244 + $0x40] sm:$0xff] %v5983
      %6016 = vst [vmem:[%s244 + $0x48] sm:$0xff] %v5984
      %6017 = vst [vmem:[%s244 + $0x50] sm:$0xff] %v5985
      %6018 = vst [vmem:[%s244 + $0x58] sm:$0xff] %v5986
      %6019 = vst [vmem:[%s244 + $0x60] sm:$0xff] %v5987
      %6020 = vst [vmem:[%s244 + $0x68] sm:$0xff] %v5988
      %6021 = vst [vmem:[%s244 + $0x70] sm:$0xff] %v5989
      %6022 = vst [vmem:[%s244 + $0x78] sm:$0xff] %v5990
      %6023 = vst [vmem:[%s244 + $0x80] sm:$0xff] %v5991
      %6024 = vst [vmem:[%s244 + $0x88] sm:$0xff] %v5992
      %6025 = vst [vmem:[%s244 + $0x90] sm:$0xff] %v5993
      %6026 = vst [vmem:[%s244 + $0x98] sm:$0xff] %v5994
      %6027 = vst [vmem:[%s244 + $0xa0] sm:$0xff] %v5995
      %6028 = vst [vmem:[%s244 + $0xa8] sm:$0xff] %v5996
      %6029 = vst [vmem:[%s244 + $0xb0] sm:$0xff] %v5997
      %6030 = vst [vmem:[%s244 + $0xb8] sm:$0xff] %v5998
      %6031 = vst [vmem:[%s244 + $0xc0] sm:$0xff] %v5999
      %6032 = vst [vmem:[%s244 + $0xc8] sm:$0xff] %v6000
      %6033 = vst [vmem:[%s244 + $0xd0] sm:$0xff] %v6001
      %6034 = vst [vmem:[%s244 + $0xd8] sm:$0xff] %v6002
      %6035 = vst [vmem:[%s244 + $0xe0] sm:$0xff] %v6003
      %6036 = vst [vmem:[%s244 + $0xe8] sm:$0xff] %v6004
      %6037 = vst [vmem:[%s244 + $0xf0] sm:$0xff] %v6005
      %6038 = vst [vmem:[%s244 + $0xf8] sm:$0xff] %v6006
      %p6039 = scmp.lt.s32.totalorder %s16, 1
      %s6040 = scalar_select %p6039, %s16, 1
      %s6041 = smul.addr %s6040, 32
      %s6042 = smul.addr %s6041, 8
      %s6043 = scalar_lea.vmem %s5, %s6042
      // Predicated region
      $region41: #{residual_block_forward.1} parent=39 // pred_check
        %p6044 = pneg %p149
      $region42: #{residual_block_forward.1} parent=39 // pred_check_branch
        %6046 = sbr.rel (%p6044) target = $region44
      $region43: #{residual_block_forward.1} parent=39 // pred_region
        _
      $region44: #{residual_block_forward.1} parent=39 // pred_fallthru
        _
    $region40: #{residual_block_forward.1} parent=5 // pred_fallthru
      _
    %p6047 = scmp.le.s32.totalorder 2, %s11
    // Predicated region
    $region45: #{residual_block_forward.1} parent=5 // pred_check
      %p6048 = pneg %p6047
    $region46: #{residual_block_forward.1} parent=5 // pred_check_branch
      %6050 = sbr.rel (%p6048) target = $region48
    $region47: #{residual_block_forward.1} parent=5 // pred_region
      %s6051 = ssub.s32 %s11, 2
      // Predicated region
      $region49: #{residual_block_forward.1} parent=47 // pred_check
        %p6052 = pneg %p155
      $region50: #{residual_block_forward.1} parent=47 // pred_check_branch
        %6054 = sbr.rel (%p6052) target = $region52
      $region51: #{residual_block_forward.1} parent=47 // pred_region
        %p6055 = scmp.lt.s32.totalorder %s17, 1
        %s6056 = scalar_select %p6055, %s17, 1
        %s6057 = smul.addr %s6056, 32
        %s6058 = smul.addr %s6057, 8
        %s6059 = scalar_lea.vmem %s5, %s6058
      $region52: #{residual_block_forward.1} parent=47 // pred_fallthru
        _
    $region48: #{residual_block_forward.1} parent=5 // pred_fallthru
      _
  $region6: #{residual_block_forward.1} parent=0 // loop_footer
    %s15 = sadd.s32 1, %s11
  $region7: #{residual_block_forward.1} parent=0 // loop_footer_branch
    %10 = sbr.rel target = $region3
  $region8: #{residual_block_forward.1} parent=0 // loop_exit
    _

</llo_original>
